<compile_context>
chip_gen: v7x
topology: tpu7x:2x2x1
jax: 0.10.0
libtpu: 0.0.40
codegen_flags: <defaults>
</compile_context>

<pallas_src>
import functools

import jax
import jax.numpy as jnp
from jax import lax
from jax.experimental import pallas as pl
from jax.experimental.pallas import tpu as pltpu

_LANE = 128  # TPU lane width; Cout is padded up to a multiple of this


# ----------------------------- in-kernel helpers -----------------------------

def _silu(x):
  return x * jax.nn.sigmoid(x)


def _group_norm(x2d, group_avg, gamma, beta, eps):
  """GroupNorm over (HW, C) for one sample; statistics kept in f32.

  group_avg is a (C, C) matrix averaging channel statistics within each group,
  so the per-group reduction is one tiny MXU matmul instead of a lane-splitting
  reshape.  mean and E[x^2] are reduced together as a single (2, C) operand,
  and the affine transform is folded into one scale/shift FMA per element.
  NOTE: single-pass E[x^2] - E[x]^2 variance; fine at these magnitudes.
  TODO(synk): centered second pass for strict production parity.
  """
  stats = jnp.concatenate(
      [jnp.mean(x2d, axis=0, keepdims=True),
       jnp.mean(x2d * x2d, axis=0, keepdims=True)], axis=0)          # (2, C)
  g = jnp.dot(stats, group_avg, preferred_element_type=jnp.float32)  # (2, C)
  mean_g = g[0:1, :]
  var_g = g[1:2, :] - mean_g * mean_g                                # biased
  inv = lax.rsqrt(var_g + eps)
  scale = gamma * inv
  shift = beta - mean_g * scale
  return x2d * scale + shift


def _clear_halo(pad_ref, H, W):
  """Zero only the 1-cell halo strips of the padded scratch (not the interior).

  2-wide strips keep the stores aligned to the bf16 sublane packing; the extra
  interior cells they touch are overwritten by the staging store right after.
  """
  Cm = pad_ref.shape[-1]
  zrow = jnp.zeros((2, W + 2, Cm), jnp.bfloat16)
  zcol = jnp.zeros((H + 2, 2, Cm), jnp.bfloat16)
  pad_ref[0:2, :, :] = zrow
  pad_ref[H:H + 2, :, :] = zrow
  pad_ref[:, 0:2, :] = zcol
  pad_ref[:, W:W + 2, :] = zcol


def _conv3x3(h2d, pad_ref, w_ref, bias, H, W):
  """3x3 stride-1 pad-1 conv on a channels-last (HW, C) activation.

  h2d:     (HW, C) f32 activation.
  pad_ref: shared bf16 VMEM scratch (H+2, W+2, Cm) with a zero halo.
  w_ref:   (9*C, Cout_p) bf16 ref, rows ordered k = dy*3+dx, then channel.
  bias:    (1, Cout_p) f32.
  Returns (HW, Cout_p) f32.
  """
  HW = H * W
  C = h2d.shape[-1]
  Cout = w_ref.shape[-1]
  # Single bf16 staging store of the interior (one cast here, none per window).
  pad_ref[1:H + 1, 1:W + 1, :C] = h2d.astype(jnp.bfloat16).reshape(H, W, C)
  windows = [
      pad_ref[dy:dy + H, dx:dx + W, :C].reshape(HW, C)
      for dy in range(3) for dx in range(3)
  ]
  if C < _LANE:
    # Small C: fuse the nine taps on the lane axis -> one K = 9*C MXU matmul.
    patch = jnp.concatenate(windows, axis=-1)                       # (HW, 9C)
    out = jnp.dot(patch, w_ref[...], preferred_element_type=jnp.float32)
  else:
    # Large C: 9-tap accumulation.  Avoids materializing the (HW, 9C) patch
    # (impossible in VMEM at production channel counts) and the lane-axis
    # concat; per-tap K = C >= 128 already fills the MXU contraction dim.
    out = jnp.zeros((HW, Cout), jnp.float32)
    for k, win in enumerate(windows):
      out = out + jnp.dot(win, w_ref[k * C:(k + 1) * C, :],
                          preferred_element_type=jnp.float32)
  return out + bias


# --------------------------------- kernel ------------------------------------

def resnet_block_kernel(x_ref, temb_ref,
                        a_in_ref, a_out_ref,
                        g1_ref, b1_ref, w1_ref, c1b_ref,
                        wt_ref, bt_ref,
                        g2_ref, b2_ref, w2_ref, c2b_ref,
                        ws_ref, bs_ref,
                        out_ref,
                        pad_ref,
                        *, H, W, eps, inv_scale):
  HW = H * W
  Cp = out_ref.shape[-1]

  # Halo cleared once per grid step; the interior stores never touch it, so it
  # stays valid for both convolutions of this step.
  _clear_halo(pad_ref, H, W)

  x_bf = x_ref[0]                                            # (HW, Cin) bf16
  x2d = x_bf.astype(jnp.float32)

  # norm1 -> SiLU -> conv1
  h = _group_norm(x2d, a_in_ref[...], g1_ref[...], b1_ref[...], eps)
  h = _silu(h)
  h = _conv3x3(h, pad_ref, w1_ref, c1b_ref[...], H, W)       # (HW, Cp) f32

  # + time_emb_proj(SiLU(temb)), broadcast over spatial positions
  t = _silu(temb_ref[0].astype(jnp.float32))                 # (1, T)
  t = jnp.dot(t.astype(jnp.bfloat16), wt_ref[...],
              preferred_element_type=jnp.float32) + bt_ref[...]
  h = h + t

  # norm2 -> SiLU -> dropout(p=0, identity) -> conv2
  h = _group_norm(h, a_out_ref[...], g2_ref[...], b2_ref[...], eps)
  h = _silu(h)
  # TODO(synk): dropout with p > 0 not implemented (module default 0.0 / eval).
  h = _conv3x3(h, pad_ref, w2_ref, c2b_ref[...], H, W)       # (HW, Cp) f32

  # conv1x1 shortcut (bf16 operand straight from the input block) + residual.
  sc = jnp.dot(x_bf, ws_ref[...],
               preferred_element_type=jnp.float32) + bs_ref[...]
  out = sc + h
  if inv_scale != 1.0:
    out = out * inv_scale
  out_ref[...] = out.reshape(1, HW, Cp).astype(out_ref.dtype)


# ------------------------- parameter preparation (hoisted) -------------------

def prepare_params(params, groups):
  """One-time conversion of PyTorch-layout weights to the kernel layout.

  Output channels are zero-padded to a multiple of 128 so kernel stores and
  MXU result columns are lane-dense; the dummy channels get zero weights,
  biases, gamma and beta and live in their own group so they never pollute the
  real group statistics.
  """
  Cout, Cin = params["conv1_w"].shape[:2]
  Cp = ((Cout + _LANE - 1) // _LANE) * _LANE

  def pad_cols(a):                         # pad last dim Cout -> Cp with zeros
    return jnp.pad(a, [(0, 0)] * (a.ndim - 1) + [(0, Cp - Cout)])

  def im2col_w(w, pad_in=False):           # OIHW -> (9*Cin, Cp), rows (dy,dx,ci)
    if pad_in:
      w = jnp.pad(w, ((0, 0), (0, Cp - w.shape[1]), (0, 0), (0, 0)))
    w = jnp.pad(w, ((0, Cp - w.shape[0]), (0, 0), (0, 0), (0, 0)))
    return (jnp.transpose(w, (2, 3, 1, 0))
            .reshape(-1, Cp).astype(jnp.bfloat16))

  def group_avg(c_real, c_pad):
    cg = c_real // groups
    cid = jnp.arange(c_pad)
    gid = jnp.where(cid < c_real, cid // cg, groups)   # pads -> isolated group
    same = (gid[:, None] == gid[None, :]).astype(jnp.float32)
    return same / same.sum(axis=0, keepdims=True)

  row = lambda v: v.reshape(1, -1).astype(jnp.float32)
  rowp = lambda v: pad_cols(row(v))
  return dict(
      a_in=group_avg(Cin, Cin), a_out=group_avg(Cout, Cp),
      g1=row(params["norm1_g"]), b1=row(params["norm1_b"]),
      w1=im2col_w(params["conv1_w"]), c1b=rowp(params["conv1_b"]),
      wt=pad_cols(jnp.transpose(params["temb_w"], (1, 0))).astype(jnp.bfloat16),
      bt=rowp(params["temb_b"]),
      g2=rowp(params["norm2_g"]), b2=rowp(params["norm2_b"]),
      w2=im2col_w(params["conv2_w"], pad_in=True), c2b=rowp(params["conv2_b"]),
      ws=pad_cols(jnp.transpose(params["short_w"][:, :, 0, 0],
                                (1, 0))).astype(jnp.bfloat16),
      bs=rowp(params["short_b"]))


# --------------------------------- wrapper -----------------------------------

def _pick_vmem_limit():
  """Generation-aware VMEM budget: ~3/4 of physical, capped at 100 MiB.

  -> ~96 MiB on v5e/v6e (128 MiB physical), ~48 MiB on v7x (64 MiB physical).
  Falls back to a v7x-safe 48 MiB if the hardware query is unavailable.
  """
  try:
    cap = int(pltpu.get_tpu_info().vmem_capacity_bytes)
  except Exception:
    cap = 0
  if cap <= 0:
    cap = 64 * 1024 * 1024
  return min(cap * 3 // 4, 100 * 1024 * 1024)


def resnet_block_2d(x_nchw, temb, prep, *, out_channels, eps=1e-6,
                    output_scale_factor=1.0):
  N, Cin, H, W = x_nchw.shape
  Cp = prep["c1b"].shape[-1]            # lane-padded Cout
  T = temb.shape[-1]
  HW = H * W
  Cm = max(Cin, Cp)                     # channels of the shared conv scratch

  # NCHW -> channels-last (N, HW, C), carried across the boundary in bf16 to
  # halve activation HBM traffic.  TODO(synk): keep the surrounding graph
  # channels-last so these HBM round-trip transposes disappear entirely.
  x = (jnp.transpose(x_nchw, (0, 2, 3, 1))
       .reshape(N, HW, Cin).astype(jnp.bfloat16))
  temb3 = temb.astype(jnp.float32).reshape(N, 1, T)

  inputs = (x, temb3, prep["a_in"], prep["a_out"],
            prep["g1"], prep["b1"], prep["w1"], prep["c1b"],
            prep["wt"], prep["bt"],
            prep["g2"], prep["b2"], prep["w2"], prep["c2b"],
            prep["ws"], prep["bs"])

  # Whole-array block, constant index (weights / norm tables).
  # TODO(synk): at production weight sizes single-buffer these constant blocks
  # (pl.Buffered(1) or a manual DMA at kernel start); default double-buffering
  # of ~30 MB conv weights alone would overflow v7x's 64 MiB VMEM.
  def const_spec(a):
    nd = a.ndim
    return pl.BlockSpec(a.shape, lambda b, _nd=nd: (0,) * _nd)

  in_specs = [pl.BlockSpec((1, HW, Cin), lambda b: (b, 0, 0)),
              pl.BlockSpec((1, 1, T), lambda b: (b, 0, 0))]
  in_specs += [const_spec(a) for a in inputs[2:]]

  kernel = functools.partial(resnet_block_kernel, H=H, W=W, eps=eps,
                             inv_scale=1.0 / output_scale_factor)
  # TODO(synk): for production DDPM shapes (C>=1280, 64x64) add H-row / Cout
  # tiling as extra grid axes so per-step blocks fit v7x VMEM and each core
  # gets >= 2 steps of pipelining.
  out = pl.pallas_call(
      kernel,
      # Output stays f32 (downstream torch graph is f32); it is already
      # lane-dense thanks to the Cp padding.
      out_shape=jax.ShapeDtypeStruct((N, HW, Cp), jnp.float32),
      grid_spec=pltpu.PrefetchScalarGridSpec(
          num_scalar_prefetch=0,
          grid=(N,),
          in_specs=in_specs,
          out_specs=pl.BlockSpec((1, HW, Cp), lambda b: (b, 0, 0)),
          scratch_shapes=[
              # ONE shared bf16 zero-halo scratch reused by both convolutions
              # (peak VMEM = max of the two, not the sum).
              pltpu.VMEM((H + 2, W + 2, Cm), jnp.bfloat16)]),
      compiler_params=pltpu.CompilerParams(
          dimension_semantics=("parallel",),
          vmem_limit_bytes=_pick_vmem_limit()),
  )(*inputs)
  out = out[:, :, :out_channels]                         # drop lane padding
  return jnp.transpose(out.reshape(N, H, W, out_channels), (0, 3, 1, 2))


# ----------------------------- pure-JAX reference ----------------------------

def ref_forward(x, temb, params, groups, eps, scale):
  def gn(h, g, b, G):
    N, C, H, W = h.shape
    hr = h.reshape(N, G, C // G, H, W)
    m = hr.mean(axis=(2, 3, 4), keepdims=True)
    v = ((hr - m) ** 2).mean(axis=(2, 3, 4), keepdims=True)
    hn = ((hr - m) / jnp.sqrt(v + eps)).reshape(N, C, H, W)
    return hn * g[None, :, None, None] + b[None, :, None, None]

  def conv(h, w, b, pad):
    out = lax.conv_general_dilated(h, w, (1, 1), [(pad, pad), (pad, pad)],
                                   dimension_numbers=("NCHW", "OIHW", "NCHW"))
    return out + b[None, :, None, None]

  h = gn(x, params["norm1_g"], params["norm1_b"], groups)
  h = jax.nn.silu(h)
  h = conv(h, params["conv1_w"], params["conv1_b"], 1)
  t = jax.nn.silu(temb) @ params["temb_w"].T + params["temb_b"]
  h = h + t[:, :, None, None]
  h = gn(h, params["norm2_g"], params["norm2_b"], groups)
  h = jax.nn.silu(h)
  h = conv(h, params["conv2_w"], params["conv2_b"], 1)
  sc = conv(x, params["short_w"], params["short_b"], 0)
  return (sc + h) / scale


# ----------------------------------- main ------------------------------------

if __name__ == "__main__":
  N, Cin, Cout, H, W = 2, 32, 64, 16, 16
  T = 32        # temb_channels
  G = 8         # groups (Cin % G == 0, Cout % G == 0)
  EPS = 1e-6
  SCALE = 1.0

  ks = jax.random.split(jax.random.PRNGKey(0), 14)
  params = {
      "norm1_g": jax.random.normal(ks[0], (Cin,), jnp.float32) * 0.1 + 1.0,
      "norm1_b": jax.random.normal(ks[1], (Cin,), jnp.float32) * 0.1,
      "conv1_w": jax.random.normal(ks[2], (Cout, Cin, 3, 3), jnp.float32) * 0.05,
      "conv1_b": jax.random.normal(ks[3], (Cout,), jnp.float32) * 0.05,
      "temb_w": jax.random.normal(ks[4], (Cout, T), jnp.float32) * 0.05,
      "temb_b": jax.random.normal(ks[5], (Cout,), jnp.float32) * 0.05,
      "norm2_g": jax.random.normal(ks[6], (Cout,), jnp.float32) * 0.1 + 1.0,
      "norm2_b": jax.random.normal(ks[7], (Cout,), jnp.float32) * 0.1,
      "conv2_w": jax.random.normal(ks[8], (Cout, Cout, 3, 3), jnp.float32) * 0.05,
      "conv2_b": jax.random.normal(ks[9], (Cout,), jnp.float32) * 0.05,
      "short_w": jax.random.normal(ks[10], (Cout, Cin, 1, 1), jnp.float32) * 0.05,
      "short_b": jax.random.normal(ks[11], (Cout,), jnp.float32) * 0.05,
  }
  x = jax.random.normal(ks[12], (N, Cin, H, W), jnp.float32)
  temb = jax.random.normal(ks[13], (N, T), jnp.float32)

  prep = prepare_params(params, groups=G)          # hoisted: once per model
  fwd = jax.jit(functools.partial(resnet_block_2d, out_channels=Cout, eps=EPS,
                                  output_scale_factor=SCALE))
  out = jax.block_until_ready(fwd(x, temb, prep))

  ref = jax.block_until_ready(ref_forward(x, temb, params, G, EPS, SCALE))
  assert out.shape == (N, Cout, H, W)
  # bf16 activation input + bf16 MXU operands (f32 accumulation) vs the
  # all-f32 reference -> relaxed tolerance (documented, intentional for DDPM);
  # structural bugs would show errors O(0.5).
  max_err = float(jnp.max(jnp.abs(out - ref)))
  assert jnp.allclose(out, ref, atol=3e-2, rtol=3e-2), max_err
  print("KERNEL_OK")
</pallas_src>

<mosaic_0001>
module attributes {stable_mosaic.version = 11 : i64} {
  func.func @resnet_block_kernel(%arg0: i32, %arg1: memref<1x256x32xbf16, #tpu.memory_space<vmem>>, %arg2: memref<1x1x32xf32, #tpu.memory_space<vmem>>, %arg3: memref<32x32xf32, #tpu.memory_space<vmem>>, %arg4: memref<128x128xf32, #tpu.memory_space<vmem>>, %arg5: memref<1x32xf32, #tpu.memory_space<vmem>>, %arg6: memref<1x32xf32, #tpu.memory_space<vmem>>, %arg7: memref<288x128xbf16, #tpu.memory_space<vmem>>, %arg8: memref<1x128xf32, #tpu.memory_space<vmem>>, %arg9: memref<32x128xbf16, #tpu.memory_space<vmem>>, %arg10: memref<1x128xf32, #tpu.memory_space<vmem>>, %arg11: memref<1x128xf32, #tpu.memory_space<vmem>>, %arg12: memref<1x128xf32, #tpu.memory_space<vmem>>, %arg13: memref<1152x128xbf16, #tpu.memory_space<vmem>>, %arg14: memref<1x128xf32, #tpu.memory_space<vmem>>, %arg15: memref<32x128xbf16, #tpu.memory_space<vmem>>, %arg16: memref<1x128xf32, #tpu.memory_space<vmem>>, %arg17: memref<1x256x128xf32, #tpu.memory_space<vmem>>, %arg18: memref<18x18x128xbf16, #tpu.memory_space<vmem>>) attributes {dimension_semantics = [#tpu.dimension_semantics<parallel>], iteration_bounds = array<i64: 2>, scalar_prefetch = 0 : i64, scratch_operands = 1 : i64, tpu.core_type = #tpu.core_type<tc>, window_params = [{transform_indices = @transform_0, window_bounds = array<i64: 1, 256, 32>}, {transform_indices = @transform_1, window_bounds = array<i64: 1, 1, 32>}, {pipeline_mode = #tpu.pipeline_mode<synchronous>, transform_indices = @transform_2, window_bounds = array<i64: 32, 32>}, {pipeline_mode = #tpu.pipeline_mode<synchronous>, transform_indices = @transform_3, window_bounds = array<i64: 128, 128>}, {pipeline_mode = #tpu.pipeline_mode<synchronous>, transform_indices = @transform_4, window_bounds = array<i64: 1, 32>}, {pipeline_mode = #tpu.pipeline_mode<synchronous>, transform_indices = @transform_5, window_bounds = array<i64: 1, 32>}, {pipeline_mode = #tpu.pipeline_mode<synchronous>, transform_indices = @transform_6, window_bounds = array<i64: 288, 128>}, {pipeline_mode = #tpu.pipeline_mode<synchronous>, transform_indices = @transform_7, window_bounds = array<i64: 1, 128>}, {pipeline_mode = #tpu.pipeline_mode<synchronous>, transform_indices = @transform_8, window_bounds = array<i64: 32, 128>}, {pipeline_mode = #tpu.pipeline_mode<synchronous>, transform_indices = @transform_9, window_bounds = array<i64: 1, 128>}, {pipeline_mode = #tpu.pipeline_mode<synchronous>, transform_indices = @transform_10, window_bounds = array<i64: 1, 128>}, {pipeline_mode = #tpu.pipeline_mode<synchronous>, transform_indices = @transform_11, window_bounds = array<i64: 1, 128>}, {pipeline_mode = #tpu.pipeline_mode<synchronous>, transform_indices = @transform_12, window_bounds = array<i64: 1152, 128>}, {pipeline_mode = #tpu.pipeline_mode<synchronous>, transform_indices = @transform_13, window_bounds = array<i64: 1, 128>}, {pipeline_mode = #tpu.pipeline_mode<synchronous>, transform_indices = @transform_14, window_bounds = array<i64: 32, 128>}, {pipeline_mode = #tpu.pipeline_mode<synchronous>, transform_indices = @transform_15, window_bounds = array<i64: 1, 128>}, {transform_indices = @transform_16, window_bounds = array<i64: 1, 256, 128>}]} {
    %cst = arith.constant 0.000000e+00 : bf16
    %0 = vector.broadcast %cst : bf16 to vector<2x18x128xbf16>
    %cst_0 = arith.constant 0.000000e+00 : bf16
    %1 = vector.broadcast %cst_0 : bf16 to vector<18x2x128xbf16>
    %c0 = arith.constant 0 : index
    %c0_1 = arith.constant 0 : index
    %c0_2 = arith.constant 0 : index
    %2 = vector.load %arg18[%c0, %c0_1, %c0_2] : memref<18x18x128xbf16, #tpu.memory_space<vmem>>, vector<2x18x128xbf16>
    tpu.vector_store %arg18[%c0, %c0_1, %c0_2], %0 {strides = array<i32>} : memref<18x18x128xbf16, #tpu.memory_space<vmem>>, vector<2x18x128xbf16>,
    %c16 = arith.constant 16 : index
    %c0_3 = arith.constant 0 : index
    %c0_4 = arith.constant 0 : index
    %3 = vector.load %arg18[%c16, %c0_3, %c0_4] : memref<18x18x128xbf16, #tpu.memory_space<vmem>>, vector<2x18x128xbf16>
    tpu.vector_store %arg18[%c16, %c0_3, %c0_4], %0 {strides = array<i32>} : memref<18x18x128xbf16, #tpu.memory_space<vmem>>, vector<2x18x128xbf16>,
    %c0_5 = arith.constant 0 : index
    %c0_6 = arith.constant 0 : index
    %c0_7 = arith.constant 0 : index
    %4 = vector.load %arg18[%c0_5, %c0_6, %c0_7] : memref<18x18x128xbf16, #tpu.memory_space<vmem>>, vector<18x2x128xbf16>
    tpu.vector_store %arg18[%c0_5, %c0_6, %c0_7], %1 {strides = array<i32>} : memref<18x18x128xbf16, #tpu.memory_space<vmem>>, vector<18x2x128xbf16>,
    %c0_8 = arith.constant 0 : index
    %c16_9 = arith.constant 16 : index
    %c0_10 = arith.constant 0 : index
    %5 = vector.load %arg18[%c0_8, %c16_9, %c0_10] : memref<18x18x128xbf16, #tpu.memory_space<vmem>>, vector<18x2x128xbf16>
    tpu.vector_store %arg18[%c0_8, %c16_9, %c0_10], %1 {strides = array<i32>} : memref<18x18x128xbf16, #tpu.memory_space<vmem>>, vector<18x2x128xbf16>,
    %c0_11 = arith.constant 0 : index
    %c0_12 = arith.constant 0 : index
    %c0_13 = arith.constant 0 : index
    %6 = vector.load %arg1[%c0_11, %c0_12, %c0_13] : memref<1x256x32xbf16, #tpu.memory_space<vmem>>, vector<1x256x32xbf16>
    %7 = vector.shape_cast %6 : vector<1x256x32xbf16> to vector<256x32xbf16>
    %8 = arith.extf %7 : vector<256x32xbf16> to vector<256x32xf32>
    %c0_14 = arith.constant 0 : index
    %c0_15 = arith.constant 0 : index
    %9 = vector.load %arg3[%c0_14, %c0_15] : memref<32x32xf32, #tpu.memory_space<vmem>>, vector<32x32xf32>
    %c0_16 = arith.constant 0 : index
    %c0_17 = arith.constant 0 : index
    %10 = vector.load %arg5[%c0_16, %c0_17] : memref<1x32xf32, #tpu.memory_space<vmem>>, vector<1x32xf32>
    %c0_18 = arith.constant 0 : index
    %c0_19 = arith.constant 0 : index
    %11 = vector.load %arg6[%c0_18, %c0_19] : memref<1x32xf32, #tpu.memory_space<vmem>>, vector<1x32xf32>
    %cst_20 = arith.constant dense<0.000000e+00> : vector<32xf32>
    %12 = vector.multi_reduction <add>, %8, %cst_20 [0] : vector<256x32xf32> to vector<32xf32>
    %13 = vector.shape_cast %12 : vector<32xf32> to vector<1x32xf32>
    %cst_21 = arith.constant 2.560000e+02 : f32
    %14 = vector.broadcast %cst_21 : f32 to vector<1x32xf32>
    %15 = arith.divf %13, %14 : vector<1x32xf32>
    %16 = arith.mulf %8, %8 : vector<256x32xf32>
    %cst_22 = arith.constant dense<0.000000e+00> : vector<32xf32>
    %17 = vector.multi_reduction <add>, %16, %cst_22 [0] : vector<256x32xf32> to vector<32xf32>
    %18 = vector.shape_cast %17 : vector<32xf32> to vector<1x32xf32>
    %cst_23 = arith.constant 2.560000e+02 : f32
    %19 = vector.broadcast %cst_23 : f32 to vector<1x32xf32>
    %20 = arith.divf %18, %19 : vector<1x32xf32>
    %21 = tpu.concatenate %15, %20 in 0 : vector<1x32xf32>, vector<1x32xf32> -> vector<2x32xf32>
    %cst_24 = arith.constant dense<0.000000e+00> : vector<2x32xf32>
    %22 = tpu.matmul %21, %9, %cst_24 {dimension_numbers = #tpu.dot_dimension_numbers<[1], [0], [0], [1], [0, 0, 1, 1], [], []>} : vector<2x32xf32>, vector<32x32xf32>, vector<2x32xf32> -> vector<2x32xf32>
    %23 = vector.extract_strided_slice %22 {offsets = [0, 0], sizes = [1, 32], strides = [1, 1]} : vector<2x32xf32> to vector<1x32xf32>
    %24 = vector.extract_strided_slice %22 {offsets = [1, 0], sizes = [1, 32], strides = [1, 1]} : vector<2x32xf32> to vector<1x32xf32>
    %25 = arith.mulf %23, %23 : vector<1x32xf32>
    %26 = arith.subf %24, %25 : vector<1x32xf32>
    %cst_25 = arith.constant 9.99999997E-7 : f32
    %27 = vector.broadcast %cst_25 : f32 to vector<1x32xf32>
    %28 = arith.addf %26, %27 : vector<1x32xf32>
    %29 = math.rsqrt %28 : vector<1x32xf32>
    %30 = arith.mulf %10, %29 : vector<1x32xf32>
    %31 = arith.mulf %23, %30 : vector<1x32xf32>
    %32 = arith.subf %11, %31 : vector<1x32xf32>
    %33 = vector.broadcast %30 : vector<1x32xf32> to vector<256x32xf32>
    %34 = arith.mulf %8, %33 : vector<256x32xf32>
    %35 = vector.broadcast %32 : vector<1x32xf32> to vector<256x32xf32>
    %36 = arith.addf %34, %35 : vector<256x32xf32>
    %37 = arith.negf %36 : vector<256x32xf32>
    %38 = math.exp %37 : vector<256x32xf32>
    %cst_26 = arith.constant 1.000000e+00 : f32
    %39 = vector.broadcast %cst_26 : f32 to vector<256x32xf32>
    %40 = arith.addf %39, %38 : vector<256x32xf32>
    %41 = arith.divf %39, %40 : vector<256x32xf32>
    %42 = arith.mulf %36, %41 : vector<256x32xf32>
    %c0_27 = arith.constant 0 : index
    %c0_28 = arith.constant 0 : index
    %43 = vector.load %arg8[%c0_27, %c0_28] : memref<1x128xf32, #tpu.memory_space<vmem>>, vector<1x128xf32>
    %44 = arith.truncf %42 : vector<256x32xf32> to vector<256x32xbf16>
    %45 = vector.shape_cast %44 : vector<256x32xbf16> to vector<16x16x32xbf16>
    %c1 = arith.constant 1 : index
    %c1_29 = arith.constant 1 : index
    %c0_30 = arith.constant 0 : index
    %46 = vector.load %arg18[%c1, %c1_29, %c0_30] : memref<18x18x128xbf16, #tpu.memory_space<vmem>>, vector<16x16x32xbf16>
    tpu.vector_store %arg18[%c1, %c1_29, %c0_30], %45 {strides = array<i32>} : memref<18x18x128xbf16, #tpu.memory_space<vmem>>, vector<16x16x32xbf16>,
    %c0_31 = arith.constant 0 : index
    %c0_32 = arith.constant 0 : index
    %c0_33 = arith.constant 0 : index
    %47 = vector.load %arg18[%c0_31, %c0_32, %c0_33] : memref<18x18x128xbf16, #tpu.memory_space<vmem>>, vector<16x16x32xbf16>
    %48 = vector.shape_cast %47 : vector<16x16x32xbf16> to vector<256x32xbf16>
    %c0_34 = arith.constant 0 : index
    %c1_35 = arith.constant 1 : index
    %c0_36 = arith.constant 0 : index
    %49 = vector.load %arg18[%c0_34, %c1_35, %c0_36] : memref<18x18x128xbf16, #tpu.memory_space<vmem>>, vector<16x16x32xbf16>
    %50 = vector.shape_cast %49 : vector<16x16x32xbf16> to vector<256x32xbf16>
    %c0_37 = arith.constant 0 : index
    %c2 = arith.constant 2 : index
    %c0_38 = arith.constant 0 : index
    %51 = vector.load %arg18[%c0_37, %c2, %c0_38] : memref<18x18x128xbf16, #tpu.memory_space<vmem>>, vector<16x16x32xbf16>
    %52 = vector.shape_cast %51 : vector<16x16x32xbf16> to vector<256x32xbf16>
    %c1_39 = arith.constant 1 : index
    %c0_40 = arith.constant 0 : index
    %c0_41 = arith.constant 0 : index
    %53 = vector.load %arg18[%c1_39, %c0_40, %c0_41] : memref<18x18x128xbf16, #tpu.memory_space<vmem>>, vector<16x16x32xbf16>
    %54 = vector.shape_cast %53 : vector<16x16x32xbf16> to vector<256x32xbf16>
    %c1_42 = arith.constant 1 : index
    %c1_43 = arith.constant 1 : index
    %c0_44 = arith.constant 0 : index
    %55 = vector.load %arg18[%c1_42, %c1_43, %c0_44] : memref<18x18x128xbf16, #tpu.memory_space<vmem>>, vector<16x16x32xbf16>
    %56 = vector.shape_cast %55 : vector<16x16x32xbf16> to vector<256x32xbf16>
    %c1_45 = arith.constant 1 : index
    %c2_46 = arith.constant 2 : index
    %c0_47 = arith.constant 0 : index
    %57 = vector.load %arg18[%c1_45, %c2_46, %c0_47] : memref<18x18x128xbf16, #tpu.memory_space<vmem>>, vector<16x16x32xbf16>
    %58 = vector.shape_cast %57 : vector<16x16x32xbf16> to vector<256x32xbf16>
    %c2_48 = arith.constant 2 : index
    %c0_49 = arith.constant 0 : index
    %c0_50 = arith.constant 0 : index
    %59 = vector.load %arg18[%c2_48, %c0_49, %c0_50] : memref<18x18x128xbf16, #tpu.memory_space<vmem>>, vector<16x16x32xbf16>
    %60 = vector.shape_cast %59 : vector<16x16x32xbf16> to vector<256x32xbf16>
    %c2_51 = arith.constant 2 : index
    %c1_52 = arith.constant 1 : index
    %c0_53 = arith.constant 0 : index
    %61 = vector.load %arg18[%c2_51, %c1_52, %c0_53] : memref<18x18x128xbf16, #tpu.memory_space<vmem>>, vector<16x16x32xbf16>
    %62 = vector.shape_cast %61 : vector<16x16x32xbf16> to vector<256x32xbf16>
    %c2_54 = arith.constant 2 : index
    %c2_55 = arith.constant 2 : index
    %c0_56 = arith.constant 0 : index
    %63 = vector.load %arg18[%c2_54, %c2_55, %c0_56] : memref<18x18x128xbf16, #tpu.memory_space<vmem>>, vector<16x16x32xbf16>
    %64 = vector.shape_cast %63 : vector<16x16x32xbf16> to vector<256x32xbf16>
    %65 = tpu.concatenate %48, %50, %52, %54, %56, %58, %60, %62, %64 in 1 : vector<256x32xbf16>, vector<256x32xbf16>, vector<256x32xbf16>, vector<256x32xbf16>, vector<256x32xbf16>, vector<256x32xbf16>, vector<256x32xbf16>, vector<256x32xbf16>, vector<256x32xbf16> -> vector<256x288xbf16>
    %c0_57 = arith.constant 0 : index
    %c0_58 = arith.constant 0 : index
    %66 = vector.load %arg7[%c0_57, %c0_58] : memref<288x128xbf16, #tpu.memory_space<vmem>>, vector<288x128xbf16>
    %cst_59 = arith.constant dense<0.000000e+00> : vector<256x128xf32>
    %67 = tpu.matmul %65, %66, %cst_59 {dimension_numbers = #tpu.dot_dimension_numbers<[1], [0], [0], [1], [0, 0, 1, 1], [], []>} : vector<256x288xbf16>, vector<288x128xbf16>, vector<256x128xf32> -> vector<256x128xf32>
    %68 = vector.broadcast %43 : vector<1x128xf32> to vector<256x128xf32>
    %69 = arith.addf %67, %68 : vector<256x128xf32>
    %c0_60 = arith.constant 0 : index
    %c0_61 = arith.constant 0 : index
    %c0_62 = arith.constant 0 : index
    %70 = vector.load %arg2[%c0_60, %c0_61, %c0_62] : memref<1x1x32xf32, #tpu.memory_space<vmem>>, vector<1x1x32xf32>
    %71 = vector.shape_cast %70 : vector<1x1x32xf32> to vector<1x32xf32>
    %72 = arith.negf %71 : vector<1x32xf32>
    %73 = math.exp %72 : vector<1x32xf32>
    %cst_63 = arith.constant 1.000000e+00 : f32
    %74 = vector.broadcast %cst_63 : f32 to vector<1x32xf32>
    %75 = arith.addf %74, %73 : vector<1x32xf32>
    %76 = arith.divf %74, %75 : vector<1x32xf32>
    %77 = arith.mulf %71, %76 : vector<1x32xf32>
    %78 = arith.truncf %77 : vector<1x32xf32> to vector<1x32xbf16>
    %c0_64 = arith.constant 0 : index
    %c0_65 = arith.constant 0 : index
    %79 = vector.load %arg9[%c0_64, %c0_65] : memref<32x128xbf16, #tpu.memory_space<vmem>>, vector<32x128xbf16>
    %cst_66 = arith.constant dense<0.000000e+00> : vector<1x128xf32>
    %80 = tpu.matmul %78, %79, %cst_66 {dimension_numbers = #tpu.dot_dimension_numbers<[1], [0], [0], [1], [0, 0, 1, 1], [], []>} : vector<1x32xbf16>, vector<32x128xbf16>, vector<1x128xf32> -> vector<1x128xf32>
    %c0_67 = arith.constant 0 : index
    %c0_68 = arith.constant 0 : index
    %81 = vector.load %arg10[%c0_67, %c0_68] : memref<1x128xf32, #tpu.memory_space<vmem>>, vector<1x128xf32>
    %82 = arith.addf %80, %81 : vector<1x128xf32>
    %83 = vector.broadcast %82 : vector<1x128xf32> to vector<256x128xf32>
    %84 = arith.addf %69, %83 : vector<256x128xf32>
    %c0_69 = arith.constant 0 : index
    %c0_70 = arith.constant 0 : index
    %85 = vector.load %arg4[%c0_69, %c0_70] : memref<128x128xf32, #tpu.memory_space<vmem>>, vector<128x128xf32>
    %c0_71 = arith.constant 0 : index
    %c0_72 = arith.constant 0 : index
    %86 = vector.load %arg11[%c0_71, %c0_72] : memref<1x128xf32, #tpu.memory_space<vmem>>, vector<1x128xf32>
    %c0_73 = arith.constant 0 : index
    %c0_74 = arith.constant 0 : index
    %87 = vector.load %arg12[%c0_73, %c0_74] : memref<1x128xf32, #tpu.memory_space<vmem>>, vector<1x128xf32>
    %cst_75 = arith.constant dense<0.000000e+00> : vector<128xf32>
    %88 = vector.multi_reduction <add>, %84, %cst_75 [0] : vector<256x128xf32> to vector<128xf32>
    %89 = vector.shape_cast %88 : vector<128xf32> to vector<1x128xf32>
    %cst_76 = arith.constant 2.560000e+02 : f32
    %90 = vector.broadcast %cst_76 : f32 to vector<1x128xf32>
    %91 = arith.divf %89, %90 : vector<1x128xf32>
    %92 = arith.mulf %84, %84 : vector<256x128xf32>
    %cst_77 = arith.constant dense<0.000000e+00> : vector<128xf32>
    %93 = vector.multi_reduction <add>, %92, %cst_77 [0] : vector<256x128xf32> to vector<128xf32>
    %94 = vector.shape_cast %93 : vector<128xf32> to vector<1x128xf32>
    %cst_78 = arith.constant 2.560000e+02 : f32
    %95 = vector.broadcast %cst_78 : f32 to vector<1x128xf32>
    %96 = arith.divf %94, %95 : vector<1x128xf32>
    %97 = tpu.concatenate %91, %96 in 0 : vector<1x128xf32>, vector<1x128xf32> -> vector<2x128xf32>
    %cst_79 = arith.constant dense<0.000000e+00> : vector<2x128xf32>
    %98 = tpu.matmul %97, %85, %cst_79 {dimension_numbers = #tpu.dot_dimension_numbers<[1], [0], [0], [1], [0, 0, 1, 1], [], []>} : vector<2x128xf32>, vector<128x128xf32>, vector<2x128xf32> -> vector<2x128xf32>
    %99 = vector.extract_strided_slice %98 {offsets = [0, 0], sizes = [1, 128], strides = [1, 1]} : vector<2x128xf32> to vector<1x128xf32>
    %100 = vector.extract_strided_slice %98 {offsets = [1, 0], sizes = [1, 128], strides = [1, 1]} : vector<2x128xf32> to vector<1x128xf32>
    %101 = arith.mulf %99, %99 : vector<1x128xf32>
    %102 = arith.subf %100, %101 : vector<1x128xf32>
    %cst_80 = arith.constant 9.99999997E-7 : f32
    %103 = vector.broadcast %cst_80 : f32 to vector<1x128xf32>
    %104 = arith.addf %102, %103 : vector<1x128xf32>
    %105 = math.rsqrt %104 : vector<1x128xf32>
    %106 = arith.mulf %86, %105 : vector<1x128xf32>
    %107 = arith.mulf %99, %106 : vector<1x128xf32>
    %108 = arith.subf %87, %107 : vector<1x128xf32>
    %109 = vector.broadcast %106 : vector<1x128xf32> to vector<256x128xf32>
    %110 = arith.mulf %84, %109 : vector<256x128xf32>
    %111 = vector.broadcast %108 : vector<1x128xf32> to vector<256x128xf32>
    %112 = arith.addf %110, %111 : vector<256x128xf32>
    %113 = arith.negf %112 : vector<256x128xf32>
    %114 = math.exp %113 : vector<256x128xf32>
    %cst_81 = arith.constant 1.000000e+00 : f32
    %115 = vector.broadcast %cst_81 : f32 to vector<256x128xf32>
    %116 = arith.addf %115, %114 : vector<256x128xf32>
    %117 = arith.divf %115, %116 : vector<256x128xf32>
    %118 = arith.mulf %112, %117 : vector<256x128xf32>
    %c0_82 = arith.constant 0 : index
    %c0_83 = arith.constant 0 : index
    %119 = vector.load %arg14[%c0_82, %c0_83] : memref<1x128xf32, #tpu.memory_space<vmem>>, vector<1x128xf32>
    %120 = arith.truncf %118 : vector<256x128xf32> to vector<256x128xbf16>
    %121 = vector.shape_cast %120 : vector<256x128xbf16> to vector<16x16x128xbf16>
    %c1_84 = arith.constant 1 : index
    %c1_85 = arith.constant 1 : index
    %c0_86 = arith.constant 0 : index
    %122 = vector.load %arg18[%c1_84, %c1_85, %c0_86] : memref<18x18x128xbf16, #tpu.memory_space<vmem>>, vector<16x16x128xbf16>
    tpu.vector_store %arg18[%c1_84, %c1_85, %c0_86], %121 {strides = array<i32>} : memref<18x18x128xbf16, #tpu.memory_space<vmem>>, vector<16x16x128xbf16>,
    %c0_87 = arith.constant 0 : index
    %c0_88 = arith.constant 0 : index
    %c0_89 = arith.constant 0 : index
    %123 = vector.load %arg18[%c0_87, %c0_88, %c0_89] : memref<18x18x128xbf16, #tpu.memory_space<vmem>>, vector<16x16x128xbf16>
    %124 = vector.shape_cast %123 : vector<16x16x128xbf16> to vector<256x128xbf16>
    %c0_90 = arith.constant 0 : index
    %c1_91 = arith.constant 1 : index
    %c0_92 = arith.constant 0 : index
    %125 = vector.load %arg18[%c0_90, %c1_91, %c0_92] : memref<18x18x128xbf16, #tpu.memory_space<vmem>>, vector<16x16x128xbf16>
    %126 = vector.shape_cast %125 : vector<16x16x128xbf16> to vector<256x128xbf16>
    %c0_93 = arith.constant 0 : index
    %c2_94 = arith.constant 2 : index
    %c0_95 = arith.constant 0 : index
    %127 = vector.load %arg18[%c0_93, %c2_94, %c0_95] : memref<18x18x128xbf16, #tpu.memory_space<vmem>>, vector<16x16x128xbf16>
    %128 = vector.shape_cast %127 : vector<16x16x128xbf16> to vector<256x128xbf16>
    %c1_96 = arith.constant 1 : index
    %c0_97 = arith.constant 0 : index
    %c0_98 = arith.constant 0 : index
    %129 = vector.load %arg18[%c1_96, %c0_97, %c0_98] : memref<18x18x128xbf16, #tpu.memory_space<vmem>>, vector<16x16x128xbf16>
    %130 = vector.shape_cast %129 : vector<16x16x128xbf16> to vector<256x128xbf16>
    %c1_99 = arith.constant 1 : index
    %c1_100 = arith.constant 1 : index
    %c0_101 = arith.constant 0 : index
    %131 = vector.load %arg18[%c1_99, %c1_100, %c0_101] : memref<18x18x128xbf16, #tpu.memory_space<vmem>>, vector<16x16x128xbf16>
    %132 = vector.shape_cast %131 : vector<16x16x128xbf16> to vector<256x128xbf16>
    %c1_102 = arith.constant 1 : index
    %c2_103 = arith.constant 2 : index
    %c0_104 = arith.constant 0 : index
    %133 = vector.load %arg18[%c1_102, %c2_103, %c0_104] : memref<18x18x128xbf16, #tpu.memory_space<vmem>>, vector<16x16x128xbf16>
    %134 = vector.shape_cast %133 : vector<16x16x128xbf16> to vector<256x128xbf16>
    %c2_105 = arith.constant 2 : index
    %c0_106 = arith.constant 0 : index
    %c0_107 = arith.constant 0 : index
    %135 = vector.load %arg18[%c2_105, %c0_106, %c0_107] : memref<18x18x128xbf16, #tpu.memory_space<vmem>>, vector<16x16x128xbf16>
    %136 = vector.shape_cast %135 : vector<16x16x128xbf16> to vector<256x128xbf16>
    %c2_108 = arith.constant 2 : index
    %c1_109 = arith.constant 1 : index
    %c0_110 = arith.constant 0 : index
    %137 = vector.load %arg18[%c2_108, %c1_109, %c0_110] : memref<18x18x128xbf16, #tpu.memory_space<vmem>>, vector<16x16x128xbf16>
    %138 = vector.shape_cast %137 : vector<16x16x128xbf16> to vector<256x128xbf16>
    %c2_111 = arith.constant 2 : index
    %c2_112 = arith.constant 2 : index
    %c0_113 = arith.constant 0 : index
    %139 = vector.load %arg18[%c2_111, %c2_112, %c0_113] : memref<18x18x128xbf16, #tpu.memory_space<vmem>>, vector<16x16x128xbf16>
    %140 = vector.shape_cast %139 : vector<16x16x128xbf16> to vector<256x128xbf16>
    %cst_114 = arith.constant 0.000000e+00 : f32
    %141 = vector.broadcast %cst_114 : f32 to vector<256x128xf32>
    %c0_115 = arith.constant 0 : index
    %c0_116 = arith.constant 0 : index
    %142 = vector.load %arg13[%c0_115, %c0_116] : memref<1152x128xbf16, #tpu.memory_space<vmem>>, vector<128x128xbf16>
    %cst_117 = arith.constant dense<0.000000e+00> : vector<256x128xf32>
    %143 = tpu.matmul %124, %142, %cst_117 {dimension_numbers = #tpu.dot_dimension_numbers<[1], [0], [0], [1], [0, 0, 1, 1], [], []>} : vector<256x128xbf16>, vector<128x128xbf16>, vector<256x128xf32> -> vector<256x128xf32>
    %144 = arith.addf %141, %143 : vector<256x128xf32>
    %c128 = arith.constant 128 : index
    %c0_118 = arith.constant 0 : index
    %145 = vector.load %arg13[%c128, %c0_118] : memref<1152x128xbf16, #tpu.memory_space<vmem>>, vector<128x128xbf16>
    %cst_119 = arith.constant dense<0.000000e+00> : vector<256x128xf32>
    %146 = tpu.matmul %126, %145, %cst_119 {dimension_numbers = #tpu.dot_dimension_numbers<[1], [0], [0], [1], [0, 0, 1, 1], [], []>} : vector<256x128xbf16>, vector<128x128xbf16>, vector<256x128xf32> -> vector<256x128xf32>
    %147 = arith.addf %144, %146 : vector<256x128xf32>
    %c256 = arith.constant 256 : index
    %c0_120 = arith.constant 0 : index
    %148 = vector.load %arg13[%c256, %c0_120] : memref<1152x128xbf16, #tpu.memory_space<vmem>>, vector<128x128xbf16>
    %cst_121 = arith.constant dense<0.000000e+00> : vector<256x128xf32>
    %149 = tpu.matmul %128, %148, %cst_121 {dimension_numbers = #tpu.dot_dimension_numbers<[1], [0], [0], [1], [0, 0, 1, 1], [], []>} : vector<256x128xbf16>, vector<128x128xbf16>, vector<256x128xf32> -> vector<256x128xf32>
    %150 = arith.addf %147, %149 : vector<256x128xf32>
    %c384 = arith.constant 384 : index
    %c0_122 = arith.constant 0 : index
    %151 = vector.load %arg13[%c384, %c0_122] : memref<1152x128xbf16, #tpu.memory_space<vmem>>, vector<128x128xbf16>
    %cst_123 = arith.constant dense<0.000000e+00> : vector<256x128xf32>
    %152 = tpu.matmul %130, %151, %cst_123 {dimension_numbers = #tpu.dot_dimension_numbers<[1], [0], [0], [1], [0, 0, 1, 1], [], []>} : vector<256x128xbf16>, vector<128x128xbf16>, vector<256x128xf32> -> vector<256x128xf32>
    %153 = arith.addf %150, %152 : vector<256x128xf32>
    %c512 = arith.constant 512 : index
    %c0_124 = arith.constant 0 : index
    %154 = vector.load %arg13[%c512, %c0_124] : memref<1152x128xbf16, #tpu.memory_space<vmem>>, vector<128x128xbf16>
    %cst_125 = arith.constant dense<0.000000e+00> : vector<256x128xf32>
    %155 = tpu.matmul %132, %154, %cst_125 {dimension_numbers = #tpu.dot_dimension_numbers<[1], [0], [0], [1], [0, 0, 1, 1], [], []>} : vector<256x128xbf16>, vector<128x128xbf16>, vector<256x128xf32> -> vector<256x128xf32>
    %156 = arith.addf %153, %155 : vector<256x128xf32>
    %c640 = arith.constant 640 : index
    %c0_126 = arith.constant 0 : index
    %157 = vector.load %arg13[%c640, %c0_126] : memref<1152x128xbf16, #tpu.memory_space<vmem>>, vector<128x128xbf16>
    %cst_127 = arith.constant dense<0.000000e+00> : vector<256x128xf32>
    %158 = tpu.matmul %134, %157, %cst_127 {dimension_numbers = #tpu.dot_dimension_numbers<[1], [0], [0], [1], [0, 0, 1, 1], [], []>} : vector<256x128xbf16>, vector<128x128xbf16>, vector<256x128xf32> -> vector<256x128xf32>
    %159 = arith.addf %156, %158 : vector<256x128xf32>
    %c768 = arith.constant 768 : index
    %c0_128 = arith.constant 0 : index
    %160 = vector.load %arg13[%c768, %c0_128] : memref<1152x128xbf16, #tpu.memory_space<vmem>>, vector<128x128xbf16>
    %cst_129 = arith.constant dense<0.000000e+00> : vector<256x128xf32>
    %161 = tpu.matmul %136, %160, %cst_129 {dimension_numbers = #tpu.dot_dimension_numbers<[1], [0], [0], [1], [0, 0, 1, 1], [], []>} : vector<256x128xbf16>, vector<128x128xbf16>, vector<256x128xf32> -> vector<256x128xf32>
    %162 = arith.addf %159, %161 : vector<256x128xf32>
    %c896 = arith.constant 896 : index
    %c0_130 = arith.constant 0 : index
    %163 = vector.load %arg13[%c896, %c0_130] : memref<1152x128xbf16, #tpu.memory_space<vmem>>, vector<128x128xbf16>
    %cst_131 = arith.constant dense<0.000000e+00> : vector<256x128xf32>
    %164 = tpu.matmul %138, %163, %cst_131 {dimension_numbers = #tpu.dot_dimension_numbers<[1], [0], [0], [1], [0, 0, 1, 1], [], []>} : vector<256x128xbf16>, vector<128x128xbf16>, vector<256x128xf32> -> vector<256x128xf32>
    %165 = arith.addf %162, %164 : vector<256x128xf32>
    %c1024 = arith.constant 1024 : index
    %c0_132 = arith.constant 0 : index
    %166 = vector.load %arg13[%c1024, %c0_132] : memref<1152x128xbf16, #tpu.memory_space<vmem>>, vector<128x128xbf16>
    %cst_133 = arith.constant dense<0.000000e+00> : vector<256x128xf32>
    %167 = tpu.matmul %140, %166, %cst_133 {dimension_numbers = #tpu.dot_dimension_numbers<[1], [0], [0], [1], [0, 0, 1, 1], [], []>} : vector<256x128xbf16>, vector<128x128xbf16>, vector<256x128xf32> -> vector<256x128xf32>
    %168 = arith.addf %165, %167 : vector<256x128xf32>
    %169 = vector.broadcast %119 : vector<1x128xf32> to vector<256x128xf32>
    %170 = arith.addf %168, %169 : vector<256x128xf32>
    %c0_134 = arith.constant 0 : index
    %c0_135 = arith.constant 0 : index
    %171 = vector.load %arg15[%c0_134, %c0_135] : memref<32x128xbf16, #tpu.memory_space<vmem>>, vector<32x128xbf16>
    %cst_136 = arith.constant dense<0.000000e+00> : vector<256x128xf32>
    %172 = tpu.matmul %7, %171, %cst_136 {dimension_numbers = #tpu.dot_dimension_numbers<[1], [0], [0], [1], [0, 0, 1, 1], [], []>} : vector<256x32xbf16>, vector<32x128xbf16>, vector<256x128xf32> -> vector<256x128xf32>
    %c0_137 = arith.constant 0 : index
    %c0_138 = arith.constant 0 : index
    %173 = vector.load %arg16[%c0_137, %c0_138] : memref<1x128xf32, #tpu.memory_space<vmem>>, vector<1x128xf32>
    %174 = vector.broadcast %173 : vector<1x128xf32> to vector<256x128xf32>
    %175 = arith.addf %172, %174 : vector<256x128xf32>
    %176 = arith.addf %175, %170 : vector<256x128xf32>
    %177 = vector.shape_cast %176 : vector<256x128xf32> to vector<1x256x128xf32>
    %c0_139 = arith.constant 0 : index
    %c0_140 = arith.constant 0 : index
    %c0_141 = arith.constant 0 : index
    %178 = vector.load %arg17[%c0_139, %c0_140, %c0_141] : memref<1x256x128xf32, #tpu.memory_space<vmem>>, vector<1x256x128xf32>
    tpu.vector_store %arg17[%c0_139, %c0_140, %c0_141], %177 {strides = array<i32>} : memref<1x256x128xf32, #tpu.memory_space<vmem>>, vector<1x256x128xf32>,
    return
  }
  func.func @transform_0(%arg0: i32) -> (i32, i32, i32) {
    %c0_i32 = arith.constant 0 : i32
    %c0_i32_0 = arith.constant 0 : i32
    %c0_i32_1 = arith.constant 0 : i32
    return %arg0, %c0_i32, %c0_i32_0 : i32, i32, i32
  }
  func.func @transform_1(%arg0: i32) -> (i32, i32, i32) {
    %c0_i32 = arith.constant 0 : i32
    %c0_i32_0 = arith.constant 0 : i32
    %c0_i32_1 = arith.constant 0 : i32
    return %arg0, %c0_i32, %c0_i32_0 : i32, i32, i32
  }
  func.func @transform_2(%arg0: i32) -> (i32, i32) {
    %c0_i32 = arith.constant 0 : i32
    %c0_i32_0 = arith.constant 0 : i32
    %c0_i32_1 = arith.constant 0 : i32
    return %c0_i32, %c0_i32_0 : i32, i32
  }
  func.func @transform_3(%arg0: i32) -> (i32, i32) {
    %c0_i32 = arith.constant 0 : i32
    %c0_i32_0 = arith.constant 0 : i32
    %c0_i32_1 = arith.constant 0 : i32
    return %c0_i32, %c0_i32_0 : i32, i32
  }
  func.func @transform_4(%arg0: i32) -> (i32, i32) {
    %c0_i32 = arith.constant 0 : i32
    %c0_i32_0 = arith.constant 0 : i32
    %c0_i32_1 = arith.constant 0 : i32
    return %c0_i32, %c0_i32_0 : i32, i32
  }
  func.func @transform_5(%arg0: i32) -> (i32, i32) {
    %c0_i32 = arith.constant 0 : i32
    %c0_i32_0 = arith.constant 0 : i32
    %c0_i32_1 = arith.constant 0 : i32
    return %c0_i32, %c0_i32_0 : i32, i32
  }
  func.func @transform_6(%arg0: i32) -> (i32, i32) {
    %c0_i32 = arith.constant 0 : i32
    %c0_i32_0 = arith.constant 0 : i32
    %c0_i32_1 = arith.constant 0 : i32
    return %c0_i32, %c0_i32_0 : i32, i32
  }
  func.func @transform_7(%arg0: i32) -> (i32, i32) {
    %c0_i32 = arith.constant 0 : i32
    %c0_i32_0 = arith.constant 0 : i32
    %c0_i32_1 = arith.constant 0 : i32
    return %c0_i32, %c0_i32_0 : i32, i32
  }
  func.func @transform_8(%arg0: i32) -> (i32, i32) {
    %c0_i32 = arith.constant 0 : i32
    %c0_i32_0 = arith.constant 0 : i32
    %c0_i32_1 = arith.constant 0 : i32
    return %c0_i32, %c0_i32_0 : i32, i32
  }
  func.func @transform_9(%arg0: i32) -> (i32, i32) {
    %c0_i32 = arith.constant 0 : i32
    %c0_i32_0 = arith.constant 0 : i32
    %c0_i32_1 = arith.constant 0 : i32
    return %c0_i32, %c0_i32_0 : i32, i32
  }
  func.func @transform_10(%arg0: i32) -> (i32, i32) {
    %c0_i32 = arith.constant 0 : i32
    %c0_i32_0 = arith.constant 0 : i32
    %c0_i32_1 = arith.constant 0 : i32
    return %c0_i32, %c0_i32_0 : i32, i32
  }
  func.func @transform_11(%arg0: i32) -> (i32, i32) {
    %c0_i32 = arith.constant 0 : i32
    %c0_i32_0 = arith.constant 0 : i32
    %c0_i32_1 = arith.constant 0 : i32
    return %c0_i32, %c0_i32_0 : i32, i32
  }
  func.func @transform_12(%arg0: i32) -> (i32, i32) {
    %c0_i32 = arith.constant 0 : i32
    %c0_i32_0 = arith.constant 0 : i32
    %c0_i32_1 = arith.constant 0 : i32
    return %c0_i32, %c0_i32_0 : i32, i32
  }
  func.func @transform_13(%arg0: i32) -> (i32, i32) {
    %c0_i32 = arith.constant 0 : i32
    %c0_i32_0 = arith.constant 0 : i32
    %c0_i32_1 = arith.constant 0 : i32
    return %c0_i32, %c0_i32_0 : i32, i32
  }
  func.func @transform_14(%arg0: i32) -> (i32, i32) {
    %c0_i32 = arith.constant 0 : i32
    %c0_i32_0 = arith.constant 0 : i32
    %c0_i32_1 = arith.constant 0 : i32
    return %c0_i32, %c0_i32_0 : i32, i32
  }
  func.func @transform_15(%arg0: i32) -> (i32, i32) {
    %c0_i32 = arith.constant 0 : i32
    %c0_i32_0 = arith.constant 0 : i32
    %c0_i32_1 = arith.constant 0 : i32
    return %c0_i32, %c0_i32_0 : i32, i32
  }
  func.func @transform_16(%arg0: i32) -> (i32, i32, i32) {
    %c0_i32 = arith.constant 0 : i32
    %c0_i32_0 = arith.constant 0 : i32
    %c0_i32_1 = arith.constant 0 : i32
    return %arg0, %c0_i32, %c0_i32_0 : i32, i32, i32
  }
}

</mosaic_0001>

<llo_original>
// kernel: resnet_block_2d.1
$region0: #{resnet_block_2d.1}
  #allocation0 [shape = 'u32[]', space=smem, size = 0x4, offset = 0x4, fixed_abs, tag = 'smem constant byte address 0x4 - core index']
  #allocation1 [shape = 'u32[144,128]{1,0:T(1,128)}', space=vmem, size = 0x12000, scoped, tag = 'internal scratch']
  #allocation2 [shape = 'bf16[18,18,128]{2,1,0:T(8,128)(2,1)}', space=vmem, size = 0x1b000, scoped, tag = 'scratch operand']
  %s0 = inlined_call_operand.vmem [shape: bf16[2,256,32], index: 0, kind: input, shape index: {}]
  %s1 = inlined_call_operand.vmem [shape: f32[2,1,32], index: 1, kind: input, shape index: {}]
  %s2 = inlined_call_operand.vmem [shape: f32[32,32], index: 2, kind: input, shape index: {}]
  %s3 = inlined_call_operand.hbm [shape: f32[128,128], index: 3, kind: input, shape index: {}]
  %s4 = inlined_call_operand.vmem [shape: f32[1,32], index: 4, kind: input, shape index: {}]
  %s5 = inlined_call_operand.vmem [shape: f32[1,32], index: 5, kind: input, shape index: {}]
  %s6 = inlined_call_operand.vmem [shape: bf16[288,128], index: 6, kind: input, shape index: {}]
  %s7 = inlined_call_operand.vmem [shape: f32[1,128], index: 7, kind: input, shape index: {}]
  %s8 = inlined_call_operand.vmem [shape: bf16[32,128], index: 8, kind: input, shape index: {}]
  %s9 = inlined_call_operand.vmem [shape: f32[1,128], index: 9, kind: input, shape index: {}]
  %s10 = inlined_call_operand.vmem [shape: f32[1,128], index: 10, kind: input, shape index: {}]
  %s11 = inlined_call_operand.vmem [shape: f32[1,128], index: 11, kind: input, shape index: {}]
  %s12 = inlined_call_operand.vmem [shape: bf16[1152,128], index: 12, kind: input, shape index: {}]
  %s13 = inlined_call_operand.vmem [shape: f32[1,128], index: 13, kind: input, shape index: {}]
  %s14 = inlined_call_operand.vmem [shape: bf16[32,128], index: 14, kind: input, shape index: {}]
  %s15 = inlined_call_operand.vmem [shape: f32[1,128], index: 15, kind: input, shape index: {}]
  %s16 = inlined_call_operand.hbm [shape: f32[2,256,128], index: 16, kind: output, shape index: {}]
  %s17 = sld [smem:[#allocation0]]
  $region101: #{resnet_block_2d.1} parent=0
    _
  %s19 = ssub.s32 1, %s17
  %s20 = scalar_select 0, %s19, %s17
  $region1: #{resnet_block_2d.1} parent=0
    #allocation3 [shape = 'u8[65536]{0}', space=vmem, size = 0x10000, scoped, tag = 'input window, operand 3, single buffered']
    #allocation4 [shape = 's32[2]{0}', space=sflag, size = 0x8, scoped, tag = 'scoped memory for resnet_block_2d.1']
    #allocation5 [shape = 's32[2]{0}', space=sflag, size = 0x8, scoped, tag = 'scoped memory for resnet_block_2d.1']
    #allocation6 [shape = 'u8[262144]{0}', space=vmem, size = 0x40000, scoped, tag = 'output window, operand 0']
    %21 = vsyncpa [#allocation4], 0
    %22 = vsyncpa [#allocation5], 0
    %s23 = scalar_lea.sflag [#allocation5], 1
    %24 = vsyncpa %s23, 0
    loop: start=0, step=1, limit=4
    $region2: #{resnet_block_2d.1} parent=1 // loop_pre_header
      _
    $region3: #{resnet_block_2d.1} parent=1 // loop_header
      %s26 = sphi 0, %s30
      %p27 = scmp.ge.s32.totalorder %s26, 4
      %s36 = sphi 0, %s38
      %s39 = sphi 0, %s36
      %s40 = sphi 0, %s39
      %s56 = sphi 0, %s40
      %s62 = sphi 0, %s64
      %s65 = sphi 0, %s62
      %s66 = sphi 0, %s65
      %s82 = sphi 0, %s66
      %s86 = sphi 0, %s86
      %s88 = sphi 0, %s86
      %s89 = sphi 0, %s88
      %s103 = sphi 0, %s89
      %s107 = sphi 0, %s107
      %s109 = sphi 0, %s107
      %s110 = sphi 0, %s109
      %s124 = sphi 0, %s110
      %s128 = sphi 0, %s128
      %s130 = sphi 0, %s128
      %s131 = sphi 0, %s130
      %s145 = sphi 0, %s131
      %s149 = sphi 0, %s149
      %s151 = sphi 0, %s149
      %s152 = sphi 0, %s151
      %s166 = sphi 0, %s152
      %s170 = sphi 0, %s170
      %s172 = sphi 0, %s170
      %s173 = sphi 0, %s172
      %s187 = sphi 0, %s173
      %s191 = sphi 0, %s191
      %s193 = sphi 0, %s191
      %s194 = sphi 0, %s193
      %s208 = sphi 0, %s194
      %s212 = sphi 0, %s212
      %s214 = sphi 0, %s212
      %s215 = sphi 0, %s214
      %s229 = sphi 0, %s215
      %s233 = sphi 0, %s233
      %s235 = sphi 0, %s233
      %s236 = sphi 0, %s235
      %s250 = sphi 0, %s236
      %s254 = sphi 0, %s254
      %s256 = sphi 0, %s254
      %s257 = sphi 0, %s256
      %s271 = sphi 0, %s257
      %s275 = sphi 0, %s275
      %s277 = sphi 0, %s275
      %s278 = sphi 0, %s277
      %s292 = sphi 0, %s278
      %s296 = sphi 0, %s296
      %s298 = sphi 0, %s296
      %s299 = sphi 0, %s298
      %s313 = sphi 0, %s299
      %s317 = sphi 0, %s317
      %s319 = sphi 0, %s317
      %s320 = sphi 0, %s319
      %s334 = sphi 0, %s320
      %s338 = sphi 0, %s338
      %s340 = sphi 0, %s338
      %s341 = sphi 0, %s340
      %s355 = sphi 0, %s341
      %s359 = sphi 0, %s359
      %s361 = sphi 0, %s359
      %s362 = sphi 0, %s361
      %s376 = sphi 0, %s362
      %s382 = sphi 0, %s384
      %s385 = sphi 0, %s382
      %s386 = sphi 0, %s385
      %s402 = sphi 0, %s386
    $region4: #{resnet_block_2d.1} parent=1 // loop_header_branch
      %29 = sbr.rel (%p27) target = $region8
    $region5: #{resnet_block_2d.1} parent=1 // loop_body
      %s31 = ssub.s32 %s26, 1
      %s32 = ssub.s32 %s26, 2
      %s33 = sadd.s32 %s26, 1
      %s34 = ssub.s32 %s26, %s33
      %p35 = scmp.eq.s32.totalorder %s34, 0
      %s37 = sadd.s32 %s36, 1
      %s38 = scalar_select %p35, %s36, %s37
      %p41 = pneg %p35
      %p42 = scmp.eq.s32.totalorder %s26, 1
      %p43 = por %p41, %p42
      %p44 = scmp.ne.s32.totalorder %s36, %s39
      %p45 = scmp.eq.s32.totalorder %s26, 0
      %p46 = por %p44, %p45
      %p47 = scmp.ne.s32.totalorder %s36, %s39
      %p48 = scmp.eq.s32.totalorder %s31, 1
      %p49 = por %p47, %p48
      %p50 = scmp.ne.s32.totalorder %s39, %s40
      %p51 = scmp.eq.s32.totalorder %s31, 0
      %p52 = por %p50, %p51
      %p53 = scmp.ne.s32.totalorder %s39, %s40
      %p54 = scmp.eq.s32.totalorder %s32, 1
      %p55 = por %p53, %p54
      %p57 = scmp.ne.s32.totalorder %s40, %s56
      %p58 = scmp.eq.s32.totalorder %s32, 0
      %p59 = por %p57, %p58
      %s60 = ssub.s32 %s26, %s33
      %p61 = scmp.eq.s32.totalorder %s60, 0
      %s63 = sadd.s32 %s62, 1
      %s64 = scalar_select %p61, %s62, %s63
      %p67 = pneg %p61
      %p68 = scmp.eq.s32.totalorder %s26, 1
      %p69 = por %p67, %p68
      %p70 = scmp.ne.s32.totalorder %s62, %s65
      %p71 = scmp.eq.s32.totalorder %s26, 0
      %p72 = por %p70, %p71
      %p73 = scmp.ne.s32.totalorder %s62, %s65
      %p74 = scmp.eq.s32.totalorder %s31, 1
      %p75 = por %p73, %p74
      %p76 = scmp.ne.s32.totalorder %s65, %s66
      %p77 = scmp.eq.s32.totalorder %s31, 0
      %p78 = por %p76, %p77
      %p79 = scmp.ne.s32.totalorder %s65, %s66
      %p80 = scmp.eq.s32.totalorder %s32, 1
      %p81 = por %p79, %p80
      %p83 = scmp.ne.s32.totalorder %s66, %s82
      %p84 = scmp.eq.s32.totalorder %s32, 0
      %p85 = por %p83, %p84
      %s87 = sadd.s32 %s86, 1
      %p90 = scmp.eq.s32.totalorder %s26, 1
      %p91 = scmp.ne.s32.totalorder %s86, %s88
      %p92 = scmp.eq.s32.totalorder %s26, 0
      %p93 = por %p91, %p92
      %p94 = scmp.ne.s32.totalorder %s86, %s88
      %p95 = scmp.eq.s32.totalorder %s31, 1
      %p96 = por %p94, %p95
      %p97 = scmp.ne.s32.totalorder %s88, %s89
      %p98 = scmp.eq.s32.totalorder %s31, 0
      %p99 = por %p97, %p98
      %p100 = scmp.ne.s32.totalorder %s88, %s89
      %p101 = scmp.eq.s32.totalorder %s32, 1
      %p102 = por %p100, %p101
      %p104 = scmp.ne.s32.totalorder %s89, %s103
      %p105 = scmp.eq.s32.totalorder %s32, 0
      %p106 = por %p104, %p105
      %s108 = sadd.s32 %s107, 1
      %p111 = scmp.eq.s32.totalorder %s26, 1
      %p112 = scmp.ne.s32.totalorder %s107, %s109
      %p113 = scmp.eq.s32.totalorder %s26, 0
      %p114 = por %p112, %p113
      %p115 = scmp.ne.s32.totalorder %s107, %s109
      %p116 = scmp.eq.s32.totalorder %s31, 1
      %p117 = por %p115, %p116
      %p118 = scmp.ne.s32.totalorder %s109, %s110
      %p119 = scmp.eq.s32.totalorder %s31, 0
      %p120 = por %p118, %p119
      %p121 = scmp.ne.s32.totalorder %s109, %s110
      %p122 = scmp.eq.s32.totalorder %s32, 1
      %p123 = por %p121, %p122
      %p125 = scmp.ne.s32.totalorder %s110, %s124
      %p126 = scmp.eq.s32.totalorder %s32, 0
      %p127 = por %p125, %p126
      %s129 = sadd.s32 %s128, 1
      %p132 = scmp.eq.s32.totalorder %s26, 1
      %p133 = scmp.ne.s32.totalorder %s128, %s130
      %p134 = scmp.eq.s32.totalorder %s26, 0
      %p135 = por %p133, %p134
      %p136 = scmp.ne.s32.totalorder %s128, %s130
      %p137 = scmp.eq.s32.totalorder %s31, 1
      %p138 = por %p136, %p137
      %p139 = scmp.ne.s32.totalorder %s130, %s131
      %p140 = scmp.eq.s32.totalorder %s31, 0
      %p141 = por %p139, %p140
      %p142 = scmp.ne.s32.totalorder %s130, %s131
      %p143 = scmp.eq.s32.totalorder %s32, 1
      %p144 = por %p142, %p143
      %p146 = scmp.ne.s32.totalorder %s131, %s145
      %p147 = scmp.eq.s32.totalorder %s32, 0
      %p148 = por %p146, %p147
      %s150 = sadd.s32 %s149, 1
      %p153 = scmp.eq.s32.totalorder %s26, 1
      %p154 = scmp.ne.s32.totalorder %s149, %s151
      %p155 = scmp.eq.s32.totalorder %s26, 0
      %p156 = por %p154, %p155
      %p157 = scmp.ne.s32.totalorder %s149, %s151
      %p158 = scmp.eq.s32.totalorder %s31, 1
      %p159 = por %p157, %p158
      %p160 = scmp.ne.s32.totalorder %s151, %s152
      %p161 = scmp.eq.s32.totalorder %s31, 0
      %p162 = por %p160, %p161
      %p163 = scmp.ne.s32.totalorder %s151, %s152
      %p164 = scmp.eq.s32.totalorder %s32, 1
      %p165 = por %p163, %p164
      %p167 = scmp.ne.s32.totalorder %s152, %s166
      %p168 = scmp.eq.s32.totalorder %s32, 0
      %p169 = por %p167, %p168
      %s171 = sadd.s32 %s170, 1
      %p174 = scmp.eq.s32.totalorder %s26, 1
      %p175 = scmp.ne.s32.totalorder %s170, %s172
      %p176 = scmp.eq.s32.totalorder %s26, 0
      %p177 = por %p175, %p176
      %p178 = scmp.ne.s32.totalorder %s170, %s172
      %p179 = scmp.eq.s32.totalorder %s31, 1
      %p180 = por %p178, %p179
      %p181 = scmp.ne.s32.totalorder %s172, %s173
      %p182 = scmp.eq.s32.totalorder %s31, 0
      %p183 = por %p181, %p182
      %p184 = scmp.ne.s32.totalorder %s172, %s173
      %p185 = scmp.eq.s32.totalorder %s32, 1
      %p186 = por %p184, %p185
      %p188 = scmp.ne.s32.totalorder %s173, %s187
      %p189 = scmp.eq.s32.totalorder %s32, 0
      %p190 = por %p188, %p189
      %s192 = sadd.s32 %s191, 1
      %p195 = scmp.eq.s32.totalorder %s26, 1
      %p196 = scmp.ne.s32.totalorder %s191, %s193
      %p197 = scmp.eq.s32.totalorder %s26, 0
      %p198 = por %p196, %p197
      %p199 = scmp.ne.s32.totalorder %s191, %s193
      %p200 = scmp.eq.s32.totalorder %s31, 1
      %p201 = por %p199, %p200
      %p202 = scmp.ne.s32.totalorder %s193, %s194
      %p203 = scmp.eq.s32.totalorder %s31, 0
      %p204 = por %p202, %p203
      %p205 = scmp.ne.s32.totalorder %s193, %s194
      %p206 = scmp.eq.s32.totalorder %s32, 1
      %p207 = por %p205, %p206
      %p209 = scmp.ne.s32.totalorder %s194, %s208
      %p210 = scmp.eq.s32.totalorder %s32, 0
      %p211 = por %p209, %p210
      %s213 = sadd.s32 %s212, 1
      %p216 = scmp.eq.s32.totalorder %s26, 1
      %p217 = scmp.ne.s32.totalorder %s212, %s214
      %p218 = scmp.eq.s32.totalorder %s26, 0
      %p219 = por %p217, %p218
      %p220 = scmp.ne.s32.totalorder %s212, %s214
      %p221 = scmp.eq.s32.totalorder %s31, 1
      %p222 = por %p220, %p221
      %p223 = scmp.ne.s32.totalorder %s214, %s215
      %p224 = scmp.eq.s32.totalorder %s31, 0
      %p225 = por %p223, %p224
      %p226 = scmp.ne.s32.totalorder %s214, %s215
      %p227 = scmp.eq.s32.totalorder %s32, 1
      %p228 = por %p226, %p227
      %p230 = scmp.ne.s32.totalorder %s215, %s229
      %p231 = scmp.eq.s32.totalorder %s32, 0
      %p232 = por %p230, %p231
      %s234 = sadd.s32 %s233, 1
      %p237 = scmp.eq.s32.totalorder %s26, 1
      %p238 = scmp.ne.s32.totalorder %s233, %s235
      %p239 = scmp.eq.s32.totalorder %s26, 0
      %p240 = por %p238, %p239
      %p241 = scmp.ne.s32.totalorder %s233, %s235
      %p242 = scmp.eq.s32.totalorder %s31, 1
      %p243 = por %p241, %p242
      %p244 = scmp.ne.s32.totalorder %s235, %s236
      %p245 = scmp.eq.s32.totalorder %s31, 0
      %p246 = por %p244, %p245
      %p247 = scmp.ne.s32.totalorder %s235, %s236
      %p248 = scmp.eq.s32.totalorder %s32, 1
      %p249 = por %p247, %p248
      %p251 = scmp.ne.s32.totalorder %s236, %s250
      %p252 = scmp.eq.s32.totalorder %s32, 0
      %p253 = por %p251, %p252
      %s255 = sadd.s32 %s254, 1
      %p258 = scmp.eq.s32.totalorder %s26, 1
      %p259 = scmp.ne.s32.totalorder %s254, %s256
      %p260 = scmp.eq.s32.totalorder %s26, 0
      %p261 = por %p259, %p260
      %p262 = scmp.ne.s32.totalorder %s254, %s256
      %p263 = scmp.eq.s32.totalorder %s31, 1
      %p264 = por %p262, %p263
      %p265 = scmp.ne.s32.totalorder %s256, %s257
      %p266 = scmp.eq.s32.totalorder %s31, 0
      %p267 = por %p265, %p266
      %p268 = scmp.ne.s32.totalorder %s256, %s257
      %p269 = scmp.eq.s32.totalorder %s32, 1
      %p270 = por %p268, %p269
      %p272 = scmp.ne.s32.totalorder %s257, %s271
      %p273 = scmp.eq.s32.totalorder %s32, 0
      %p274 = por %p272, %p273
      %s276 = sadd.s32 %s275, 1
      %p279 = scmp.eq.s32.totalorder %s26, 1
      %p280 = scmp.ne.s32.totalorder %s275, %s277
      %p281 = scmp.eq.s32.totalorder %s26, 0
      %p282 = por %p280, %p281
      %p283 = scmp.ne.s32.totalorder %s275, %s277
      %p284 = scmp.eq.s32.totalorder %s31, 1
      %p285 = por %p283, %p284
      %p286 = scmp.ne.s32.totalorder %s277, %s278
      %p287 = scmp.eq.s32.totalorder %s31, 0
      %p288 = por %p286, %p287
      %p289 = scmp.ne.s32.totalorder %s277, %s278
      %p290 = scmp.eq.s32.totalorder %s32, 1
      %p291 = por %p289, %p290
      %p293 = scmp.ne.s32.totalorder %s278, %s292
      %p294 = scmp.eq.s32.totalorder %s32, 0
      %p295 = por %p293, %p294
      %s297 = sadd.s32 %s296, 1
      %p300 = scmp.eq.s32.totalorder %s26, 1
      %p301 = scmp.ne.s32.totalorder %s296, %s298
      %p302 = scmp.eq.s32.totalorder %s26, 0
      %p303 = por %p301, %p302
      %p304 = scmp.ne.s32.totalorder %s296, %s298
      %p305 = scmp.eq.s32.totalorder %s31, 1
      %p306 = por %p304, %p305
      %p307 = scmp.ne.s32.totalorder %s298, %s299
      %p308 = scmp.eq.s32.totalorder %s31, 0
      %p309 = por %p307, %p308
      %p310 = scmp.ne.s32.totalorder %s298, %s299
      %p311 = scmp.eq.s32.totalorder %s32, 1
      %p312 = por %p310, %p311
      %p314 = scmp.ne.s32.totalorder %s299, %s313
      %p315 = scmp.eq.s32.totalorder %s32, 0
      %p316 = por %p314, %p315
      %s318 = sadd.s32 %s317, 1
      %p321 = scmp.eq.s32.totalorder %s26, 1
      %p322 = scmp.ne.s32.totalorder %s317, %s319
      %p323 = scmp.eq.s32.totalorder %s26, 0
      %p324 = por %p322, %p323
      %p325 = scmp.ne.s32.totalorder %s317, %s319
      %p326 = scmp.eq.s32.totalorder %s31, 1
      %p327 = por %p325, %p326
      %p328 = scmp.ne.s32.totalorder %s319, %s320
      %p329 = scmp.eq.s32.totalorder %s31, 0
      %p330 = por %p328, %p329
      %p331 = scmp.ne.s32.totalorder %s319, %s320
      %p332 = scmp.eq.s32.totalorder %s32, 1
      %p333 = por %p331, %p332
      %p335 = scmp.ne.s32.totalorder %s320, %s334
      %p336 = scmp.eq.s32.totalorder %s32, 0
      %p337 = por %p335, %p336
      %s339 = sadd.s32 %s338, 1
      %p342 = scmp.eq.s32.totalorder %s26, 1
      %p343 = scmp.ne.s32.totalorder %s338, %s340
      %p344 = scmp.eq.s32.totalorder %s26, 0
      %p345 = por %p343, %p344
      %p346 = scmp.ne.s32.totalorder %s338, %s340
      %p347 = scmp.eq.s32.totalorder %s31, 1
      %p348 = por %p346, %p347
      %p349 = scmp.ne.s32.totalorder %s340, %s341
      %p350 = scmp.eq.s32.totalorder %s31, 0
      %p351 = por %p349, %p350
      %p352 = scmp.ne.s32.totalorder %s340, %s341
      %p353 = scmp.eq.s32.totalorder %s32, 1
      %p354 = por %p352, %p353
      %p356 = scmp.ne.s32.totalorder %s341, %s355
      %p357 = scmp.eq.s32.totalorder %s32, 0
      %p358 = por %p356, %p357
      %s360 = sadd.s32 %s359, 1
      %p363 = scmp.eq.s32.totalorder %s26, 1
      %p364 = scmp.ne.s32.totalorder %s359, %s361
      %p365 = scmp.eq.s32.totalorder %s26, 0
      %p366 = por %p364, %p365
      %p367 = scmp.ne.s32.totalorder %s359, %s361
      %p368 = scmp.eq.s32.totalorder %s31, 1
      %p369 = por %p367, %p368
      %p370 = scmp.ne.s32.totalorder %s361, %s362
      %p371 = scmp.eq.s32.totalorder %s31, 0
      %p372 = por %p370, %p371
      %p373 = scmp.ne.s32.totalorder %s361, %s362
      %p374 = scmp.eq.s32.totalorder %s32, 1
      %p375 = por %p373, %p374
      %p377 = scmp.ne.s32.totalorder %s362, %s376
      %p378 = scmp.eq.s32.totalorder %s32, 0
      %p379 = por %p377, %p378
      %s380 = ssub.s32 %s26, %s33
      %p381 = scmp.eq.s32.totalorder %s380, 0
      %s383 = sadd.s32 %s382, 1
      %s384 = scalar_select %p381, %s382, %s383
      %p387 = pneg %p381
      %p388 = scmp.eq.s32.totalorder %s26, 1
      %p389 = por %p387, %p388
      %p390 = scmp.ne.s32.totalorder %s382, %s385
      %p391 = scmp.eq.s32.totalorder %s26, 0
      %p392 = por %p390, %p391
      %p393 = scmp.ne.s32.totalorder %s382, %s385
      %p394 = scmp.eq.s32.totalorder %s31, 1
      %p395 = por %p393, %p394
      %p396 = scmp.ne.s32.totalorder %s385, %s386
      %p397 = scmp.eq.s32.totalorder %s31, 0
      %p398 = por %p396, %p397
      %p399 = scmp.ne.s32.totalorder %s385, %s386
      %p400 = scmp.eq.s32.totalorder %s32, 1
      %p401 = por %p399, %p400
      %p403 = scmp.ne.s32.totalorder %s386, %s402
      %p404 = scmp.eq.s32.totalorder %s32, 0
      %p405 = por %p403, %p404
      %p406 = scmp.le.s32.totalorder 1, %s26
      %p407 = scmp.lt.s32.totalorder %s26, 3
      %p408 = pnand %p406, %p407
      %p409 = pneg %p408
      // Predicated region
      $region9: #{resnet_block_2d.1} parent=5 // pred_check
        _
      $region10: #{resnet_block_2d.1} parent=5 // pred_check_branch
        %411 = sbr.rel (%p408) target = $region12
      $region11: #{resnet_block_2d.1} parent=5 // pred_region
        %s412 = ssub.s32 %s26, 1
        // Predicated region
        $region13: #{resnet_block_2d.1} parent=11 // pred_check
          %p413 = pneg %p99
        $region14: #{resnet_block_2d.1} parent=11 // pred_check_branch
          %415 = sbr.rel (%p413) target = $region16
        $region15: #{resnet_block_2d.1} parent=11 // pred_region
          _
        $region16: #{resnet_block_2d.1} parent=11 // pred_fallthru
          _
        // Predicated region
        $region17: #{resnet_block_2d.1} parent=11 // pred_check
          %p416 = pneg %p120
        $region18: #{resnet_block_2d.1} parent=11 // pred_check_branch
          %418 = sbr.rel (%p416) target = $region20
        $region19: #{resnet_block_2d.1} parent=11 // pred_region
          %s420 = ssub.s32 2048, 2048
          %421 = vsyncadd [#allocation4], %s420
          %s422 = sshll.u32 [#allocation3], 4
          %s423 = int_to_ptr.vmem [resolvable:$true] %s422
          %428 = dma.hbm_to_vmem [thread:$0]  %s3, 2048, %s423, [#allocation4], 128, 128, 8
        $region20: #{resnet_block_2d.1} parent=11 // pred_fallthru
          _
        // Predicated region
        $region21: #{resnet_block_2d.1} parent=11 // pred_check
          %p429 = pneg %p141
        $region22: #{resnet_block_2d.1} parent=11 // pred_check_branch
          %431 = sbr.rel (%p429) target = $region24
        $region23: #{resnet_block_2d.1} parent=11 // pred_region
          _
        $region24: #{resnet_block_2d.1} parent=11 // pred_fallthru
          _
        // Predicated region
        $region25: #{resnet_block_2d.1} parent=11 // pred_check
          %p432 = pneg %p162
        $region26: #{resnet_block_2d.1} parent=11 // pred_check_branch
          %434 = sbr.rel (%p432) target = $region28
        $region27: #{resnet_block_2d.1} parent=11 // pred_region
          _
        $region28: #{resnet_block_2d.1} parent=11 // pred_fallthru
          _
        // Predicated region
        $region29: #{resnet_block_2d.1} parent=11 // pred_check
          %p435 = pneg %p183
        $region30: #{resnet_block_2d.1} parent=11 // pred_check_branch
          %437 = sbr.rel (%p435) target = $region32
        $region31: #{resnet_block_2d.1} parent=11 // pred_region
          _
        $region32: #{resnet_block_2d.1} parent=11 // pred_fallthru
          _
        // Predicated region
        $region33: #{resnet_block_2d.1} parent=11 // pred_check
          %p438 = pneg %p204
        $region34: #{resnet_block_2d.1} parent=11 // pred_check_branch
          %440 = sbr.rel (%p438) target = $region36
        $region35: #{resnet_block_2d.1} parent=11 // pred_region
          _
        $region36: #{resnet_block_2d.1} parent=11 // pred_fallthru
          _
        // Predicated region
        $region37: #{resnet_block_2d.1} parent=11 // pred_check
          %p441 = pneg %p225
        $region38: #{resnet_block_2d.1} parent=11 // pred_check_branch
          %443 = sbr.rel (%p441) target = $region40
        $region39: #{resnet_block_2d.1} parent=11 // pred_region
          _
        $region40: #{resnet_block_2d.1} parent=11 // pred_fallthru
          _
        // Predicated region
        $region41: #{resnet_block_2d.1} parent=11 // pred_check
          %p444 = pneg %p246
        $region42: #{resnet_block_2d.1} parent=11 // pred_check_branch
          %446 = sbr.rel (%p444) target = $region44
        $region43: #{resnet_block_2d.1} parent=11 // pred_region
          _
        $region44: #{resnet_block_2d.1} parent=11 // pred_fallthru
          _
        // Predicated region
        $region45: #{resnet_block_2d.1} parent=11 // pred_check
          %p447 = pneg %p267
        $region46: #{resnet_block_2d.1} parent=11 // pred_check_branch
          %449 = sbr.rel (%p447) target = $region48
        $region47: #{resnet_block_2d.1} parent=11 // pred_region
          _
        $region48: #{resnet_block_2d.1} parent=11 // pred_fallthru
          _
        // Predicated region
        $region49: #{resnet_block_2d.1} parent=11 // pred_check
          %p450 = pneg %p288
        $region50: #{resnet_block_2d.1} parent=11 // pred_check_branch
          %452 = sbr.rel (%p450) target = $region52
        $region51: #{resnet_block_2d.1} parent=11 // pred_region
          _
        $region52: #{resnet_block_2d.1} parent=11 // pred_fallthru
          _
        // Predicated region
        $region53: #{resnet_block_2d.1} parent=11 // pred_check
          %p453 = pneg %p309
        $region54: #{resnet_block_2d.1} parent=11 // pred_check_branch
          %455 = sbr.rel (%p453) target = $region56
        $region55: #{resnet_block_2d.1} parent=11 // pred_region
          _
        $region56: #{resnet_block_2d.1} parent=11 // pred_fallthru
          _
        // Predicated region
        $region57: #{resnet_block_2d.1} parent=11 // pred_check
          %p456 = pneg %p330
        $region58: #{resnet_block_2d.1} parent=11 // pred_check_branch
          %458 = sbr.rel (%p456) target = $region60
        $region59: #{resnet_block_2d.1} parent=11 // pred_region
          _
        $region60: #{resnet_block_2d.1} parent=11 // pred_fallthru
          _
        // Predicated region
        $region61: #{resnet_block_2d.1} parent=11 // pred_check
          %p459 = pneg %p351
        $region62: #{resnet_block_2d.1} parent=11 // pred_check_branch
          %461 = sbr.rel (%p459) target = $region64
        $region63: #{resnet_block_2d.1} parent=11 // pred_region
          _
        $region64: #{resnet_block_2d.1} parent=11 // pred_fallthru
          _
        // Predicated region
        $region65: #{resnet_block_2d.1} parent=11 // pred_check
          %p462 = pneg %p372
        $region66: #{resnet_block_2d.1} parent=11 // pred_check_branch
          %464 = sbr.rel (%p462) target = $region68
        $region67: #{resnet_block_2d.1} parent=11 // pred_region
          _
        $region68: #{resnet_block_2d.1} parent=11 // pred_fallthru
          _
      $region12: #{resnet_block_2d.1} parent=5 // pred_fallthru
        _
      %p465 = scmp.lt.s32.totalorder %s26, 2
      // Predicated region
      $region69: #{resnet_block_2d.1} parent=5 // pred_check
        %p466 = pneg %p465
      $region70: #{resnet_block_2d.1} parent=5 // pred_check_branch
        %468 = sbr.rel (%p466) target = $region72
      $region71: #{resnet_block_2d.1} parent=5 // pred_region
        // Predicated region
        $region73: #{resnet_block_2d.1} parent=71 // pred_check
          %p469 = pneg %p46
        $region74: #{resnet_block_2d.1} parent=71 // pred_check_branch
          %471 = sbr.rel (%p469) target = $region76
        $region75: #{resnet_block_2d.1} parent=71 // pred_region
          %p472 = scmp.lt.s32.totalorder %s26, 1
          %s473 = scalar_select %p472, %s26, 1
          %s474 = smul.addr %s473, 32
          %s475 = smul.addr %s474, 4
          %s476 = scalar_lea.vmem %s0, %s475
        $region76: #{resnet_block_2d.1} parent=71 // pred_fallthru
          _
        // Predicated region
        $region77: #{resnet_block_2d.1} parent=71 // pred_check
          %p477 = pneg %p72
        $region78: #{resnet_block_2d.1} parent=71 // pred_check_branch
          %479 = sbr.rel (%p477) target = $region80
        $region79: #{resnet_block_2d.1} parent=71 // pred_region
          %p480 = scmp.lt.s32.totalorder %s26, 1
          %s481 = scalar_select %p480, %s26, 1
          %s482 = scalar_lea.vmem %s1, %s481
        $region80: #{resnet_block_2d.1} parent=71 // pred_fallthru
          _
      $region72: #{resnet_block_2d.1} parent=5 // pred_fallthru
        _
      %p483 = scmp.le.s32.totalorder 1, %s26
      %p484 = scmp.lt.s32.totalorder %s26, 3
      %p485 = pnand %p483, %p484
      %p486 = pneg %p485
      // Predicated region
      $region81: #{resnet_block_2d.1} parent=5 // pred_check
        _
      $region82: #{resnet_block_2d.1} parent=5 // pred_check_branch
        %488 = sbr.rel (%p485) target = $region84
      $region83: #{resnet_block_2d.1} parent=5 // pred_region
        %s489 = ssub.s32 %s26, 1
        // Predicated region
        $region85: #{resnet_block_2d.1} parent=83 // pred_check
          %p490 = pneg %p120
        $region86: #{resnet_block_2d.1} parent=83 // pred_check_branch
          %492 = sbr.rel (%p490) target = $region88
        $region87: #{resnet_block_2d.1} parent=83 // pred_region
          %493 = dma.done [#allocation4], 2048
        $region88: #{resnet_block_2d.1} parent=83 // pred_fallthru
          _
        %p494 = scmp.lt.s32.totalorder %s31, 1
        %s495 = scalar_select %p494, %s31, 1
        %s496 = smul.addr %s495, 32
        %s497 = smul.addr %s496, 4
        %s498 = scalar_lea.vmem %s0, %s497
        %p499 = pneg %p52
        %p500 = pneg %p49
        %p501 = scmp.lt.s32.totalorder %s31, 1
        %s502 = scalar_select %p501, %s31, 1
        %s503 = scalar_lea.vmem %s1, %s502
        %p504 = pneg %p78
        %p505 = pneg %p75
        %p506 = pneg %p99
        %p507 = pneg %p96
        %p508 = pneg %p120
        %p509 = pneg %p117
        %p510 = pneg %p141
        %p511 = pneg %p138
        %p512 = pneg %p162
        %p513 = pneg %p159
        %p514 = pneg %p183
        %p515 = pneg %p180
        %p516 = pneg %p204
        %p517 = pneg %p201
        %p518 = pneg %p225
        %p519 = pneg %p222
        %p520 = pneg %p246
        %p521 = pneg %p243
        %p522 = pneg %p267
        %p523 = pneg %p264
        %p524 = pneg %p288
        %p525 = pneg %p285
        %p526 = pneg %p309
        %p527 = pneg %p306
        %p528 = pneg %p330
        %p529 = pneg %p327
        %p530 = pneg %p351
        %p531 = pneg %p348
        %p532 = pneg %p372
        %p533 = pneg %p369
        %p534 = pneg %p398
        %p535 = pneg %p395
        %s536 = sand.u32 %s385, 1
        %s537 = scalar_lea.sflag [#allocation5], %s536
        %s538 = sand.u32 %s385, 1
        %s539 = smul.addr %s538, 256
        %s540 = scalar_lea.vmem [#allocation6], %s539
        %p541 = scmp.lt.s32.totalorder %s31, 1
        %s542 = scalar_select %p541, %s31, 1
        %s543 = smul.addr %s542, 32
        %s544 = smul.addr %s543, 4
        %s545 = scalar_lea.vmem %s0, %s544
        %p546 = scmp.lt.s32.totalorder %s31, 1
        %s547 = scalar_select %p546, %s31, 1
        %s548 = scalar_lea.vmem %s1, %s547
        %550 = vst [vmem:[#allocation2] sm:$0xf] 0
        %551 = vst [vmem:[#allocation2 + $0x4] sm:$0xf] 0
        %552 = vst [vmem:[#allocation2 + $0x8] sm:$0x1] 0
        %553 = vst [vmem:[#allocation2 + $0xc] sm:$0xf] 0
        %554 = vst [vmem:[#allocation2 + $0x10] sm:$0xf] 0
        %555 = vst [vmem:[#allocation2 + $0x14] sm:$0x1] 0
        %s556 = scalar_lea.vmem [#allocation2], 192
        %557 = vst [vmem:[%s556] sm:$0xf] 0
        %558 = vst [vmem:[%s556 + $0x4] sm:$0xf] 0
        %559 = vst [vmem:[%s556 + $0x8] sm:$0x1] 0
        %560 = vst [vmem:[%s556 + $0xc] sm:$0xf] 0
        %561 = vst [vmem:[%s556 + $0x10] sm:$0xf] 0
        %562 = vst [vmem:[%s556 + $0x14] sm:$0x1] 0
        %563 = vst [vmem:[#allocation2] sm:$0x1] 0
        %564 = vst [vmem:[#allocation2 + $0xc] sm:$0x1] 0
        %565 = vst [vmem:[#allocation2 + $0x18] sm:$0x1] 0
        %566 = vst [vmem:[#allocation2 + $0x24] sm:$0x1] 0
        %567 = vst [vmem:[#allocation2 + $0x30] sm:$0x1] 0
        %568 = vst [vmem:[#allocation2 + $0x3c] sm:$0x1] 0
        %569 = vst [vmem:[#allocation2 + $0x48] sm:$0x1] 0
        %570 = vst [vmem:[#allocation2 + $0x54] sm:$0x1] 0
        %571 = vst [vmem:[#allocation2 + $0x60] sm:$0x1] 0
        %572 = vst [vmem:[#allocation2 + $0x6c] sm:$0x1] 0
        %573 = vst [vmem:[#allocation2 + $0x78] sm:$0x1] 0
        %574 = vst [vmem:[#allocation2 + $0x84] sm:$0x1] 0
        %575 = vst [vmem:[#allocation2 + $0x90] sm:$0x1] 0
        %576 = vst [vmem:[#allocation2 + $0x9c] sm:$0x1] 0
        %577 = vst [vmem:[#allocation2 + $0xa8] sm:$0x1] 0
        %578 = vst [vmem:[#allocation2 + $0xb4] sm:$0x1] 0
        %579 = vst [vmem:[#allocation2 + $0xc0] sm:$0x1] 0
        %580 = vst [vmem:[#allocation2 + $0xcc] sm:$0x1] 0
        %581 = vst [vmem:[#allocation2 + $0x8] sm:$0x1] 0
        %582 = vst [vmem:[#allocation2 + $0x14] sm:$0x1] 0
        %583 = vst [vmem:[#allocation2 + $0x20] sm:$0x1] 0
        %584 = vst [vmem:[#allocation2 + $0x2c] sm:$0x1] 0
        %585 = vst [vmem:[#allocation2 + $0x38] sm:$0x1] 0
        %586 = vst [vmem:[#allocation2 + $0x44] sm:$0x1] 0
        %587 = vst [vmem:[#allocation2 + $0x50] sm:$0x1] 0
        %588 = vst [vmem:[#allocation2 + $0x5c] sm:$0x1] 0
        %589 = vst [vmem:[#allocation2 + $0x68] sm:$0x1] 0
        %590 = vst [vmem:[#allocation2 + $0x74] sm:$0x1] 0
        %591 = vst [vmem:[#allocation2 + $0x80] sm:$0x1] 0
        %592 = vst [vmem:[#allocation2 + $0x8c] sm:$0x1] 0
        %593 = vst [vmem:[#allocation2 + $0x98] sm:$0x1] 0
        %594 = vst [vmem:[#allocation2 + $0xa4] sm:$0x1] 0
        %595 = vst [vmem:[#allocation2 + $0xb0] sm:$0x1] 0
        %596 = vst [vmem:[#allocation2 + $0xbc] sm:$0x1] 0
        %597 = vst [vmem:[#allocation2 + $0xc8] sm:$0x1] 0
        %598 = vst [vmem:[#allocation2 + $0xd4] sm:$0x1] 0
        %v599 = vld [vmem:[%s545] sm:$0xf]
        %v600 = vld [vmem:[%s545 + $0x4] sm:$0xf]
        %v601 = vld [vmem:[%s545 + $0x8] sm:$0xf]
        %v602 = vld [vmem:[%s545 + $0xc] sm:$0xf]
        %v603 = vld [vmem:[%s545 + $0x10] sm:$0xf]
        %v604 = vld [vmem:[%s545 + $0x14] sm:$0xf]
        %v605 = vld [vmem:[%s545 + $0x18] sm:$0xf]
        %v606 = vld [vmem:[%s545 + $0x1c] sm:$0xf]
        %v607 = vld [vmem:[%s545 + $0x20] sm:$0xf]
        %v608 = vld [vmem:[%s545 + $0x24] sm:$0xf]
        %v609 = vld [vmem:[%s545 + $0x28] sm:$0xf]
        %v610 = vld [vmem:[%s545 + $0x2c] sm:$0xf]
        %v611 = vld [vmem:[%s545 + $0x30] sm:$0xf]
        %v612 = vld [vmem:[%s545 + $0x34] sm:$0xf]
        %v613 = vld [vmem:[%s545 + $0x38] sm:$0xf]
        %v614 = vld [vmem:[%s545 + $0x3c] sm:$0xf]
        %v615 = vld [vmem:[%s545 + $0x40] sm:$0xf]
        %v616 = vld [vmem:[%s545 + $0x44] sm:$0xf]
        %v617 = vld [vmem:[%s545 + $0x48] sm:$0xf]
        %v618 = vld [vmem:[%s545 + $0x4c] sm:$0xf]
        %v619 = vld [vmem:[%s545 + $0x50] sm:$0xf]
        %v620 = vld [vmem:[%s545 + $0x54] sm:$0xf]
        %v621 = vld [vmem:[%s545 + $0x58] sm:$0xf]
        %v622 = vld [vmem:[%s545 + $0x5c] sm:$0xf]
        %v623 = vld [vmem:[%s545 + $0x60] sm:$0xf]
        %v624 = vld [vmem:[%s545 + $0x64] sm:$0xf]
        %v625 = vld [vmem:[%s545 + $0x68] sm:$0xf]
        %v626 = vld [vmem:[%s545 + $0x6c] sm:$0xf]
        %v627 = vld [vmem:[%s545 + $0x70] sm:$0xf]
        %v628 = vld [vmem:[%s545 + $0x74] sm:$0xf]
        %v629 = vld [vmem:[%s545 + $0x78] sm:$0xf]
        %v630 = vld [vmem:[%s545 + $0x7c] sm:$0xf]
        %v631 = vunpack.c.l.bf16 %v599
        %v632 = vunpack.c.l.bf16 %v600
        %v633 = vunpack.c.l.bf16 %v601
        %v634 = vunpack.c.l.bf16 %v602
        %v635 = vunpack.c.l.bf16 %v603
        %v636 = vunpack.c.l.bf16 %v604
        %v637 = vunpack.c.l.bf16 %v605
        %v638 = vunpack.c.l.bf16 %v606
        %v639 = vunpack.c.l.bf16 %v607
        %v640 = vunpack.c.l.bf16 %v608
        %v641 = vunpack.c.l.bf16 %v609
        %v642 = vunpack.c.l.bf16 %v610
        %v643 = vunpack.c.l.bf16 %v611
        %v644 = vunpack.c.l.bf16 %v612
        %v645 = vunpack.c.l.bf16 %v613
        %v646 = vunpack.c.l.bf16 %v614
        %v647 = vunpack.c.l.bf16 %v615
        %v648 = vunpack.c.l.bf16 %v616
        %v649 = vunpack.c.l.bf16 %v617
        %v650 = vunpack.c.l.bf16 %v618
        %v651 = vunpack.c.l.bf16 %v619
        %v652 = vunpack.c.l.bf16 %v620
        %v653 = vunpack.c.l.bf16 %v621
        %v654 = vunpack.c.l.bf16 %v622
        %v655 = vunpack.c.l.bf16 %v623
        %v656 = vunpack.c.l.bf16 %v624
        %v657 = vunpack.c.l.bf16 %v625
        %v658 = vunpack.c.l.bf16 %v626
        %v659 = vunpack.c.l.bf16 %v627
        %v660 = vunpack.c.l.bf16 %v628
        %v661 = vunpack.c.l.bf16 %v629
        %v662 = vunpack.c.l.bf16 %v630
        %v663 = vld [vmem:[%s2] sm:$0xff]
        %v664 = vld [vmem:[%s2 + $0x8] sm:$0xff]
        %v665 = vld [vmem:[%s2 + $0x10] sm:$0xff]
        %v666 = vld [vmem:[%s2 + $0x18] sm:$0xff]
        %v667 = vld [vmem:[%s4] sm:$0x1]
        %v668 = vld [vmem:[%s5] sm:$0x1]
        %vm669 = vcmask 261120
        %v670 = vsel %vm669, %v631, 0.0
        %v671 = vsel %vm669, %v632, 0.0
        %v672 = vadd.f32 %v670, %v671
        %v673 = vsel %vm669, %v633, 0.0
        %v674 = vadd.f32 %v672, %v673
        %v675 = vsel %vm669, %v634, 0.0
        %v676 = vadd.f32 %v674, %v675
        %v677 = vsel %vm669, %v635, 0.0
        %v678 = vadd.f32 %v676, %v677
        %v679 = vsel %vm669, %v636, 0.0
        %v680 = vadd.f32 %v678, %v679
        %v681 = vsel %vm669, %v637, 0.0
        %v682 = vadd.f32 %v680, %v681
        %v683 = vsel %vm669, %v638, 0.0
        %v684 = vadd.f32 %v682, %v683
        %v685 = vsel %vm669, %v639, 0.0
        %v686 = vadd.f32 %v684, %v685
        %v687 = vsel %vm669, %v640, 0.0
        %v688 = vadd.f32 %v686, %v687
        %v689 = vsel %vm669, %v641, 0.0
        %v690 = vadd.f32 %v688, %v689
        %v691 = vsel %vm669, %v642, 0.0
        %v692 = vadd.f32 %v690, %v691
        %v693 = vsel %vm669, %v643, 0.0
        %v694 = vadd.f32 %v692, %v693
        %v695 = vsel %vm669, %v644, 0.0
        %v696 = vadd.f32 %v694, %v695
        %v697 = vsel %vm669, %v645, 0.0
        %v698 = vadd.f32 %v696, %v697
        %v699 = vsel %vm669, %v646, 0.0
        %v700 = vadd.f32 %v698, %v699
        %v701 = vsel %vm669, %v647, 0.0
        %v702 = vadd.f32 %v700, %v701
        %v703 = vsel %vm669, %v648, 0.0
        %v704 = vadd.f32 %v702, %v703
        %v705 = vsel %vm669, %v649, 0.0
        %v706 = vadd.f32 %v704, %v705
        %v707 = vsel %vm669, %v650, 0.0
        %v708 = vadd.f32 %v706, %v707
        %v709 = vsel %vm669, %v651, 0.0
        %v710 = vadd.f32 %v708, %v709
        %v711 = vsel %vm669, %v652, 0.0
        %v712 = vadd.f32 %v710, %v711
        %v713 = vsel %vm669, %v653, 0.0
        %v714 = vadd.f32 %v712, %v713
        %v715 = vsel %vm669, %v654, 0.0
        %v716 = vadd.f32 %v714, %v715
        %v717 = vsel %vm669, %v655, 0.0
        %v718 = vadd.f32 %v716, %v717
        %v719 = vsel %vm669, %v656, 0.0
        %v720 = vadd.f32 %v718, %v719
        %v721 = vsel %vm669, %v657, 0.0
        %v722 = vadd.f32 %v720, %v721
        %v723 = vsel %vm669, %v658, 0.0
        %v724 = vadd.f32 %v722, %v723
        %v725 = vsel %vm669, %v659, 0.0
        %v726 = vadd.f32 %v724, %v725
        %v727 = vsel %vm669, %v660, 0.0
        %v728 = vadd.f32 %v726, %v727
        %v729 = vsel %vm669, %v661, 0.0
        %v730 = vadd.f32 %v728, %v729
        %v731 = vsel %vm669, %v662, 0.0
        %v732 = vadd.f32 %v730, %v731
        %v733 = vrot.slane %v732, 4
        %v734 = vadd.f32 %v732, %v733
        %v735 = vrot.slane %v734, 2
        %v736 = vadd.f32 %v734, %v735
        %v737 = vrot.slane %v736, 1
        %v738 = vadd.f32 %v736, %v737
        %v739 = vrcp.pop 256.0
        %v740 = vmul.f32 %v738, %v739
        %v741 = vmul.f32 %v631, %v631
        %v742 = vmul.f32 %v632, %v632
        %v743 = vmul.f32 %v633, %v633
        %v744 = vmul.f32 %v634, %v634
        %v745 = vmul.f32 %v635, %v635
        %v746 = vmul.f32 %v636, %v636
        %v747 = vmul.f32 %v637, %v637
        %v748 = vmul.f32 %v638, %v638
        %v749 = vmul.f32 %v639, %v639
        %v750 = vmul.f32 %v640, %v640
        %v751 = vmul.f32 %v641, %v641
        %v752 = vmul.f32 %v642, %v642
        %v753 = vmul.f32 %v643, %v643
        %v754 = vmul.f32 %v644, %v644
        %v755 = vmul.f32 %v645, %v645
        %v756 = vmul.f32 %v646, %v646
        %v757 = vmul.f32 %v647, %v647
        %v758 = vmul.f32 %v648, %v648
        %v759 = vmul.f32 %v649, %v649
        %v760 = vmul.f32 %v650, %v650
        %v761 = vmul.f32 %v651, %v651
        %v762 = vmul.f32 %v652, %v652
        %v763 = vmul.f32 %v653, %v653
        %v764 = vmul.f32 %v654, %v654
        %v765 = vmul.f32 %v655, %v655
        %v766 = vmul.f32 %v656, %v656
        %v767 = vmul.f32 %v657, %v657
        %v768 = vmul.f32 %v658, %v658
        %v769 = vmul.f32 %v659, %v659
        %v770 = vmul.f32 %v660, %v660
        %v771 = vmul.f32 %v661, %v661
        %v772 = vmul.f32 %v662, %v662
        %v773 = vsel %vm669, %v741, 0.0
        %v774 = vsel %vm669, %v742, 0.0
        %v775 = vadd.f32 %v773, %v774
        %v776 = vsel %vm669, %v743, 0.0
        %v777 = vadd.f32 %v775, %v776
        %v778 = vsel %vm669, %v744, 0.0
        %v779 = vadd.f32 %v777, %v778
        %v780 = vsel %vm669, %v745, 0.0
        %v781 = vadd.f32 %v779, %v780
        %v782 = vsel %vm669, %v746, 0.0
        %v783 = vadd.f32 %v781, %v782
        %v784 = vsel %vm669, %v747, 0.0
        %v785 = vadd.f32 %v783, %v784
        %v786 = vsel %vm669, %v748, 0.0
        %v787 = vadd.f32 %v785, %v786
        %v788 = vsel %vm669, %v749, 0.0
        %v789 = vadd.f32 %v787, %v788
        %v790 = vsel %vm669, %v750, 0.0
        %v791 = vadd.f32 %v789, %v790
        %v792 = vsel %vm669, %v751, 0.0
        %v793 = vadd.f32 %v791, %v792
        %v794 = vsel %vm669, %v752, 0.0
        %v795 = vadd.f32 %v793, %v794
        %v796 = vsel %vm669, %v753, 0.0
        %v797 = vadd.f32 %v795, %v796
        %v798 = vsel %vm669, %v754, 0.0
        %v799 = vadd.f32 %v797, %v798
        %v800 = vsel %vm669, %v755, 0.0
        %v801 = vadd.f32 %v799, %v800
        %v802 = vsel %vm669, %v756, 0.0
        %v803 = vadd.f32 %v801, %v802
        %v804 = vsel %vm669, %v757, 0.0
        %v805 = vadd.f32 %v803, %v804
        %v806 = vsel %vm669, %v758, 0.0
        %v807 = vadd.f32 %v805, %v806
        %v808 = vsel %vm669, %v759, 0.0
        %v809 = vadd.f32 %v807, %v808
        %v810 = vsel %vm669, %v760, 0.0
        %v811 = vadd.f32 %v809, %v810
        %v812 = vsel %vm669, %v761, 0.0
        %v813 = vadd.f32 %v811, %v812
        %v814 = vsel %vm669, %v762, 0.0
        %v815 = vadd.f32 %v813, %v814
        %v816 = vsel %vm669, %v763, 0.0
        %v817 = vadd.f32 %v815, %v816
        %v818 = vsel %vm669, %v764, 0.0
        %v819 = vadd.f32 %v817, %v818
        %v820 = vsel %vm669, %v765, 0.0
        %v821 = vadd.f32 %v819, %v820
        %v822 = vsel %vm669, %v766, 0.0
        %v823 = vadd.f32 %v821, %v822
        %v824 = vsel %vm669, %v767, 0.0
        %v825 = vadd.f32 %v823, %v824
        %v826 = vsel %vm669, %v768, 0.0
        %v827 = vadd.f32 %v825, %v826
        %v828 = vsel %vm669, %v769, 0.0
        %v829 = vadd.f32 %v827, %v828
        %v830 = vsel %vm669, %v770, 0.0
        %v831 = vadd.f32 %v829, %v830
        %v832 = vsel %vm669, %v771, 0.0
        %v833 = vadd.f32 %v831, %v832
        %v834 = vsel %vm669, %v772, 0.0
        %v835 = vadd.f32 %v833, %v834
        %v836 = vrot.slane %v835, 4
        %v837 = vadd.f32 %v835, %v836
        %v838 = vrot.slane %v837, 2
        %v839 = vadd.f32 %v837, %v838
        %v840 = vrot.slane %v839, 1
        %v841 = vadd.f32 %v839, %v840
        %v842 = vmul.f32 %v841, %v739
        %vm843 = vcmask 1040384
        %v844 = vsel %vm843, %v740, %v842
        %v846 = vsel %vm669, %v844, 0
        %848 = vmatprep.subr.mxu0 0.0
        %849 = vmatpush1.msra.mxu0 %v663
        %850 = vmatprep.subr.mxu0 0.0
        %851 = vmatpush1.msra.mxu0 %v664
        %852 = vmatprep.subr.mxu0 0.0
        %853 = vmatpush1.msra.mxu0 %v665
        %854 = vmatprep.subr.mxu0 0.0
        %855 = vmatpush1.msra.mxu0 %v666
        %856 = vmatprep.subr.mxu0 0.0
        %857 = vmatpush1.msra.mxu0 0.0
        %858 = vmatprep.subr.mxu0 0.0
        %859 = vmatpush1.msra.mxu0 0.0
        %860 = vmatprep.subr.mxu0 0.0
        %861 = vmatpush1.msra.mxu0 0.0
        %862 = vmatprep.subr.mxu0 0.0
        %863 = vmatpush1.msra.mxu0 0.0
        %864 = vmatprep.subr.mxu0 0.0
        %865 = vmatpush1.msra.mxu0 0.0
        %866 = vmatprep.subr.mxu0 0.0
        %867 = vmatpush1.msra.mxu0 0.0
        %868 = vmatprep.subr.mxu0 0.0
        %869 = vmatpush1.msra.mxu0 0.0
        %870 = vmatprep.subr.mxu0 0.0
        %871 = vmatpush1.msra.mxu0 0.0
        %872 = vmatprep.subr.mxu0 0.0
        %873 = vmatpush1.msra.mxu0 0.0
        %874 = vmatprep.subr.mxu0 0.0
        %875 = vmatpush1.msra.mxu0 0.0
        %876 = vmatprep.subr.mxu0 0.0
        %877 = vmatpush1.msra.mxu0 0.0
        %878 = vmatprep.subr.mxu0 0.0
        %879 = vmatpush1.msra.mxu0 0.0
        %880 = vmatprep.subr.mxu0 0.0
        %881 = vmatpush1.msra.mxu0 0.0
        %882 = vmatprep.subr.mxu0 0.0
        %883 = vmatpush1.msra.mxu0 0.0
        %884 = vmatprep.subr.mxu0 0.0
        %885 = vmatpush1.msra.mxu0 0.0
        %886 = vmatprep.subr.mxu0 0.0
        %887 = vmatpush1.msra.mxu0 0.0
        %888 = vmatprep.subr.mxu0 0.0
        %889 = vmatpush1.msra.mxu0 0.0
        %890 = vmatprep.subr.mxu0 0.0
        %891 = vmatpush1.msra.mxu0 0.0
        %892 = vmatprep.subr.mxu0 0.0
        %893 = vmatpush1.msra.mxu0 0.0
        %894 = vmatprep.subr.mxu0 0.0
        %895 = vmatpush1.msra.mxu0 0.0
        %896 = vmatprep.subr.mxu0 0.0
        %897 = vmatpush1.msra.mxu0 0.0
        %898 = vmatprep.subr.mxu0 0.0
        %899 = vmatpush1.msra.mxu0 0.0
        %900 = vmatprep.subr.mxu0 0.0
        %901 = vmatpush1.msra.mxu0 0.0
        %902 = vmatprep.subr.mxu0 0.0
        %903 = vmatpush1.msra.mxu0 0.0
        %904 = vmatprep.subr.mxu0 0.0
        %905 = vmatpush1.msra.mxu0 0.0
        %906 = vmatprep.subr.mxu0 0.0
        %907 = vmatpush1.msra.mxu0 0.0
        %908 = vmatprep.subr.mxu0 0.0
        %909 = vmatpush1.msra.mxu0 0.0
        %910 = vmatprep.subr.mxu0 0.0
        %911 = vmatpush1.msra.mxu0 0.0
        %912 = vmatprep.mubr.f32.mxu0 0.0
        %913 = vmatmul.mubr.f32.gmra.mrb[0].mxu0 %v846
        %v914 = vpop.f32.mrb[0].mxu0
        %v915 = vadd.f32 0.0, %v914
        %v916 = vpop.f32.mrb[0].mxu0
        %917 = vdwg.mxu0
        %v918 = vmul.f32 %v915, %v915
        %v920 = vrot.slane %v918, 7
        %v922 = vsub.f32 %v915, %v920
        %v923 = vadd.f32 %v922, 1e-06
        %v924 = vrsqrt.pop %v923
        %v927 = vunpack.c.l.s4 1966171168
        %v928 = vunpack.c.0.s8 %v927
        %v929 = vlaneseq
        %v930 = vshrl.u32 %v929, 7
        %v931 = vsub.s32 %v928, %v930
        %v932 = vrot.slane %v924, %v931
        %v933 = vcombine.high %v932, %v932
        %v935 = vunpack.c.l.s4 1966171168
        %v936 = vunpack.c.0.s8 %v935
        %v937 = vlaneseq
        %v938 = vshrl.u32 %v937, 7
        %v939 = vsub.s32 %v936, %v938
        %v940 = vrot.slane %v933, %v939
        %v942 = vmul.f32 %v667, %v940
        %v943 = vmul.f32 %v915, %v942
        %v944 = vsub.f32 %v668, %v943
        %v946 = vlaneseq
        %v947 = vshrl.u32 %v946, 7
        %v948 = vsub.s32 0, %v947
        %v949 = vrot.slane %v942, %v948
        %v951 = vmul.f32 %v631, %v949
        %v952 = vmul.f32 %v632, %v949
        %v953 = vmul.f32 %v633, %v949
        %v954 = vmul.f32 %v634, %v949
        %v955 = vmul.f32 %v635, %v949
        %v956 = vmul.f32 %v636, %v949
        %v957 = vmul.f32 %v637, %v949
        %v958 = vmul.f32 %v638, %v949
        %v959 = vmul.f32 %v639, %v949
        %v960 = vmul.f32 %v640, %v949
        %v961 = vmul.f32 %v641, %v949
        %v962 = vmul.f32 %v642, %v949
        %v963 = vmul.f32 %v643, %v949
        %v964 = vmul.f32 %v644, %v949
        %v965 = vmul.f32 %v645, %v949
        %v966 = vmul.f32 %v646, %v949
        %v967 = vmul.f32 %v647, %v949
        %v968 = vmul.f32 %v648, %v949
        %v969 = vmul.f32 %v649, %v949
        %v970 = vmul.f32 %v650, %v949
        %v971 = vmul.f32 %v651, %v949
        %v972 = vmul.f32 %v652, %v949
        %v973 = vmul.f32 %v653, %v949
        %v974 = vmul.f32 %v654, %v949
        %v975 = vmul.f32 %v655, %v949
        %v976 = vmul.f32 %v656, %v949
        %v977 = vmul.f32 %v657, %v949
        %v978 = vmul.f32 %v658, %v949
        %v979 = vmul.f32 %v659, %v949
        %v980 = vmul.f32 %v660, %v949
        %v981 = vmul.f32 %v661, %v949
        %v982 = vmul.f32 %v662, %v949
        %v984 = vlaneseq
        %v985 = vshrl.u32 %v984, 7
        %v986 = vsub.s32 0, %v985
        %v987 = vrot.slane %v944, %v986
        %v989 = vadd.f32 %v951, %v987
        %v990 = vadd.f32 %v952, %v987
        %v991 = vadd.f32 %v953, %v987
        %v992 = vadd.f32 %v954, %v987
        %v993 = vadd.f32 %v955, %v987
        %v994 = vadd.f32 %v956, %v987
        %v995 = vadd.f32 %v957, %v987
        %v996 = vadd.f32 %v958, %v987
        %v997 = vadd.f32 %v959, %v987
        %v998 = vadd.f32 %v960, %v987
        %v999 = vadd.f32 %v961, %v987
        %v1000 = vadd.f32 %v962, %v987
        %v1001 = vadd.f32 %v963, %v987
        %v1002 = vadd.f32 %v964, %v987
        %v1003 = vadd.f32 %v965, %v987
        %v1004 = vadd.f32 %v966, %v987
        %v1005 = vadd.f32 %v967, %v987
        %v1006 = vadd.f32 %v968, %v987
        %v1007 = vadd.f32 %v969, %v987
        %v1008 = vadd.f32 %v970, %v987
        %v1009 = vadd.f32 %v971, %v987
        %v1010 = vadd.f32 %v972, %v987
        %v1011 = vadd.f32 %v973, %v987
        %v1012 = vadd.f32 %v974, %v987
        %v1013 = vadd.f32 %v975, %v987
        %v1014 = vadd.f32 %v976, %v987
        %v1015 = vadd.f32 %v977, %v987
        %v1016 = vadd.f32 %v978, %v987
        %v1017 = vadd.f32 %v979, %v987
        %v1018 = vadd.f32 %v980, %v987
        %v1019 = vadd.f32 %v981, %v987
        %v1020 = vadd.f32 %v982, %v987
        %v1021 = vxor.u32 %v989, 2147483648
        %v1022 = vxor.u32 %v990, 2147483648
        %v1023 = vxor.u32 %v991, 2147483648
        %v1024 = vxor.u32 %v992, 2147483648
        %v1025 = vxor.u32 %v993, 2147483648
        %v1026 = vxor.u32 %v994, 2147483648
        %v1027 = vxor.u32 %v995, 2147483648
        %v1028 = vxor.u32 %v996, 2147483648
        %v1029 = vxor.u32 %v997, 2147483648
        %v1030 = vxor.u32 %v998, 2147483648
        %v1031 = vxor.u32 %v999, 2147483648
        %v1032 = vxor.u32 %v1000, 2147483648
        %v1033 = vxor.u32 %v1001, 2147483648
        %v1034 = vxor.u32 %v1002, 2147483648
        %v1035 = vxor.u32 %v1003, 2147483648
        %v1036 = vxor.u32 %v1004, 2147483648
        %v1037 = vxor.u32 %v1005, 2147483648
        %v1038 = vxor.u32 %v1006, 2147483648
        %v1039 = vxor.u32 %v1007, 2147483648
        %v1040 = vxor.u32 %v1008, 2147483648
        %v1041 = vxor.u32 %v1009, 2147483648
        %v1042 = vxor.u32 %v1010, 2147483648
        %v1043 = vxor.u32 %v1011, 2147483648
        %v1044 = vxor.u32 %v1012, 2147483648
        %v1045 = vxor.u32 %v1013, 2147483648
        %v1046 = vxor.u32 %v1014, 2147483648
        %v1047 = vxor.u32 %v1015, 2147483648
        %v1048 = vxor.u32 %v1016, 2147483648
        %v1049 = vxor.u32 %v1017, 2147483648
        %v1050 = vxor.u32 %v1018, 2147483648
        %v1051 = vxor.u32 %v1019, 2147483648
        %v1052 = vxor.u32 %v1020, 2147483648
        %v1053 = vmul.f32 %v1021, 1.442695
        %v1054 = vpow.pop %v1053
        %v1055 = vmul.f32 %v1022, 1.442695
        %v1056 = vpow.pop %v1055
        %v1057 = vmul.f32 %v1023, 1.442695
        %v1058 = vpow.pop %v1057
        %v1059 = vmul.f32 %v1024, 1.442695
        %v1060 = vpow.pop %v1059
        %v1061 = vmul.f32 %v1025, 1.442695
        %v1062 = vpow.pop %v1061
        %v1063 = vmul.f32 %v1026, 1.442695
        %v1064 = vpow.pop %v1063
        %v1065 = vmul.f32 %v1027, 1.442695
        %v1066 = vpow.pop %v1065
        %v1067 = vmul.f32 %v1028, 1.442695
        %v1068 = vpow.pop %v1067
        %v1069 = vmul.f32 %v1029, 1.442695
        %v1070 = vpow.pop %v1069
        %v1071 = vmul.f32 %v1030, 1.442695
        %v1072 = vpow.pop %v1071
        %v1073 = vmul.f32 %v1031, 1.442695
        %v1074 = vpow.pop %v1073
        %v1075 = vmul.f32 %v1032, 1.442695
        %v1076 = vpow.pop %v1075
        %v1077 = vmul.f32 %v1033, 1.442695
        %v1078 = vpow.pop %v1077
        %v1079 = vmul.f32 %v1034, 1.442695
        %v1080 = vpow.pop %v1079
        %v1081 = vmul.f32 %v1035, 1.442695
        %v1082 = vpow.pop %v1081
        %v1083 = vmul.f32 %v1036, 1.442695
        %v1084 = vpow.pop %v1083
        %v1085 = vmul.f32 %v1037, 1.442695
        %v1086 = vpow.pop %v1085
        %v1087 = vmul.f32 %v1038, 1.442695
        %v1088 = vpow.pop %v1087
        %v1089 = vmul.f32 %v1039, 1.442695
        %v1090 = vpow.pop %v1089
        %v1091 = vmul.f32 %v1040, 1.442695
        %v1092 = vpow.pop %v1091
        %v1093 = vmul.f32 %v1041, 1.442695
        %v1094 = vpow.pop %v1093
        %v1095 = vmul.f32 %v1042, 1.442695
        %v1096 = vpow.pop %v1095
        %v1097 = vmul.f32 %v1043, 1.442695
        %v1098 = vpow.pop %v1097
        %v1099 = vmul.f32 %v1044, 1.442695
        %v1100 = vpow.pop %v1099
        %v1101 = vmul.f32 %v1045, 1.442695
        %v1102 = vpow.pop %v1101
        %v1103 = vmul.f32 %v1046, 1.442695
        %v1104 = vpow.pop %v1103
        %v1105 = vmul.f32 %v1047, 1.442695
        %v1106 = vpow.pop %v1105
        %v1107 = vmul.f32 %v1048, 1.442695
        %v1108 = vpow.pop %v1107
        %v1109 = vmul.f32 %v1049, 1.442695
        %v1110 = vpow.pop %v1109
        %v1111 = vmul.f32 %v1050, 1.442695
        %v1112 = vpow.pop %v1111
        %v1113 = vmul.f32 %v1051, 1.442695
        %v1114 = vpow.pop %v1113
        %v1115 = vmul.f32 %v1052, 1.442695
        %v1116 = vpow.pop %v1115
        %v1117 = vadd.f32 %v1054, 1.0
        %v1118 = vadd.f32 %v1056, 1.0
        %v1119 = vadd.f32 %v1058, 1.0
        %v1120 = vadd.f32 %v1060, 1.0
        %v1121 = vadd.f32 %v1062, 1.0
        %v1122 = vadd.f32 %v1064, 1.0
        %v1123 = vadd.f32 %v1066, 1.0
        %v1124 = vadd.f32 %v1068, 1.0
        %v1125 = vadd.f32 %v1070, 1.0
        %v1126 = vadd.f32 %v1072, 1.0
        %v1127 = vadd.f32 %v1074, 1.0
        %v1128 = vadd.f32 %v1076, 1.0
        %v1129 = vadd.f32 %v1078, 1.0
        %v1130 = vadd.f32 %v1080, 1.0
        %v1131 = vadd.f32 %v1082, 1.0
        %v1132 = vadd.f32 %v1084, 1.0
        %v1133 = vadd.f32 %v1086, 1.0
        %v1134 = vadd.f32 %v1088, 1.0
        %v1135 = vadd.f32 %v1090, 1.0
        %v1136 = vadd.f32 %v1092, 1.0
        %v1137 = vadd.f32 %v1094, 1.0
        %v1138 = vadd.f32 %v1096, 1.0
        %v1139 = vadd.f32 %v1098, 1.0
        %v1140 = vadd.f32 %v1100, 1.0
        %v1141 = vadd.f32 %v1102, 1.0
        %v1142 = vadd.f32 %v1104, 1.0
        %v1143 = vadd.f32 %v1106, 1.0
        %v1144 = vadd.f32 %v1108, 1.0
        %v1145 = vadd.f32 %v1110, 1.0
        %v1146 = vadd.f32 %v1112, 1.0
        %v1147 = vadd.f32 %v1114, 1.0
        %v1148 = vadd.f32 %v1116, 1.0
        %v1149 = vrcp.pop %v1117
        %v1150 = vmul.f32 1.0, %v1149
        %v1151 = vrcp.pop %v1118
        %v1152 = vmul.f32 1.0, %v1151
        %v1153 = vrcp.pop %v1119
        %v1154 = vmul.f32 1.0, %v1153
        %v1155 = vrcp.pop %v1120
        %v1156 = vmul.f32 1.0, %v1155
        %v1157 = vrcp.pop %v1121
        %v1158 = vmul.f32 1.0, %v1157
        %v1159 = vrcp.pop %v1122
        %v1160 = vmul.f32 1.0, %v1159
        %v1161 = vrcp.pop %v1123
        %v1162 = vmul.f32 1.0, %v1161
        %v1163 = vrcp.pop %v1124
        %v1164 = vmul.f32 1.0, %v1163
        %v1165 = vrcp.pop %v1125
        %v1166 = vmul.f32 1.0, %v1165
        %v1167 = vrcp.pop %v1126
        %v1168 = vmul.f32 1.0, %v1167
        %v1169 = vrcp.pop %v1127
        %v1170 = vmul.f32 1.0, %v1169
        %v1171 = vrcp.pop %v1128
        %v1172 = vmul.f32 1.0, %v1171
        %v1173 = vrcp.pop %v1129
        %v1174 = vmul.f32 1.0, %v1173
        %v1175 = vrcp.pop %v1130
        %v1176 = vmul.f32 1.0, %v1175
        %v1177 = vrcp.pop %v1131
        %v1178 = vmul.f32 1.0, %v1177
        %v1179 = vrcp.pop %v1132
        %v1180 = vmul.f32 1.0, %v1179
        %v1181 = vrcp.pop %v1133
        %v1182 = vmul.f32 1.0, %v1181
        %v1183 = vrcp.pop %v1134
        %v1184 = vmul.f32 1.0, %v1183
        %v1185 = vrcp.pop %v1135
        %v1186 = vmul.f32 1.0, %v1185
        %v1187 = vrcp.pop %v1136
        %v1188 = vmul.f32 1.0, %v1187
        %v1189 = vrcp.pop %v1137
        %v1190 = vmul.f32 1.0, %v1189
        %v1191 = vrcp.pop %v1138
        %v1192 = vmul.f32 1.0, %v1191
        %v1193 = vrcp.pop %v1139
        %v1194 = vmul.f32 1.0, %v1193
        %v1195 = vrcp.pop %v1140
        %v1196 = vmul.f32 1.0, %v1195
        %v1197 = vrcp.pop %v1141
        %v1198 = vmul.f32 1.0, %v1197
        %v1199 = vrcp.pop %v1142
        %v1200 = vmul.f32 1.0, %v1199
        %v1201 = vrcp.pop %v1143
        %v1202 = vmul.f32 1.0, %v1201
        %v1203 = vrcp.pop %v1144
        %v1204 = vmul.f32 1.0, %v1203
        %v1205 = vrcp.pop %v1145
        %v1206 = vmul.f32 1.0, %v1205
        %v1207 = vrcp.pop %v1146
        %v1208 = vmul.f32 1.0, %v1207
        %v1209 = vrcp.pop %v1147
        %v1210 = vmul.f32 1.0, %v1209
        %v1211 = vrcp.pop %v1148
        %v1212 = vmul.f32 1.0, %v1211
        %v1213 = vmul.f32 %v989, %v1150
        %v1214 = vmul.f32 %v990, %v1152
        %v1215 = vmul.f32 %v991, %v1154
        %v1216 = vmul.f32 %v992, %v1156
        %v1217 = vmul.f32 %v993, %v1158
        %v1218 = vmul.f32 %v994, %v1160
        %v1219 = vmul.f32 %v995, %v1162
        %v1220 = vmul.f32 %v996, %v1164
        %v1221 = vmul.f32 %v997, %v1166
        %v1222 = vmul.f32 %v998, %v1168
        %v1223 = vmul.f32 %v999, %v1170
        %v1224 = vmul.f32 %v1000, %v1172
        %v1225 = vmul.f32 %v1001, %v1174
        %v1226 = vmul.f32 %v1002, %v1176
        %v1227 = vmul.f32 %v1003, %v1178
        %v1228 = vmul.f32 %v1004, %v1180
        %v1229 = vmul.f32 %v1005, %v1182
        %v1230 = vmul.f32 %v1006, %v1184
        %v1231 = vmul.f32 %v1007, %v1186
        %v1232 = vmul.f32 %v1008, %v1188
        %v1233 = vmul.f32 %v1009, %v1190
        %v1234 = vmul.f32 %v1010, %v1192
        %v1235 = vmul.f32 %v1011, %v1194
        %v1236 = vmul.f32 %v1012, %v1196
        %v1237 = vmul.f32 %v1013, %v1198
        %v1238 = vmul.f32 %v1014, %v1200
        %v1239 = vmul.f32 %v1015, %v1202
        %v1240 = vmul.f32 %v1016, %v1204
        %v1241 = vmul.f32 %v1017, %v1206
        %v1242 = vmul.f32 %v1018, %v1208
        %v1243 = vmul.f32 %v1019, %v1210
        %v1244 = vmul.f32 %v1020, %v1212
        %v1245 = vld [vmem:[%s7] sm:$0x1]
        %v1246 = vpack.c.bf16 %v1214, %v1213
        %v1247 = vpack.c.bf16 %v1216, %v1215
        %v1248 = vpack.c.bf16 %v1218, %v1217
        %v1249 = vpack.c.bf16 %v1220, %v1219
        %v1250 = vpack.c.bf16 %v1222, %v1221
        %v1251 = vpack.c.bf16 %v1224, %v1223
        %v1252 = vpack.c.bf16 %v1226, %v1225
        %v1253 = vpack.c.bf16 %v1228, %v1227
        %v1254 = vpack.c.bf16 %v1230, %v1229
        %v1255 = vpack.c.bf16 %v1232, %v1231
        %v1256 = vpack.c.bf16 %v1234, %v1233
        %v1257 = vpack.c.bf16 %v1236, %v1235
        %v1258 = vpack.c.bf16 %v1238, %v1237
        %v1259 = vpack.c.bf16 %v1240, %v1239
        %v1260 = vpack.c.bf16 %v1242, %v1241
        %v1261 = vpack.c.bf16 %v1244, %v1243
        %v1278 = vunpack.c.l.b16 %v1246
        %v1279 = vunpack.c.h.b16 %v1246
        %v1280 = vunpack.c.l.b16 %v1247
        %v1281 = vunpack.c.h.b16 %v1247
        %v1282 = vunpack.c.l.b16 %v1248
        %v1283 = vunpack.c.h.b16 %v1248
        %v1284 = vunpack.c.l.b16 %v1249
        %v1285 = vunpack.c.h.b16 %v1249
        %v1286 = vunpack.c.l.b16 %v1250
        %v1287 = vunpack.c.h.b16 %v1250
        %v1288 = vunpack.c.l.b16 %v1251
        %v1289 = vunpack.c.h.b16 %v1251
        %v1290 = vunpack.c.l.b16 %v1252
        %v1291 = vunpack.c.h.b16 %v1252
        %v1292 = vunpack.c.l.b16 %v1253
        %v1293 = vunpack.c.h.b16 %v1253
        %v1294 = vunpack.c.l.b16 %v1254
        %v1295 = vunpack.c.h.b16 %v1254
        %v1296 = vunpack.c.l.b16 %v1255
        %v1297 = vunpack.c.h.b16 %v1255
        %v1298 = vunpack.c.l.b16 %v1256
        %v1299 = vunpack.c.h.b16 %v1256
        %v1300 = vunpack.c.l.b16 %v1257
        %v1301 = vunpack.c.h.b16 %v1257
        %v1302 = vunpack.c.l.b16 %v1258
        %v1303 = vunpack.c.h.b16 %v1258
        %v1304 = vunpack.c.l.b16 %v1259
        %v1305 = vunpack.c.h.b16 %v1259
        %v1306 = vunpack.c.l.b16 %v1260
        %v1307 = vunpack.c.h.b16 %v1260
        %v1308 = vunpack.c.l.b16 %v1261
        %v1309 = vunpack.c.h.b16 %v1261
        %v1310 = vpack.c.b16 %v1278, %v1278
        %v1311 = vpack.c.b16 %v1279, %v1279
        %v1312 = vpack.c.b16 %v1280, %v1280
        %v1313 = vpack.c.b16 %v1281, %v1281
        %v1314 = vpack.c.b16 %v1282, %v1282
        %v1315 = vpack.c.b16 %v1283, %v1283
        %v1316 = vpack.c.b16 %v1284, %v1284
        %v1317 = vpack.c.b16 %v1285, %v1285
        %v1318 = vpack.c.b16 %v1286, %v1286
        %v1319 = vpack.c.b16 %v1287, %v1287
        %v1320 = vpack.c.b16 %v1288, %v1288
        %v1321 = vpack.c.b16 %v1289, %v1289
        %v1322 = vpack.c.b16 %v1290, %v1290
        %v1323 = vpack.c.b16 %v1291, %v1291
        %v1324 = vpack.c.b16 %v1292, %v1292
        %v1325 = vpack.c.b16 %v1293, %v1293
        %v1326 = vpack.c.b16 %v1294, %v1294
        %v1327 = vpack.c.b16 %v1295, %v1295
        %v1328 = vpack.c.b16 %v1296, %v1296
        %v1329 = vpack.c.b16 %v1297, %v1297
        %v1330 = vpack.c.b16 %v1298, %v1298
        %v1331 = vpack.c.b16 %v1299, %v1299
        %v1332 = vpack.c.b16 %v1300, %v1300
        %v1333 = vpack.c.b16 %v1301, %v1301
        %v1334 = vpack.c.b16 %v1302, %v1302
        %v1335 = vpack.c.b16 %v1303, %v1303
        %v1336 = vpack.c.b16 %v1304, %v1304
        %v1337 = vpack.c.b16 %v1305, %v1305
        %v1338 = vpack.c.b16 %v1306, %v1306
        %v1339 = vpack.c.b16 %v1307, %v1307
        %v1340 = vpack.c.b16 %v1308, %v1308
        %v1341 = vpack.c.b16 %v1309, %v1309
        %vm1342 = vsmask.f32 256
        %vm1343 = vsmask.f32 4368
        %vm1344 = vmor %vm1342, %vm1343
        %v1346 = vshrl.u32 %v1310, 16
        %v1348 = vrot.slane %v1346, 7
        %v1349 = vshll.u32 %v1310, 16
        %v1351 = vor.u32 %v1348, %v1349
        %v1352 = vrot.slane %v1348, 4
        %v1354 = vshrl.u32 %v1311, 16
        %v1356 = vrot.slane %v1354, 7
        %v1357 = vshll.u32 %v1311, 16
        %v1359 = vor.u32 %v1356, %v1357
        %v1360 = vsel %vm1344, %v1352, %v1359
        %v1361 = vrot.slane %v1356, 4
        %v1363 = vshrl.u32 %v1312, 16
        %v1365 = vrot.slane %v1363, 7
        %v1366 = vshll.u32 %v1312, 16
        %v1368 = vor.u32 %v1365, %v1366
        %v1369 = vrot.slane %v1365, 4
        %v1371 = vshrl.u32 %v1313, 16
        %v1373 = vrot.slane %v1371, 7
        %v1374 = vshll.u32 %v1313, 16
        %v1376 = vor.u32 %v1373, %v1374
        %v1377 = vsel %vm1344, %v1369, %v1376
        %v1378 = vrot.slane %v1373, 4
        %v1380 = vshrl.u32 %v1314, 16
        %v1382 = vrot.slane %v1380, 7
        %v1383 = vshll.u32 %v1314, 16
        %v1385 = vor.u32 %v1382, %v1383
        %v1386 = vrot.slane %v1382, 4
        %v1388 = vshrl.u32 %v1315, 16
        %v1390 = vrot.slane %v1388, 7
        %v1391 = vshll.u32 %v1315, 16
        %v1393 = vor.u32 %v1390, %v1391
        %v1394 = vsel %vm1344, %v1386, %v1393
        %v1395 = vrot.slane %v1390, 4
        %v1397 = vshrl.u32 %v1316, 16
        %v1399 = vrot.slane %v1397, 7
        %v1400 = vshll.u32 %v1316, 16
        %v1402 = vor.u32 %v1399, %v1400
        %v1403 = vrot.slane %v1399, 4
        %v1405 = vshrl.u32 %v1317, 16
        %v1407 = vrot.slane %v1405, 7
        %v1408 = vshll.u32 %v1317, 16
        %v1410 = vor.u32 %v1407, %v1408
        %v1411 = vsel %vm1344, %v1403, %v1410
        %v1412 = vrot.slane %v1407, 4
        %v1414 = vshrl.u32 %v1318, 16
        %v1416 = vrot.slane %v1414, 7
        %v1417 = vshll.u32 %v1318, 16
        %v1419 = vor.u32 %v1416, %v1417
        %v1420 = vrot.slane %v1416, 4
        %v1422 = vshrl.u32 %v1319, 16
        %v1424 = vrot.slane %v1422, 7
        %v1425 = vshll.u32 %v1319, 16
        %v1427 = vor.u32 %v1424, %v1425
        %v1428 = vsel %vm1344, %v1420, %v1427
        %v1429 = vrot.slane %v1424, 4
        %v1431 = vshrl.u32 %v1320, 16
        %v1433 = vrot.slane %v1431, 7
        %v1434 = vshll.u32 %v1320, 16
        %v1436 = vor.u32 %v1433, %v1434
        %v1437 = vrot.slane %v1433, 4
        %v1439 = vshrl.u32 %v1321, 16
        %v1441 = vrot.slane %v1439, 7
        %v1442 = vshll.u32 %v1321, 16
        %v1444 = vor.u32 %v1441, %v1442
        %v1445 = vsel %vm1344, %v1437, %v1444
        %v1446 = vrot.slane %v1441, 4
        %v1448 = vshrl.u32 %v1322, 16
        %v1450 = vrot.slane %v1448, 7
        %v1451 = vshll.u32 %v1322, 16
        %v1453 = vor.u32 %v1450, %v1451
        %v1454 = vrot.slane %v1450, 4
        %v1456 = vshrl.u32 %v1323, 16
        %v1458 = vrot.slane %v1456, 7
        %v1459 = vshll.u32 %v1323, 16
        %v1461 = vor.u32 %v1458, %v1459
        %v1462 = vsel %vm1344, %v1454, %v1461
        %v1463 = vrot.slane %v1458, 4
        %v1465 = vshrl.u32 %v1324, 16
        %v1467 = vrot.slane %v1465, 7
        %v1468 = vshll.u32 %v1324, 16
        %v1470 = vor.u32 %v1467, %v1468
        %v1471 = vrot.slane %v1467, 4
        %v1473 = vshrl.u32 %v1325, 16
        %v1475 = vrot.slane %v1473, 7
        %v1476 = vshll.u32 %v1325, 16
        %v1478 = vor.u32 %v1475, %v1476
        %v1479 = vsel %vm1344, %v1471, %v1478
        %v1480 = vrot.slane %v1475, 4
        %v1482 = vshrl.u32 %v1326, 16
        %v1484 = vrot.slane %v1482, 7
        %v1485 = vshll.u32 %v1326, 16
        %v1487 = vor.u32 %v1484, %v1485
        %v1488 = vrot.slane %v1484, 4
        %v1490 = vshrl.u32 %v1327, 16
        %v1492 = vrot.slane %v1490, 7
        %v1493 = vshll.u32 %v1327, 16
        %v1495 = vor.u32 %v1492, %v1493
        %v1496 = vsel %vm1344, %v1488, %v1495
        %v1497 = vrot.slane %v1492, 4
        %v1499 = vshrl.u32 %v1328, 16
        %v1501 = vrot.slane %v1499, 7
        %v1502 = vshll.u32 %v1328, 16
        %v1504 = vor.u32 %v1501, %v1502
        %v1505 = vrot.slane %v1501, 4
        %v1507 = vshrl.u32 %v1329, 16
        %v1509 = vrot.slane %v1507, 7
        %v1510 = vshll.u32 %v1329, 16
        %v1512 = vor.u32 %v1509, %v1510
        %v1513 = vsel %vm1344, %v1505, %v1512
        %v1514 = vrot.slane %v1509, 4
        %v1516 = vshrl.u32 %v1330, 16
        %v1518 = vrot.slane %v1516, 7
        %v1519 = vshll.u32 %v1330, 16
        %v1521 = vor.u32 %v1518, %v1519
        %v1522 = vrot.slane %v1518, 4
        %v1524 = vshrl.u32 %v1331, 16
        %v1526 = vrot.slane %v1524, 7
        %v1527 = vshll.u32 %v1331, 16
        %v1529 = vor.u32 %v1526, %v1527
        %v1530 = vsel %vm1344, %v1522, %v1529
        %v1531 = vrot.slane %v1526, 4
        %v1533 = vshrl.u32 %v1332, 16
        %v1535 = vrot.slane %v1533, 7
        %v1536 = vshll.u32 %v1332, 16
        %v1538 = vor.u32 %v1535, %v1536
        %v1539 = vrot.slane %v1535, 4
        %v1541 = vshrl.u32 %v1333, 16
        %v1543 = vrot.slane %v1541, 7
        %v1544 = vshll.u32 %v1333, 16
        %v1546 = vor.u32 %v1543, %v1544
        %v1547 = vsel %vm1344, %v1539, %v1546
        %v1548 = vrot.slane %v1543, 4
        %v1550 = vshrl.u32 %v1334, 16
        %v1552 = vrot.slane %v1550, 7
        %v1553 = vshll.u32 %v1334, 16
        %v1555 = vor.u32 %v1552, %v1553
        %v1556 = vrot.slane %v1552, 4
        %v1558 = vshrl.u32 %v1335, 16
        %v1560 = vrot.slane %v1558, 7
        %v1561 = vshll.u32 %v1335, 16
        %v1563 = vor.u32 %v1560, %v1561
        %v1564 = vsel %vm1344, %v1556, %v1563
        %v1565 = vrot.slane %v1560, 4
        %v1567 = vshrl.u32 %v1336, 16
        %v1569 = vrot.slane %v1567, 7
        %v1570 = vshll.u32 %v1336, 16
        %v1572 = vor.u32 %v1569, %v1570
        %v1573 = vrot.slane %v1569, 4
        %v1575 = vshrl.u32 %v1337, 16
        %v1577 = vrot.slane %v1575, 7
        %v1578 = vshll.u32 %v1337, 16
        %v1580 = vor.u32 %v1577, %v1578
        %v1581 = vsel %vm1344, %v1573, %v1580
        %v1582 = vrot.slane %v1577, 4
        %v1584 = vshrl.u32 %v1338, 16
        %v1586 = vrot.slane %v1584, 7
        %v1587 = vshll.u32 %v1338, 16
        %v1589 = vor.u32 %v1586, %v1587
        %v1590 = vrot.slane %v1586, 4
        %v1592 = vshrl.u32 %v1339, 16
        %v1594 = vrot.slane %v1592, 7
        %v1595 = vshll.u32 %v1339, 16
        %v1597 = vor.u32 %v1594, %v1595
        %v1598 = vsel %vm1344, %v1590, %v1597
        %v1599 = vrot.slane %v1594, 4
        %v1601 = vshrl.u32 %v1340, 16
        %v1603 = vrot.slane %v1601, 7
        %v1604 = vshll.u32 %v1340, 16
        %v1606 = vor.u32 %v1603, %v1604
        %v1607 = vrot.slane %v1603, 4
        %v1609 = vshrl.u32 %v1341, 16
        %v1611 = vrot.slane %v1609, 7
        %v1612 = vshll.u32 %v1341, 16
        %v1614 = vor.u32 %v1611, %v1612
        %v1615 = vsel %vm1344, %v1607, %v1614
        %v1616 = vrot.slane %v1611, 4
        %s1665 = scalar_lea.vmem [#allocation2], 12
        %vm1666 = vcmask 257024
        %vm1667 = vsmask.f32 7938
        %vm1668 = vmand %vm1666, %vm1667
        %v1669 = vld [vmem:[%s1665] sm:$0xf]
        %v1670 = vsel %vm1668, %v1351, %v1669
        %1671 = vst [vmem:[%s1665] sm:$0xf] %v1670
        %vm1672 = vcmask 257024
        %1673 = vst.msk [vmem:[%s1665 + $0x4] sm:$0xf] %vm1672, %v1360
        %vm1674 = vcmask 253952
        %vm1675 = vmand %vm1674, %vm1342
        %v1676 = vld [vmem:[%s1665 + $0x8] sm:$0x1]
        %v1677 = vsel %vm1675, %v1361, %v1676
        %1678 = vst [vmem:[%s1665 + $0x8] sm:$0x1] %v1677
        %v1679 = vld [vmem:[%s1665 + $0xc] sm:$0xf]
        %v1680 = vsel %vm1668, %v1368, %v1679
        %1681 = vst [vmem:[%s1665 + $0xc] sm:$0xf] %v1680
        %1682 = vst.msk [vmem:[%s1665 + $0x10] sm:$0xf] %vm1672, %v1377
        %v1683 = vld [vmem:[%s1665 + $0x14] sm:$0x1]
        %v1684 = vsel %vm1675, %v1378, %v1683
        %1685 = vst [vmem:[%s1665 + $0x14] sm:$0x1] %v1684
        %v1686 = vld [vmem:[%s1665 + $0x18] sm:$0xf]
        %v1687 = vsel %vm1668, %v1385, %v1686
        %1688 = vst [vmem:[%s1665 + $0x18] sm:$0xf] %v1687
        %1689 = vst.msk [vmem:[%s1665 + $0x1c] sm:$0xf] %vm1672, %v1394
        %v1690 = vld [vmem:[%s1665 + $0x20] sm:$0x1]
        %v1691 = vsel %vm1675, %v1395, %v1690
        %1692 = vst [vmem:[%s1665 + $0x20] sm:$0x1] %v1691
        %v1693 = vld [vmem:[%s1665 + $0x24] sm:$0xf]
        %v1694 = vsel %vm1668, %v1402, %v1693
        %1695 = vst [vmem:[%s1665 + $0x24] sm:$0xf] %v1694
        %1696 = vst.msk [vmem:[%s1665 + $0x28] sm:$0xf] %vm1672, %v1411
        %v1697 = vld [vmem:[%s1665 + $0x2c] sm:$0x1]
        %v1698 = vsel %vm1675, %v1412, %v1697
        %1699 = vst [vmem:[%s1665 + $0x2c] sm:$0x1] %v1698
        %v1700 = vld [vmem:[%s1665 + $0x30] sm:$0xf]
        %v1701 = vsel %vm1668, %v1419, %v1700
        %1702 = vst [vmem:[%s1665 + $0x30] sm:$0xf] %v1701
        %1703 = vst.msk [vmem:[%s1665 + $0x34] sm:$0xf] %vm1672, %v1428
        %v1704 = vld [vmem:[%s1665 + $0x38] sm:$0x1]
        %v1705 = vsel %vm1675, %v1429, %v1704
        %1706 = vst [vmem:[%s1665 + $0x38] sm:$0x1] %v1705
        %v1707 = vld [vmem:[%s1665 + $0x3c] sm:$0xf]
        %v1708 = vsel %vm1668, %v1436, %v1707
        %1709 = vst [vmem:[%s1665 + $0x3c] sm:$0xf] %v1708
        %1710 = vst.msk [vmem:[%s1665 + $0x40] sm:$0xf] %vm1672, %v1445
        %v1711 = vld [vmem:[%s1665 + $0x44] sm:$0x1]
        %v1712 = vsel %vm1675, %v1446, %v1711
        %1713 = vst [vmem:[%s1665 + $0x44] sm:$0x1] %v1712
        %v1714 = vld [vmem:[%s1665 + $0x48] sm:$0xf]
        %v1715 = vsel %vm1668, %v1453, %v1714
        %1716 = vst [vmem:[%s1665 + $0x48] sm:$0xf] %v1715
        %1717 = vst.msk [vmem:[%s1665 + $0x4c] sm:$0xf] %vm1672, %v1462
        %v1718 = vld [vmem:[%s1665 + $0x50] sm:$0x1]
        %v1719 = vsel %vm1675, %v1463, %v1718
        %1720 = vst [vmem:[%s1665 + $0x50] sm:$0x1] %v1719
        %v1721 = vld [vmem:[%s1665 + $0x54] sm:$0xf]
        %v1722 = vsel %vm1668, %v1470, %v1721
        %1723 = vst [vmem:[%s1665 + $0x54] sm:$0xf] %v1722
        %1724 = vst.msk [vmem:[%s1665 + $0x58] sm:$0xf] %vm1672, %v1479
        %v1725 = vld [vmem:[%s1665 + $0x5c] sm:$0x1]
        %v1726 = vsel %vm1675, %v1480, %v1725
        %1727 = vst [vmem:[%s1665 + $0x5c] sm:$0x1] %v1726
        %v1728 = vld [vmem:[%s1665 + $0x60] sm:$0xf]
        %v1729 = vsel %vm1668, %v1487, %v1728
        %1730 = vst [vmem:[%s1665 + $0x60] sm:$0xf] %v1729
        %1731 = vst.msk [vmem:[%s1665 + $0x64] sm:$0xf] %vm1672, %v1496
        %v1732 = vld [vmem:[%s1665 + $0x68] sm:$0x1]
        %v1733 = vsel %vm1675, %v1497, %v1732
        %1734 = vst [vmem:[%s1665 + $0x68] sm:$0x1] %v1733
        %v1735 = vld [vmem:[%s1665 + $0x6c] sm:$0xf]
        %v1736 = vsel %vm1668, %v1504, %v1735
        %1737 = vst [vmem:[%s1665 + $0x6c] sm:$0xf] %v1736
        %1738 = vst.msk [vmem:[%s1665 + $0x70] sm:$0xf] %vm1672, %v1513
        %v1739 = vld [vmem:[%s1665 + $0x74] sm:$0x1]
        %v1740 = vsel %vm1675, %v1514, %v1739
        %1741 = vst [vmem:[%s1665 + $0x74] sm:$0x1] %v1740
        %v1742 = vld [vmem:[%s1665 + $0x78] sm:$0xf]
        %v1743 = vsel %vm1668, %v1521, %v1742
        %1744 = vst [vmem:[%s1665 + $0x78] sm:$0xf] %v1743
        %1745 = vst.msk [vmem:[%s1665 + $0x7c] sm:$0xf] %vm1672, %v1530
        %v1746 = vld [vmem:[%s1665 + $0x80] sm:$0x1]
        %v1747 = vsel %vm1675, %v1531, %v1746
        %1748 = vst [vmem:[%s1665 + $0x80] sm:$0x1] %v1747
        %v1749 = vld [vmem:[%s1665 + $0x84] sm:$0xf]
        %v1750 = vsel %vm1668, %v1538, %v1749
        %1751 = vst [vmem:[%s1665 + $0x84] sm:$0xf] %v1750
        %1752 = vst.msk [vmem:[%s1665 + $0x88] sm:$0xf] %vm1672, %v1547
        %v1753 = vld [vmem:[%s1665 + $0x8c] sm:$0x1]
        %v1754 = vsel %vm1675, %v1548, %v1753
        %1755 = vst [vmem:[%s1665 + $0x8c] sm:$0x1] %v1754
        %v1756 = vld [vmem:[%s1665 + $0x90] sm:$0xf]
        %v1757 = vsel %vm1668, %v1555, %v1756
        %1758 = vst [vmem:[%s1665 + $0x90] sm:$0xf] %v1757
        %1759 = vst.msk [vmem:[%s1665 + $0x94] sm:$0xf] %vm1672, %v1564
        %v1760 = vld [vmem:[%s1665 + $0x98] sm:$0x1]
        %v1761 = vsel %vm1675, %v1565, %v1760
        %1762 = vst [vmem:[%s1665 + $0x98] sm:$0x1] %v1761
        %v1763 = vld [vmem:[%s1665 + $0x9c] sm:$0xf]
        %v1764 = vsel %vm1668, %v1572, %v1763
        %1765 = vst [vmem:[%s1665 + $0x9c] sm:$0xf] %v1764
        %1766 = vst.msk [vmem:[%s1665 + $0xa0] sm:$0xf] %vm1672, %v1581
        %v1767 = vld [vmem:[%s1665 + $0xa4] sm:$0x1]
        %v1768 = vsel %vm1675, %v1582, %v1767
        %1769 = vst [vmem:[%s1665 + $0xa4] sm:$0x1] %v1768
        %v1770 = vld [vmem:[%s1665 + $0xa8] sm:$0xf]
        %v1771 = vsel %vm1668, %v1589, %v1770
        %1772 = vst [vmem:[%s1665 + $0xa8] sm:$0xf] %v1771
        %1773 = vst.msk [vmem:[%s1665 + $0xac] sm:$0xf] %vm1672, %v1598
        %v1774 = vld [vmem:[%s1665 + $0xb0] sm:$0x1]
        %v1775 = vsel %vm1675, %v1599, %v1774
        %1776 = vst [vmem:[%s1665 + $0xb0] sm:$0x1] %v1775
        %v1777 = vld [vmem:[%s1665 + $0xb4] sm:$0xf]
        %v1778 = vsel %vm1668, %v1606, %v1777
        %1779 = vst [vmem:[%s1665 + $0xb4] sm:$0xf] %v1778
        %1780 = vst.msk [vmem:[%s1665 + $0xb8] sm:$0xf] %vm1672, %v1615
        %v1781 = vld [vmem:[%s1665 + $0xbc] sm:$0x1]
        %v1782 = vsel %vm1675, %v1616, %v1781
        %1783 = vst [vmem:[%s1665 + $0xbc] sm:$0x1] %v1782
        %v1784 = vld [vmem:[#allocation2] sm:$0xf]
        %v1785 = vld [vmem:[#allocation2 + $0x4] sm:$0xf]
        %v1786 = vld [vmem:[#allocation2 + $0xc] sm:$0xf]
        %v1787 = vld [vmem:[#allocation2 + $0x10] sm:$0xf]
        %v1788 = vld [vmem:[#allocation2 + $0x18] sm:$0xf]
        %v1789 = vld [vmem:[#allocation2 + $0x1c] sm:$0xf]
        %v1790 = vld [vmem:[#allocation2 + $0x24] sm:$0xf]
        %v1791 = vld [vmem:[#allocation2 + $0x28] sm:$0xf]
        %v1792 = vld [vmem:[#allocation2 + $0x30] sm:$0xf]
        %v1793 = vld [vmem:[#allocation2 + $0x34] sm:$0xf]
        %v1794 = vld [vmem:[#allocation2 + $0x3c] sm:$0xf]
        %v1795 = vld [vmem:[#allocation2 + $0x40] sm:$0xf]
        %v1796 = vld [vmem:[#allocation2 + $0x48] sm:$0xf]
        %v1797 = vld [vmem:[#allocation2 + $0x4c] sm:$0xf]
        %v1798 = vld [vmem:[#allocation2 + $0x54] sm:$0xf]
        %v1799 = vld [vmem:[#allocation2 + $0x58] sm:$0xf]
        %v1800 = vld [vmem:[#allocation2 + $0x60] sm:$0xf]
        %v1801 = vld [vmem:[#allocation2 + $0x64] sm:$0xf]
        %v1802 = vld [vmem:[#allocation2 + $0x6c] sm:$0xf]
        %v1803 = vld [vmem:[#allocation2 + $0x70] sm:$0xf]
        %v1804 = vld [vmem:[#allocation2 + $0x78] sm:$0xf]
        %v1805 = vld [vmem:[#allocation2 + $0x7c] sm:$0xf]
        %v1806 = vld [vmem:[#allocation2 + $0x84] sm:$0xf]
        %v1807 = vld [vmem:[#allocation2 + $0x88] sm:$0xf]
        %v1808 = vld [vmem:[#allocation2 + $0x90] sm:$0xf]
        %v1809 = vld [vmem:[#allocation2 + $0x94] sm:$0xf]
        %v1810 = vld [vmem:[#allocation2 + $0x9c] sm:$0xf]
        %v1811 = vld [vmem:[#allocation2 + $0xa0] sm:$0xf]
        %v1812 = vld [vmem:[#allocation2 + $0xa8] sm:$0xf]
        %v1813 = vld [vmem:[#allocation2 + $0xac] sm:$0xf]
        %v1814 = vld [vmem:[#allocation2 + $0xb4] sm:$0xf]
        %v1815 = vld [vmem:[#allocation2 + $0xb8] sm:$0xf]
        %v1816 = vld [vmem:[#allocation2 + $0x8] sm:$0x1]
        %v1817 = vld [vmem:[#allocation2 + $0x14] sm:$0x1]
        %v1818 = vld [vmem:[#allocation2 + $0x20] sm:$0x1]
        %v1819 = vld [vmem:[#allocation2 + $0x2c] sm:$0x1]
        %v1820 = vld [vmem:[#allocation2 + $0x38] sm:$0x1]
        %v1821 = vld [vmem:[#allocation2 + $0x44] sm:$0x1]
        %v1822 = vld [vmem:[#allocation2 + $0x50] sm:$0x1]
        %v1823 = vld [vmem:[#allocation2 + $0x5c] sm:$0x1]
        %v1824 = vld [vmem:[#allocation2 + $0x68] sm:$0x1]
        %v1825 = vld [vmem:[#allocation2 + $0x74] sm:$0x1]
        %v1826 = vld [vmem:[#allocation2 + $0x80] sm:$0x1]
        %v1827 = vld [vmem:[#allocation2 + $0x8c] sm:$0x1]
        %v1828 = vld [vmem:[#allocation2 + $0x98] sm:$0x1]
        %v1829 = vld [vmem:[#allocation2 + $0xa4] sm:$0x1]
        %v1830 = vld [vmem:[#allocation2 + $0xb0] sm:$0x1]
        %v1831 = vld [vmem:[#allocation2 + $0xbc] sm:$0x1]
        %vm1832 = vsmask.f32 3328
        %vm1833 = vsmask.f32 7440
        %vm1834 = vmor %vm1832, %vm1833
        %v1836 = vshrl.u32 %v1784, 16
        %v1838 = vrot.slane %v1836, 4
        %v1839 = vshll.u32 %v1784, 16
        %v1841 = vrot.slane %v1839, 5
        %v1842 = vor.u32 %v1838, %v1841
        %v1843 = vrot.slane %v1842, 4
        %v1845 = vshll.u32 %v1785, 16
        %v1847 = vrot.slane %v1845, 5
        %v1848 = vsel %vm1834, %v1843, %v1847
        %v1849 = vshrl.u32 %v1785, 16
        %v1851 = vrot.slane %v1849, 4
        %v1852 = vor.u32 %v1851, %v1847
        %v1853 = vrot.slane %v1852, 4
        %v1855 = vshll.u32 %v1816, 16
        %v1857 = vrot.slane %v1855, 5
        %v1858 = vsel %vm1834, %v1853, %v1857
        %v1860 = vshrl.u32 %v1786, 16
        %v1862 = vrot.slane %v1860, 4
        %v1863 = vshll.u32 %v1786, 16
        %v1865 = vrot.slane %v1863, 5
        %v1866 = vor.u32 %v1862, %v1865
        %v1867 = vrot.slane %v1866, 4
        %v1869 = vshll.u32 %v1787, 16
        %v1871 = vrot.slane %v1869, 5
        %v1872 = vsel %vm1834, %v1867, %v1871
        %v1873 = vshrl.u32 %v1787, 16
        %v1875 = vrot.slane %v1873, 4
        %v1876 = vor.u32 %v1875, %v1871
        %v1877 = vrot.slane %v1876, 4
        %v1879 = vshll.u32 %v1817, 16
        %v1881 = vrot.slane %v1879, 5
        %v1882 = vsel %vm1834, %v1877, %v1881
        %v1884 = vshrl.u32 %v1788, 16
        %v1886 = vrot.slane %v1884, 4
        %v1887 = vshll.u32 %v1788, 16
        %v1889 = vrot.slane %v1887, 5
        %v1890 = vor.u32 %v1886, %v1889
        %v1891 = vrot.slane %v1890, 4
        %v1893 = vshll.u32 %v1789, 16
        %v1895 = vrot.slane %v1893, 5
        %v1896 = vsel %vm1834, %v1891, %v1895
        %v1897 = vshrl.u32 %v1789, 16
        %v1899 = vrot.slane %v1897, 4
        %v1900 = vor.u32 %v1899, %v1895
        %v1901 = vrot.slane %v1900, 4
        %v1903 = vshll.u32 %v1818, 16
        %v1905 = vrot.slane %v1903, 5
        %v1906 = vsel %vm1834, %v1901, %v1905
        %v1908 = vshrl.u32 %v1790, 16
        %v1910 = vrot.slane %v1908, 4
        %v1911 = vshll.u32 %v1790, 16
        %v1913 = vrot.slane %v1911, 5
        %v1914 = vor.u32 %v1910, %v1913
        %v1915 = vrot.slane %v1914, 4
        %v1917 = vshll.u32 %v1791, 16
        %v1919 = vrot.slane %v1917, 5
        %v1920 = vsel %vm1834, %v1915, %v1919
        %v1921 = vshrl.u32 %v1791, 16
        %v1923 = vrot.slane %v1921, 4
        %v1924 = vor.u32 %v1923, %v1919
        %v1925 = vrot.slane %v1924, 4
        %v1927 = vshll.u32 %v1819, 16
        %v1929 = vrot.slane %v1927, 5
        %v1930 = vsel %vm1834, %v1925, %v1929
        %v1932 = vshrl.u32 %v1792, 16
        %v1934 = vrot.slane %v1932, 4
        %v1935 = vshll.u32 %v1792, 16
        %v1937 = vrot.slane %v1935, 5
        %v1938 = vor.u32 %v1934, %v1937
        %v1939 = vrot.slane %v1938, 4
        %v1941 = vshll.u32 %v1793, 16
        %v1943 = vrot.slane %v1941, 5
        %v1944 = vsel %vm1834, %v1939, %v1943
        %v1945 = vshrl.u32 %v1793, 16
        %v1947 = vrot.slane %v1945, 4
        %v1948 = vor.u32 %v1947, %v1943
        %v1949 = vrot.slane %v1948, 4
        %v1951 = vshll.u32 %v1820, 16
        %v1953 = vrot.slane %v1951, 5
        %v1954 = vsel %vm1834, %v1949, %v1953
        %v1956 = vshrl.u32 %v1794, 16
        %v1958 = vrot.slane %v1956, 4
        %v1959 = vshll.u32 %v1794, 16
        %v1961 = vrot.slane %v1959, 5
        %v1962 = vor.u32 %v1958, %v1961
        %v1963 = vrot.slane %v1962, 4
        %v1965 = vshll.u32 %v1795, 16
        %v1967 = vrot.slane %v1965, 5
        %v1968 = vsel %vm1834, %v1963, %v1967
        %v1969 = vshrl.u32 %v1795, 16
        %v1971 = vrot.slane %v1969, 4
        %v1972 = vor.u32 %v1971, %v1967
        %v1973 = vrot.slane %v1972, 4
        %v1975 = vshll.u32 %v1821, 16
        %v1977 = vrot.slane %v1975, 5
        %v1978 = vsel %vm1834, %v1973, %v1977
        %v1980 = vshrl.u32 %v1796, 16
        %v1982 = vrot.slane %v1980, 4
        %v1983 = vshll.u32 %v1796, 16
        %v1985 = vrot.slane %v1983, 5
        %v1986 = vor.u32 %v1982, %v1985
        %v1987 = vrot.slane %v1986, 4
        %v1989 = vshll.u32 %v1797, 16
        %v1991 = vrot.slane %v1989, 5
        %v1992 = vsel %vm1834, %v1987, %v1991
        %v1993 = vshrl.u32 %v1797, 16
        %v1995 = vrot.slane %v1993, 4
        %v1996 = vor.u32 %v1995, %v1991
        %v1997 = vrot.slane %v1996, 4
        %v1999 = vshll.u32 %v1822, 16
        %v2001 = vrot.slane %v1999, 5
        %v2002 = vsel %vm1834, %v1997, %v2001
        %v2004 = vshrl.u32 %v1798, 16
        %v2006 = vrot.slane %v2004, 4
        %v2007 = vshll.u32 %v1798, 16
        %v2009 = vrot.slane %v2007, 5
        %v2010 = vor.u32 %v2006, %v2009
        %v2011 = vrot.slane %v2010, 4
        %v2013 = vshll.u32 %v1799, 16
        %v2015 = vrot.slane %v2013, 5
        %v2016 = vsel %vm1834, %v2011, %v2015
        %v2017 = vshrl.u32 %v1799, 16
        %v2019 = vrot.slane %v2017, 4
        %v2020 = vor.u32 %v2019, %v2015
        %v2021 = vrot.slane %v2020, 4
        %v2023 = vshll.u32 %v1823, 16
        %v2025 = vrot.slane %v2023, 5
        %v2026 = vsel %vm1834, %v2021, %v2025
        %v2028 = vshrl.u32 %v1800, 16
        %v2030 = vrot.slane %v2028, 4
        %v2031 = vshll.u32 %v1800, 16
        %v2033 = vrot.slane %v2031, 5
        %v2034 = vor.u32 %v2030, %v2033
        %v2035 = vrot.slane %v2034, 4
        %v2037 = vshll.u32 %v1801, 16
        %v2039 = vrot.slane %v2037, 5
        %v2040 = vsel %vm1834, %v2035, %v2039
        %v2041 = vshrl.u32 %v1801, 16
        %v2043 = vrot.slane %v2041, 4
        %v2044 = vor.u32 %v2043, %v2039
        %v2045 = vrot.slane %v2044, 4
        %v2047 = vshll.u32 %v1824, 16
        %v2049 = vrot.slane %v2047, 5
        %v2050 = vsel %vm1834, %v2045, %v2049
        %v2052 = vshrl.u32 %v1802, 16
        %v2054 = vrot.slane %v2052, 4
        %v2055 = vshll.u32 %v1802, 16
        %v2057 = vrot.slane %v2055, 5
        %v2058 = vor.u32 %v2054, %v2057
        %v2059 = vrot.slane %v2058, 4
        %v2061 = vshll.u32 %v1803, 16
        %v2063 = vrot.slane %v2061, 5
        %v2064 = vsel %vm1834, %v2059, %v2063
        %v2065 = vshrl.u32 %v1803, 16
        %v2067 = vrot.slane %v2065, 4
        %v2068 = vor.u32 %v2067, %v2063
        %v2069 = vrot.slane %v2068, 4
        %v2071 = vshll.u32 %v1825, 16
        %v2073 = vrot.slane %v2071, 5
        %v2074 = vsel %vm1834, %v2069, %v2073
        %v2076 = vshrl.u32 %v1804, 16
        %v2078 = vrot.slane %v2076, 4
        %v2079 = vshll.u32 %v1804, 16
        %v2081 = vrot.slane %v2079, 5
        %v2082 = vor.u32 %v2078, %v2081
        %v2083 = vrot.slane %v2082, 4
        %v2085 = vshll.u32 %v1805, 16
        %v2087 = vrot.slane %v2085, 5
        %v2088 = vsel %vm1834, %v2083, %v2087
        %v2089 = vshrl.u32 %v1805, 16
        %v2091 = vrot.slane %v2089, 4
        %v2092 = vor.u32 %v2091, %v2087
        %v2093 = vrot.slane %v2092, 4
        %v2095 = vshll.u32 %v1826, 16
        %v2097 = vrot.slane %v2095, 5
        %v2098 = vsel %vm1834, %v2093, %v2097
        %v2100 = vshrl.u32 %v1806, 16
        %v2102 = vrot.slane %v2100, 4
        %v2103 = vshll.u32 %v1806, 16
        %v2105 = vrot.slane %v2103, 5
        %v2106 = vor.u32 %v2102, %v2105
        %v2107 = vrot.slane %v2106, 4
        %v2109 = vshll.u32 %v1807, 16
        %v2111 = vrot.slane %v2109, 5
        %v2112 = vsel %vm1834, %v2107, %v2111
        %v2113 = vshrl.u32 %v1807, 16
        %v2115 = vrot.slane %v2113, 4
        %v2116 = vor.u32 %v2115, %v2111
        %v2117 = vrot.slane %v2116, 4
        %v2119 = vshll.u32 %v1827, 16
        %v2121 = vrot.slane %v2119, 5
        %v2122 = vsel %vm1834, %v2117, %v2121
        %v2124 = vshrl.u32 %v1808, 16
        %v2126 = vrot.slane %v2124, 4
        %v2127 = vshll.u32 %v1808, 16
        %v2129 = vrot.slane %v2127, 5
        %v2130 = vor.u32 %v2126, %v2129
        %v2131 = vrot.slane %v2130, 4
        %v2133 = vshll.u32 %v1809, 16
        %v2135 = vrot.slane %v2133, 5
        %v2136 = vsel %vm1834, %v2131, %v2135
        %v2137 = vshrl.u32 %v1809, 16
        %v2139 = vrot.slane %v2137, 4
        %v2140 = vor.u32 %v2139, %v2135
        %v2141 = vrot.slane %v2140, 4
        %v2143 = vshll.u32 %v1828, 16
        %v2145 = vrot.slane %v2143, 5
        %v2146 = vsel %vm1834, %v2141, %v2145
        %v2148 = vshrl.u32 %v1810, 16
        %v2150 = vrot.slane %v2148, 4
        %v2151 = vshll.u32 %v1810, 16
        %v2153 = vrot.slane %v2151, 5
        %v2154 = vor.u32 %v2150, %v2153
        %v2155 = vrot.slane %v2154, 4
        %v2157 = vshll.u32 %v1811, 16
        %v2159 = vrot.slane %v2157, 5
        %v2160 = vsel %vm1834, %v2155, %v2159
        %v2161 = vshrl.u32 %v1811, 16
        %v2163 = vrot.slane %v2161, 4
        %v2164 = vor.u32 %v2163, %v2159
        %v2165 = vrot.slane %v2164, 4
        %v2167 = vshll.u32 %v1829, 16
        %v2169 = vrot.slane %v2167, 5
        %v2170 = vsel %vm1834, %v2165, %v2169
        %v2172 = vshrl.u32 %v1812, 16
        %v2174 = vrot.slane %v2172, 4
        %v2175 = vshll.u32 %v1812, 16
        %v2177 = vrot.slane %v2175, 5
        %v2178 = vor.u32 %v2174, %v2177
        %v2179 = vrot.slane %v2178, 4
        %v2181 = vshll.u32 %v1813, 16
        %v2183 = vrot.slane %v2181, 5
        %v2184 = vsel %vm1834, %v2179, %v2183
        %v2185 = vshrl.u32 %v1813, 16
        %v2187 = vrot.slane %v2185, 4
        %v2188 = vor.u32 %v2187, %v2183
        %v2189 = vrot.slane %v2188, 4
        %v2191 = vshll.u32 %v1830, 16
        %v2193 = vrot.slane %v2191, 5
        %v2194 = vsel %vm1834, %v2189, %v2193
        %v2196 = vshrl.u32 %v1814, 16
        %v2198 = vrot.slane %v2196, 4
        %v2199 = vshll.u32 %v1814, 16
        %v2201 = vrot.slane %v2199, 5
        %v2202 = vor.u32 %v2198, %v2201
        %v2203 = vrot.slane %v2202, 4
        %v2205 = vshll.u32 %v1815, 16
        %v2207 = vrot.slane %v2205, 5
        %v2208 = vsel %vm1834, %v2203, %v2207
        %v2209 = vshrl.u32 %v1815, 16
        %v2211 = vrot.slane %v2209, 4
        %v2212 = vor.u32 %v2211, %v2207
        %v2213 = vrot.slane %v2212, 4
        %v2215 = vshll.u32 %v1831, 16
        %v2217 = vrot.slane %v2215, 5
        %v2218 = vsel %vm1834, %v2213, %v2217
        %v2219 = vld [vmem:[#allocation2] sm:$0xe]
        %v2220 = vld [vmem:[#allocation2 + $0xc] sm:$0xe]
        %v2221 = vld [vmem:[#allocation2 + $0x18] sm:$0xe]
        %v2222 = vld [vmem:[#allocation2 + $0x24] sm:$0xe]
        %v2223 = vld [vmem:[#allocation2 + $0x30] sm:$0xe]
        %v2224 = vld [vmem:[#allocation2 + $0x3c] sm:$0xe]
        %v2225 = vld [vmem:[#allocation2 + $0x48] sm:$0xe]
        %v2226 = vld [vmem:[#allocation2 + $0x54] sm:$0xe]
        %v2227 = vld [vmem:[#allocation2 + $0x60] sm:$0xe]
        %v2228 = vld [vmem:[#allocation2 + $0x6c] sm:$0xe]
        %v2229 = vld [vmem:[#allocation2 + $0x78] sm:$0xe]
        %v2230 = vld [vmem:[#allocation2 + $0x84] sm:$0xe]
        %v2231 = vld [vmem:[#allocation2 + $0x90] sm:$0xe]
        %v2232 = vld [vmem:[#allocation2 + $0x9c] sm:$0xe]
        %v2233 = vld [vmem:[#allocation2 + $0xa8] sm:$0xe]
        %v2234 = vld [vmem:[#allocation2 + $0xb4] sm:$0xe]
        %vm2283 = vcmask 1042432
        %vm2284 = vcmask 1046532
        %vm2285 = vmor %vm2283, %vm2284
        %v2286 = vrot.slane %v2219, 5
        %v2287 = vrot.slane %v2286, 4
        %v2288 = vrot.slane %v1785, 5
        %v2289 = vsel %vm2285, %v2287, %v2288
        %v2290 = vrot.slane %v2288, 4
        %v2291 = vrot.slane %v1816, 5
        %v2292 = vsel %vm2285, %v2290, %v2291
        %v2293 = vrot.slane %v2220, 5
        %v2294 = vrot.slane %v2293, 4
        %v2295 = vrot.slane %v1787, 5
        %v2296 = vsel %vm2285, %v2294, %v2295
        %v2297 = vrot.slane %v2295, 4
        %v2298 = vrot.slane %v1817, 5
        %v2299 = vsel %vm2285, %v2297, %v2298
        %v2300 = vrot.slane %v2221, 5
        %v2301 = vrot.slane %v2300, 4
        %v2302 = vrot.slane %v1789, 5
        %v2303 = vsel %vm2285, %v2301, %v2302
        %v2304 = vrot.slane %v2302, 4
        %v2305 = vrot.slane %v1818, 5
        %v2306 = vsel %vm2285, %v2304, %v2305
        %v2307 = vrot.slane %v2222, 5
        %v2308 = vrot.slane %v2307, 4
        %v2309 = vrot.slane %v1791, 5
        %v2310 = vsel %vm2285, %v2308, %v2309
        %v2311 = vrot.slane %v2309, 4
        %v2312 = vrot.slane %v1819, 5
        %v2313 = vsel %vm2285, %v2311, %v2312
        %v2314 = vrot.slane %v2223, 5
        %v2315 = vrot.slane %v2314, 4
        %v2316 = vrot.slane %v1793, 5
        %v2317 = vsel %vm2285, %v2315, %v2316
        %v2318 = vrot.slane %v2316, 4
        %v2319 = vrot.slane %v1820, 5
        %v2320 = vsel %vm2285, %v2318, %v2319
        %v2321 = vrot.slane %v2224, 5
        %v2322 = vrot.slane %v2321, 4
        %v2323 = vrot.slane %v1795, 5
        %v2324 = vsel %vm2285, %v2322, %v2323
        %v2325 = vrot.slane %v2323, 4
        %v2326 = vrot.slane %v1821, 5
        %v2327 = vsel %vm2285, %v2325, %v2326
        %v2328 = vrot.slane %v2225, 5
        %v2329 = vrot.slane %v2328, 4
        %v2330 = vrot.slane %v1797, 5
        %v2331 = vsel %vm2285, %v2329, %v2330
        %v2332 = vrot.slane %v2330, 4
        %v2333 = vrot.slane %v1822, 5
        %v2334 = vsel %vm2285, %v2332, %v2333
        %v2335 = vrot.slane %v2226, 5
        %v2336 = vrot.slane %v2335, 4
        %v2337 = vrot.slane %v1799, 5
        %v2338 = vsel %vm2285, %v2336, %v2337
        %v2339 = vrot.slane %v2337, 4
        %v2340 = vrot.slane %v1823, 5
        %v2341 = vsel %vm2285, %v2339, %v2340
        %v2342 = vrot.slane %v2227, 5
        %v2343 = vrot.slane %v2342, 4
        %v2344 = vrot.slane %v1801, 5
        %v2345 = vsel %vm2285, %v2343, %v2344
        %v2346 = vrot.slane %v2344, 4
        %v2347 = vrot.slane %v1824, 5
        %v2348 = vsel %vm2285, %v2346, %v2347
        %v2349 = vrot.slane %v2228, 5
        %v2350 = vrot.slane %v2349, 4
        %v2351 = vrot.slane %v1803, 5
        %v2352 = vsel %vm2285, %v2350, %v2351
        %v2353 = vrot.slane %v2351, 4
        %v2354 = vrot.slane %v1825, 5
        %v2355 = vsel %vm2285, %v2353, %v2354
        %v2356 = vrot.slane %v2229, 5
        %v2357 = vrot.slane %v2356, 4
        %v2358 = vrot.slane %v1805, 5
        %v2359 = vsel %vm2285, %v2357, %v2358
        %v2360 = vrot.slane %v2358, 4
        %v2361 = vrot.slane %v1826, 5
        %v2362 = vsel %vm2285, %v2360, %v2361
        %v2363 = vrot.slane %v2230, 5
        %v2364 = vrot.slane %v2363, 4
        %v2365 = vrot.slane %v1807, 5
        %v2366 = vsel %vm2285, %v2364, %v2365
        %v2367 = vrot.slane %v2365, 4
        %v2368 = vrot.slane %v1827, 5
        %v2369 = vsel %vm2285, %v2367, %v2368
        %v2370 = vrot.slane %v2231, 5
        %v2371 = vrot.slane %v2370, 4
        %v2372 = vrot.slane %v1809, 5
        %v2373 = vsel %vm2285, %v2371, %v2372
        %v2374 = vrot.slane %v2372, 4
        %v2375 = vrot.slane %v1828, 5
        %v2376 = vsel %vm2285, %v2374, %v2375
        %v2377 = vrot.slane %v2232, 5
        %v2378 = vrot.slane %v2377, 4
        %v2379 = vrot.slane %v1811, 5
        %v2380 = vsel %vm2285, %v2378, %v2379
        %v2381 = vrot.slane %v2379, 4
        %v2382 = vrot.slane %v1829, 5
        %v2383 = vsel %vm2285, %v2381, %v2382
        %v2384 = vrot.slane %v2233, 5
        %v2385 = vrot.slane %v2384, 4
        %v2386 = vrot.slane %v1813, 5
        %v2387 = vsel %vm2285, %v2385, %v2386
        %v2388 = vrot.slane %v2386, 4
        %v2389 = vrot.slane %v1830, 5
        %v2390 = vsel %vm2285, %v2388, %v2389
        %v2391 = vrot.slane %v2234, 5
        %v2392 = vrot.slane %v2391, 4
        %v2393 = vrot.slane %v1815, 5
        %v2394 = vsel %vm2285, %v2392, %v2393
        %v2395 = vrot.slane %v2393, 4
        %v2396 = vrot.slane %v1831, 5
        %v2397 = vsel %vm2285, %v2395, %v2396
        %v2398 = vld [vmem:[%s1665] sm:$0xf]
        %v2399 = vld [vmem:[%s1665 + $0x4] sm:$0xf]
        %v2400 = vld [vmem:[%s1665 + $0xc] sm:$0xf]
        %v2401 = vld [vmem:[%s1665 + $0x10] sm:$0xf]
        %v2402 = vld [vmem:[%s1665 + $0x18] sm:$0xf]
        %v2403 = vld [vmem:[%s1665 + $0x1c] sm:$0xf]
        %v2404 = vld [vmem:[%s1665 + $0x24] sm:$0xf]
        %v2405 = vld [vmem:[%s1665 + $0x28] sm:$0xf]
        %v2406 = vld [vmem:[%s1665 + $0x30] sm:$0xf]
        %v2407 = vld [vmem:[%s1665 + $0x34] sm:$0xf]
        %v2408 = vld [vmem:[%s1665 + $0x3c] sm:$0xf]
        %v2409 = vld [vmem:[%s1665 + $0x40] sm:$0xf]
        %v2410 = vld [vmem:[%s1665 + $0x48] sm:$0xf]
        %v2411 = vld [vmem:[%s1665 + $0x4c] sm:$0xf]
        %v2412 = vld [vmem:[%s1665 + $0x54] sm:$0xf]
        %v2413 = vld [vmem:[%s1665 + $0x58] sm:$0xf]
        %v2414 = vld [vmem:[%s1665 + $0x60] sm:$0xf]
        %v2415 = vld [vmem:[%s1665 + $0x64] sm:$0xf]
        %v2416 = vld [vmem:[%s1665 + $0x6c] sm:$0xf]
        %v2417 = vld [vmem:[%s1665 + $0x70] sm:$0xf]
        %v2418 = vld [vmem:[%s1665 + $0x78] sm:$0xf]
        %v2419 = vld [vmem:[%s1665 + $0x7c] sm:$0xf]
        %v2420 = vld [vmem:[%s1665 + $0x84] sm:$0xf]
        %v2421 = vld [vmem:[%s1665 + $0x88] sm:$0xf]
        %v2422 = vld [vmem:[%s1665 + $0x90] sm:$0xf]
        %v2423 = vld [vmem:[%s1665 + $0x94] sm:$0xf]
        %v2424 = vld [vmem:[%s1665 + $0x9c] sm:$0xf]
        %v2425 = vld [vmem:[%s1665 + $0xa0] sm:$0xf]
        %v2426 = vld [vmem:[%s1665 + $0xa8] sm:$0xf]
        %v2427 = vld [vmem:[%s1665 + $0xac] sm:$0xf]
        %v2428 = vld [vmem:[%s1665 + $0xb4] sm:$0xf]
        %v2429 = vld [vmem:[%s1665 + $0xb8] sm:$0xf]
        %v2430 = vld [vmem:[%s1665 + $0x8] sm:$0x1]
        %v2431 = vld [vmem:[%s1665 + $0x14] sm:$0x1]
        %v2432 = vld [vmem:[%s1665 + $0x20] sm:$0x1]
        %v2433 = vld [vmem:[%s1665 + $0x2c] sm:$0x1]
        %v2434 = vld [vmem:[%s1665 + $0x38] sm:$0x1]
        %v2435 = vld [vmem:[%s1665 + $0x44] sm:$0x1]
        %v2436 = vld [vmem:[%s1665 + $0x50] sm:$0x1]
        %v2437 = vld [vmem:[%s1665 + $0x5c] sm:$0x1]
        %v2438 = vld [vmem:[%s1665 + $0x68] sm:$0x1]
        %v2439 = vld [vmem:[%s1665 + $0x74] sm:$0x1]
        %v2440 = vld [vmem:[%s1665 + $0x80] sm:$0x1]
        %v2441 = vld [vmem:[%s1665 + $0x8c] sm:$0x1]
        %v2442 = vld [vmem:[%s1665 + $0x98] sm:$0x1]
        %v2443 = vld [vmem:[%s1665 + $0xa4] sm:$0x1]
        %v2444 = vld [vmem:[%s1665 + $0xb0] sm:$0x1]
        %v2445 = vld [vmem:[%s1665 + $0xbc] sm:$0x1]
        %v2447 = vshrl.u32 %v2398, 16
        %v2449 = vrot.slane %v2447, 4
        %v2450 = vshll.u32 %v2398, 16
        %v2452 = vrot.slane %v2450, 5
        %v2453 = vor.u32 %v2449, %v2452
        %v2454 = vrot.slane %v2453, 4
        %v2456 = vshll.u32 %v2399, 16
        %v2458 = vrot.slane %v2456, 5
        %v2459 = vsel %vm1834, %v2454, %v2458
        %v2460 = vshrl.u32 %v2399, 16
        %v2462 = vrot.slane %v2460, 4
        %v2463 = vor.u32 %v2462, %v2458
        %v2464 = vrot.slane %v2463, 4
        %v2466 = vshll.u32 %v2430, 16
        %v2468 = vrot.slane %v2466, 5
        %v2469 = vsel %vm1834, %v2464, %v2468
        %v2471 = vshrl.u32 %v2400, 16
        %v2473 = vrot.slane %v2471, 4
        %v2474 = vshll.u32 %v2400, 16
        %v2476 = vrot.slane %v2474, 5
        %v2477 = vor.u32 %v2473, %v2476
        %v2478 = vrot.slane %v2477, 4
        %v2480 = vshll.u32 %v2401, 16
        %v2482 = vrot.slane %v2480, 5
        %v2483 = vsel %vm1834, %v2478, %v2482
        %v2484 = vshrl.u32 %v2401, 16
        %v2486 = vrot.slane %v2484, 4
        %v2487 = vor.u32 %v2486, %v2482
        %v2488 = vrot.slane %v2487, 4
        %v2490 = vshll.u32 %v2431, 16
        %v2492 = vrot.slane %v2490, 5
        %v2493 = vsel %vm1834, %v2488, %v2492
        %v2495 = vshrl.u32 %v2402, 16
        %v2497 = vrot.slane %v2495, 4
        %v2498 = vshll.u32 %v2402, 16
        %v2500 = vrot.slane %v2498, 5
        %v2501 = vor.u32 %v2497, %v2500
        %v2502 = vrot.slane %v2501, 4
        %v2504 = vshll.u32 %v2403, 16
        %v2506 = vrot.slane %v2504, 5
        %v2507 = vsel %vm1834, %v2502, %v2506
        %v2508 = vshrl.u32 %v2403, 16
        %v2510 = vrot.slane %v2508, 4
        %v2511 = vor.u32 %v2510, %v2506
        %v2512 = vrot.slane %v2511, 4
        %v2514 = vshll.u32 %v2432, 16
        %v2516 = vrot.slane %v2514, 5
        %v2517 = vsel %vm1834, %v2512, %v2516
        %v2519 = vshrl.u32 %v2404, 16
        %v2521 = vrot.slane %v2519, 4
        %v2522 = vshll.u32 %v2404, 16
        %v2524 = vrot.slane %v2522, 5
        %v2525 = vor.u32 %v2521, %v2524
        %v2526 = vrot.slane %v2525, 4
        %v2528 = vshll.u32 %v2405, 16
        %v2530 = vrot.slane %v2528, 5
        %v2531 = vsel %vm1834, %v2526, %v2530
        %v2532 = vshrl.u32 %v2405, 16
        %v2534 = vrot.slane %v2532, 4
        %v2535 = vor.u32 %v2534, %v2530
        %v2536 = vrot.slane %v2535, 4
        %v2538 = vshll.u32 %v2433, 16
        %v2540 = vrot.slane %v2538, 5
        %v2541 = vsel %vm1834, %v2536, %v2540
        %v2543 = vshrl.u32 %v2406, 16
        %v2545 = vrot.slane %v2543, 4
        %v2546 = vshll.u32 %v2406, 16
        %v2548 = vrot.slane %v2546, 5
        %v2549 = vor.u32 %v2545, %v2548
        %v2550 = vrot.slane %v2549, 4
        %v2552 = vshll.u32 %v2407, 16
        %v2554 = vrot.slane %v2552, 5
        %v2555 = vsel %vm1834, %v2550, %v2554
        %v2556 = vshrl.u32 %v2407, 16
        %v2558 = vrot.slane %v2556, 4
        %v2559 = vor.u32 %v2558, %v2554
        %v2560 = vrot.slane %v2559, 4
        %v2562 = vshll.u32 %v2434, 16
        %v2564 = vrot.slane %v2562, 5
        %v2565 = vsel %vm1834, %v2560, %v2564
        %v2567 = vshrl.u32 %v2408, 16
        %v2569 = vrot.slane %v2567, 4
        %v2570 = vshll.u32 %v2408, 16
        %v2572 = vrot.slane %v2570, 5
        %v2573 = vor.u32 %v2569, %v2572
        %v2574 = vrot.slane %v2573, 4
        %v2576 = vshll.u32 %v2409, 16
        %v2578 = vrot.slane %v2576, 5
        %v2579 = vsel %vm1834, %v2574, %v2578
        %v2580 = vshrl.u32 %v2409, 16
        %v2582 = vrot.slane %v2580, 4
        %v2583 = vor.u32 %v2582, %v2578
        %v2584 = vrot.slane %v2583, 4
        %v2586 = vshll.u32 %v2435, 16
        %v2588 = vrot.slane %v2586, 5
        %v2589 = vsel %vm1834, %v2584, %v2588
        %v2591 = vshrl.u32 %v2410, 16
        %v2593 = vrot.slane %v2591, 4
        %v2594 = vshll.u32 %v2410, 16
        %v2596 = vrot.slane %v2594, 5
        %v2597 = vor.u32 %v2593, %v2596
        %v2598 = vrot.slane %v2597, 4
        %v2600 = vshll.u32 %v2411, 16
        %v2602 = vrot.slane %v2600, 5
        %v2603 = vsel %vm1834, %v2598, %v2602
        %v2604 = vshrl.u32 %v2411, 16
        %v2606 = vrot.slane %v2604, 4
        %v2607 = vor.u32 %v2606, %v2602
        %v2608 = vrot.slane %v2607, 4
        %v2610 = vshll.u32 %v2436, 16
        %v2612 = vrot.slane %v2610, 5
        %v2613 = vsel %vm1834, %v2608, %v2612
        %v2615 = vshrl.u32 %v2412, 16
        %v2617 = vrot.slane %v2615, 4
        %v2618 = vshll.u32 %v2412, 16
        %v2620 = vrot.slane %v2618, 5
        %v2621 = vor.u32 %v2617, %v2620
        %v2622 = vrot.slane %v2621, 4
        %v2624 = vshll.u32 %v2413, 16
        %v2626 = vrot.slane %v2624, 5
        %v2627 = vsel %vm1834, %v2622, %v2626
        %v2628 = vshrl.u32 %v2413, 16
        %v2630 = vrot.slane %v2628, 4
        %v2631 = vor.u32 %v2630, %v2626
        %v2632 = vrot.slane %v2631, 4
        %v2634 = vshll.u32 %v2437, 16
        %v2636 = vrot.slane %v2634, 5
        %v2637 = vsel %vm1834, %v2632, %v2636
        %v2639 = vshrl.u32 %v2414, 16
        %v2641 = vrot.slane %v2639, 4
        %v2642 = vshll.u32 %v2414, 16
        %v2644 = vrot.slane %v2642, 5
        %v2645 = vor.u32 %v2641, %v2644
        %v2646 = vrot.slane %v2645, 4
        %v2648 = vshll.u32 %v2415, 16
        %v2650 = vrot.slane %v2648, 5
        %v2651 = vsel %vm1834, %v2646, %v2650
        %v2652 = vshrl.u32 %v2415, 16
        %v2654 = vrot.slane %v2652, 4
        %v2655 = vor.u32 %v2654, %v2650
        %v2656 = vrot.slane %v2655, 4
        %v2658 = vshll.u32 %v2438, 16
        %v2660 = vrot.slane %v2658, 5
        %v2661 = vsel %vm1834, %v2656, %v2660
        %v2663 = vshrl.u32 %v2416, 16
        %v2665 = vrot.slane %v2663, 4
        %v2666 = vshll.u32 %v2416, 16
        %v2668 = vrot.slane %v2666, 5
        %v2669 = vor.u32 %v2665, %v2668
        %v2670 = vrot.slane %v2669, 4
        %v2672 = vshll.u32 %v2417, 16
        %v2674 = vrot.slane %v2672, 5
        %v2675 = vsel %vm1834, %v2670, %v2674
        %v2676 = vshrl.u32 %v2417, 16
        %v2678 = vrot.slane %v2676, 4
        %v2679 = vor.u32 %v2678, %v2674
        %v2680 = vrot.slane %v2679, 4
        %v2682 = vshll.u32 %v2439, 16
        %v2684 = vrot.slane %v2682, 5
        %v2685 = vsel %vm1834, %v2680, %v2684
        %v2687 = vshrl.u32 %v2418, 16
        %v2689 = vrot.slane %v2687, 4
        %v2690 = vshll.u32 %v2418, 16
        %v2692 = vrot.slane %v2690, 5
        %v2693 = vor.u32 %v2689, %v2692
        %v2694 = vrot.slane %v2693, 4
        %v2696 = vshll.u32 %v2419, 16
        %v2698 = vrot.slane %v2696, 5
        %v2699 = vsel %vm1834, %v2694, %v2698
        %v2700 = vshrl.u32 %v2419, 16
        %v2702 = vrot.slane %v2700, 4
        %v2703 = vor.u32 %v2702, %v2698
        %v2704 = vrot.slane %v2703, 4
        %v2706 = vshll.u32 %v2440, 16
        %v2708 = vrot.slane %v2706, 5
        %v2709 = vsel %vm1834, %v2704, %v2708
        %v2711 = vshrl.u32 %v2420, 16
        %v2713 = vrot.slane %v2711, 4
        %v2714 = vshll.u32 %v2420, 16
        %v2716 = vrot.slane %v2714, 5
        %v2717 = vor.u32 %v2713, %v2716
        %v2718 = vrot.slane %v2717, 4
        %v2720 = vshll.u32 %v2421, 16
        %v2722 = vrot.slane %v2720, 5
        %v2723 = vsel %vm1834, %v2718, %v2722
        %v2724 = vshrl.u32 %v2421, 16
        %v2726 = vrot.slane %v2724, 4
        %v2727 = vor.u32 %v2726, %v2722
        %v2728 = vrot.slane %v2727, 4
        %v2730 = vshll.u32 %v2441, 16
        %v2732 = vrot.slane %v2730, 5
        %v2733 = vsel %vm1834, %v2728, %v2732
        %v2735 = vshrl.u32 %v2422, 16
        %v2737 = vrot.slane %v2735, 4
        %v2738 = vshll.u32 %v2422, 16
        %v2740 = vrot.slane %v2738, 5
        %v2741 = vor.u32 %v2737, %v2740
        %v2742 = vrot.slane %v2741, 4
        %v2744 = vshll.u32 %v2423, 16
        %v2746 = vrot.slane %v2744, 5
        %v2747 = vsel %vm1834, %v2742, %v2746
        %v2748 = vshrl.u32 %v2423, 16
        %v2750 = vrot.slane %v2748, 4
        %v2751 = vor.u32 %v2750, %v2746
        %v2752 = vrot.slane %v2751, 4
        %v2754 = vshll.u32 %v2442, 16
        %v2756 = vrot.slane %v2754, 5
        %v2757 = vsel %vm1834, %v2752, %v2756
        %v2759 = vshrl.u32 %v2424, 16
        %v2761 = vrot.slane %v2759, 4
        %v2762 = vshll.u32 %v2424, 16
        %v2764 = vrot.slane %v2762, 5
        %v2765 = vor.u32 %v2761, %v2764
        %v2766 = vrot.slane %v2765, 4
        %v2768 = vshll.u32 %v2425, 16
        %v2770 = vrot.slane %v2768, 5
        %v2771 = vsel %vm1834, %v2766, %v2770
        %v2772 = vshrl.u32 %v2425, 16
        %v2774 = vrot.slane %v2772, 4
        %v2775 = vor.u32 %v2774, %v2770
        %v2776 = vrot.slane %v2775, 4
        %v2778 = vshll.u32 %v2443, 16
        %v2780 = vrot.slane %v2778, 5
        %v2781 = vsel %vm1834, %v2776, %v2780
        %v2783 = vshrl.u32 %v2426, 16
        %v2785 = vrot.slane %v2783, 4
        %v2786 = vshll.u32 %v2426, 16
        %v2788 = vrot.slane %v2786, 5
        %v2789 = vor.u32 %v2785, %v2788
        %v2790 = vrot.slane %v2789, 4
        %v2792 = vshll.u32 %v2427, 16
        %v2794 = vrot.slane %v2792, 5
        %v2795 = vsel %vm1834, %v2790, %v2794
        %v2796 = vshrl.u32 %v2427, 16
        %v2798 = vrot.slane %v2796, 4
        %v2799 = vor.u32 %v2798, %v2794
        %v2800 = vrot.slane %v2799, 4
        %v2802 = vshll.u32 %v2444, 16
        %v2804 = vrot.slane %v2802, 5
        %v2805 = vsel %vm1834, %v2800, %v2804
        %v2807 = vshrl.u32 %v2428, 16
        %v2809 = vrot.slane %v2807, 4
        %v2810 = vshll.u32 %v2428, 16
        %v2812 = vrot.slane %v2810, 5
        %v2813 = vor.u32 %v2809, %v2812
        %v2814 = vrot.slane %v2813, 4
        %v2816 = vshll.u32 %v2429, 16
        %v2818 = vrot.slane %v2816, 5
        %v2819 = vsel %vm1834, %v2814, %v2818
        %v2820 = vshrl.u32 %v2429, 16
        %v2822 = vrot.slane %v2820, 4
        %v2823 = vor.u32 %v2822, %v2818
        %v2824 = vrot.slane %v2823, 4
        %v2826 = vshll.u32 %v2445, 16
        %v2828 = vrot.slane %v2826, 5
        %v2829 = vsel %vm1834, %v2824, %v2828
        %v2830 = vld [vmem:[%s1665] sm:$0xe]
        %v2831 = vld [vmem:[%s1665 + $0xc] sm:$0xe]
        %v2832 = vld [vmem:[%s1665 + $0x18] sm:$0xe]
        %v2833 = vld [vmem:[%s1665 + $0x24] sm:$0xe]
        %v2834 = vld [vmem:[%s1665 + $0x30] sm:$0xe]
        %v2835 = vld [vmem:[%s1665 + $0x3c] sm:$0xe]
        %v2836 = vld [vmem:[%s1665 + $0x48] sm:$0xe]
        %v2837 = vld [vmem:[%s1665 + $0x54] sm:$0xe]
        %v2838 = vld [vmem:[%s1665 + $0x60] sm:$0xe]
        %v2839 = vld [vmem:[%s1665 + $0x6c] sm:$0xe]
        %v2840 = vld [vmem:[%s1665 + $0x78] sm:$0xe]
        %v2841 = vld [vmem:[%s1665 + $0x84] sm:$0xe]
        %v2842 = vld [vmem:[%s1665 + $0x90] sm:$0xe]
        %v2843 = vld [vmem:[%s1665 + $0x9c] sm:$0xe]
        %v2844 = vld [vmem:[%s1665 + $0xa8] sm:$0xe]
        %v2845 = vld [vmem:[%s1665 + $0xb4] sm:$0xe]
        %v2894 = vrot.slane %v2830, 5
        %v2895 = vrot.slane %v2894, 4
        %v2896 = vrot.slane %v2399, 5
        %v2897 = vsel %vm2285, %v2895, %v2896
        %v2898 = vrot.slane %v2896, 4
        %v2899 = vrot.slane %v2430, 5
        %v2900 = vsel %vm2285, %v2898, %v2899
        %v2901 = vrot.slane %v2831, 5
        %v2902 = vrot.slane %v2901, 4
        %v2903 = vrot.slane %v2401, 5
        %v2904 = vsel %vm2285, %v2902, %v2903
        %v2905 = vrot.slane %v2903, 4
        %v2906 = vrot.slane %v2431, 5
        %v2907 = vsel %vm2285, %v2905, %v2906
        %v2908 = vrot.slane %v2832, 5
        %v2909 = vrot.slane %v2908, 4
        %v2910 = vrot.slane %v2403, 5
        %v2911 = vsel %vm2285, %v2909, %v2910
        %v2912 = vrot.slane %v2910, 4
        %v2913 = vrot.slane %v2432, 5
        %v2914 = vsel %vm2285, %v2912, %v2913
        %v2915 = vrot.slane %v2833, 5
        %v2916 = vrot.slane %v2915, 4
        %v2917 = vrot.slane %v2405, 5
        %v2918 = vsel %vm2285, %v2916, %v2917
        %v2919 = vrot.slane %v2917, 4
        %v2920 = vrot.slane %v2433, 5
        %v2921 = vsel %vm2285, %v2919, %v2920
        %v2922 = vrot.slane %v2834, 5
        %v2923 = vrot.slane %v2922, 4
        %v2924 = vrot.slane %v2407, 5
        %v2925 = vsel %vm2285, %v2923, %v2924
        %v2926 = vrot.slane %v2924, 4
        %v2927 = vrot.slane %v2434, 5
        %v2928 = vsel %vm2285, %v2926, %v2927
        %v2929 = vrot.slane %v2835, 5
        %v2930 = vrot.slane %v2929, 4
        %v2931 = vrot.slane %v2409, 5
        %v2932 = vsel %vm2285, %v2930, %v2931
        %v2933 = vrot.slane %v2931, 4
        %v2934 = vrot.slane %v2435, 5
        %v2935 = vsel %vm2285, %v2933, %v2934
        %v2936 = vrot.slane %v2836, 5
        %v2937 = vrot.slane %v2936, 4
        %v2938 = vrot.slane %v2411, 5
        %v2939 = vsel %vm2285, %v2937, %v2938
        %v2940 = vrot.slane %v2938, 4
        %v2941 = vrot.slane %v2436, 5
        %v2942 = vsel %vm2285, %v2940, %v2941
        %v2943 = vrot.slane %v2837, 5
        %v2944 = vrot.slane %v2943, 4
        %v2945 = vrot.slane %v2413, 5
        %v2946 = vsel %vm2285, %v2944, %v2945
        %v2947 = vrot.slane %v2945, 4
        %v2948 = vrot.slane %v2437, 5
        %v2949 = vsel %vm2285, %v2947, %v2948
        %v2950 = vrot.slane %v2838, 5
        %v2951 = vrot.slane %v2950, 4
        %v2952 = vrot.slane %v2415, 5
        %v2953 = vsel %vm2285, %v2951, %v2952
        %v2954 = vrot.slane %v2952, 4
        %v2955 = vrot.slane %v2438, 5
        %v2956 = vsel %vm2285, %v2954, %v2955
        %v2957 = vrot.slane %v2839, 5
        %v2958 = vrot.slane %v2957, 4
        %v2959 = vrot.slane %v2417, 5
        %v2960 = vsel %vm2285, %v2958, %v2959
        %v2961 = vrot.slane %v2959, 4
        %v2962 = vrot.slane %v2439, 5
        %v2963 = vsel %vm2285, %v2961, %v2962
        %v2964 = vrot.slane %v2840, 5
        %v2965 = vrot.slane %v2964, 4
        %v2966 = vrot.slane %v2419, 5
        %v2967 = vsel %vm2285, %v2965, %v2966
        %v2968 = vrot.slane %v2966, 4
        %v2969 = vrot.slane %v2440, 5
        %v2970 = vsel %vm2285, %v2968, %v2969
        %v2971 = vrot.slane %v2841, 5
        %v2972 = vrot.slane %v2971, 4
        %v2973 = vrot.slane %v2421, 5
        %v2974 = vsel %vm2285, %v2972, %v2973
        %v2975 = vrot.slane %v2973, 4
        %v2976 = vrot.slane %v2441, 5
        %v2977 = vsel %vm2285, %v2975, %v2976
        %v2978 = vrot.slane %v2842, 5
        %v2979 = vrot.slane %v2978, 4
        %v2980 = vrot.slane %v2423, 5
        %v2981 = vsel %vm2285, %v2979, %v2980
        %v2982 = vrot.slane %v2980, 4
        %v2983 = vrot.slane %v2442, 5
        %v2984 = vsel %vm2285, %v2982, %v2983
        %v2985 = vrot.slane %v2843, 5
        %v2986 = vrot.slane %v2985, 4
        %v2987 = vrot.slane %v2425, 5
        %v2988 = vsel %vm2285, %v2986, %v2987
        %v2989 = vrot.slane %v2987, 4
        %v2990 = vrot.slane %v2443, 5
        %v2991 = vsel %vm2285, %v2989, %v2990
        %v2992 = vrot.slane %v2844, 5
        %v2993 = vrot.slane %v2992, 4
        %v2994 = vrot.slane %v2427, 5
        %v2995 = vsel %vm2285, %v2993, %v2994
        %v2996 = vrot.slane %v2994, 4
        %v2997 = vrot.slane %v2444, 5
        %v2998 = vsel %vm2285, %v2996, %v2997
        %v2999 = vrot.slane %v2845, 5
        %v3000 = vrot.slane %v2999, 4
        %v3001 = vrot.slane %v2429, 5
        %v3002 = vsel %vm2285, %v3000, %v3001
        %v3003 = vrot.slane %v3001, 4
        %v3004 = vrot.slane %v2445, 5
        %v3005 = vsel %vm2285, %v3003, %v3004
        %s3006 = scalar_lea.vmem [#allocation2], 24
        %v3007 = vld [vmem:[%s3006] sm:$0xf]
        %v3008 = vld [vmem:[%s3006 + $0x4] sm:$0xf]
        %v3009 = vld [vmem:[%s3006 + $0xc] sm:$0xf]
        %v3010 = vld [vmem:[%s3006 + $0x10] sm:$0xf]
        %v3011 = vld [vmem:[%s3006 + $0x18] sm:$0xf]
        %v3012 = vld [vmem:[%s3006 + $0x1c] sm:$0xf]
        %v3013 = vld [vmem:[%s3006 + $0x24] sm:$0xf]
        %v3014 = vld [vmem:[%s3006 + $0x28] sm:$0xf]
        %v3015 = vld [vmem:[%s3006 + $0x30] sm:$0xf]
        %v3016 = vld [vmem:[%s3006 + $0x34] sm:$0xf]
        %v3017 = vld [vmem:[%s3006 + $0x3c] sm:$0xf]
        %v3018 = vld [vmem:[%s3006 + $0x40] sm:$0xf]
        %v3019 = vld [vmem:[%s3006 + $0x48] sm:$0xf]
        %v3020 = vld [vmem:[%s3006 + $0x4c] sm:$0xf]
        %v3021 = vld [vmem:[%s3006 + $0x54] sm:$0xf]
        %v3022 = vld [vmem:[%s3006 + $0x58] sm:$0xf]
        %v3023 = vld [vmem:[%s3006 + $0x60] sm:$0xf]
        %v3024 = vld [vmem:[%s3006 + $0x64] sm:$0xf]
        %v3025 = vld [vmem:[%s3006 + $0x6c] sm:$0xf]
        %v3026 = vld [vmem:[%s3006 + $0x70] sm:$0xf]
        %v3027 = vld [vmem:[%s3006 + $0x78] sm:$0xf]
        %v3028 = vld [vmem:[%s3006 + $0x7c] sm:$0xf]
        %v3029 = vld [vmem:[%s3006 + $0x84] sm:$0xf]
        %v3030 = vld [vmem:[%s3006 + $0x88] sm:$0xf]
        %v3031 = vld [vmem:[%s3006 + $0x90] sm:$0xf]
        %v3032 = vld [vmem:[%s3006 + $0x94] sm:$0xf]
        %v3033 = vld [vmem:[%s3006 + $0x9c] sm:$0xf]
        %v3034 = vld [vmem:[%s3006 + $0xa0] sm:$0xf]
        %v3035 = vld [vmem:[%s3006 + $0xa8] sm:$0xf]
        %v3036 = vld [vmem:[%s3006 + $0xac] sm:$0xf]
        %v3037 = vld [vmem:[%s3006 + $0xb4] sm:$0xf]
        %v3038 = vld [vmem:[%s3006 + $0xb8] sm:$0xf]
        %v3039 = vld [vmem:[%s3006 + $0x8] sm:$0x1]
        %v3040 = vld [vmem:[%s3006 + $0x14] sm:$0x1]
        %v3041 = vld [vmem:[%s3006 + $0x20] sm:$0x1]
        %v3042 = vld [vmem:[%s3006 + $0x2c] sm:$0x1]
        %v3043 = vld [vmem:[%s3006 + $0x38] sm:$0x1]
        %v3044 = vld [vmem:[%s3006 + $0x44] sm:$0x1]
        %v3045 = vld [vmem:[%s3006 + $0x50] sm:$0x1]
        %v3046 = vld [vmem:[%s3006 + $0x5c] sm:$0x1]
        %v3047 = vld [vmem:[%s3006 + $0x68] sm:$0x1]
        %v3048 = vld [vmem:[%s3006 + $0x74] sm:$0x1]
        %v3049 = vld [vmem:[%s3006 + $0x80] sm:$0x1]
        %v3050 = vld [vmem:[%s3006 + $0x8c] sm:$0x1]
        %v3051 = vld [vmem:[%s3006 + $0x98] sm:$0x1]
        %v3052 = vld [vmem:[%s3006 + $0xa4] sm:$0x1]
        %v3053 = vld [vmem:[%s3006 + $0xb0] sm:$0x1]
        %v3054 = vld [vmem:[%s3006 + $0xbc] sm:$0x1]
        %v3056 = vshrl.u32 %v3007, 16
        %v3058 = vrot.slane %v3056, 4
        %v3059 = vshll.u32 %v3007, 16
        %v3061 = vrot.slane %v3059, 5
        %v3062 = vor.u32 %v3058, %v3061
        %v3063 = vrot.slane %v3062, 4
        %v3065 = vshll.u32 %v3008, 16
        %v3067 = vrot.slane %v3065, 5
        %v3068 = vsel %vm1834, %v3063, %v3067
        %v3069 = vshrl.u32 %v3008, 16
        %v3071 = vrot.slane %v3069, 4
        %v3072 = vor.u32 %v3071, %v3067
        %v3073 = vrot.slane %v3072, 4
        %v3075 = vshll.u32 %v3039, 16
        %v3077 = vrot.slane %v3075, 5
        %v3078 = vsel %vm1834, %v3073, %v3077
        %v3080 = vshrl.u32 %v3009, 16
        %v3082 = vrot.slane %v3080, 4
        %v3083 = vshll.u32 %v3009, 16
        %v3085 = vrot.slane %v3083, 5
        %v3086 = vor.u32 %v3082, %v3085
        %v3087 = vrot.slane %v3086, 4
        %v3089 = vshll.u32 %v3010, 16
        %v3091 = vrot.slane %v3089, 5
        %v3092 = vsel %vm1834, %v3087, %v3091
        %v3093 = vshrl.u32 %v3010, 16
        %v3095 = vrot.slane %v3093, 4
        %v3096 = vor.u32 %v3095, %v3091
        %v3097 = vrot.slane %v3096, 4
        %v3099 = vshll.u32 %v3040, 16
        %v3101 = vrot.slane %v3099, 5
        %v3102 = vsel %vm1834, %v3097, %v3101
        %v3104 = vshrl.u32 %v3011, 16
        %v3106 = vrot.slane %v3104, 4
        %v3107 = vshll.u32 %v3011, 16
        %v3109 = vrot.slane %v3107, 5
        %v3110 = vor.u32 %v3106, %v3109
        %v3111 = vrot.slane %v3110, 4
        %v3113 = vshll.u32 %v3012, 16
        %v3115 = vrot.slane %v3113, 5
        %v3116 = vsel %vm1834, %v3111, %v3115
        %v3117 = vshrl.u32 %v3012, 16
        %v3119 = vrot.slane %v3117, 4
        %v3120 = vor.u32 %v3119, %v3115
        %v3121 = vrot.slane %v3120, 4
        %v3123 = vshll.u32 %v3041, 16
        %v3125 = vrot.slane %v3123, 5
        %v3126 = vsel %vm1834, %v3121, %v3125
        %v3128 = vshrl.u32 %v3013, 16
        %v3130 = vrot.slane %v3128, 4
        %v3131 = vshll.u32 %v3013, 16
        %v3133 = vrot.slane %v3131, 5
        %v3134 = vor.u32 %v3130, %v3133
        %v3135 = vrot.slane %v3134, 4
        %v3137 = vshll.u32 %v3014, 16
        %v3139 = vrot.slane %v3137, 5
        %v3140 = vsel %vm1834, %v3135, %v3139
        %v3141 = vshrl.u32 %v3014, 16
        %v3143 = vrot.slane %v3141, 4
        %v3144 = vor.u32 %v3143, %v3139
        %v3145 = vrot.slane %v3144, 4
        %v3147 = vshll.u32 %v3042, 16
        %v3149 = vrot.slane %v3147, 5
        %v3150 = vsel %vm1834, %v3145, %v3149
        %v3152 = vshrl.u32 %v3015, 16
        %v3154 = vrot.slane %v3152, 4
        %v3155 = vshll.u32 %v3015, 16
        %v3157 = vrot.slane %v3155, 5
        %v3158 = vor.u32 %v3154, %v3157
        %v3159 = vrot.slane %v3158, 4
        %v3161 = vshll.u32 %v3016, 16
        %v3163 = vrot.slane %v3161, 5
        %v3164 = vsel %vm1834, %v3159, %v3163
        %v3165 = vshrl.u32 %v3016, 16
        %v3167 = vrot.slane %v3165, 4
        %v3168 = vor.u32 %v3167, %v3163
        %v3169 = vrot.slane %v3168, 4
        %v3171 = vshll.u32 %v3043, 16
        %v3173 = vrot.slane %v3171, 5
        %v3174 = vsel %vm1834, %v3169, %v3173
        %v3176 = vshrl.u32 %v3017, 16
        %v3178 = vrot.slane %v3176, 4
        %v3179 = vshll.u32 %v3017, 16
        %v3181 = vrot.slane %v3179, 5
        %v3182 = vor.u32 %v3178, %v3181
        %v3183 = vrot.slane %v3182, 4
        %v3185 = vshll.u32 %v3018, 16
        %v3187 = vrot.slane %v3185, 5
        %v3188 = vsel %vm1834, %v3183, %v3187
        %v3189 = vshrl.u32 %v3018, 16
        %v3191 = vrot.slane %v3189, 4
        %v3192 = vor.u32 %v3191, %v3187
        %v3193 = vrot.slane %v3192, 4
        %v3195 = vshll.u32 %v3044, 16
        %v3197 = vrot.slane %v3195, 5
        %v3198 = vsel %vm1834, %v3193, %v3197
        %v3200 = vshrl.u32 %v3019, 16
        %v3202 = vrot.slane %v3200, 4
        %v3203 = vshll.u32 %v3019, 16
        %v3205 = vrot.slane %v3203, 5
        %v3206 = vor.u32 %v3202, %v3205
        %v3207 = vrot.slane %v3206, 4
        %v3209 = vshll.u32 %v3020, 16
        %v3211 = vrot.slane %v3209, 5
        %v3212 = vsel %vm1834, %v3207, %v3211
        %v3213 = vshrl.u32 %v3020, 16
        %v3215 = vrot.slane %v3213, 4
        %v3216 = vor.u32 %v3215, %v3211
        %v3217 = vrot.slane %v3216, 4
        %v3219 = vshll.u32 %v3045, 16
        %v3221 = vrot.slane %v3219, 5
        %v3222 = vsel %vm1834, %v3217, %v3221
        %v3224 = vshrl.u32 %v3021, 16
        %v3226 = vrot.slane %v3224, 4
        %v3227 = vshll.u32 %v3021, 16
        %v3229 = vrot.slane %v3227, 5
        %v3230 = vor.u32 %v3226, %v3229
        %v3231 = vrot.slane %v3230, 4
        %v3233 = vshll.u32 %v3022, 16
        %v3235 = vrot.slane %v3233, 5
        %v3236 = vsel %vm1834, %v3231, %v3235
        %v3237 = vshrl.u32 %v3022, 16
        %v3239 = vrot.slane %v3237, 4
        %v3240 = vor.u32 %v3239, %v3235
        %v3241 = vrot.slane %v3240, 4
        %v3243 = vshll.u32 %v3046, 16
        %v3245 = vrot.slane %v3243, 5
        %v3246 = vsel %vm1834, %v3241, %v3245
        %v3248 = vshrl.u32 %v3023, 16
        %v3250 = vrot.slane %v3248, 4
        %v3251 = vshll.u32 %v3023, 16
        %v3253 = vrot.slane %v3251, 5
        %v3254 = vor.u32 %v3250, %v3253
        %v3255 = vrot.slane %v3254, 4
        %v3257 = vshll.u32 %v3024, 16
        %v3259 = vrot.slane %v3257, 5
        %v3260 = vsel %vm1834, %v3255, %v3259
        %v3261 = vshrl.u32 %v3024, 16
        %v3263 = vrot.slane %v3261, 4
        %v3264 = vor.u32 %v3263, %v3259
        %v3265 = vrot.slane %v3264, 4
        %v3267 = vshll.u32 %v3047, 16
        %v3269 = vrot.slane %v3267, 5
        %v3270 = vsel %vm1834, %v3265, %v3269
        %v3272 = vshrl.u32 %v3025, 16
        %v3274 = vrot.slane %v3272, 4
        %v3275 = vshll.u32 %v3025, 16
        %v3277 = vrot.slane %v3275, 5
        %v3278 = vor.u32 %v3274, %v3277
        %v3279 = vrot.slane %v3278, 4
        %v3281 = vshll.u32 %v3026, 16
        %v3283 = vrot.slane %v3281, 5
        %v3284 = vsel %vm1834, %v3279, %v3283
        %v3285 = vshrl.u32 %v3026, 16
        %v3287 = vrot.slane %v3285, 4
        %v3288 = vor.u32 %v3287, %v3283
        %v3289 = vrot.slane %v3288, 4
        %v3291 = vshll.u32 %v3048, 16
        %v3293 = vrot.slane %v3291, 5
        %v3294 = vsel %vm1834, %v3289, %v3293
        %v3296 = vshrl.u32 %v3027, 16
        %v3298 = vrot.slane %v3296, 4
        %v3299 = vshll.u32 %v3027, 16
        %v3301 = vrot.slane %v3299, 5
        %v3302 = vor.u32 %v3298, %v3301
        %v3303 = vrot.slane %v3302, 4
        %v3305 = vshll.u32 %v3028, 16
        %v3307 = vrot.slane %v3305, 5
        %v3308 = vsel %vm1834, %v3303, %v3307
        %v3309 = vshrl.u32 %v3028, 16
        %v3311 = vrot.slane %v3309, 4
        %v3312 = vor.u32 %v3311, %v3307
        %v3313 = vrot.slane %v3312, 4
        %v3315 = vshll.u32 %v3049, 16
        %v3317 = vrot.slane %v3315, 5
        %v3318 = vsel %vm1834, %v3313, %v3317
        %v3320 = vshrl.u32 %v3029, 16
        %v3322 = vrot.slane %v3320, 4
        %v3323 = vshll.u32 %v3029, 16
        %v3325 = vrot.slane %v3323, 5
        %v3326 = vor.u32 %v3322, %v3325
        %v3327 = vrot.slane %v3326, 4
        %v3329 = vshll.u32 %v3030, 16
        %v3331 = vrot.slane %v3329, 5
        %v3332 = vsel %vm1834, %v3327, %v3331
        %v3333 = vshrl.u32 %v3030, 16
        %v3335 = vrot.slane %v3333, 4
        %v3336 = vor.u32 %v3335, %v3331
        %v3337 = vrot.slane %v3336, 4
        %v3339 = vshll.u32 %v3050, 16
        %v3341 = vrot.slane %v3339, 5
        %v3342 = vsel %vm1834, %v3337, %v3341
        %v3344 = vshrl.u32 %v3031, 16
        %v3346 = vrot.slane %v3344, 4
        %v3347 = vshll.u32 %v3031, 16
        %v3349 = vrot.slane %v3347, 5
        %v3350 = vor.u32 %v3346, %v3349
        %v3351 = vrot.slane %v3350, 4
        %v3353 = vshll.u32 %v3032, 16
        %v3355 = vrot.slane %v3353, 5
        %v3356 = vsel %vm1834, %v3351, %v3355
        %v3357 = vshrl.u32 %v3032, 16
        %v3359 = vrot.slane %v3357, 4
        %v3360 = vor.u32 %v3359, %v3355
        %v3361 = vrot.slane %v3360, 4
        %v3363 = vshll.u32 %v3051, 16
        %v3365 = vrot.slane %v3363, 5
        %v3366 = vsel %vm1834, %v3361, %v3365
        %v3368 = vshrl.u32 %v3033, 16
        %v3370 = vrot.slane %v3368, 4
        %v3371 = vshll.u32 %v3033, 16
        %v3373 = vrot.slane %v3371, 5
        %v3374 = vor.u32 %v3370, %v3373
        %v3375 = vrot.slane %v3374, 4
        %v3377 = vshll.u32 %v3034, 16
        %v3379 = vrot.slane %v3377, 5
        %v3380 = vsel %vm1834, %v3375, %v3379
        %v3381 = vshrl.u32 %v3034, 16
        %v3383 = vrot.slane %v3381, 4
        %v3384 = vor.u32 %v3383, %v3379
        %v3385 = vrot.slane %v3384, 4
        %v3387 = vshll.u32 %v3052, 16
        %v3389 = vrot.slane %v3387, 5
        %v3390 = vsel %vm1834, %v3385, %v3389
        %v3392 = vshrl.u32 %v3035, 16
        %v3394 = vrot.slane %v3392, 4
        %v3395 = vshll.u32 %v3035, 16
        %v3397 = vrot.slane %v3395, 5
        %v3398 = vor.u32 %v3394, %v3397
        %v3399 = vrot.slane %v3398, 4
        %v3401 = vshll.u32 %v3036, 16
        %v3403 = vrot.slane %v3401, 5
        %v3404 = vsel %vm1834, %v3399, %v3403
        %v3405 = vshrl.u32 %v3036, 16
        %v3407 = vrot.slane %v3405, 4
        %v3408 = vor.u32 %v3407, %v3403
        %v3409 = vrot.slane %v3408, 4
        %v3411 = vshll.u32 %v3053, 16
        %v3413 = vrot.slane %v3411, 5
        %v3414 = vsel %vm1834, %v3409, %v3413
        %v3416 = vshrl.u32 %v3037, 16
        %v3418 = vrot.slane %v3416, 4
        %v3419 = vshll.u32 %v3037, 16
        %v3421 = vrot.slane %v3419, 5
        %v3422 = vor.u32 %v3418, %v3421
        %v3423 = vrot.slane %v3422, 4
        %v3425 = vshll.u32 %v3038, 16
        %v3427 = vrot.slane %v3425, 5
        %v3428 = vsel %vm1834, %v3423, %v3427
        %v3429 = vshrl.u32 %v3038, 16
        %v3431 = vrot.slane %v3429, 4
        %v3432 = vor.u32 %v3431, %v3427
        %v3433 = vrot.slane %v3432, 4
        %v3435 = vshll.u32 %v3054, 16
        %v3437 = vrot.slane %v3435, 5
        %v3438 = vsel %vm1834, %v3433, %v3437
        %v3439 = vld [vmem:[%s3006] sm:$0xe]
        %v3440 = vld [vmem:[%s3006 + $0xc] sm:$0xe]
        %v3441 = vld [vmem:[%s3006 + $0x18] sm:$0xe]
        %v3442 = vld [vmem:[%s3006 + $0x24] sm:$0xe]
        %v3443 = vld [vmem:[%s3006 + $0x30] sm:$0xe]
        %v3444 = vld [vmem:[%s3006 + $0x3c] sm:$0xe]
        %v3445 = vld [vmem:[%s3006 + $0x48] sm:$0xe]
        %v3446 = vld [vmem:[%s3006 + $0x54] sm:$0xe]
        %v3447 = vld [vmem:[%s3006 + $0x60] sm:$0xe]
        %v3448 = vld [vmem:[%s3006 + $0x6c] sm:$0xe]
        %v3449 = vld [vmem:[%s3006 + $0x78] sm:$0xe]
        %v3450 = vld [vmem:[%s3006 + $0x84] sm:$0xe]
        %v3451 = vld [vmem:[%s3006 + $0x90] sm:$0xe]
        %v3452 = vld [vmem:[%s3006 + $0x9c] sm:$0xe]
        %v3453 = vld [vmem:[%s3006 + $0xa8] sm:$0xe]
        %v3454 = vld [vmem:[%s3006 + $0xb4] sm:$0xe]
        %v3503 = vrot.slane %v3439, 5
        %v3504 = vrot.slane %v3503, 4
        %v3505 = vrot.slane %v3008, 5
        %v3506 = vsel %vm2285, %v3504, %v3505
        %v3507 = vrot.slane %v3505, 4
        %v3508 = vrot.slane %v3039, 5
        %v3509 = vsel %vm2285, %v3507, %v3508
        %v3510 = vrot.slane %v3440, 5
        %v3511 = vrot.slane %v3510, 4
        %v3512 = vrot.slane %v3010, 5
        %v3513 = vsel %vm2285, %v3511, %v3512
        %v3514 = vrot.slane %v3512, 4
        %v3515 = vrot.slane %v3040, 5
        %v3516 = vsel %vm2285, %v3514, %v3515
        %v3517 = vrot.slane %v3441, 5
        %v3518 = vrot.slane %v3517, 4
        %v3519 = vrot.slane %v3012, 5
        %v3520 = vsel %vm2285, %v3518, %v3519
        %v3521 = vrot.slane %v3519, 4
        %v3522 = vrot.slane %v3041, 5
        %v3523 = vsel %vm2285, %v3521, %v3522
        %v3524 = vrot.slane %v3442, 5
        %v3525 = vrot.slane %v3524, 4
        %v3526 = vrot.slane %v3014, 5
        %v3527 = vsel %vm2285, %v3525, %v3526
        %v3528 = vrot.slane %v3526, 4
        %v3529 = vrot.slane %v3042, 5
        %v3530 = vsel %vm2285, %v3528, %v3529
        %v3531 = vrot.slane %v3443, 5
        %v3532 = vrot.slane %v3531, 4
        %v3533 = vrot.slane %v3016, 5
        %v3534 = vsel %vm2285, %v3532, %v3533
        %v3535 = vrot.slane %v3533, 4
        %v3536 = vrot.slane %v3043, 5
        %v3537 = vsel %vm2285, %v3535, %v3536
        %v3538 = vrot.slane %v3444, 5
        %v3539 = vrot.slane %v3538, 4
        %v3540 = vrot.slane %v3018, 5
        %v3541 = vsel %vm2285, %v3539, %v3540
        %v3542 = vrot.slane %v3540, 4
        %v3543 = vrot.slane %v3044, 5
        %v3544 = vsel %vm2285, %v3542, %v3543
        %v3545 = vrot.slane %v3445, 5
        %v3546 = vrot.slane %v3545, 4
        %v3547 = vrot.slane %v3020, 5
        %v3548 = vsel %vm2285, %v3546, %v3547
        %v3549 = vrot.slane %v3547, 4
        %v3550 = vrot.slane %v3045, 5
        %v3551 = vsel %vm2285, %v3549, %v3550
        %v3552 = vrot.slane %v3446, 5
        %v3553 = vrot.slane %v3552, 4
        %v3554 = vrot.slane %v3022, 5
        %v3555 = vsel %vm2285, %v3553, %v3554
        %v3556 = vrot.slane %v3554, 4
        %v3557 = vrot.slane %v3046, 5
        %v3558 = vsel %vm2285, %v3556, %v3557
        %v3559 = vrot.slane %v3447, 5
        %v3560 = vrot.slane %v3559, 4
        %v3561 = vrot.slane %v3024, 5
        %v3562 = vsel %vm2285, %v3560, %v3561
        %v3563 = vrot.slane %v3561, 4
        %v3564 = vrot.slane %v3047, 5
        %v3565 = vsel %vm2285, %v3563, %v3564
        %v3566 = vrot.slane %v3448, 5
        %v3567 = vrot.slane %v3566, 4
        %v3568 = vrot.slane %v3026, 5
        %v3569 = vsel %vm2285, %v3567, %v3568
        %v3570 = vrot.slane %v3568, 4
        %v3571 = vrot.slane %v3048, 5
        %v3572 = vsel %vm2285, %v3570, %v3571
        %v3573 = vrot.slane %v3449, 5
        %v3574 = vrot.slane %v3573, 4
        %v3575 = vrot.slane %v3028, 5
        %v3576 = vsel %vm2285, %v3574, %v3575
        %v3577 = vrot.slane %v3575, 4
        %v3578 = vrot.slane %v3049, 5
        %v3579 = vsel %vm2285, %v3577, %v3578
        %v3580 = vrot.slane %v3450, 5
        %v3581 = vrot.slane %v3580, 4
        %v3582 = vrot.slane %v3030, 5
        %v3583 = vsel %vm2285, %v3581, %v3582
        %v3584 = vrot.slane %v3582, 4
        %v3585 = vrot.slane %v3050, 5
        %v3586 = vsel %vm2285, %v3584, %v3585
        %v3587 = vrot.slane %v3451, 5
        %v3588 = vrot.slane %v3587, 4
        %v3589 = vrot.slane %v3032, 5
        %v3590 = vsel %vm2285, %v3588, %v3589
        %v3591 = vrot.slane %v3589, 4
        %v3592 = vrot.slane %v3051, 5
        %v3593 = vsel %vm2285, %v3591, %v3592
        %v3594 = vrot.slane %v3452, 5
        %v3595 = vrot.slane %v3594, 4
        %v3596 = vrot.slane %v3034, 5
        %v3597 = vsel %vm2285, %v3595, %v3596
        %v3598 = vrot.slane %v3596, 4
        %v3599 = vrot.slane %v3052, 5
        %v3600 = vsel %vm2285, %v3598, %v3599
        %v3601 = vrot.slane %v3453, 5
        %v3602 = vrot.slane %v3601, 4
        %v3603 = vrot.slane %v3036, 5
        %v3604 = vsel %vm2285, %v3602, %v3603
        %v3605 = vrot.slane %v3603, 4
        %v3606 = vrot.slane %v3053, 5
        %v3607 = vsel %vm2285, %v3605, %v3606
        %v3608 = vrot.slane %v3454, 5
        %v3609 = vrot.slane %v3608, 4
        %v3610 = vrot.slane %v3038, 5
        %v3611 = vsel %vm2285, %v3609, %v3610
        %v3612 = vrot.slane %v3610, 4
        %v3613 = vrot.slane %v3054, 5
        %v3614 = vsel %vm2285, %v3612, %v3613
        %v3631 = vunpack.c.l.b16 %v1784
        %v3632 = vunpack.c.l.b16 %v1785
        %v3633 = vunpack.c.l.b16 %v1786
        %v3634 = vunpack.c.l.b16 %v1787
        %v3635 = vunpack.c.l.b16 %v1788
        %v3636 = vunpack.c.l.b16 %v1789
        %v3637 = vunpack.c.l.b16 %v1790
        %v3638 = vunpack.c.l.b16 %v1791
        %v3639 = vunpack.c.l.b16 %v1792
        %v3640 = vunpack.c.l.b16 %v1793
        %v3641 = vunpack.c.l.b16 %v1794
        %v3642 = vunpack.c.l.b16 %v1795
        %v3643 = vunpack.c.l.b16 %v1796
        %v3644 = vunpack.c.l.b16 %v1797
        %v3645 = vunpack.c.l.b16 %v1798
        %v3646 = vunpack.c.l.b16 %v1799
        %v3647 = vunpack.c.l.b16 %v1800
        %v3648 = vunpack.c.l.b16 %v1801
        %v3649 = vunpack.c.l.b16 %v1802
        %v3650 = vunpack.c.l.b16 %v1803
        %v3651 = vunpack.c.l.b16 %v1804
        %v3652 = vunpack.c.l.b16 %v1805
        %v3653 = vunpack.c.l.b16 %v1806
        %v3654 = vunpack.c.l.b16 %v1807
        %v3655 = vunpack.c.l.b16 %v1808
        %v3656 = vunpack.c.l.b16 %v1809
        %v3657 = vunpack.c.l.b16 %v1810
        %v3658 = vunpack.c.l.b16 %v1811
        %v3659 = vunpack.c.l.b16 %v1812
        %v3660 = vunpack.c.l.b16 %v1813
        %v3661 = vunpack.c.l.b16 %v1814
        %v3662 = vunpack.c.l.b16 %v1815
        %v3663 = vpack.c.b16 %v3632, %v3631
        %v3664 = vpack.c.b16 %v3634, %v3633
        %v3665 = vpack.c.b16 %v3636, %v3635
        %v3666 = vpack.c.b16 %v3638, %v3637
        %v3667 = vpack.c.b16 %v3640, %v3639
        %v3668 = vpack.c.b16 %v3642, %v3641
        %v3669 = vpack.c.b16 %v3644, %v3643
        %v3670 = vpack.c.b16 %v3646, %v3645
        %v3671 = vpack.c.b16 %v3648, %v3647
        %v3672 = vpack.c.b16 %v3650, %v3649
        %v3673 = vpack.c.b16 %v3652, %v3651
        %v3674 = vpack.c.b16 %v3654, %v3653
        %v3675 = vpack.c.b16 %v3656, %v3655
        %v3676 = vpack.c.b16 %v3658, %v3657
        %v3677 = vpack.c.b16 %v3660, %v3659
        %v3678 = vpack.c.b16 %v3662, %v3661
        %v3679 = vunpack.c.l.b16 %v1848
        %v3680 = vunpack.c.l.b16 %v1858
        %v3681 = vunpack.c.l.b16 %v1872
        %v3682 = vunpack.c.l.b16 %v1882
        %v3683 = vunpack.c.l.b16 %v1896
        %v3684 = vunpack.c.l.b16 %v1906
        %v3685 = vunpack.c.l.b16 %v1920
        %v3686 = vunpack.c.l.b16 %v1930
        %v3687 = vunpack.c.l.b16 %v1944
        %v3688 = vunpack.c.l.b16 %v1954
        %v3689 = vunpack.c.l.b16 %v1968
        %v3690 = vunpack.c.l.b16 %v1978
        %v3691 = vunpack.c.l.b16 %v1992
        %v3692 = vunpack.c.l.b16 %v2002
        %v3693 = vunpack.c.l.b16 %v2016
        %v3694 = vunpack.c.l.b16 %v2026
        %v3695 = vunpack.c.l.b16 %v2040
        %v3696 = vunpack.c.l.b16 %v2050
        %v3697 = vunpack.c.l.b16 %v2064
        %v3698 = vunpack.c.l.b16 %v2074
        %v3699 = vunpack.c.l.b16 %v2088
        %v3700 = vunpack.c.l.b16 %v2098
        %v3701 = vunpack.c.l.b16 %v2112
        %v3702 = vunpack.c.l.b16 %v2122
        %v3703 = vunpack.c.l.b16 %v2136
        %v3704 = vunpack.c.l.b16 %v2146
        %v3705 = vunpack.c.l.b16 %v2160
        %v3706 = vunpack.c.l.b16 %v2170
        %v3707 = vunpack.c.l.b16 %v2184
        %v3708 = vunpack.c.l.b16 %v2194
        %v3709 = vunpack.c.l.b16 %v2208
        %v3710 = vunpack.c.l.b16 %v2218
        %v3711 = vpack.c.b16 %v3680, %v3679
        %v3712 = vpack.c.b16 %v3682, %v3681
        %v3713 = vpack.c.b16 %v3684, %v3683
        %v3714 = vpack.c.b16 %v3686, %v3685
        %v3715 = vpack.c.b16 %v3688, %v3687
        %v3716 = vpack.c.b16 %v3690, %v3689
        %v3717 = vpack.c.b16 %v3692, %v3691
        %v3718 = vpack.c.b16 %v3694, %v3693
        %v3719 = vpack.c.b16 %v3696, %v3695
        %v3720 = vpack.c.b16 %v3698, %v3697
        %v3721 = vpack.c.b16 %v3700, %v3699
        %v3722 = vpack.c.b16 %v3702, %v3701
        %v3723 = vpack.c.b16 %v3704, %v3703
        %v3724 = vpack.c.b16 %v3706, %v3705
        %v3725 = vpack.c.b16 %v3708, %v3707
        %v3726 = vpack.c.b16 %v3710, %v3709
        %3727 = vrot.lane.b32.xlu0 %v3711, 32
        %v3728 = vpop.permute.xlu0 %3727
        %3729 = vrot.lane.b32.xlu0 %v3712, 32
        %v3730 = vpop.permute.xlu0 %3729
        %3731 = vrot.lane.b32.xlu0 %v3713, 32
        %v3732 = vpop.permute.xlu0 %3731
        %3733 = vrot.lane.b32.xlu0 %v3714, 32
        %v3734 = vpop.permute.xlu0 %3733
        %3735 = vrot.lane.b32.xlu0 %v3715, 32
        %v3736 = vpop.permute.xlu0 %3735
        %3737 = vrot.lane.b32.xlu0 %v3716, 32
        %v3738 = vpop.permute.xlu0 %3737
        %3739 = vrot.lane.b32.xlu0 %v3717, 32
        %v3740 = vpop.permute.xlu0 %3739
        %3741 = vrot.lane.b32.xlu0 %v3718, 32
        %v3742 = vpop.permute.xlu0 %3741
        %3743 = vrot.lane.b32.xlu0 %v3719, 32
        %v3744 = vpop.permute.xlu0 %3743
        %3745 = vrot.lane.b32.xlu0 %v3720, 32
        %v3746 = vpop.permute.xlu0 %3745
        %3747 = vrot.lane.b32.xlu0 %v3721, 32
        %v3748 = vpop.permute.xlu0 %3747
        %3749 = vrot.lane.b32.xlu0 %v3722, 32
        %v3750 = vpop.permute.xlu0 %3749
        %3751 = vrot.lane.b32.xlu0 %v3723, 32
        %v3752 = vpop.permute.xlu0 %3751
        %3753 = vrot.lane.b32.xlu0 %v3724, 32
        %v3754 = vpop.permute.xlu0 %3753
        %3755 = vrot.lane.b32.xlu0 %v3725, 32
        %v3756 = vpop.permute.xlu0 %3755
        %3757 = vrot.lane.b32.xlu0 %v3726, 32
        %v3758 = vpop.permute.xlu0 %3757
        %v3759 = vunpack.c.l.b16 %v2289
        %v3760 = vunpack.c.l.b16 %v2292
        %v3761 = vunpack.c.l.b16 %v2296
        %v3762 = vunpack.c.l.b16 %v2299
        %v3763 = vunpack.c.l.b16 %v2303
        %v3764 = vunpack.c.l.b16 %v2306
        %v3765 = vunpack.c.l.b16 %v2310
        %v3766 = vunpack.c.l.b16 %v2313
        %v3767 = vunpack.c.l.b16 %v2317
        %v3768 = vunpack.c.l.b16 %v2320
        %v3769 = vunpack.c.l.b16 %v2324
        %v3770 = vunpack.c.l.b16 %v2327
        %v3771 = vunpack.c.l.b16 %v2331
        %v3772 = vunpack.c.l.b16 %v2334
        %v3773 = vunpack.c.l.b16 %v2338
        %v3774 = vunpack.c.l.b16 %v2341
        %v3775 = vunpack.c.l.b16 %v2345
        %v3776 = vunpack.c.l.b16 %v2348
        %v3777 = vunpack.c.l.b16 %v2352
        %v3778 = vunpack.c.l.b16 %v2355
        %v3779 = vunpack.c.l.b16 %v2359
        %v3780 = vunpack.c.l.b16 %v2362
        %v3781 = vunpack.c.l.b16 %v2366
        %v3782 = vunpack.c.l.b16 %v2369
        %v3783 = vunpack.c.l.b16 %v2373
        %v3784 = vunpack.c.l.b16 %v2376
        %v3785 = vunpack.c.l.b16 %v2380
        %v3786 = vunpack.c.l.b16 %v2383
        %v3787 = vunpack.c.l.b16 %v2387
        %v3788 = vunpack.c.l.b16 %v2390
        %v3789 = vunpack.c.l.b16 %v2394
        %v3790 = vunpack.c.l.b16 %v2397
        %v3791 = vpack.c.b16 %v3760, %v3759
        %v3792 = vpack.c.b16 %v3762, %v3761
        %v3793 = vpack.c.b16 %v3764, %v3763
        %v3794 = vpack.c.b16 %v3766, %v3765
        %v3795 = vpack.c.b16 %v3768, %v3767
        %v3796 = vpack.c.b16 %v3770, %v3769
        %v3797 = vpack.c.b16 %v3772, %v3771
        %v3798 = vpack.c.b16 %v3774, %v3773
        %v3799 = vpack.c.b16 %v3776, %v3775
        %v3800 = vpack.c.b16 %v3778, %v3777
        %v3801 = vpack.c.b16 %v3780, %v3779
        %v3802 = vpack.c.b16 %v3782, %v3781
        %v3803 = vpack.c.b16 %v3784, %v3783
        %v3804 = vpack.c.b16 %v3786, %v3785
        %v3805 = vpack.c.b16 %v3788, %v3787
        %v3806 = vpack.c.b16 %v3790, %v3789
        %3807 = vrot.lane.b32.xlu0 %v3791, 64
        %v3808 = vpop.permute.xlu0 %3807
        %3809 = vrot.lane.b32.xlu0 %v3792, 64
        %v3810 = vpop.permute.xlu0 %3809
        %3811 = vrot.lane.b32.xlu0 %v3793, 64
        %v3812 = vpop.permute.xlu0 %3811
        %3813 = vrot.lane.b32.xlu0 %v3794, 64
        %v3814 = vpop.permute.xlu0 %3813
        %3815 = vrot.lane.b32.xlu0 %v3795, 64
        %v3816 = vpop.permute.xlu0 %3815
        %3817 = vrot.lane.b32.xlu0 %v3796, 64
        %v3818 = vpop.permute.xlu0 %3817
        %3819 = vrot.lane.b32.xlu0 %v3797, 64
        %v3820 = vpop.permute.xlu0 %3819
        %3821 = vrot.lane.b32.xlu0 %v3798, 64
        %v3822 = vpop.permute.xlu0 %3821
        %3823 = vrot.lane.b32.xlu0 %v3799, 64
        %v3824 = vpop.permute.xlu0 %3823
        %3825 = vrot.lane.b32.xlu0 %v3800, 64
        %v3826 = vpop.permute.xlu0 %3825
        %3827 = vrot.lane.b32.xlu0 %v3801, 64
        %v3828 = vpop.permute.xlu0 %3827
        %3829 = vrot.lane.b32.xlu0 %v3802, 64
        %v3830 = vpop.permute.xlu0 %3829
        %3831 = vrot.lane.b32.xlu0 %v3803, 64
        %v3832 = vpop.permute.xlu0 %3831
        %3833 = vrot.lane.b32.xlu0 %v3804, 64
        %v3834 = vpop.permute.xlu0 %3833
        %3835 = vrot.lane.b32.xlu0 %v3805, 64
        %v3836 = vpop.permute.xlu0 %3835
        %3837 = vrot.lane.b32.xlu0 %v3806, 64
        %v3838 = vpop.permute.xlu0 %3837
        %v3855 = vunpack.c.l.b16 %v2398
        %v3856 = vunpack.c.l.b16 %v2399
        %v3857 = vunpack.c.l.b16 %v2400
        %v3858 = vunpack.c.l.b16 %v2401
        %v3859 = vunpack.c.l.b16 %v2402
        %v3860 = vunpack.c.l.b16 %v2403
        %v3861 = vunpack.c.l.b16 %v2404
        %v3862 = vunpack.c.l.b16 %v2405
        %v3863 = vunpack.c.l.b16 %v2406
        %v3864 = vunpack.c.l.b16 %v2407
        %v3865 = vunpack.c.l.b16 %v2408
        %v3866 = vunpack.c.l.b16 %v2409
        %v3867 = vunpack.c.l.b16 %v2410
        %v3868 = vunpack.c.l.b16 %v2411
        %v3869 = vunpack.c.l.b16 %v2412
        %v3870 = vunpack.c.l.b16 %v2413
        %v3871 = vunpack.c.l.b16 %v2414
        %v3872 = vunpack.c.l.b16 %v2415
        %v3873 = vunpack.c.l.b16 %v2416
        %v3874 = vunpack.c.l.b16 %v2417
        %v3875 = vunpack.c.l.b16 %v2418
        %v3876 = vunpack.c.l.b16 %v2419
        %v3877 = vunpack.c.l.b16 %v2420
        %v3878 = vunpack.c.l.b16 %v2421
        %v3879 = vunpack.c.l.b16 %v2422
        %v3880 = vunpack.c.l.b16 %v2423
        %v3881 = vunpack.c.l.b16 %v2424
        %v3882 = vunpack.c.l.b16 %v2425
        %v3883 = vunpack.c.l.b16 %v2426
        %v3884 = vunpack.c.l.b16 %v2427
        %v3885 = vunpack.c.l.b16 %v2428
        %v3886 = vunpack.c.l.b16 %v2429
        %v3887 = vpack.c.b16 %v3856, %v3855
        %v3888 = vpack.c.b16 %v3858, %v3857
        %v3889 = vpack.c.b16 %v3860, %v3859
        %v3890 = vpack.c.b16 %v3862, %v3861
        %v3891 = vpack.c.b16 %v3864, %v3863
        %v3892 = vpack.c.b16 %v3866, %v3865
        %v3893 = vpack.c.b16 %v3868, %v3867
        %v3894 = vpack.c.b16 %v3870, %v3869
        %v3895 = vpack.c.b16 %v3872, %v3871
        %v3896 = vpack.c.b16 %v3874, %v3873
        %v3897 = vpack.c.b16 %v3876, %v3875
        %v3898 = vpack.c.b16 %v3878, %v3877
        %v3899 = vpack.c.b16 %v3880, %v3879
        %v3900 = vpack.c.b16 %v3882, %v3881
        %v3901 = vpack.c.b16 %v3884, %v3883
        %v3902 = vpack.c.b16 %v3886, %v3885
        %3903 = vrot.lane.b32.xlu0 %v3887, 96
        %v3904 = vpop.permute.xlu0 %3903
        %3905 = vrot.lane.b32.xlu0 %v3888, 96
        %v3906 = vpop.permute.xlu0 %3905
        %3907 = vrot.lane.b32.xlu0 %v3889, 96
        %v3908 = vpop.permute.xlu0 %3907
        %3909 = vrot.lane.b32.xlu0 %v3890, 96
        %v3910 = vpop.permute.xlu0 %3909
        %3911 = vrot.lane.b32.xlu0 %v3891, 96
        %v3912 = vpop.permute.xlu0 %3911
        %3913 = vrot.lane.b32.xlu0 %v3892, 96
        %v3914 = vpop.permute.xlu0 %3913
        %3915 = vrot.lane.b32.xlu0 %v3893, 96
        %v3916 = vpop.permute.xlu0 %3915
        %3917 = vrot.lane.b32.xlu0 %v3894, 96
        %v3918 = vpop.permute.xlu0 %3917
        %3919 = vrot.lane.b32.xlu0 %v3895, 96
        %v3920 = vpop.permute.xlu0 %3919
        %3921 = vrot.lane.b32.xlu0 %v3896, 96
        %v3922 = vpop.permute.xlu0 %3921
        %3923 = vrot.lane.b32.xlu0 %v3897, 96
        %v3924 = vpop.permute.xlu0 %3923
        %3925 = vrot.lane.b32.xlu0 %v3898, 96
        %v3926 = vpop.permute.xlu0 %3925
        %3927 = vrot.lane.b32.xlu0 %v3899, 96
        %v3928 = vpop.permute.xlu0 %3927
        %3929 = vrot.lane.b32.xlu0 %v3900, 96
        %v3930 = vpop.permute.xlu0 %3929
        %3931 = vrot.lane.b32.xlu0 %v3901, 96
        %v3932 = vpop.permute.xlu0 %3931
        %3933 = vrot.lane.b32.xlu0 %v3902, 96
        %v3934 = vpop.permute.xlu0 %3933
        %v3935 = vunpack.c.l.b16 %v2459
        %v3936 = vunpack.c.l.b16 %v2469
        %v3937 = vunpack.c.l.b16 %v2483
        %v3938 = vunpack.c.l.b16 %v2493
        %v3939 = vunpack.c.l.b16 %v2507
        %v3940 = vunpack.c.l.b16 %v2517
        %v3941 = vunpack.c.l.b16 %v2531
        %v3942 = vunpack.c.l.b16 %v2541
        %v3943 = vunpack.c.l.b16 %v2555
        %v3944 = vunpack.c.l.b16 %v2565
        %v3945 = vunpack.c.l.b16 %v2579
        %v3946 = vunpack.c.l.b16 %v2589
        %v3947 = vunpack.c.l.b16 %v2603
        %v3948 = vunpack.c.l.b16 %v2613
        %v3949 = vunpack.c.l.b16 %v2627
        %v3950 = vunpack.c.l.b16 %v2637
        %v3951 = vunpack.c.l.b16 %v2651
        %v3952 = vunpack.c.l.b16 %v2661
        %v3953 = vunpack.c.l.b16 %v2675
        %v3954 = vunpack.c.l.b16 %v2685
        %v3955 = vunpack.c.l.b16 %v2699
        %v3956 = vunpack.c.l.b16 %v2709
        %v3957 = vunpack.c.l.b16 %v2723
        %v3958 = vunpack.c.l.b16 %v2733
        %v3959 = vunpack.c.l.b16 %v2747
        %v3960 = vunpack.c.l.b16 %v2757
        %v3961 = vunpack.c.l.b16 %v2771
        %v3962 = vunpack.c.l.b16 %v2781
        %v3963 = vunpack.c.l.b16 %v2795
        %v3964 = vunpack.c.l.b16 %v2805
        %v3965 = vunpack.c.l.b16 %v2819
        %v3966 = vunpack.c.l.b16 %v2829
        %v3967 = vpack.c.b16 %v3936, %v3935
        %v3968 = vpack.c.b16 %v3938, %v3937
        %v3969 = vpack.c.b16 %v3940, %v3939
        %v3970 = vpack.c.b16 %v3942, %v3941
        %v3971 = vpack.c.b16 %v3944, %v3943
        %v3972 = vpack.c.b16 %v3946, %v3945
        %v3973 = vpack.c.b16 %v3948, %v3947
        %v3974 = vpack.c.b16 %v3950, %v3949
        %v3975 = vpack.c.b16 %v3952, %v3951
        %v3976 = vpack.c.b16 %v3954, %v3953
        %v3977 = vpack.c.b16 %v3956, %v3955
        %v3978 = vpack.c.b16 %v3958, %v3957
        %v3979 = vpack.c.b16 %v3960, %v3959
        %v3980 = vpack.c.b16 %v3962, %v3961
        %v3981 = vpack.c.b16 %v3964, %v3963
        %v3982 = vpack.c.b16 %v3966, %v3965
        %v3983 = vunpack.c.l.b16 %v2897
        %v3984 = vunpack.c.l.b16 %v2900
        %v3985 = vunpack.c.l.b16 %v2904
        %v3986 = vunpack.c.l.b16 %v2907
        %v3987 = vunpack.c.l.b16 %v2911
        %v3988 = vunpack.c.l.b16 %v2914
        %v3989 = vunpack.c.l.b16 %v2918
        %v3990 = vunpack.c.l.b16 %v2921
        %v3991 = vunpack.c.l.b16 %v2925
        %v3992 = vunpack.c.l.b16 %v2928
        %v3993 = vunpack.c.l.b16 %v2932
        %v3994 = vunpack.c.l.b16 %v2935
        %v3995 = vunpack.c.l.b16 %v2939
        %v3996 = vunpack.c.l.b16 %v2942
        %v3997 = vunpack.c.l.b16 %v2946
        %v3998 = vunpack.c.l.b16 %v2949
        %v3999 = vunpack.c.l.b16 %v2953
        %v4000 = vunpack.c.l.b16 %v2956
        %v4001 = vunpack.c.l.b16 %v2960
        %v4002 = vunpack.c.l.b16 %v2963
        %v4003 = vunpack.c.l.b16 %v2967
        %v4004 = vunpack.c.l.b16 %v2970
        %v4005 = vunpack.c.l.b16 %v2974
        %v4006 = vunpack.c.l.b16 %v2977
        %v4007 = vunpack.c.l.b16 %v2981
        %v4008 = vunpack.c.l.b16 %v2984
        %v4009 = vunpack.c.l.b16 %v2988
        %v4010 = vunpack.c.l.b16 %v2991
        %v4011 = vunpack.c.l.b16 %v2995
        %v4012 = vunpack.c.l.b16 %v2998
        %v4013 = vunpack.c.l.b16 %v3002
        %v4014 = vunpack.c.l.b16 %v3005
        %v4015 = vpack.c.b16 %v3984, %v3983
        %v4016 = vpack.c.b16 %v3986, %v3985
        %v4017 = vpack.c.b16 %v3988, %v3987
        %v4018 = vpack.c.b16 %v3990, %v3989
        %v4019 = vpack.c.b16 %v3992, %v3991
        %v4020 = vpack.c.b16 %v3994, %v3993
        %v4021 = vpack.c.b16 %v3996, %v3995
        %v4022 = vpack.c.b16 %v3998, %v3997
        %v4023 = vpack.c.b16 %v4000, %v3999
        %v4024 = vpack.c.b16 %v4002, %v4001
        %v4025 = vpack.c.b16 %v4004, %v4003
        %v4026 = vpack.c.b16 %v4006, %v4005
        %v4027 = vpack.c.b16 %v4008, %v4007
        %v4028 = vpack.c.b16 %v4010, %v4009
        %v4029 = vpack.c.b16 %v4012, %v4011
        %v4030 = vpack.c.b16 %v4014, %v4013
        %4031 = vrot.lane.b32.xlu0 %v4015, 32
        %v4032 = vpop.permute.xlu0 %4031
        %4033 = vrot.lane.b32.xlu0 %v4016, 32
        %v4034 = vpop.permute.xlu0 %4033
        %4035 = vrot.lane.b32.xlu0 %v4017, 32
        %v4036 = vpop.permute.xlu0 %4035
        %4037 = vrot.lane.b32.xlu0 %v4018, 32
        %v4038 = vpop.permute.xlu0 %4037
        %4039 = vrot.lane.b32.xlu0 %v4019, 32
        %v4040 = vpop.permute.xlu0 %4039
        %4041 = vrot.lane.b32.xlu0 %v4020, 32
        %v4042 = vpop.permute.xlu0 %4041
        %4043 = vrot.lane.b32.xlu0 %v4021, 32
        %v4044 = vpop.permute.xlu0 %4043
        %4045 = vrot.lane.b32.xlu0 %v4022, 32
        %v4046 = vpop.permute.xlu0 %4045
        %4047 = vrot.lane.b32.xlu0 %v4023, 32
        %v4048 = vpop.permute.xlu0 %4047
        %4049 = vrot.lane.b32.xlu0 %v4024, 32
        %v4050 = vpop.permute.xlu0 %4049
        %4051 = vrot.lane.b32.xlu0 %v4025, 32
        %v4052 = vpop.permute.xlu0 %4051
        %4053 = vrot.lane.b32.xlu0 %v4026, 32
        %v4054 = vpop.permute.xlu0 %4053
        %4055 = vrot.lane.b32.xlu0 %v4027, 32
        %v4056 = vpop.permute.xlu0 %4055
        %4057 = vrot.lane.b32.xlu0 %v4028, 32
        %v4058 = vpop.permute.xlu0 %4057
        %4059 = vrot.lane.b32.xlu0 %v4029, 32
        %v4060 = vpop.permute.xlu0 %4059
        %4061 = vrot.lane.b32.xlu0 %v4030, 32
        %v4062 = vpop.permute.xlu0 %4061
        %v4079 = vunpack.c.l.b16 %v3007
        %v4080 = vunpack.c.l.b16 %v3008
        %v4081 = vunpack.c.l.b16 %v3009
        %v4082 = vunpack.c.l.b16 %v3010
        %v4083 = vunpack.c.l.b16 %v3011
        %v4084 = vunpack.c.l.b16 %v3012
        %v4085 = vunpack.c.l.b16 %v3013
        %v4086 = vunpack.c.l.b16 %v3014
        %v4087 = vunpack.c.l.b16 %v3015
        %v4088 = vunpack.c.l.b16 %v3016
        %v4089 = vunpack.c.l.b16 %v3017
        %v4090 = vunpack.c.l.b16 %v3018
        %v4091 = vunpack.c.l.b16 %v3019
        %v4092 = vunpack.c.l.b16 %v3020
        %v4093 = vunpack.c.l.b16 %v3021
        %v4094 = vunpack.c.l.b16 %v3022
        %v4095 = vunpack.c.l.b16 %v3023
        %v4096 = vunpack.c.l.b16 %v3024
        %v4097 = vunpack.c.l.b16 %v3025
        %v4098 = vunpack.c.l.b16 %v3026
        %v4099 = vunpack.c.l.b16 %v3027
        %v4100 = vunpack.c.l.b16 %v3028
        %v4101 = vunpack.c.l.b16 %v3029
        %v4102 = vunpack.c.l.b16 %v3030
        %v4103 = vunpack.c.l.b16 %v3031
        %v4104 = vunpack.c.l.b16 %v3032
        %v4105 = vunpack.c.l.b16 %v3033
        %v4106 = vunpack.c.l.b16 %v3034
        %v4107 = vunpack.c.l.b16 %v3035
        %v4108 = vunpack.c.l.b16 %v3036
        %v4109 = vunpack.c.l.b16 %v3037
        %v4110 = vunpack.c.l.b16 %v3038
        %v4111 = vpack.c.b16 %v4080, %v4079
        %v4112 = vpack.c.b16 %v4082, %v4081
        %v4113 = vpack.c.b16 %v4084, %v4083
        %v4114 = vpack.c.b16 %v4086, %v4085
        %v4115 = vpack.c.b16 %v4088, %v4087
        %v4116 = vpack.c.b16 %v4090, %v4089
        %v4117 = vpack.c.b16 %v4092, %v4091
        %v4118 = vpack.c.b16 %v4094, %v4093
        %v4119 = vpack.c.b16 %v4096, %v4095
        %v4120 = vpack.c.b16 %v4098, %v4097
        %v4121 = vpack.c.b16 %v4100, %v4099
        %v4122 = vpack.c.b16 %v4102, %v4101
        %v4123 = vpack.c.b16 %v4104, %v4103
        %v4124 = vpack.c.b16 %v4106, %v4105
        %v4125 = vpack.c.b16 %v4108, %v4107
        %v4126 = vpack.c.b16 %v4110, %v4109
        %4127 = vrot.lane.b32.xlu0 %v4111, 64
        %v4128 = vpop.permute.xlu0 %4127
        %4129 = vrot.lane.b32.xlu0 %v4112, 64
        %v4130 = vpop.permute.xlu0 %4129
        %4131 = vrot.lane.b32.xlu0 %v4113, 64
        %v4132 = vpop.permute.xlu0 %4131
        %4133 = vrot.lane.b32.xlu0 %v4114, 64
        %v4134 = vpop.permute.xlu0 %4133
        %4135 = vrot.lane.b32.xlu0 %v4115, 64
        %v4136 = vpop.permute.xlu0 %4135
        %4137 = vrot.lane.b32.xlu0 %v4116, 64
        %v4138 = vpop.permute.xlu0 %4137
        %4139 = vrot.lane.b32.xlu0 %v4117, 64
        %v4140 = vpop.permute.xlu0 %4139
        %4141 = vrot.lane.b32.xlu0 %v4118, 64
        %v4142 = vpop.permute.xlu0 %4141
        %4143 = vrot.lane.b32.xlu0 %v4119, 64
        %v4144 = vpop.permute.xlu0 %4143
        %4145 = vrot.lane.b32.xlu0 %v4120, 64
        %v4146 = vpop.permute.xlu0 %4145
        %4147 = vrot.lane.b32.xlu0 %v4121, 64
        %v4148 = vpop.permute.xlu0 %4147
        %4149 = vrot.lane.b32.xlu0 %v4122, 64
        %v4150 = vpop.permute.xlu0 %4149
        %4151 = vrot.lane.b32.xlu0 %v4123, 64
        %v4152 = vpop.permute.xlu0 %4151
        %4153 = vrot.lane.b32.xlu0 %v4124, 64
        %v4154 = vpop.permute.xlu0 %4153
        %4155 = vrot.lane.b32.xlu0 %v4125, 64
        %v4156 = vpop.permute.xlu0 %4155
        %4157 = vrot.lane.b32.xlu0 %v4126, 64
        %v4158 = vpop.permute.xlu0 %4157
        %v4159 = vunpack.c.l.b16 %v3068
        %v4160 = vunpack.c.l.b16 %v3078
        %v4161 = vunpack.c.l.b16 %v3092
        %v4162 = vunpack.c.l.b16 %v3102
        %v4163 = vunpack.c.l.b16 %v3116
        %v4164 = vunpack.c.l.b16 %v3126
        %v4165 = vunpack.c.l.b16 %v3140
        %v4166 = vunpack.c.l.b16 %v3150
        %v4167 = vunpack.c.l.b16 %v3164
        %v4168 = vunpack.c.l.b16 %v3174
        %v4169 = vunpack.c.l.b16 %v3188
        %v4170 = vunpack.c.l.b16 %v3198
        %v4171 = vunpack.c.l.b16 %v3212
        %v4172 = vunpack.c.l.b16 %v3222
        %v4173 = vunpack.c.l.b16 %v3236
        %v4174 = vunpack.c.l.b16 %v3246
        %v4175 = vunpack.c.l.b16 %v3260
        %v4176 = vunpack.c.l.b16 %v3270
        %v4177 = vunpack.c.l.b16 %v3284
        %v4178 = vunpack.c.l.b16 %v3294
        %v4179 = vunpack.c.l.b16 %v3308
        %v4180 = vunpack.c.l.b16 %v3318
        %v4181 = vunpack.c.l.b16 %v3332
        %v4182 = vunpack.c.l.b16 %v3342
        %v4183 = vunpack.c.l.b16 %v3356
        %v4184 = vunpack.c.l.b16 %v3366
        %v4185 = vunpack.c.l.b16 %v3380
        %v4186 = vunpack.c.l.b16 %v3390
        %v4187 = vunpack.c.l.b16 %v3404
        %v4188 = vunpack.c.l.b16 %v3414
        %v4189 = vunpack.c.l.b16 %v3428
        %v4190 = vunpack.c.l.b16 %v3438
        %v4191 = vpack.c.b16 %v4160, %v4159
        %v4192 = vpack.c.b16 %v4162, %v4161
        %v4193 = vpack.c.b16 %v4164, %v4163
        %v4194 = vpack.c.b16 %v4166, %v4165
        %v4195 = vpack.c.b16 %v4168, %v4167
        %v4196 = vpack.c.b16 %v4170, %v4169
        %v4197 = vpack.c.b16 %v4172, %v4171
        %v4198 = vpack.c.b16 %v4174, %v4173
        %v4199 = vpack.c.b16 %v4176, %v4175
        %v4200 = vpack.c.b16 %v4178, %v4177
        %v4201 = vpack.c.b16 %v4180, %v4179
        %v4202 = vpack.c.b16 %v4182, %v4181
        %v4203 = vpack.c.b16 %v4184, %v4183
        %v4204 = vpack.c.b16 %v4186, %v4185
        %v4205 = vpack.c.b16 %v4188, %v4187
        %v4206 = vpack.c.b16 %v4190, %v4189
        %4207 = vrot.lane.b32.xlu0 %v4191, 96
        %v4208 = vpop.permute.xlu0 %4207
        %4209 = vrot.lane.b32.xlu0 %v4192, 96
        %v4210 = vpop.permute.xlu0 %4209
        %4211 = vrot.lane.b32.xlu0 %v4193, 96
        %v4212 = vpop.permute.xlu0 %4211
        %4213 = vrot.lane.b32.xlu0 %v4194, 96
        %v4214 = vpop.permute.xlu0 %4213
        %4215 = vrot.lane.b32.xlu0 %v4195, 96
        %v4216 = vpop.permute.xlu0 %4215
        %4217 = vrot.lane.b32.xlu0 %v4196, 96
        %v4218 = vpop.permute.xlu0 %4217
        %4219 = vrot.lane.b32.xlu0 %v4197, 96
        %v4220 = vpop.permute.xlu0 %4219
        %4221 = vrot.lane.b32.xlu0 %v4198, 96
        %v4222 = vpop.permute.xlu0 %4221
        %4223 = vrot.lane.b32.xlu0 %v4199, 96
        %v4224 = vpop.permute.xlu0 %4223
        %4225 = vrot.lane.b32.xlu0 %v4200, 96
        %v4226 = vpop.permute.xlu0 %4225
        %4227 = vrot.lane.b32.xlu0 %v4201, 96
        %v4228 = vpop.permute.xlu0 %4227
        %4229 = vrot.lane.b32.xlu0 %v4202, 96
        %v4230 = vpop.permute.xlu0 %4229
        %4231 = vrot.lane.b32.xlu0 %v4203, 96
        %v4232 = vpop.permute.xlu0 %4231
        %4233 = vrot.lane.b32.xlu0 %v4204, 96
        %v4234 = vpop.permute.xlu0 %4233
        %4235 = vrot.lane.b32.xlu0 %v4205, 96
        %v4236 = vpop.permute.xlu0 %4235
        %4237 = vrot.lane.b32.xlu0 %v4206, 96
        %v4238 = vpop.permute.xlu0 %4237
        %v4239 = vunpack.c.l.b16 %v3506
        %v4240 = vunpack.c.l.b16 %v3509
        %v4241 = vunpack.c.l.b16 %v3513
        %v4242 = vunpack.c.l.b16 %v3516
        %v4243 = vunpack.c.l.b16 %v3520
        %v4244 = vunpack.c.l.b16 %v3523
        %v4245 = vunpack.c.l.b16 %v3527
        %v4246 = vunpack.c.l.b16 %v3530
        %v4247 = vunpack.c.l.b16 %v3534
        %v4248 = vunpack.c.l.b16 %v3537
        %v4249 = vunpack.c.l.b16 %v3541
        %v4250 = vunpack.c.l.b16 %v3544
        %v4251 = vunpack.c.l.b16 %v3548
        %v4252 = vunpack.c.l.b16 %v3551
        %v4253 = vunpack.c.l.b16 %v3555
        %v4254 = vunpack.c.l.b16 %v3558
        %v4255 = vunpack.c.l.b16 %v3562
        %v4256 = vunpack.c.l.b16 %v3565
        %v4257 = vunpack.c.l.b16 %v3569
        %v4258 = vunpack.c.l.b16 %v3572
        %v4259 = vunpack.c.l.b16 %v3576
        %v4260 = vunpack.c.l.b16 %v3579
        %v4261 = vunpack.c.l.b16 %v3583
        %v4262 = vunpack.c.l.b16 %v3586
        %v4263 = vunpack.c.l.b16 %v3590
        %v4264 = vunpack.c.l.b16 %v3593
        %v4265 = vunpack.c.l.b16 %v3597
        %v4266 = vunpack.c.l.b16 %v3600
        %v4267 = vunpack.c.l.b16 %v3604
        %v4268 = vunpack.c.l.b16 %v3607
        %v4269 = vunpack.c.l.b16 %v3611
        %v4270 = vunpack.c.l.b16 %v3614
        %v4271 = vpack.c.b16 %v4240, %v4239
        %v4272 = vpack.c.b16 %v4242, %v4241
        %v4273 = vpack.c.b16 %v4244, %v4243
        %v4274 = vpack.c.b16 %v4246, %v4245
        %v4275 = vpack.c.b16 %v4248, %v4247
        %v4276 = vpack.c.b16 %v4250, %v4249
        %v4277 = vpack.c.b16 %v4252, %v4251
        %v4278 = vpack.c.b16 %v4254, %v4253
        %v4279 = vpack.c.b16 %v4256, %v4255
        %v4280 = vpack.c.b16 %v4258, %v4257
        %v4281 = vpack.c.b16 %v4260, %v4259
        %v4282 = vpack.c.b16 %v4262, %v4261
        %v4283 = vpack.c.b16 %v4264, %v4263
        %v4284 = vpack.c.b16 %v4266, %v4265
        %v4285 = vpack.c.b16 %v4268, %v4267
        %v4286 = vpack.c.b16 %v4270, %v4269
        %v4289 = vsel %vm669, %v3663, %v3728
        %v4292 = vsel %vm669, %v3664, %v3730
        %v4295 = vsel %vm669, %v3665, %v3732
        %v4298 = vsel %vm669, %v3666, %v3734
        %v4301 = vsel %vm669, %v3667, %v3736
        %v4304 = vsel %vm669, %v3668, %v3738
        %v4307 = vsel %vm669, %v3669, %v3740
        %v4310 = vsel %vm669, %v3670, %v3742
        %v4313 = vsel %vm669, %v3671, %v3744
        %v4316 = vsel %vm669, %v3672, %v3746
        %v4319 = vsel %vm669, %v3673, %v3748
        %v4322 = vsel %vm669, %v3674, %v3750
        %v4325 = vsel %vm669, %v3675, %v3752
        %v4328 = vsel %vm669, %v3676, %v3754
        %v4331 = vsel %vm669, %v3677, %v3756
        %v4334 = vsel %vm669, %v3678, %v3758
        %vm4335 = vcmask 523264
        %v4337 = vsel %vm4335, %v4289, %v3808
        %v4339 = vsel %vm4335, %v4292, %v3810
        %v4341 = vsel %vm4335, %v4295, %v3812
        %v4343 = vsel %vm4335, %v4298, %v3814
        %v4345 = vsel %vm4335, %v4301, %v3816
        %v4347 = vsel %vm4335, %v4304, %v3818
        %v4349 = vsel %vm4335, %v4307, %v3820
        %v4351 = vsel %vm4335, %v4310, %v3822
        %v4353 = vsel %vm4335, %v4313, %v3824
        %v4355 = vsel %vm4335, %v4316, %v3826
        %v4357 = vsel %vm4335, %v4319, %v3828
        %v4359 = vsel %vm4335, %v4322, %v3830
        %v4361 = vsel %vm4335, %v4325, %v3832
        %v4363 = vsel %vm4335, %v4328, %v3834
        %v4365 = vsel %vm4335, %v4331, %v3836
        %v4367 = vsel %vm4335, %v4334, %v3838
        %vm4368 = vcmask 785408
        %v4370 = vsel %vm4368, %v4337, %v3904
        %v4373 = vsel %vm4368, %v4339, %v3906
        %v4376 = vsel %vm4368, %v4341, %v3908
        %v4379 = vsel %vm4368, %v4343, %v3910
        %v4382 = vsel %vm4368, %v4345, %v3912
        %v4385 = vsel %vm4368, %v4347, %v3914
        %v4388 = vsel %vm4368, %v4349, %v3916
        %v4391 = vsel %vm4368, %v4351, %v3918
        %v4394 = vsel %vm4368, %v4353, %v3920
        %v4397 = vsel %vm4368, %v4355, %v3922
        %v4400 = vsel %vm4368, %v4357, %v3924
        %v4403 = vsel %vm4368, %v4359, %v3926
        %v4406 = vsel %vm4368, %v4361, %v3928
        %v4409 = vsel %vm4368, %v4363, %v3930
        %v4412 = vsel %vm4368, %v4365, %v3932
        %v4415 = vsel %vm4368, %v4367, %v3934
        %v4419 = vsel %vm669, %v3967, %v4032
        %v4422 = vsel %vm669, %v3968, %v4034
        %v4425 = vsel %vm669, %v3969, %v4036
        %v4428 = vsel %vm669, %v3970, %v4038
        %v4431 = vsel %vm669, %v3971, %v4040
        %v4434 = vsel %vm669, %v3972, %v4042
        %v4437 = vsel %vm669, %v3973, %v4044
        %v4440 = vsel %vm669, %v3974, %v4046
        %v4443 = vsel %vm669, %v3975, %v4048
        %v4446 = vsel %vm669, %v3976, %v4050
        %v4449 = vsel %vm669, %v3977, %v4052
        %v4452 = vsel %vm669, %v3978, %v4054
        %v4455 = vsel %vm669, %v3979, %v4056
        %v4458 = vsel %vm669, %v3980, %v4058
        %v4461 = vsel %vm669, %v3981, %v4060
        %v4464 = vsel %vm669, %v3982, %v4062
        %v4466 = vsel %vm4335, %v4419, %v4128
        %v4468 = vsel %vm4335, %v4422, %v4130
        %v4470 = vsel %vm4335, %v4425, %v4132
        %v4472 = vsel %vm4335, %v4428, %v4134
        %v4474 = vsel %vm4335, %v4431, %v4136
        %v4476 = vsel %vm4335, %v4434, %v4138
        %v4478 = vsel %vm4335, %v4437, %v4140
        %v4480 = vsel %vm4335, %v4440, %v4142
        %v4482 = vsel %vm4335, %v4443, %v4144
        %v4484 = vsel %vm4335, %v4446, %v4146
        %v4486 = vsel %vm4335, %v4449, %v4148
        %v4488 = vsel %vm4335, %v4452, %v4150
        %v4490 = vsel %vm4335, %v4455, %v4152
        %v4492 = vsel %vm4335, %v4458, %v4154
        %v4494 = vsel %vm4335, %v4461, %v4156
        %v4496 = vsel %vm4335, %v4464, %v4158
        %v4498 = vsel %vm4368, %v4466, %v4208
        %v4501 = vsel %vm4368, %v4468, %v4210
        %v4504 = vsel %vm4368, %v4470, %v4212
        %v4507 = vsel %vm4368, %v4472, %v4214
        %v4510 = vsel %vm4368, %v4474, %v4216
        %v4513 = vsel %vm4368, %v4476, %v4218
        %v4516 = vsel %vm4368, %v4478, %v4220
        %v4519 = vsel %vm4368, %v4480, %v4222
        %v4522 = vsel %vm4368, %v4482, %v4224
        %v4525 = vsel %vm4368, %v4484, %v4226
        %v4528 = vsel %vm4368, %v4486, %v4228
        %v4531 = vsel %vm4368, %v4488, %v4230
        %v4534 = vsel %vm4368, %v4490, %v4232
        %v4537 = vsel %vm4368, %v4492, %v4234
        %v4540 = vsel %vm4368, %v4494, %v4236
        %v4543 = vsel %vm4368, %v4496, %v4238
        %v4545 = vld [vmem:[%s6] sm:$0xf]
        %v4546 = vld [vmem:[%s6 + $0x4] sm:$0xf]
        %v4547 = vld [vmem:[%s6 + $0x8] sm:$0xf]
        %v4548 = vld [vmem:[%s6 + $0xc] sm:$0xf]
        %v4549 = vld [vmem:[%s6 + $0x10] sm:$0xf]
        %v4550 = vld [vmem:[%s6 + $0x14] sm:$0xf]
        %v4551 = vld [vmem:[%s6 + $0x18] sm:$0xf]
        %v4552 = vld [vmem:[%s6 + $0x1c] sm:$0xf]
        %v4553 = vld [vmem:[%s6 + $0x20] sm:$0xf]
        %v4554 = vld [vmem:[%s6 + $0x24] sm:$0xf]
        %v4555 = vld [vmem:[%s6 + $0x28] sm:$0xf]
        %v4556 = vld [vmem:[%s6 + $0x2c] sm:$0xf]
        %v4557 = vld [vmem:[%s6 + $0x30] sm:$0xf]
        %v4558 = vld [vmem:[%s6 + $0x34] sm:$0xf]
        %v4559 = vld [vmem:[%s6 + $0x38] sm:$0xf]
        %v4560 = vld [vmem:[%s6 + $0x3c] sm:$0xf]
        %v4561 = vld [vmem:[%s6 + $0x40] sm:$0xf]
        %v4562 = vld [vmem:[%s6 + $0x44] sm:$0xf]
        %v4563 = vld [vmem:[%s6 + $0x48] sm:$0xf]
        %v4564 = vld [vmem:[%s6 + $0x4c] sm:$0xf]
        %v4565 = vld [vmem:[%s6 + $0x50] sm:$0xf]
        %v4566 = vld [vmem:[%s6 + $0x54] sm:$0xf]
        %v4567 = vld [vmem:[%s6 + $0x58] sm:$0xf]
        %v4568 = vld [vmem:[%s6 + $0x5c] sm:$0xf]
        %v4569 = vld [vmem:[%s6 + $0x60] sm:$0xf]
        %v4570 = vld [vmem:[%s6 + $0x64] sm:$0xf]
        %v4571 = vld [vmem:[%s6 + $0x68] sm:$0xf]
        %v4572 = vld [vmem:[%s6 + $0x6c] sm:$0xf]
        %v4573 = vld [vmem:[%s6 + $0x70] sm:$0xf]
        %v4574 = vld [vmem:[%s6 + $0x74] sm:$0xf]
        %v4575 = vld [vmem:[%s6 + $0x78] sm:$0xf]
        %v4576 = vld [vmem:[%s6 + $0x7c] sm:$0xf]
        %v4577 = vld [vmem:[%s6 + $0x80] sm:$0xf]
        %v4578 = vld [vmem:[%s6 + $0x84] sm:$0xf]
        %v4579 = vld [vmem:[%s6 + $0x88] sm:$0xf]
        %v4580 = vld [vmem:[%s6 + $0x8c] sm:$0xf]
        %v4582 = vlaneseq
        %v4583 = vshrl.u32 %v4582, 7
        %v4584 = vsub.s32 0, %v4583
        %v4585 = vrot.slane %v1245, %v4584
        %v4623 = vunpack.c.l.b16 %v4545
        %v4624 = vunpack.c.l.b16 %v4546
        %v4625 = vunpack.c.l.b16 %v4547
        %v4626 = vunpack.c.l.b16 %v4548
        %v4627 = vunpack.c.l.b16 %v4549
        %v4628 = vunpack.c.l.b16 %v4550
        %v4629 = vunpack.c.l.b16 %v4551
        %v4630 = vunpack.c.l.b16 %v4552
        %v4631 = vunpack.c.l.b16 %v4553
        %v4632 = vunpack.c.l.b16 %v4554
        %v4633 = vunpack.c.l.b16 %v4555
        %v4634 = vunpack.c.l.b16 %v4556
        %v4635 = vunpack.c.l.b16 %v4557
        %v4636 = vunpack.c.l.b16 %v4558
        %v4637 = vunpack.c.l.b16 %v4559
        %v4638 = vunpack.c.l.b16 %v4560
        %v4639 = vunpack.c.l.b16 %v4561
        %v4640 = vunpack.c.l.b16 %v4562
        %v4641 = vunpack.c.l.b16 %v4563
        %v4642 = vunpack.c.l.b16 %v4564
        %v4643 = vunpack.c.l.b16 %v4565
        %v4644 = vunpack.c.l.b16 %v4566
        %v4645 = vunpack.c.l.b16 %v4567
        %v4646 = vunpack.c.l.b16 %v4568
        %v4647 = vunpack.c.l.b16 %v4569
        %v4648 = vunpack.c.l.b16 %v4570
        %v4649 = vunpack.c.l.b16 %v4571
        %v4650 = vunpack.c.l.b16 %v4572
        %v4651 = vunpack.c.l.b16 %v4573
        %v4652 = vunpack.c.l.b16 %v4574
        %v4653 = vunpack.c.l.b16 %v4575
        %v4654 = vunpack.c.l.b16 %v4576
        %v4655 = vunpack.c.l.b16 %v4577
        %v4656 = vunpack.c.l.b16 %v4578
        %v4657 = vunpack.c.l.b16 %v4579
        %v4658 = vunpack.c.l.b16 %v4580
        %v4659 = vpack.c.b16 %v4624, %v4623
        %v4660 = vpack.c.b16 %v4626, %v4625
        %v4661 = vpack.c.b16 %v4628, %v4627
        %v4662 = vpack.c.b16 %v4630, %v4629
        %v4663 = vpack.c.b16 %v4632, %v4631
        %v4664 = vpack.c.b16 %v4634, %v4633
        %v4665 = vpack.c.b16 %v4636, %v4635
        %v4666 = vpack.c.b16 %v4638, %v4637
        %v4667 = vpack.c.b16 %v4640, %v4639
        %v4668 = vpack.c.b16 %v4642, %v4641
        %v4669 = vpack.c.b16 %v4644, %v4643
        %v4670 = vpack.c.b16 %v4646, %v4645
        %v4671 = vpack.c.b16 %v4648, %v4647
        %v4672 = vpack.c.b16 %v4650, %v4649
        %v4673 = vpack.c.b16 %v4652, %v4651
        %v4674 = vpack.c.b16 %v4654, %v4653
        %v4675 = vpack.c.b16 %v4656, %v4655
        %v4676 = vpack.c.b16 %v4658, %v4657
        %v4696 = vsel %vm669, %v4271, 0
        %v4699 = vsel %vm669, %v4272, 0
        %v4702 = vsel %vm669, %v4273, 0
        %v4705 = vsel %vm669, %v4274, 0
        %v4708 = vsel %vm669, %v4275, 0
        %v4711 = vsel %vm669, %v4276, 0
        %v4714 = vsel %vm669, %v4277, 0
        %v4717 = vsel %vm669, %v4278, 0
        %v4720 = vsel %vm669, %v4279, 0
        %v4723 = vsel %vm669, %v4280, 0
        %v4726 = vsel %vm669, %v4281, 0
        %v4729 = vsel %vm669, %v4282, 0
        %v4732 = vsel %vm669, %v4283, 0
        %v4735 = vsel %vm669, %v4284, 0
        %v4738 = vsel %vm669, %v4285, 0
        %v4741 = vsel %vm669, %v4286, 0
        %4743 = vmatprep.subr.bf16.mxu0 0
        %4744 = vmatpush1.bf16.msra.mxu0 %v4659
        %4745 = vmatprep.subr.bf16.mxu0 0
        %4746 = vmatpush1.bf16.msra.mxu0 %v4660
        %4747 = vmatprep.subr.bf16.mxu0 0
        %4748 = vmatpush1.bf16.msra.mxu0 %v4661
        %4749 = vmatprep.subr.bf16.mxu0 0
        %4750 = vmatpush1.bf16.msra.mxu0 %v4662
        %4751 = vmatprep.subr.bf16.mxu0 0
        %4752 = vmatpush1.bf16.msra.mxu0 %v4663
        %4753 = vmatprep.subr.bf16.mxu0 0
        %4754 = vmatpush1.bf16.msra.mxu0 %v4664
        %4755 = vmatprep.subr.bf16.mxu0 0
        %4756 = vmatpush1.bf16.msra.mxu0 %v4665
        %4757 = vmatprep.subr.bf16.mxu0 0
        %4758 = vmatpush1.bf16.msra.mxu0 %v4666
        %4759 = vmatprep.subr.bf16.mxu0 0
        %4760 = vmatpush1.bf16.msra.mxu0 %v4667
        %4761 = vmatprep.subr.bf16.mxu0 0
        %4762 = vmatpush1.bf16.msra.mxu0 %v4668
        %4763 = vmatprep.subr.bf16.mxu0 0
        %4764 = vmatpush1.bf16.msra.mxu0 %v4669
        %4765 = vmatprep.subr.bf16.mxu0 0
        %4766 = vmatpush1.bf16.msra.mxu0 %v4670
        %4767 = vmatprep.subr.bf16.mxu0 0
        %4768 = vmatpush1.bf16.msra.mxu0 %v4671
        %4769 = vmatprep.subr.bf16.mxu0 0
        %4770 = vmatpush1.bf16.msra.mxu0 %v4672
        %4771 = vmatprep.subr.bf16.mxu0 0
        %4772 = vmatpush1.bf16.msra.mxu0 %v4673
        %4773 = vmatprep.subr.bf16.mxu0 0
        %4774 = vmatpush1.bf16.msra.mxu0 %v4674
        %4775 = vmatprep.mubr.bf16.mxu0 %v4498
        %4776 = vmatmul.mubr.bf16.gmra.mrb[0].mxu0 %v4370
        %v4777 = vpop.f32.mrb[0].mxu0
        %v4778 = vadd.f32 %v4585, %v4777
        %v4779 = vpop.f32.mrb[0].mxu0
        %v4780 = vpop.f32.mrb[0].mxu0
        %v4781 = vadd.f32 %v4585, %v4780
        %v4782 = vpop.f32.mrb[0].mxu0
        %4783 = vmatprep.mubr.bf16.mxu0 %v4501
        %4784 = vmatmul.mubr.bf16.gmra.mrb[0].mxu0 %v4373
        %v4785 = vpop.f32.mrb[0].mxu0
        %v4786 = vadd.f32 %v4585, %v4785
        %v4787 = vpop.f32.mrb[0].mxu0
        %v4788 = vpop.f32.mrb[0].mxu0
        %v4789 = vadd.f32 %v4585, %v4788
        %v4790 = vpop.f32.mrb[0].mxu0
        %4791 = vmatprep.mubr.bf16.mxu0 %v4504
        %4792 = vmatmul.mubr.bf16.gmra.mrb[0].mxu0 %v4376
        %v4793 = vpop.f32.mrb[0].mxu0
        %v4794 = vadd.f32 %v4585, %v4793
        %v4795 = vpop.f32.mrb[0].mxu0
        %v4796 = vpop.f32.mrb[0].mxu0
        %v4797 = vadd.f32 %v4585, %v4796
        %v4798 = vpop.f32.mrb[0].mxu0
        %4799 = vmatprep.mubr.bf16.mxu0 %v4507
        %4800 = vmatmul.mubr.bf16.gmra.mrb[0].mxu0 %v4379
        %v4801 = vpop.f32.mrb[0].mxu0
        %v4802 = vadd.f32 %v4585, %v4801
        %v4803 = vpop.f32.mrb[0].mxu0
        %v4804 = vpop.f32.mrb[0].mxu0
        %v4805 = vadd.f32 %v4585, %v4804
        %v4806 = vpop.f32.mrb[0].mxu0
        %4807 = vmatprep.mubr.bf16.mxu0 %v4510
        %4808 = vmatmul.mubr.bf16.gmra.mrb[0].mxu0 %v4382
        %v4809 = vpop.f32.mrb[0].mxu0
        %v4810 = vadd.f32 %v4585, %v4809
        %v4811 = vpop.f32.mrb[0].mxu0
        %v4812 = vpop.f32.mrb[0].mxu0
        %v4813 = vadd.f32 %v4585, %v4812
        %v4814 = vpop.f32.mrb[0].mxu0
        %4815 = vmatprep.mubr.bf16.mxu0 %v4513
        %4816 = vmatmul.mubr.bf16.gmra.mrb[0].mxu0 %v4385
        %v4817 = vpop.f32.mrb[0].mxu0
        %v4818 = vadd.f32 %v4585, %v4817
        %v4819 = vpop.f32.mrb[0].mxu0
        %v4820 = vpop.f32.mrb[0].mxu0
        %v4821 = vadd.f32 %v4585, %v4820
        %v4822 = vpop.f32.mrb[0].mxu0
        %4823 = vmatprep.mubr.bf16.mxu0 %v4516
        %4824 = vmatmul.mubr.bf16.gmra.mrb[0].mxu0 %v4388
        %v4825 = vpop.f32.mrb[0].mxu0
        %v4826 = vadd.f32 %v4585, %v4825
        %v4827 = vpop.f32.mrb[0].mxu0
        %v4828 = vpop.f32.mrb[0].mxu0
        %v4829 = vadd.f32 %v4585, %v4828
        %v4830 = vpop.f32.mrb[0].mxu0
        %4831 = vmatprep.mubr.bf16.mxu0 %v4519
        %4832 = vmatmul.mubr.bf16.gmra.mrb[0].mxu0 %v4391
        %v4833 = vpop.f32.mrb[0].mxu0
        %v4834 = vadd.f32 %v4585, %v4833
        %v4835 = vpop.f32.mrb[0].mxu0
        %v4836 = vpop.f32.mrb[0].mxu0
        %v4837 = vadd.f32 %v4585, %v4836
        %v4838 = vpop.f32.mrb[0].mxu0
        %4839 = vmatprep.mubr.bf16.mxu0 %v4522
        %4840 = vmatmul.mubr.bf16.gmra.mrb[0].mxu0 %v4394
        %v4841 = vpop.f32.mrb[0].mxu0
        %v4842 = vadd.f32 %v4585, %v4841
        %v4843 = vpop.f32.mrb[0].mxu0
        %v4844 = vpop.f32.mrb[0].mxu0
        %v4845 = vadd.f32 %v4585, %v4844
        %v4846 = vpop.f32.mrb[0].mxu0
        %4847 = vmatprep.mubr.bf16.mxu0 %v4525
        %4848 = vmatmul.mubr.bf16.gmra.mrb[0].mxu0 %v4397
        %v4849 = vpop.f32.mrb[0].mxu0
        %v4850 = vadd.f32 %v4585, %v4849
        %v4851 = vpop.f32.mrb[0].mxu0
        %v4852 = vpop.f32.mrb[0].mxu0
        %v4853 = vadd.f32 %v4585, %v4852
        %v4854 = vpop.f32.mrb[0].mxu0
        %4855 = vmatprep.mubr.bf16.mxu0 %v4528
        %4856 = vmatmul.mubr.bf16.gmra.mrb[0].mxu0 %v4400
        %v4857 = vpop.f32.mrb[0].mxu0
        %v4858 = vadd.f32 %v4585, %v4857
        %v4859 = vpop.f32.mrb[0].mxu0
        %v4860 = vpop.f32.mrb[0].mxu0
        %v4861 = vadd.f32 %v4585, %v4860
        %v4862 = vpop.f32.mrb[0].mxu0
        %4863 = vmatprep.mubr.bf16.mxu0 %v4531
        %4864 = vmatmul.mubr.bf16.gmra.mrb[0].mxu0 %v4403
        %v4865 = vpop.f32.mrb[0].mxu0
        %v4866 = vadd.f32 %v4585, %v4865
        %v4867 = vpop.f32.mrb[0].mxu0
        %v4868 = vpop.f32.mrb[0].mxu0
        %v4869 = vadd.f32 %v4585, %v4868
        %v4870 = vpop.f32.mrb[0].mxu0
        %4871 = vmatprep.mubr.bf16.mxu0 %v4534
        %4872 = vmatmul.mubr.bf16.gmra.mrb[0].mxu0 %v4406
        %v4873 = vpop.f32.mrb[0].mxu0
        %v4874 = vadd.f32 %v4585, %v4873
        %v4875 = vpop.f32.mrb[0].mxu0
        %v4876 = vpop.f32.mrb[0].mxu0
        %v4877 = vadd.f32 %v4585, %v4876
        %v4878 = vpop.f32.mrb[0].mxu0
        %4879 = vmatprep.mubr.bf16.mxu0 %v4537
        %4880 = vmatmul.mubr.bf16.gmra.mrb[0].mxu0 %v4409
        %v4881 = vpop.f32.mrb[0].mxu0
        %v4882 = vadd.f32 %v4585, %v4881
        %v4883 = vpop.f32.mrb[0].mxu0
        %v4884 = vpop.f32.mrb[0].mxu0
        %v4885 = vadd.f32 %v4585, %v4884
        %v4886 = vpop.f32.mrb[0].mxu0
        %4887 = vmatprep.mubr.bf16.mxu0 %v4540
        %4888 = vmatmul.mubr.bf16.gmra.mrb[0].mxu0 %v4412
        %v4889 = vpop.f32.mrb[0].mxu0
        %v4890 = vadd.f32 %v4585, %v4889
        %v4891 = vpop.f32.mrb[0].mxu0
        %v4892 = vpop.f32.mrb[0].mxu0
        %v4893 = vadd.f32 %v4585, %v4892
        %v4894 = vpop.f32.mrb[0].mxu0
        %4895 = vmatprep.mubr.bf16.mxu0 %v4543
        %4896 = vmatmul.mubr.bf16.gmra.mrb[0].mxu0 %v4415
        %v4897 = vpop.f32.mrb[0].mxu0
        %v4898 = vadd.f32 %v4585, %v4897
        %v4899 = vpop.f32.mrb[0].mxu0
        %v4900 = vpop.f32.mrb[0].mxu0
        %v4901 = vadd.f32 %v4585, %v4900
        %v4902 = vpop.f32.mrb[0].mxu0
        %4903 = vdwg.mxu0
        %4904 = vmatprep.subr.bf16.mxu0 0
        %4905 = vmatpush1.bf16.msra.mxu0 %v4675
        %4906 = vmatprep.subr.bf16.mxu0 0
        %4907 = vmatpush1.bf16.msra.mxu0 %v4676
        %4908 = vmatprep.subr.bf16.mxu0 0
        %4909 = vmatpush1.bf16.msra.mxu0 0
        %4910 = vmatprep.subr.bf16.mxu0 0
        %4911 = vmatpush1.bf16.msra.mxu0 0
        %4912 = vmatprep.subr.bf16.mxu0 0
        %4913 = vmatpush1.bf16.msra.mxu0 0
        %4914 = vmatprep.subr.bf16.mxu0 0
        %4915 = vmatpush1.bf16.msra.mxu0 0
        %4916 = vmatprep.subr.bf16.mxu0 0
        %4917 = vmatpush1.bf16.msra.mxu0 0
        %4918 = vmatprep.subr.bf16.mxu0 0
        %4919 = vmatpush1.bf16.msra.mxu0 0
        %4920 = vmatprep.subr.bf16.mxu0 0
        %4921 = vmatpush1.bf16.msra.mxu0 0
        %4922 = vmatprep.subr.bf16.mxu0 0
        %4923 = vmatpush1.bf16.msra.mxu0 0
        %4924 = vmatprep.subr.bf16.mxu0 0
        %4925 = vmatpush1.bf16.msra.mxu0 0
        %4926 = vmatprep.subr.bf16.mxu0 0
        %4927 = vmatpush1.bf16.msra.mxu0 0
        %4928 = vmatprep.subr.bf16.mxu0 0
        %4929 = vmatpush1.bf16.msra.mxu0 0
        %4930 = vmatprep.subr.bf16.mxu0 0
        %4931 = vmatpush1.bf16.msra.mxu0 0
        %4932 = vmatprep.subr.bf16.mxu0 0
        %4933 = vmatpush1.bf16.msra.mxu0 0
        %4934 = vmatprep.subr.bf16.mxu0 0
        %4935 = vmatpush1.bf16.msra.mxu0 0
        %4936 = vmatprep.mubr.bf16.mxu0 0
        %4937 = vmatmul.mubr.bf16.gmra.mrb[0].mxu0 %v4696
        %v4938 = vpop.f32.mrb[0].mxu0
        %v4939 = vadd.f32 %v4778, %v4938
        %v4940 = vpop.f32.mrb[0].mxu0
        %v4941 = vpop.f32.mrb[0].mxu0
        %v4942 = vadd.f32 %v4781, %v4941
        %v4943 = vpop.f32.mrb[0].mxu0
        %4944 = vmatprep.mubr.bf16.mxu0 0
        %4945 = vmatmul.mubr.bf16.gmra.mrb[0].mxu0 %v4699
        %v4946 = vpop.f32.mrb[0].mxu0
        %v4947 = vadd.f32 %v4786, %v4946
        %v4948 = vpop.f32.mrb[0].mxu0
        %v4949 = vpop.f32.mrb[0].mxu0
        %v4950 = vadd.f32 %v4789, %v4949
        %v4951 = vpop.f32.mrb[0].mxu0
        %4952 = vmatprep.mubr.bf16.mxu0 0
        %4953 = vmatmul.mubr.bf16.gmra.mrb[0].mxu0 %v4702
        %v4954 = vpop.f32.mrb[0].mxu0
        %v4955 = vadd.f32 %v4794, %v4954
        %v4956 = vpop.f32.mrb[0].mxu0
        %v4957 = vpop.f32.mrb[0].mxu0
        %v4958 = vadd.f32 %v4797, %v4957
        %v4959 = vpop.f32.mrb[0].mxu0
        %4960 = vmatprep.mubr.bf16.mxu0 0
        %4961 = vmatmul.mubr.bf16.gmra.mrb[0].mxu0 %v4705
        %v4962 = vpop.f32.mrb[0].mxu0
        %v4963 = vadd.f32 %v4802, %v4962
        %v4964 = vpop.f32.mrb[0].mxu0
        %v4965 = vpop.f32.mrb[0].mxu0
        %v4966 = vadd.f32 %v4805, %v4965
        %v4967 = vpop.f32.mrb[0].mxu0
        %4968 = vmatprep.mubr.bf16.mxu0 0
        %4969 = vmatmul.mubr.bf16.gmra.mrb[0].mxu0 %v4708
        %v4970 = vpop.f32.mrb[0].mxu0
        %v4971 = vadd.f32 %v4810, %v4970
        %v4972 = vpop.f32.mrb[0].mxu0
        %v4973 = vpop.f32.mrb[0].mxu0
        %v4974 = vadd.f32 %v4813, %v4973
        %v4975 = vpop.f32.mrb[0].mxu0
        %4976 = vmatprep.mubr.bf16.mxu0 0
        %4977 = vmatmul.mubr.bf16.gmra.mrb[0].mxu0 %v4711
        %v4978 = vpop.f32.mrb[0].mxu0
        %v4979 = vadd.f32 %v4818, %v4978
        %v4980 = vpop.f32.mrb[0].mxu0
        %v4981 = vpop.f32.mrb[0].mxu0
        %v4982 = vadd.f32 %v4821, %v4981
        %v4983 = vpop.f32.mrb[0].mxu0
        %4984 = vmatprep.mubr.bf16.mxu0 0
        %4985 = vmatmul.mubr.bf16.gmra.mrb[0].mxu0 %v4714
        %v4986 = vpop.f32.mrb[0].mxu0
        %v4987 = vadd.f32 %v4826, %v4986
        %v4988 = vpop.f32.mrb[0].mxu0
        %v4989 = vpop.f32.mrb[0].mxu0
        %v4990 = vadd.f32 %v4829, %v4989
        %v4991 = vpop.f32.mrb[0].mxu0
        %4992 = vmatprep.mubr.bf16.mxu0 0
        %4993 = vmatmul.mubr.bf16.gmra.mrb[0].mxu0 %v4717
        %v4994 = vpop.f32.mrb[0].mxu0
        %v4995 = vadd.f32 %v4834, %v4994
        %v4996 = vpop.f32.mrb[0].mxu0
        %v4997 = vpop.f32.mrb[0].mxu0
        %v4998 = vadd.f32 %v4837, %v4997
        %v4999 = vpop.f32.mrb[0].mxu0
        %5000 = vmatprep.mubr.bf16.mxu0 0
        %5001 = vmatmul.mubr.bf16.gmra.mrb[0].mxu0 %v4720
        %v5002 = vpop.f32.mrb[0].mxu0
        %v5003 = vadd.f32 %v4842, %v5002
        %v5004 = vpop.f32.mrb[0].mxu0
        %v5005 = vpop.f32.mrb[0].mxu0
        %v5006 = vadd.f32 %v4845, %v5005
        %v5007 = vpop.f32.mrb[0].mxu0
        %5008 = vmatprep.mubr.bf16.mxu0 0
        %5009 = vmatmul.mubr.bf16.gmra.mrb[0].mxu0 %v4723
        %v5010 = vpop.f32.mrb[0].mxu0
        %v5011 = vadd.f32 %v4850, %v5010
        %v5012 = vpop.f32.mrb[0].mxu0
        %v5013 = vpop.f32.mrb[0].mxu0
        %v5014 = vadd.f32 %v4853, %v5013
        %v5015 = vpop.f32.mrb[0].mxu0
        %5016 = vmatprep.mubr.bf16.mxu0 0
        %5017 = vmatmul.mubr.bf16.gmra.mrb[0].mxu0 %v4726
        %v5018 = vpop.f32.mrb[0].mxu0
        %v5019 = vadd.f32 %v4858, %v5018
        %v5020 = vpop.f32.mrb[0].mxu0
        %v5021 = vpop.f32.mrb[0].mxu0
        %v5022 = vadd.f32 %v4861, %v5021
        %v5023 = vpop.f32.mrb[0].mxu0
        %5024 = vmatprep.mubr.bf16.mxu0 0
        %5025 = vmatmul.mubr.bf16.gmra.mrb[0].mxu0 %v4729
        %v5026 = vpop.f32.mrb[0].mxu0
        %v5027 = vadd.f32 %v4866, %v5026
        %v5028 = vpop.f32.mrb[0].mxu0
        %v5029 = vpop.f32.mrb[0].mxu0
        %v5030 = vadd.f32 %v4869, %v5029
        %v5031 = vpop.f32.mrb[0].mxu0
        %5032 = vmatprep.mubr.bf16.mxu0 0
        %5033 = vmatmul.mubr.bf16.gmra.mrb[0].mxu0 %v4732
        %v5034 = vpop.f32.mrb[0].mxu0
        %v5035 = vadd.f32 %v4874, %v5034
        %v5036 = vpop.f32.mrb[0].mxu0
        %v5037 = vpop.f32.mrb[0].mxu0
        %v5038 = vadd.f32 %v4877, %v5037
        %v5039 = vpop.f32.mrb[0].mxu0
        %5040 = vmatprep.mubr.bf16.mxu0 0
        %5041 = vmatmul.mubr.bf16.gmra.mrb[0].mxu0 %v4735
        %v5042 = vpop.f32.mrb[0].mxu0
        %v5043 = vadd.f32 %v4882, %v5042
        %v5044 = vpop.f32.mrb[0].mxu0
        %v5045 = vpop.f32.mrb[0].mxu0
        %v5046 = vadd.f32 %v4885, %v5045
        %v5047 = vpop.f32.mrb[0].mxu0
        %5048 = vmatprep.mubr.bf16.mxu0 0
        %5049 = vmatmul.mubr.bf16.gmra.mrb[0].mxu0 %v4738
        %v5050 = vpop.f32.mrb[0].mxu0
        %v5051 = vadd.f32 %v4890, %v5050
        %v5052 = vpop.f32.mrb[0].mxu0
        %v5053 = vpop.f32.mrb[0].mxu0
        %v5054 = vadd.f32 %v4893, %v5053
        %v5055 = vpop.f32.mrb[0].mxu0
        %5056 = vmatprep.mubr.bf16.mxu0 0
        %5057 = vmatmul.mubr.bf16.gmra.mrb[0].mxu0 %v4741
        %v5058 = vpop.f32.mrb[0].mxu0
        %v5059 = vadd.f32 %v4898, %v5058
        %v5060 = vpop.f32.mrb[0].mxu0
        %v5061 = vpop.f32.mrb[0].mxu0
        %v5062 = vadd.f32 %v4901, %v5061
        %v5063 = vpop.f32.mrb[0].mxu0
        %5064 = vdwg.mxu0
        %v5065 = vld [vmem:[%s548] sm:$0x1]
        %v5066 = vxor.u32 %v5065, 2147483648
        %v5067 = vmul.f32 %v5066, 1.442695
        %v5068 = vpow.pop %v5067
        %v5069 = vadd.f32 %v5068, 1.0
        %v5070 = vrcp.pop %v5069
        %v5071 = vmul.f32 1.0, %v5070
        %v5072 = vmul.f32 %v5065, %v5071
        %v5073 = vpack.c.bf16 %v5072, %v5072
        %v5074 = vld [vmem:[%s8] sm:$0xf]
        %v5075 = vld [vmem:[%s8 + $0x4] sm:$0xf]
        %v5076 = vld [vmem:[%s8 + $0x8] sm:$0xf]
        %v5077 = vld [vmem:[%s8 + $0xc] sm:$0xf]
        %v5078 = vld [vmem:[%s9] sm:$0x1]
        %v5083 = vunpack.c.l.b16 %v5074
        %v5084 = vunpack.c.l.b16 %v5075
        %v5085 = vunpack.c.l.b16 %v5076
        %v5086 = vunpack.c.l.b16 %v5077
        %v5087 = vpack.c.b16 %v5084, %v5083
        %v5088 = vpack.c.b16 %v5086, %v5085
        %v5092 = vsel %vm669, %v5073, 0
        %5094 = vmatprep.subr.bf16.mxu0 0
        %5095 = vmatpush1.bf16.msra.mxu0 %v5087
        %5096 = vmatprep.subr.bf16.mxu0 0
        %5097 = vmatpush1.bf16.msra.mxu0 %v5088
        %5098 = vmatprep.subr.bf16.mxu0 0
        %5099 = vmatpush1.bf16.msra.mxu0 0
        %5100 = vmatprep.subr.bf16.mxu0 0
        %5101 = vmatpush1.bf16.msra.mxu0 0
        %5102 = vmatprep.subr.bf16.mxu0 0
        %5103 = vmatpush1.bf16.msra.mxu0 0
        %5104 = vmatprep.subr.bf16.mxu0 0
        %5105 = vmatpush1.bf16.msra.mxu0 0
        %5106 = vmatprep.subr.bf16.mxu0 0
        %5107 = vmatpush1.bf16.msra.mxu0 0
        %5108 = vmatprep.subr.bf16.mxu0 0
        %5109 = vmatpush1.bf16.msra.mxu0 0
        %5110 = vmatprep.subr.bf16.mxu0 0
        %5111 = vmatpush1.bf16.msra.mxu0 0
        %5112 = vmatprep.subr.bf16.mxu0 0
        %5113 = vmatpush1.bf16.msra.mxu0 0
        %5114 = vmatprep.subr.bf16.mxu0 0
        %5115 = vmatpush1.bf16.msra.mxu0 0
        %5116 = vmatprep.subr.bf16.mxu0 0
        %5117 = vmatpush1.bf16.msra.mxu0 0
        %5118 = vmatprep.subr.bf16.mxu0 0
        %5119 = vmatpush1.bf16.msra.mxu0 0
        %5120 = vmatprep.subr.bf16.mxu0 0
        %5121 = vmatpush1.bf16.msra.mxu0 0
        %5122 = vmatprep.subr.bf16.mxu0 0
        %5123 = vmatpush1.bf16.msra.mxu0 0
        %5124 = vmatprep.subr.bf16.mxu0 0
        %5125 = vmatpush1.bf16.msra.mxu0 0
        %5126 = vmatprep.mubr.bf16.mxu0 0
        %5127 = vmatmul.mubr.bf16.gmra.mrb[0].mxu0 %v5092
        %v5128 = vpop.f32.mrb[0].mxu0
        %v5129 = vadd.f32 %v5078, %v5128
        %v5130 = vpop.f32.mrb[0].mxu0
        %v5131 = vpop.f32.mrb[0].mxu0
        %v5132 = vpop.f32.mrb[0].mxu0
        %5133 = vdwg.mxu0
        %v5134 = vlaneseq
        %v5135 = vshrl.u32 %v5134, 7
        %v5136 = vsub.s32 0, %v5135
        %v5137 = vrot.slane %v5129, %v5136
        %v5138 = vadd.f32 %v4939, %v5137
        %v5139 = vadd.f32 %v4942, %v5137
        %v5140 = vadd.f32 %v4947, %v5137
        %v5141 = vadd.f32 %v4950, %v5137
        %v5142 = vadd.f32 %v4955, %v5137
        %v5143 = vadd.f32 %v4958, %v5137
        %v5144 = vadd.f32 %v4963, %v5137
        %v5145 = vadd.f32 %v4966, %v5137
        %v5146 = vadd.f32 %v4971, %v5137
        %v5147 = vadd.f32 %v4974, %v5137
        %v5148 = vadd.f32 %v4979, %v5137
        %v5149 = vadd.f32 %v4982, %v5137
        %v5150 = vadd.f32 %v4987, %v5137
        %v5151 = vadd.f32 %v4990, %v5137
        %v5152 = vadd.f32 %v4995, %v5137
        %v5153 = vadd.f32 %v4998, %v5137
        %v5154 = vadd.f32 %v5003, %v5137
        %v5155 = vadd.f32 %v5006, %v5137
        %v5156 = vadd.f32 %v5011, %v5137
        %v5157 = vadd.f32 %v5014, %v5137
        %v5158 = vadd.f32 %v5019, %v5137
        %v5159 = vadd.f32 %v5022, %v5137
        %v5160 = vadd.f32 %v5027, %v5137
        %v5161 = vadd.f32 %v5030, %v5137
        %v5162 = vadd.f32 %v5035, %v5137
        %v5163 = vadd.f32 %v5038, %v5137
        %v5164 = vadd.f32 %v5043, %v5137
        %v5165 = vadd.f32 %v5046, %v5137
        %v5166 = vadd.f32 %v5051, %v5137
        %v5167 = vadd.f32 %v5054, %v5137
        %v5168 = vadd.f32 %v5059, %v5137
        %v5169 = vadd.f32 %v5062, %v5137
        %v5170 = vld [vmem:[#allocation3] sm:$0xff]
        %v5171 = vld [vmem:[#allocation3 + $0x8] sm:$0xff]
        %v5172 = vld [vmem:[#allocation3 + $0x10] sm:$0xff]
        %v5173 = vld [vmem:[#allocation3 + $0x18] sm:$0xff]
        %v5174 = vld [vmem:[#allocation3 + $0x20] sm:$0xff]
        %v5175 = vld [vmem:[#allocation3 + $0x28] sm:$0xff]
        %v5176 = vld [vmem:[#allocation3 + $0x30] sm:$0xff]
        %v5177 = vld [vmem:[#allocation3 + $0x38] sm:$0xff]
        %v5178 = vld [vmem:[#allocation3 + $0x40] sm:$0xff]
        %v5179 = vld [vmem:[#allocation3 + $0x48] sm:$0xff]
        %v5180 = vld [vmem:[#allocation3 + $0x50] sm:$0xff]
        %v5181 = vld [vmem:[#allocation3 + $0x58] sm:$0xff]
        %v5182 = vld [vmem:[#allocation3 + $0x60] sm:$0xff]
        %v5183 = vld [vmem:[#allocation3 + $0x68] sm:$0xff]
        %v5184 = vld [vmem:[#allocation3 + $0x70] sm:$0xff]
        %v5185 = vld [vmem:[#allocation3 + $0x78] sm:$0xff]
        %v5186 = vld [vmem:[%s10] sm:$0x1]
        %v5187 = vld [vmem:[%s11] sm:$0x1]
        %v5188 = vadd.f32 %v5138, %v5139
        %v5189 = vadd.f32 %v5188, %v5140
        %v5190 = vadd.f32 %v5189, %v5141
        %v5191 = vadd.f32 %v5190, %v5142
        %v5192 = vadd.f32 %v5191, %v5143
        %v5193 = vadd.f32 %v5192, %v5144
        %v5194 = vadd.f32 %v5193, %v5145
        %v5195 = vadd.f32 %v5194, %v5146
        %v5196 = vadd.f32 %v5195, %v5147
        %v5197 = vadd.f32 %v5196, %v5148
        %v5198 = vadd.f32 %v5197, %v5149
        %v5199 = vadd.f32 %v5198, %v5150
        %v5200 = vadd.f32 %v5199, %v5151
        %v5201 = vadd.f32 %v5200, %v5152
        %v5202 = vadd.f32 %v5201, %v5153
        %v5203 = vadd.f32 %v5202, %v5154
        %v5204 = vadd.f32 %v5203, %v5155
        %v5205 = vadd.f32 %v5204, %v5156
        %v5206 = vadd.f32 %v5205, %v5157
        %v5207 = vadd.f32 %v5206, %v5158
        %v5208 = vadd.f32 %v5207, %v5159
        %v5209 = vadd.f32 %v5208, %v5160
        %v5210 = vadd.f32 %v5209, %v5161
        %v5211 = vadd.f32 %v5210, %v5162
        %v5212 = vadd.f32 %v5211, %v5163
        %v5213 = vadd.f32 %v5212, %v5164
        %v5214 = vadd.f32 %v5213, %v5165
        %v5215 = vadd.f32 %v5214, %v5166
        %v5216 = vadd.f32 %v5215, %v5167
        %v5217 = vadd.f32 %v5216, %v5168
        %v5218 = vadd.f32 %v5217, %v5169
        %v5219 = vrot.slane %v5218, 4
        %v5220 = vadd.f32 %v5218, %v5219
        %v5221 = vrot.slane %v5220, 2
        %v5222 = vadd.f32 %v5220, %v5221
        %v5223 = vrot.slane %v5222, 1
        %v5224 = vadd.f32 %v5222, %v5223
        %v5225 = vmul.f32 %v5224, %v739
        %v5226 = vmul.f32 %v5138, %v5138
        %v5227 = vmul.f32 %v5139, %v5139
        %v5228 = vmul.f32 %v5140, %v5140
        %v5229 = vmul.f32 %v5141, %v5141
        %v5230 = vmul.f32 %v5142, %v5142
        %v5231 = vmul.f32 %v5143, %v5143
        %v5232 = vmul.f32 %v5144, %v5144
        %v5233 = vmul.f32 %v5145, %v5145
        %v5234 = vmul.f32 %v5146, %v5146
        %v5235 = vmul.f32 %v5147, %v5147
        %v5236 = vmul.f32 %v5148, %v5148
        %v5237 = vmul.f32 %v5149, %v5149
        %v5238 = vmul.f32 %v5150, %v5150
        %v5239 = vmul.f32 %v5151, %v5151
        %v5240 = vmul.f32 %v5152, %v5152
        %v5241 = vmul.f32 %v5153, %v5153
        %v5242 = vmul.f32 %v5154, %v5154
        %v5243 = vmul.f32 %v5155, %v5155
        %v5244 = vmul.f32 %v5156, %v5156
        %v5245 = vmul.f32 %v5157, %v5157
        %v5246 = vmul.f32 %v5158, %v5158
        %v5247 = vmul.f32 %v5159, %v5159
        %v5248 = vmul.f32 %v5160, %v5160
        %v5249 = vmul.f32 %v5161, %v5161
        %v5250 = vmul.f32 %v5162, %v5162
        %v5251 = vmul.f32 %v5163, %v5163
        %v5252 = vmul.f32 %v5164, %v5164
        %v5253 = vmul.f32 %v5165, %v5165
        %v5254 = vmul.f32 %v5166, %v5166
        %v5255 = vmul.f32 %v5167, %v5167
        %v5256 = vmul.f32 %v5168, %v5168
        %v5257 = vmul.f32 %v5169, %v5169
        %v5258 = vadd.f32 %v5226, %v5227
        %v5259 = vadd.f32 %v5258, %v5228
        %v5260 = vadd.f32 %v5259, %v5229
        %v5261 = vadd.f32 %v5260, %v5230
        %v5262 = vadd.f32 %v5261, %v5231
        %v5263 = vadd.f32 %v5262, %v5232
        %v5264 = vadd.f32 %v5263, %v5233
        %v5265 = vadd.f32 %v5264, %v5234
        %v5266 = vadd.f32 %v5265, %v5235
        %v5267 = vadd.f32 %v5266, %v5236
        %v5268 = vadd.f32 %v5267, %v5237
        %v5269 = vadd.f32 %v5268, %v5238
        %v5270 = vadd.f32 %v5269, %v5239
        %v5271 = vadd.f32 %v5270, %v5240
        %v5272 = vadd.f32 %v5271, %v5241
        %v5273 = vadd.f32 %v5272, %v5242
        %v5274 = vadd.f32 %v5273, %v5243
        %v5275 = vadd.f32 %v5274, %v5244
        %v5276 = vadd.f32 %v5275, %v5245
        %v5277 = vadd.f32 %v5276, %v5246
        %v5278 = vadd.f32 %v5277, %v5247
        %v5279 = vadd.f32 %v5278, %v5248
        %v5280 = vadd.f32 %v5279, %v5249
        %v5281 = vadd.f32 %v5280, %v5250
        %v5282 = vadd.f32 %v5281, %v5251
        %v5283 = vadd.f32 %v5282, %v5252
        %v5284 = vadd.f32 %v5283, %v5253
        %v5285 = vadd.f32 %v5284, %v5254
        %v5286 = vadd.f32 %v5285, %v5255
        %v5287 = vadd.f32 %v5286, %v5256
        %v5288 = vadd.f32 %v5287, %v5257
        %v5289 = vrot.slane %v5288, 4
        %v5290 = vadd.f32 %v5288, %v5289
        %v5291 = vrot.slane %v5290, 2
        %v5292 = vadd.f32 %v5290, %v5291
        %v5293 = vrot.slane %v5292, 1
        %v5294 = vadd.f32 %v5292, %v5293
        %v5295 = vmul.f32 %v5294, %v739
        %v5296 = vsel %vm843, %v5225, %v5295
        %5297 = vmatprep.subr.mxu0 0.0
        %5298 = vmatpush1.msra.mxu0 %v5170
        %5299 = vmatprep.subr.mxu0 0.0
        %5300 = vmatpush1.msra.mxu0 %v5171
        %5301 = vmatprep.subr.mxu0 0.0
        %5302 = vmatpush1.msra.mxu0 %v5172
        %5303 = vmatprep.subr.mxu0 0.0
        %5304 = vmatpush1.msra.mxu0 %v5173
        %5305 = vmatprep.subr.mxu0 0.0
        %5306 = vmatpush1.msra.mxu0 %v5174
        %5307 = vmatprep.subr.mxu0 0.0
        %5308 = vmatpush1.msra.mxu0 %v5175
        %5309 = vmatprep.subr.mxu0 0.0
        %5310 = vmatpush1.msra.mxu0 %v5176
        %5311 = vmatprep.subr.mxu0 0.0
        %5312 = vmatpush1.msra.mxu0 %v5177
        %5313 = vmatprep.subr.mxu0 0.0
        %5314 = vmatpush1.msra.mxu0 %v5178
        %5315 = vmatprep.subr.mxu0 0.0
        %5316 = vmatpush1.msra.mxu0 %v5179
        %5317 = vmatprep.subr.mxu0 0.0
        %5318 = vmatpush1.msra.mxu0 %v5180
        %5319 = vmatprep.subr.mxu0 0.0
        %5320 = vmatpush1.msra.mxu0 %v5181
        %5321 = vmatprep.subr.mxu0 0.0
        %5322 = vmatpush1.msra.mxu0 %v5182
        %5323 = vmatprep.subr.mxu0 0.0
        %5324 = vmatpush1.msra.mxu0 %v5183
        %5325 = vmatprep.subr.mxu0 0.0
        %5326 = vmatpush1.msra.mxu0 %v5184
        %5327 = vmatprep.subr.mxu0 0.0
        %5328 = vmatpush1.msra.mxu0 %v5185
        %5329 = vmatprep.subr.mxu0 0.0
        %5330 = vmatpush1.msra.mxu0 0.0
        %5331 = vmatprep.subr.mxu0 0.0
        %5332 = vmatpush1.msra.mxu0 0.0
        %5333 = vmatprep.subr.mxu0 0.0
        %5334 = vmatpush1.msra.mxu0 0.0
        %5335 = vmatprep.subr.mxu0 0.0
        %5336 = vmatpush1.msra.mxu0 0.0
        %5337 = vmatprep.subr.mxu0 0.0
        %5338 = vmatpush1.msra.mxu0 0.0
        %5339 = vmatprep.subr.mxu0 0.0
        %5340 = vmatpush1.msra.mxu0 0.0
        %5341 = vmatprep.subr.mxu0 0.0
        %5342 = vmatpush1.msra.mxu0 0.0
        %5343 = vmatprep.subr.mxu0 0.0
        %5344 = vmatpush1.msra.mxu0 0.0
        %5345 = vmatprep.subr.mxu0 0.0
        %5346 = vmatpush1.msra.mxu0 0.0
        %5347 = vmatprep.subr.mxu0 0.0
        %5348 = vmatpush1.msra.mxu0 0.0
        %5349 = vmatprep.subr.mxu0 0.0
        %5350 = vmatpush1.msra.mxu0 0.0
        %5351 = vmatprep.subr.mxu0 0.0
        %5352 = vmatpush1.msra.mxu0 0.0
        %5353 = vmatprep.subr.mxu0 0.0
        %5354 = vmatpush1.msra.mxu0 0.0
        %5355 = vmatprep.subr.mxu0 0.0
        %5356 = vmatpush1.msra.mxu0 0.0
        %5357 = vmatprep.subr.mxu0 0.0
        %5358 = vmatpush1.msra.mxu0 0.0
        %5359 = vmatprep.subr.mxu0 0.0
        %5360 = vmatpush1.msra.mxu0 0.0
        %5361 = vmatprep.mubr.f32.mxu0 0.0
        %5362 = vmatmul.mubr.f32.gmra.mrb[0].mxu0 %v5296
        %v5363 = vpop.f32.mrb[0].mxu0
        %v5364 = vadd.f32 0.0, %v5363
        %v5365 = vpop.f32.mrb[0].mxu0
        %5366 = vdwg.mxu0
        %v5367 = vmul.f32 %v5364, %v5364
        %v5369 = vrot.slane %v5367, 7
        %v5371 = vsub.f32 %v5364, %v5369
        %v5372 = vadd.f32 %v5371, 1e-06
        %v5373 = vrsqrt.pop %v5372
        %v5376 = vunpack.c.l.s4 1966171168
        %v5377 = vunpack.c.0.s8 %v5376
        %v5378 = vlaneseq
        %v5379 = vshrl.u32 %v5378, 7
        %v5380 = vsub.s32 %v5377, %v5379
        %v5381 = vrot.slane %v5373, %v5380
        %v5382 = vcombine.high %v5381, %v5381
        %v5384 = vunpack.c.l.s4 1966171168
        %v5385 = vunpack.c.0.s8 %v5384
        %v5386 = vlaneseq
        %v5387 = vshrl.u32 %v5386, 7
        %v5388 = vsub.s32 %v5385, %v5387
        %v5389 = vrot.slane %v5382, %v5388
        %v5391 = vmul.f32 %v5186, %v5389
        %v5392 = vmul.f32 %v5364, %v5391
        %v5393 = vsub.f32 %v5187, %v5392
        %v5395 = vlaneseq
        %v5396 = vshrl.u32 %v5395, 7
        %v5397 = vsub.s32 0, %v5396
        %v5398 = vrot.slane %v5391, %v5397
        %v5400 = vmul.f32 %v5138, %v5398
        %v5401 = vmul.f32 %v5139, %v5398
        %v5402 = vmul.f32 %v5140, %v5398
        %v5403 = vmul.f32 %v5141, %v5398
        %v5404 = vmul.f32 %v5142, %v5398
        %v5405 = vmul.f32 %v5143, %v5398
        %v5406 = vmul.f32 %v5144, %v5398
        %v5407 = vmul.f32 %v5145, %v5398
        %v5408 = vmul.f32 %v5146, %v5398
        %v5409 = vmul.f32 %v5147, %v5398
        %v5410 = vmul.f32 %v5148, %v5398
        %v5411 = vmul.f32 %v5149, %v5398
        %v5412 = vmul.f32 %v5150, %v5398
        %v5413 = vmul.f32 %v5151, %v5398
        %v5414 = vmul.f32 %v5152, %v5398
        %v5415 = vmul.f32 %v5153, %v5398
        %v5416 = vmul.f32 %v5154, %v5398
        %v5417 = vmul.f32 %v5155, %v5398
        %v5418 = vmul.f32 %v5156, %v5398
        %v5419 = vmul.f32 %v5157, %v5398
        %v5420 = vmul.f32 %v5158, %v5398
        %v5421 = vmul.f32 %v5159, %v5398
        %v5422 = vmul.f32 %v5160, %v5398
        %v5423 = vmul.f32 %v5161, %v5398
        %v5424 = vmul.f32 %v5162, %v5398
        %v5425 = vmul.f32 %v5163, %v5398
        %v5426 = vmul.f32 %v5164, %v5398
        %v5427 = vmul.f32 %v5165, %v5398
        %v5428 = vmul.f32 %v5166, %v5398
        %v5429 = vmul.f32 %v5167, %v5398
        %v5430 = vmul.f32 %v5168, %v5398
        %v5431 = vmul.f32 %v5169, %v5398
        %v5433 = vlaneseq
        %v5434 = vshrl.u32 %v5433, 7
        %v5435 = vsub.s32 0, %v5434
        %v5436 = vrot.slane %v5393, %v5435
        %v5438 = vadd.f32 %v5400, %v5436
        %v5439 = vadd.f32 %v5401, %v5436
        %v5440 = vadd.f32 %v5402, %v5436
        %v5441 = vadd.f32 %v5403, %v5436
        %v5442 = vadd.f32 %v5404, %v5436
        %v5443 = vadd.f32 %v5405, %v5436
        %v5444 = vadd.f32 %v5406, %v5436
        %v5445 = vadd.f32 %v5407, %v5436
        %v5446 = vadd.f32 %v5408, %v5436
        %v5447 = vadd.f32 %v5409, %v5436
        %v5448 = vadd.f32 %v5410, %v5436
        %v5449 = vadd.f32 %v5411, %v5436
        %v5450 = vadd.f32 %v5412, %v5436
        %v5451 = vadd.f32 %v5413, %v5436
        %v5452 = vadd.f32 %v5414, %v5436
        %v5453 = vadd.f32 %v5415, %v5436
        %v5454 = vadd.f32 %v5416, %v5436
        %v5455 = vadd.f32 %v5417, %v5436
        %v5456 = vadd.f32 %v5418, %v5436
        %v5457 = vadd.f32 %v5419, %v5436
        %v5458 = vadd.f32 %v5420, %v5436
        %v5459 = vadd.f32 %v5421, %v5436
        %v5460 = vadd.f32 %v5422, %v5436
        %v5461 = vadd.f32 %v5423, %v5436
        %v5462 = vadd.f32 %v5424, %v5436
        %v5463 = vadd.f32 %v5425, %v5436
        %v5464 = vadd.f32 %v5426, %v5436
        %v5465 = vadd.f32 %v5427, %v5436
        %v5466 = vadd.f32 %v5428, %v5436
        %v5467 = vadd.f32 %v5429, %v5436
        %v5468 = vadd.f32 %v5430, %v5436
        %v5469 = vadd.f32 %v5431, %v5436
        %v5470 = vxor.u32 %v5438, 2147483648
        %v5471 = vxor.u32 %v5439, 2147483648
        %v5472 = vxor.u32 %v5440, 2147483648
        %v5473 = vxor.u32 %v5441, 2147483648
        %v5474 = vxor.u32 %v5442, 2147483648
        %v5475 = vxor.u32 %v5443, 2147483648
        %v5476 = vxor.u32 %v5444, 2147483648
        %v5477 = vxor.u32 %v5445, 2147483648
        %v5478 = vxor.u32 %v5446, 2147483648
        %v5479 = vxor.u32 %v5447, 2147483648
        %v5480 = vxor.u32 %v5448, 2147483648
        %v5481 = vxor.u32 %v5449, 2147483648
        %v5482 = vxor.u32 %v5450, 2147483648
        %v5483 = vxor.u32 %v5451, 2147483648
        %v5484 = vxor.u32 %v5452, 2147483648
        %v5485 = vxor.u32 %v5453, 2147483648
        %v5486 = vxor.u32 %v5454, 2147483648
        %v5487 = vxor.u32 %v5455, 2147483648
        %v5488 = vxor.u32 %v5456, 2147483648
        %v5489 = vxor.u32 %v5457, 2147483648
        %v5490 = vxor.u32 %v5458, 2147483648
        %v5491 = vxor.u32 %v5459, 2147483648
        %v5492 = vxor.u32 %v5460, 2147483648
        %v5493 = vxor.u32 %v5461, 2147483648
        %v5494 = vxor.u32 %v5462, 2147483648
        %v5495 = vxor.u32 %v5463, 2147483648
        %v5496 = vxor.u32 %v5464, 2147483648
        %v5497 = vxor.u32 %v5465, 2147483648
        %v5498 = vxor.u32 %v5466, 2147483648
        %v5499 = vxor.u32 %v5467, 2147483648
        %v5500 = vxor.u32 %v5468, 2147483648
        %v5501 = vxor.u32 %v5469, 2147483648
        %v5502 = vmul.f32 %v5470, 1.442695
        %v5503 = vpow.pop %v5502
        %v5504 = vmul.f32 %v5471, 1.442695
        %v5505 = vpow.pop %v5504
        %v5506 = vmul.f32 %v5472, 1.442695
        %v5507 = vpow.pop %v5506
        %v5508 = vmul.f32 %v5473, 1.442695
        %v5509 = vpow.pop %v5508
        %v5510 = vmul.f32 %v5474, 1.442695
        %v5511 = vpow.pop %v5510
        %v5512 = vmul.f32 %v5475, 1.442695
        %v5513 = vpow.pop %v5512
        %v5514 = vmul.f32 %v5476, 1.442695
        %v5515 = vpow.pop %v5514
        %v5516 = vmul.f32 %v5477, 1.442695
        %v5517 = vpow.pop %v5516
        %v5518 = vmul.f32 %v5478, 1.442695
        %v5519 = vpow.pop %v5518
        %v5520 = vmul.f32 %v5479, 1.442695
        %v5521 = vpow.pop %v5520
        %v5522 = vmul.f32 %v5480, 1.442695
        %v5523 = vpow.pop %v5522
        %v5524 = vmul.f32 %v5481, 1.442695
        %v5525 = vpow.pop %v5524
        %v5526 = vmul.f32 %v5482, 1.442695
        %v5527 = vpow.pop %v5526
        %v5528 = vmul.f32 %v5483, 1.442695
        %v5529 = vpow.pop %v5528
        %v5530 = vmul.f32 %v5484, 1.442695
        %v5531 = vpow.pop %v5530
        %v5532 = vmul.f32 %v5485, 1.442695
        %v5533 = vpow.pop %v5532
        %v5534 = vmul.f32 %v5486, 1.442695
        %v5535 = vpow.pop %v5534
        %v5536 = vmul.f32 %v5487, 1.442695
        %v5537 = vpow.pop %v5536
        %v5538 = vmul.f32 %v5488, 1.442695
        %v5539 = vpow.pop %v5538
        %v5540 = vmul.f32 %v5489, 1.442695
        %v5541 = vpow.pop %v5540
        %v5542 = vmul.f32 %v5490, 1.442695
        %v5543 = vpow.pop %v5542
        %v5544 = vmul.f32 %v5491, 1.442695
        %v5545 = vpow.pop %v5544
        %v5546 = vmul.f32 %v5492, 1.442695
        %v5547 = vpow.pop %v5546
        %v5548 = vmul.f32 %v5493, 1.442695
        %v5549 = vpow.pop %v5548
        %v5550 = vmul.f32 %v5494, 1.442695
        %v5551 = vpow.pop %v5550
        %v5552 = vmul.f32 %v5495, 1.442695
        %v5553 = vpow.pop %v5552
        %v5554 = vmul.f32 %v5496, 1.442695
        %v5555 = vpow.pop %v5554
        %v5556 = vmul.f32 %v5497, 1.442695
        %v5557 = vpow.pop %v5556
        %v5558 = vmul.f32 %v5498, 1.442695
        %v5559 = vpow.pop %v5558
        %v5560 = vmul.f32 %v5499, 1.442695
        %v5561 = vpow.pop %v5560
        %v5562 = vmul.f32 %v5500, 1.442695
        %v5563 = vpow.pop %v5562
        %v5564 = vmul.f32 %v5501, 1.442695
        %v5565 = vpow.pop %v5564
        %v5566 = vadd.f32 %v5503, 1.0
        %v5567 = vadd.f32 %v5505, 1.0
        %v5568 = vadd.f32 %v5507, 1.0
        %v5569 = vadd.f32 %v5509, 1.0
        %v5570 = vadd.f32 %v5511, 1.0
        %v5571 = vadd.f32 %v5513, 1.0
        %v5572 = vadd.f32 %v5515, 1.0
        %v5573 = vadd.f32 %v5517, 1.0
        %v5574 = vadd.f32 %v5519, 1.0
        %v5575 = vadd.f32 %v5521, 1.0
        %v5576 = vadd.f32 %v5523, 1.0
        %v5577 = vadd.f32 %v5525, 1.0
        %v5578 = vadd.f32 %v5527, 1.0
        %v5579 = vadd.f32 %v5529, 1.0
        %v5580 = vadd.f32 %v5531, 1.0
        %v5581 = vadd.f32 %v5533, 1.0
        %v5582 = vadd.f32 %v5535, 1.0
        %v5583 = vadd.f32 %v5537, 1.0
        %v5584 = vadd.f32 %v5539, 1.0
        %v5585 = vadd.f32 %v5541, 1.0
        %v5586 = vadd.f32 %v5543, 1.0
        %v5587 = vadd.f32 %v5545, 1.0
        %v5588 = vadd.f32 %v5547, 1.0
        %v5589 = vadd.f32 %v5549, 1.0
        %v5590 = vadd.f32 %v5551, 1.0
        %v5591 = vadd.f32 %v5553, 1.0
        %v5592 = vadd.f32 %v5555, 1.0
        %v5593 = vadd.f32 %v5557, 1.0
        %v5594 = vadd.f32 %v5559, 1.0
        %v5595 = vadd.f32 %v5561, 1.0
        %v5596 = vadd.f32 %v5563, 1.0
        %v5597 = vadd.f32 %v5565, 1.0
        %v5598 = vrcp.pop %v5566
        %v5599 = vmul.f32 1.0, %v5598
        %v5600 = vrcp.pop %v5567
        %v5601 = vmul.f32 1.0, %v5600
        %v5602 = vrcp.pop %v5568
        %v5603 = vmul.f32 1.0, %v5602
        %v5604 = vrcp.pop %v5569
        %v5605 = vmul.f32 1.0, %v5604
        %v5606 = vrcp.pop %v5570
        %v5607 = vmul.f32 1.0, %v5606
        %v5608 = vrcp.pop %v5571
        %v5609 = vmul.f32 1.0, %v5608
        %v5610 = vrcp.pop %v5572
        %v5611 = vmul.f32 1.0, %v5610
        %v5612 = vrcp.pop %v5573
        %v5613 = vmul.f32 1.0, %v5612
        %v5614 = vrcp.pop %v5574
        %v5615 = vmul.f32 1.0, %v5614
        %v5616 = vrcp.pop %v5575
        %v5617 = vmul.f32 1.0, %v5616
        %v5618 = vrcp.pop %v5576
        %v5619 = vmul.f32 1.0, %v5618
        %v5620 = vrcp.pop %v5577
        %v5621 = vmul.f32 1.0, %v5620
        %v5622 = vrcp.pop %v5578
        %v5623 = vmul.f32 1.0, %v5622
        %v5624 = vrcp.pop %v5579
        %v5625 = vmul.f32 1.0, %v5624
        %v5626 = vrcp.pop %v5580
        %v5627 = vmul.f32 1.0, %v5626
        %v5628 = vrcp.pop %v5581
        %v5629 = vmul.f32 1.0, %v5628
        %v5630 = vrcp.pop %v5582
        %v5631 = vmul.f32 1.0, %v5630
        %v5632 = vrcp.pop %v5583
        %v5633 = vmul.f32 1.0, %v5632
        %v5634 = vrcp.pop %v5584
        %v5635 = vmul.f32 1.0, %v5634
        %v5636 = vrcp.pop %v5585
        %v5637 = vmul.f32 1.0, %v5636
        %v5638 = vrcp.pop %v5586
        %v5639 = vmul.f32 1.0, %v5638
        %v5640 = vrcp.pop %v5587
        %v5641 = vmul.f32 1.0, %v5640
        %v5642 = vrcp.pop %v5588
        %v5643 = vmul.f32 1.0, %v5642
        %v5644 = vrcp.pop %v5589
        %v5645 = vmul.f32 1.0, %v5644
        %v5646 = vrcp.pop %v5590
        %v5647 = vmul.f32 1.0, %v5646
        %v5648 = vrcp.pop %v5591
        %v5649 = vmul.f32 1.0, %v5648
        %v5650 = vrcp.pop %v5592
        %v5651 = vmul.f32 1.0, %v5650
        %v5652 = vrcp.pop %v5593
        %v5653 = vmul.f32 1.0, %v5652
        %v5654 = vrcp.pop %v5594
        %v5655 = vmul.f32 1.0, %v5654
        %v5656 = vrcp.pop %v5595
        %v5657 = vmul.f32 1.0, %v5656
        %v5658 = vrcp.pop %v5596
        %v5659 = vmul.f32 1.0, %v5658
        %v5660 = vrcp.pop %v5597
        %v5661 = vmul.f32 1.0, %v5660
        %v5662 = vmul.f32 %v5438, %v5599
        %v5663 = vmul.f32 %v5439, %v5601
        %v5664 = vmul.f32 %v5440, %v5603
        %v5665 = vmul.f32 %v5441, %v5605
        %v5666 = vmul.f32 %v5442, %v5607
        %v5667 = vmul.f32 %v5443, %v5609
        %v5668 = vmul.f32 %v5444, %v5611
        %v5669 = vmul.f32 %v5445, %v5613
        %v5670 = vmul.f32 %v5446, %v5615
        %v5671 = vmul.f32 %v5447, %v5617
        %v5672 = vmul.f32 %v5448, %v5619
        %v5673 = vmul.f32 %v5449, %v5621
        %v5674 = vmul.f32 %v5450, %v5623
        %v5675 = vmul.f32 %v5451, %v5625
        %v5676 = vmul.f32 %v5452, %v5627
        %v5677 = vmul.f32 %v5453, %v5629
        %v5678 = vmul.f32 %v5454, %v5631
        %v5679 = vmul.f32 %v5455, %v5633
        %v5680 = vmul.f32 %v5456, %v5635
        %v5681 = vmul.f32 %v5457, %v5637
        %v5682 = vmul.f32 %v5458, %v5639
        %v5683 = vmul.f32 %v5459, %v5641
        %v5684 = vmul.f32 %v5460, %v5643
        %v5685 = vmul.f32 %v5461, %v5645
        %v5686 = vmul.f32 %v5462, %v5647
        %v5687 = vmul.f32 %v5463, %v5649
        %v5688 = vmul.f32 %v5464, %v5651
        %v5689 = vmul.f32 %v5465, %v5653
        %v5690 = vmul.f32 %v5466, %v5655
        %v5691 = vmul.f32 %v5467, %v5657
        %v5692 = vmul.f32 %v5468, %v5659
        %v5693 = vmul.f32 %v5469, %v5661
        %v5694 = vld [vmem:[%s13] sm:$0x1]
        %v5695 = vpack.c.bf16 %v5663, %v5662
        %v5696 = vpack.c.bf16 %v5665, %v5664
        %v5697 = vpack.c.bf16 %v5667, %v5666
        %v5698 = vpack.c.bf16 %v5669, %v5668
        %v5699 = vpack.c.bf16 %v5671, %v5670
        %v5700 = vpack.c.bf16 %v5673, %v5672
        %v5701 = vpack.c.bf16 %v5675, %v5674
        %v5702 = vpack.c.bf16 %v5677, %v5676
        %v5703 = vpack.c.bf16 %v5679, %v5678
        %v5704 = vpack.c.bf16 %v5681, %v5680
        %v5705 = vpack.c.bf16 %v5683, %v5682
        %v5706 = vpack.c.bf16 %v5685, %v5684
        %v5707 = vpack.c.bf16 %v5687, %v5686
        %v5708 = vpack.c.bf16 %v5689, %v5688
        %v5709 = vpack.c.bf16 %v5691, %v5690
        %v5710 = vpack.c.bf16 %v5693, %v5692
        %v5727 = vunpack.c.l.b16 %v5695
        %v5728 = vunpack.c.h.b16 %v5695
        %v5729 = vunpack.c.l.b16 %v5696
        %v5730 = vunpack.c.h.b16 %v5696
        %v5731 = vunpack.c.l.b16 %v5697
        %v5732 = vunpack.c.h.b16 %v5697
        %v5733 = vunpack.c.l.b16 %v5698
        %v5734 = vunpack.c.h.b16 %v5698
        %v5735 = vunpack.c.l.b16 %v5699
        %v5736 = vunpack.c.h.b16 %v5699
        %v5737 = vunpack.c.l.b16 %v5700
        %v5738 = vunpack.c.h.b16 %v5700
        %v5739 = vunpack.c.l.b16 %v5701
        %v5740 = vunpack.c.h.b16 %v5701
        %v5741 = vunpack.c.l.b16 %v5702
        %v5742 = vunpack.c.h.b16 %v5702
        %v5743 = vunpack.c.l.b16 %v5703
        %v5744 = vunpack.c.h.b16 %v5703
        %v5745 = vunpack.c.l.b16 %v5704
        %v5746 = vunpack.c.h.b16 %v5704
        %v5747 = vunpack.c.l.b16 %v5705
        %v5748 = vunpack.c.h.b16 %v5705
        %v5749 = vunpack.c.l.b16 %v5706
        %v5750 = vunpack.c.h.b16 %v5706
        %v5751 = vunpack.c.l.b16 %v5707
        %v5752 = vunpack.c.h.b16 %v5707
        %v5753 = vunpack.c.l.b16 %v5708
        %v5754 = vunpack.c.h.b16 %v5708
        %v5755 = vunpack.c.l.b16 %v5709
        %v5756 = vunpack.c.h.b16 %v5709
        %v5757 = vunpack.c.l.b16 %v5710
        %v5758 = vunpack.c.h.b16 %v5710
        %v5759 = vpack.c.b16 %v5727, %v5727
        %v5760 = vpack.c.b16 %v5728, %v5728
        %v5761 = vpack.c.b16 %v5729, %v5729
        %v5762 = vpack.c.b16 %v5730, %v5730
        %v5763 = vpack.c.b16 %v5731, %v5731
        %v5764 = vpack.c.b16 %v5732, %v5732
        %v5765 = vpack.c.b16 %v5733, %v5733
        %v5766 = vpack.c.b16 %v5734, %v5734
        %v5767 = vpack.c.b16 %v5735, %v5735
        %v5768 = vpack.c.b16 %v5736, %v5736
        %v5769 = vpack.c.b16 %v5737, %v5737
        %v5770 = vpack.c.b16 %v5738, %v5738
        %v5771 = vpack.c.b16 %v5739, %v5739
        %v5772 = vpack.c.b16 %v5740, %v5740
        %v5773 = vpack.c.b16 %v5741, %v5741
        %v5774 = vpack.c.b16 %v5742, %v5742
        %v5775 = vpack.c.b16 %v5743, %v5743
        %v5776 = vpack.c.b16 %v5744, %v5744
        %v5777 = vpack.c.b16 %v5745, %v5745
        %v5778 = vpack.c.b16 %v5746, %v5746
        %v5779 = vpack.c.b16 %v5747, %v5747
        %v5780 = vpack.c.b16 %v5748, %v5748
        %v5781 = vpack.c.b16 %v5749, %v5749
        %v5782 = vpack.c.b16 %v5750, %v5750
        %v5783 = vpack.c.b16 %v5751, %v5751
        %v5784 = vpack.c.b16 %v5752, %v5752
        %v5785 = vpack.c.b16 %v5753, %v5753
        %v5786 = vpack.c.b16 %v5754, %v5754
        %v5787 = vpack.c.b16 %v5755, %v5755
        %v5788 = vpack.c.b16 %v5756, %v5756
        %v5789 = vpack.c.b16 %v5757, %v5757
        %v5790 = vpack.c.b16 %v5758, %v5758
        %v5792 = vshrl.u32 %v5759, 16
        %v5794 = vrot.slane %v5792, 7
        %v5795 = vshll.u32 %v5759, 16
        %v5797 = vor.u32 %v5794, %v5795
        %v5798 = vrot.slane %v5794, 4
        %v5800 = vshrl.u32 %v5760, 16
        %v5802 = vrot.slane %v5800, 7
        %v5803 = vshll.u32 %v5760, 16
        %v5805 = vor.u32 %v5802, %v5803
        %v5806 = vsel %vm1344, %v5798, %v5805
        %v5807 = vrot.slane %v5802, 4
        %v5809 = vshrl.u32 %v5761, 16
        %v5811 = vrot.slane %v5809, 7
        %v5812 = vshll.u32 %v5761, 16
        %v5814 = vor.u32 %v5811, %v5812
        %v5815 = vrot.slane %v5811, 4
        %v5817 = vshrl.u32 %v5762, 16
        %v5819 = vrot.slane %v5817, 7
        %v5820 = vshll.u32 %v5762, 16
        %v5822 = vor.u32 %v5819, %v5820
        %v5823 = vsel %vm1344, %v5815, %v5822
        %v5824 = vrot.slane %v5819, 4
        %v5826 = vshrl.u32 %v5763, 16
        %v5828 = vrot.slane %v5826, 7
        %v5829 = vshll.u32 %v5763, 16
        %v5831 = vor.u32 %v5828, %v5829
        %v5832 = vrot.slane %v5828, 4
        %v5834 = vshrl.u32 %v5764, 16
        %v5836 = vrot.slane %v5834, 7
        %v5837 = vshll.u32 %v5764, 16
        %v5839 = vor.u32 %v5836, %v5837
        %v5840 = vsel %vm1344, %v5832, %v5839
        %v5841 = vrot.slane %v5836, 4
        %v5843 = vshrl.u32 %v5765, 16
        %v5845 = vrot.slane %v5843, 7
        %v5846 = vshll.u32 %v5765, 16
        %v5848 = vor.u32 %v5845, %v5846
        %v5849 = vrot.slane %v5845, 4
        %v5851 = vshrl.u32 %v5766, 16
        %v5853 = vrot.slane %v5851, 7
        %v5854 = vshll.u32 %v5766, 16
        %v5856 = vor.u32 %v5853, %v5854
        %v5857 = vsel %vm1344, %v5849, %v5856
        %v5858 = vrot.slane %v5853, 4
        %v5860 = vshrl.u32 %v5767, 16
        %v5862 = vrot.slane %v5860, 7
        %v5863 = vshll.u32 %v5767, 16
        %v5865 = vor.u32 %v5862, %v5863
        %v5866 = vrot.slane %v5862, 4
        %v5868 = vshrl.u32 %v5768, 16
        %v5870 = vrot.slane %v5868, 7
        %v5871 = vshll.u32 %v5768, 16
        %v5873 = vor.u32 %v5870, %v5871
        %v5874 = vsel %vm1344, %v5866, %v5873
        %v5875 = vrot.slane %v5870, 4
        %v5877 = vshrl.u32 %v5769, 16
        %v5879 = vrot.slane %v5877, 7
        %v5880 = vshll.u32 %v5769, 16
        %v5882 = vor.u32 %v5879, %v5880
        %v5883 = vrot.slane %v5879, 4
        %v5885 = vshrl.u32 %v5770, 16
        %v5887 = vrot.slane %v5885, 7
        %v5888 = vshll.u32 %v5770, 16
        %v5890 = vor.u32 %v5887, %v5888
        %v5891 = vsel %vm1344, %v5883, %v5890
        %v5892 = vrot.slane %v5887, 4
        %v5894 = vshrl.u32 %v5771, 16
        %v5896 = vrot.slane %v5894, 7
        %v5897 = vshll.u32 %v5771, 16
        %v5899 = vor.u32 %v5896, %v5897
        %v5900 = vrot.slane %v5896, 4
        %v5902 = vshrl.u32 %v5772, 16
        %v5904 = vrot.slane %v5902, 7
        %v5905 = vshll.u32 %v5772, 16
        %v5907 = vor.u32 %v5904, %v5905
        %v5908 = vsel %vm1344, %v5900, %v5907
        %v5909 = vrot.slane %v5904, 4
        %v5911 = vshrl.u32 %v5773, 16
        %v5913 = vrot.slane %v5911, 7
        %v5914 = vshll.u32 %v5773, 16
        %v5916 = vor.u32 %v5913, %v5914
        %v5917 = vrot.slane %v5913, 4
        %v5919 = vshrl.u32 %v5774, 16
        %v5921 = vrot.slane %v5919, 7
        %v5922 = vshll.u32 %v5774, 16
        %v5924 = vor.u32 %v5921, %v5922
        %v5925 = vsel %vm1344, %v5917, %v5924
        %v5926 = vrot.slane %v5921, 4
        %v5928 = vshrl.u32 %v5775, 16
        %v5930 = vrot.slane %v5928, 7
        %v5931 = vshll.u32 %v5775, 16
        %v5933 = vor.u32 %v5930, %v5931
        %v5934 = vrot.slane %v5930, 4
        %v5936 = vshrl.u32 %v5776, 16
        %v5938 = vrot.slane %v5936, 7
        %v5939 = vshll.u32 %v5776, 16
        %v5941 = vor.u32 %v5938, %v5939
        %v5942 = vsel %vm1344, %v5934, %v5941
        %v5943 = vrot.slane %v5938, 4
        %v5945 = vshrl.u32 %v5777, 16
        %v5947 = vrot.slane %v5945, 7
        %v5948 = vshll.u32 %v5777, 16
        %v5950 = vor.u32 %v5947, %v5948
        %v5951 = vrot.slane %v5947, 4
        %v5953 = vshrl.u32 %v5778, 16
        %v5955 = vrot.slane %v5953, 7
        %v5956 = vshll.u32 %v5778, 16
        %v5958 = vor.u32 %v5955, %v5956
        %v5959 = vsel %vm1344, %v5951, %v5958
        %v5960 = vrot.slane %v5955, 4
        %v5962 = vshrl.u32 %v5779, 16
        %v5964 = vrot.slane %v5962, 7
        %v5965 = vshll.u32 %v5779, 16
        %v5967 = vor.u32 %v5964, %v5965
        %v5968 = vrot.slane %v5964, 4
        %v5970 = vshrl.u32 %v5780, 16
        %v5972 = vrot.slane %v5970, 7
        %v5973 = vshll.u32 %v5780, 16
        %v5975 = vor.u32 %v5972, %v5973
        %v5976 = vsel %vm1344, %v5968, %v5975
        %v5977 = vrot.slane %v5972, 4
        %v5979 = vshrl.u32 %v5781, 16
        %v5981 = vrot.slane %v5979, 7
        %v5982 = vshll.u32 %v5781, 16
        %v5984 = vor.u32 %v5981, %v5982
        %v5985 = vrot.slane %v5981, 4
        %v5987 = vshrl.u32 %v5782, 16
        %v5989 = vrot.slane %v5987, 7
        %v5990 = vshll.u32 %v5782, 16
        %v5992 = vor.u32 %v5989, %v5990
        %v5993 = vsel %vm1344, %v5985, %v5992
        %v5994 = vrot.slane %v5989, 4
        %v5996 = vshrl.u32 %v5783, 16
        %v5998 = vrot.slane %v5996, 7
        %v5999 = vshll.u32 %v5783, 16
        %v6001 = vor.u32 %v5998, %v5999
        %v6002 = vrot.slane %v5998, 4
        %v6004 = vshrl.u32 %v5784, 16
        %v6006 = vrot.slane %v6004, 7
        %v6007 = vshll.u32 %v5784, 16
        %v6009 = vor.u32 %v6006, %v6007
        %v6010 = vsel %vm1344, %v6002, %v6009
        %v6011 = vrot.slane %v6006, 4
        %v6013 = vshrl.u32 %v5785, 16
        %v6015 = vrot.slane %v6013, 7
        %v6016 = vshll.u32 %v5785, 16
        %v6018 = vor.u32 %v6015, %v6016
        %v6019 = vrot.slane %v6015, 4
        %v6021 = vshrl.u32 %v5786, 16
        %v6023 = vrot.slane %v6021, 7
        %v6024 = vshll.u32 %v5786, 16
        %v6026 = vor.u32 %v6023, %v6024
        %v6027 = vsel %vm1344, %v6019, %v6026
        %v6028 = vrot.slane %v6023, 4
        %v6030 = vshrl.u32 %v5787, 16
        %v6032 = vrot.slane %v6030, 7
        %v6033 = vshll.u32 %v5787, 16
        %v6035 = vor.u32 %v6032, %v6033
        %v6036 = vrot.slane %v6032, 4
        %v6038 = vshrl.u32 %v5788, 16
        %v6040 = vrot.slane %v6038, 7
        %v6041 = vshll.u32 %v5788, 16
        %v6043 = vor.u32 %v6040, %v6041
        %v6044 = vsel %vm1344, %v6036, %v6043
        %v6045 = vrot.slane %v6040, 4
        %v6047 = vshrl.u32 %v5789, 16
        %v6049 = vrot.slane %v6047, 7
        %v6050 = vshll.u32 %v5789, 16
        %v6052 = vor.u32 %v6049, %v6050
        %v6053 = vrot.slane %v6049, 4
        %v6055 = vshrl.u32 %v5790, 16
        %v6057 = vrot.slane %v6055, 7
        %v6058 = vshll.u32 %v5790, 16
        %v6060 = vor.u32 %v6057, %v6058
        %v6061 = vsel %vm1344, %v6053, %v6060
        %v6062 = vrot.slane %v6057, 4
        %vm6111 = vcmask 1043456
        %vm6112 = vmand %vm6111, %vm1667
        %v6113 = vld [vmem:[%s1665] sm:$0xf]
        %v6114 = vsel %vm6112, %v5797, %v6113
        %6115 = vst [vmem:[%s1665] sm:$0xf] %v6114
        %6116 = vst [vmem:[%s1665 + $0x4] sm:$0xf] %v5806
        %vm6117 = vcmask 1040384
        %vm6118 = vmand %vm6117, %vm1342
        %v6119 = vld [vmem:[%s1665 + $0x8] sm:$0x1]
        %v6120 = vsel %vm6118, %v5807, %v6119
        %6121 = vst [vmem:[%s1665 + $0x8] sm:$0x1] %v6120
        %v6122 = vld [vmem:[%s1665 + $0xc] sm:$0xf]
        %v6123 = vsel %vm6112, %v5814, %v6122
        %6124 = vst [vmem:[%s1665 + $0xc] sm:$0xf] %v6123
        %6125 = vst [vmem:[%s1665 + $0x10] sm:$0xf] %v5823
        %v6126 = vld [vmem:[%s1665 + $0x14] sm:$0x1]
        %v6127 = vsel %vm6118, %v5824, %v6126
        %6128 = vst [vmem:[%s1665 + $0x14] sm:$0x1] %v6127
        %v6129 = vld [vmem:[%s1665 + $0x18] sm:$0xf]
        %v6130 = vsel %vm6112, %v5831, %v6129
        %6131 = vst [vmem:[%s1665 + $0x18] sm:$0xf] %v6130
        %6132 = vst [vmem:[%s1665 + $0x1c] sm:$0xf] %v5840
        %v6133 = vld [vmem:[%s1665 + $0x20] sm:$0x1]
        %v6134 = vsel %vm6118, %v5841, %v6133
        %6135 = vst [vmem:[%s1665 + $0x20] sm:$0x1] %v6134
        %v6136 = vld [vmem:[%s1665 + $0x24] sm:$0xf]
        %v6137 = vsel %vm6112, %v5848, %v6136
        %6138 = vst [vmem:[%s1665 + $0x24] sm:$0xf] %v6137
        %6139 = vst [vmem:[%s1665 + $0x28] sm:$0xf] %v5857
        %v6140 = vld [vmem:[%s1665 + $0x2c] sm:$0x1]
        %v6141 = vsel %vm6118, %v5858, %v6140
        %6142 = vst [vmem:[%s1665 + $0x2c] sm:$0x1] %v6141
        %v6143 = vld [vmem:[%s1665 + $0x30] sm:$0xf]
        %v6144 = vsel %vm6112, %v5865, %v6143
        %6145 = vst [vmem:[%s1665 + $0x30] sm:$0xf] %v6144
        %6146 = vst [vmem:[%s1665 + $0x34] sm:$0xf] %v5874
        %v6147 = vld [vmem:[%s1665 + $0x38] sm:$0x1]
        %v6148 = vsel %vm6118, %v5875, %v6147
        %6149 = vst [vmem:[%s1665 + $0x38] sm:$0x1] %v6148
        %v6150 = vld [vmem:[%s1665 + $0x3c] sm:$0xf]
        %v6151 = vsel %vm6112, %v5882, %v6150
        %6152 = vst [vmem:[%s1665 + $0x3c] sm:$0xf] %v6151
        %6153 = vst [vmem:[%s1665 + $0x40] sm:$0xf] %v5891
        %v6154 = vld [vmem:[%s1665 + $0x44] sm:$0x1]
        %v6155 = vsel %vm6118, %v5892, %v6154
        %6156 = vst [vmem:[%s1665 + $0x44] sm:$0x1] %v6155
        %v6157 = vld [vmem:[%s1665 + $0x48] sm:$0xf]
        %v6158 = vsel %vm6112, %v5899, %v6157
        %6159 = vst [vmem:[%s1665 + $0x48] sm:$0xf] %v6158
        %6160 = vst [vmem:[%s1665 + $0x4c] sm:$0xf] %v5908
        %v6161 = vld [vmem:[%s1665 + $0x50] sm:$0x1]
        %v6162 = vsel %vm6118, %v5909, %v6161
        %6163 = vst [vmem:[%s1665 + $0x50] sm:$0x1] %v6162
        %v6164 = vld [vmem:[%s1665 + $0x54] sm:$0xf]
        %v6165 = vsel %vm6112, %v5916, %v6164
        %6166 = vst [vmem:[%s1665 + $0x54] sm:$0xf] %v6165
        %6167 = vst [vmem:[%s1665 + $0x58] sm:$0xf] %v5925
        %v6168 = vld [vmem:[%s1665 + $0x5c] sm:$0x1]
        %v6169 = vsel %vm6118, %v5926, %v6168
        %6170 = vst [vmem:[%s1665 + $0x5c] sm:$0x1] %v6169
        %v6171 = vld [vmem:[%s1665 + $0x60] sm:$0xf]
        %v6172 = vsel %vm6112, %v5933, %v6171
        %6173 = vst [vmem:[%s1665 + $0x60] sm:$0xf] %v6172
        %6174 = vst [vmem:[%s1665 + $0x64] sm:$0xf] %v5942
        %v6175 = vld [vmem:[%s1665 + $0x68] sm:$0x1]
        %v6176 = vsel %vm6118, %v5943, %v6175
        %6177 = vst [vmem:[%s1665 + $0x68] sm:$0x1] %v6176
        %v6178 = vld [vmem:[%s1665 + $0x6c] sm:$0xf]
        %v6179 = vsel %vm6112, %v5950, %v6178
        %6180 = vst [vmem:[%s1665 + $0x6c] sm:$0xf] %v6179
        %6181 = vst [vmem:[%s1665 + $0x70] sm:$0xf] %v5959
        %v6182 = vld [vmem:[%s1665 + $0x74] sm:$0x1]
        %v6183 = vsel %vm6118, %v5960, %v6182
        %6184 = vst [vmem:[%s1665 + $0x74] sm:$0x1] %v6183
        %v6185 = vld [vmem:[%s1665 + $0x78] sm:$0xf]
        %v6186 = vsel %vm6112, %v5967, %v6185
        %6187 = vst [vmem:[%s1665 + $0x78] sm:$0xf] %v6186
        %6188 = vst [vmem:[%s1665 + $0x7c] sm:$0xf] %v5976
        %v6189 = vld [vmem:[%s1665 + $0x80] sm:$0x1]
        %v6190 = vsel %vm6118, %v5977, %v6189
        %6191 = vst [vmem:[%s1665 + $0x80] sm:$0x1] %v6190
        %v6192 = vld [vmem:[%s1665 + $0x84] sm:$0xf]
        %v6193 = vsel %vm6112, %v5984, %v6192
        %6194 = vst [vmem:[%s1665 + $0x84] sm:$0xf] %v6193
        %6195 = vst [vmem:[%s1665 + $0x88] sm:$0xf] %v5993
        %v6196 = vld [vmem:[%s1665 + $0x8c] sm:$0x1]
        %v6197 = vsel %vm6118, %v5994, %v6196
        %6198 = vst [vmem:[%s1665 + $0x8c] sm:$0x1] %v6197
        %v6199 = vld [vmem:[%s1665 + $0x90] sm:$0xf]
        %v6200 = vsel %vm6112, %v6001, %v6199
        %6201 = vst [vmem:[%s1665 + $0x90] sm:$0xf] %v6200
        %6202 = vst [vmem:[%s1665 + $0x94] sm:$0xf] %v6010
        %v6203 = vld [vmem:[%s1665 + $0x98] sm:$0x1]
        %v6204 = vsel %vm6118, %v6011, %v6203
        %6205 = vst [vmem:[%s1665 + $0x98] sm:$0x1] %v6204
        %v6206 = vld [vmem:[%s1665 + $0x9c] sm:$0xf]
        %v6207 = vsel %vm6112, %v6018, %v6206
        %6208 = vst [vmem:[%s1665 + $0x9c] sm:$0xf] %v6207
        %6209 = vst [vmem:[%s1665 + $0xa0] sm:$0xf] %v6027
        %v6210 = vld [vmem:[%s1665 + $0xa4] sm:$0x1]
        %v6211 = vsel %vm6118, %v6028, %v6210
        %6212 = vst [vmem:[%s1665 + $0xa4] sm:$0x1] %v6211
        %v6213 = vld [vmem:[%s1665 + $0xa8] sm:$0xf]
        %v6214 = vsel %vm6112, %v6035, %v6213
        %6215 = vst [vmem:[%s1665 + $0xa8] sm:$0xf] %v6214
        %6216 = vst [vmem:[%s1665 + $0xac] sm:$0xf] %v6044
        %v6217 = vld [vmem:[%s1665 + $0xb0] sm:$0x1]
        %v6218 = vsel %vm6118, %v6045, %v6217
        %6219 = vst [vmem:[%s1665 + $0xb0] sm:$0x1] %v6218
        %v6220 = vld [vmem:[%s1665 + $0xb4] sm:$0xf]
        %v6221 = vsel %vm6112, %v6052, %v6220
        %6222 = vst [vmem:[%s1665 + $0xb4] sm:$0xf] %v6221
        %6223 = vst [vmem:[%s1665 + $0xb8] sm:$0xf] %v6061
        %v6224 = vld [vmem:[%s1665 + $0xbc] sm:$0x1]
        %v6225 = vsel %vm6118, %v6062, %v6224
        %6226 = vst [vmem:[%s1665 + $0xbc] sm:$0x1] %v6225
        %v6227 = vld [vmem:[#allocation2] sm:$0xf]
        %v6228 = vld [vmem:[#allocation2 + $0x4] sm:$0xf]
        %v6229 = vld [vmem:[#allocation2 + $0xc] sm:$0xf]
        %v6230 = vld [vmem:[#allocation2 + $0x10] sm:$0xf]
        %v6231 = vld [vmem:[#allocation2 + $0x18] sm:$0xf]
        %v6232 = vld [vmem:[#allocation2 + $0x1c] sm:$0xf]
        %v6233 = vld [vmem:[#allocation2 + $0x24] sm:$0xf]
        %v6234 = vld [vmem:[#allocation2 + $0x28] sm:$0xf]
        %v6235 = vld [vmem:[#allocation2 + $0x30] sm:$0xf]
        %v6236 = vld [vmem:[#allocation2 + $0x34] sm:$0xf]
        %v6237 = vld [vmem:[#allocation2 + $0x3c] sm:$0xf]
        %v6238 = vld [vmem:[#allocation2 + $0x40] sm:$0xf]
        %v6239 = vld [vmem:[#allocation2 + $0x48] sm:$0xf]
        %v6240 = vld [vmem:[#allocation2 + $0x4c] sm:$0xf]
        %v6241 = vld [vmem:[#allocation2 + $0x54] sm:$0xf]
        %v6242 = vld [vmem:[#allocation2 + $0x58] sm:$0xf]
        %v6243 = vld [vmem:[#allocation2 + $0x60] sm:$0xf]
        %v6244 = vld [vmem:[#allocation2 + $0x64] sm:$0xf]
        %v6245 = vld [vmem:[#allocation2 + $0x6c] sm:$0xf]
        %v6246 = vld [vmem:[#allocation2 + $0x70] sm:$0xf]
        %v6247 = vld [vmem:[#allocation2 + $0x78] sm:$0xf]
        %v6248 = vld [vmem:[#allocation2 + $0x7c] sm:$0xf]
        %v6249 = vld [vmem:[#allocation2 + $0x84] sm:$0xf]
        %v6250 = vld [vmem:[#allocation2 + $0x88] sm:$0xf]
        %v6251 = vld [vmem:[#allocation2 + $0x90] sm:$0xf]
        %v6252 = vld [vmem:[#allocation2 + $0x94] sm:$0xf]
        %v6253 = vld [vmem:[#allocation2 + $0x9c] sm:$0xf]
        %v6254 = vld [vmem:[#allocation2 + $0xa0] sm:$0xf]
        %v6255 = vld [vmem:[#allocation2 + $0xa8] sm:$0xf]
        %v6256 = vld [vmem:[#allocation2 + $0xac] sm:$0xf]
        %v6257 = vld [vmem:[#allocation2 + $0xb4] sm:$0xf]
        %v6258 = vld [vmem:[#allocation2 + $0xb8] sm:$0xf]
        %v6259 = vld [vmem:[#allocation2 + $0x8] sm:$0x1]
        %v6260 = vld [vmem:[#allocation2 + $0x14] sm:$0x1]
        %v6261 = vld [vmem:[#allocation2 + $0x20] sm:$0x1]
        %v6262 = vld [vmem:[#allocation2 + $0x2c] sm:$0x1]
        %v6263 = vld [vmem:[#allocation2 + $0x38] sm:$0x1]
        %v6264 = vld [vmem:[#allocation2 + $0x44] sm:$0x1]
        %v6265 = vld [vmem:[#allocation2 + $0x50] sm:$0x1]
        %v6266 = vld [vmem:[#allocation2 + $0x5c] sm:$0x1]
        %v6267 = vld [vmem:[#allocation2 + $0x68] sm:$0x1]
        %v6268 = vld [vmem:[#allocation2 + $0x74] sm:$0x1]
        %v6269 = vld [vmem:[#allocation2 + $0x80] sm:$0x1]
        %v6270 = vld [vmem:[#allocation2 + $0x8c] sm:$0x1]
        %v6271 = vld [vmem:[#allocation2 + $0x98] sm:$0x1]
        %v6272 = vld [vmem:[#allocation2 + $0xa4] sm:$0x1]
        %v6273 = vld [vmem:[#allocation2 + $0xb0] sm:$0x1]
        %v6274 = vld [vmem:[#allocation2 + $0xbc] sm:$0x1]
        %v6276 = vshrl.u32 %v6227, 16
        %v6278 = vrot.slane %v6276, 4
        %v6279 = vshll.u32 %v6227, 16
        %v6281 = vrot.slane %v6279, 5
        %v6282 = vor.u32 %v6278, %v6281
        %v6283 = vrot.slane %v6282, 4
        %v6285 = vshll.u32 %v6228, 16
        %v6287 = vrot.slane %v6285, 5
        %v6288 = vsel %vm1834, %v6283, %v6287
        %v6289 = vshrl.u32 %v6228, 16
        %v6291 = vrot.slane %v6289, 4
        %v6292 = vor.u32 %v6291, %v6287
        %v6293 = vrot.slane %v6292, 4
        %v6295 = vshll.u32 %v6259, 16
        %v6297 = vrot.slane %v6295, 5
        %v6298 = vsel %vm1834, %v6293, %v6297
        %v6300 = vshrl.u32 %v6229, 16
        %v6302 = vrot.slane %v6300, 4
        %v6303 = vshll.u32 %v6229, 16
        %v6305 = vrot.slane %v6303, 5
        %v6306 = vor.u32 %v6302, %v6305
        %v6307 = vrot.slane %v6306, 4
        %v6309 = vshll.u32 %v6230, 16
        %v6311 = vrot.slane %v6309, 5
        %v6312 = vsel %vm1834, %v6307, %v6311
        %v6313 = vshrl.u32 %v6230, 16
        %v6315 = vrot.slane %v6313, 4
        %v6316 = vor.u32 %v6315, %v6311
        %v6317 = vrot.slane %v6316, 4
        %v6319 = vshll.u32 %v6260, 16
        %v6321 = vrot.slane %v6319, 5
        %v6322 = vsel %vm1834, %v6317, %v6321
        %v6324 = vshrl.u32 %v6231, 16
        %v6326 = vrot.slane %v6324, 4
        %v6327 = vshll.u32 %v6231, 16
        %v6329 = vrot.slane %v6327, 5
        %v6330 = vor.u32 %v6326, %v6329
        %v6331 = vrot.slane %v6330, 4
        %v6333 = vshll.u32 %v6232, 16
        %v6335 = vrot.slane %v6333, 5
        %v6336 = vsel %vm1834, %v6331, %v6335
        %v6337 = vshrl.u32 %v6232, 16
        %v6339 = vrot.slane %v6337, 4
        %v6340 = vor.u32 %v6339, %v6335
        %v6341 = vrot.slane %v6340, 4
        %v6343 = vshll.u32 %v6261, 16
        %v6345 = vrot.slane %v6343, 5
        %v6346 = vsel %vm1834, %v6341, %v6345
        %v6348 = vshrl.u32 %v6233, 16
        %v6350 = vrot.slane %v6348, 4
        %v6351 = vshll.u32 %v6233, 16
        %v6353 = vrot.slane %v6351, 5
        %v6354 = vor.u32 %v6350, %v6353
        %v6355 = vrot.slane %v6354, 4
        %v6357 = vshll.u32 %v6234, 16
        %v6359 = vrot.slane %v6357, 5
        %v6360 = vsel %vm1834, %v6355, %v6359
        %v6361 = vshrl.u32 %v6234, 16
        %v6363 = vrot.slane %v6361, 4
        %v6364 = vor.u32 %v6363, %v6359
        %v6365 = vrot.slane %v6364, 4
        %v6367 = vshll.u32 %v6262, 16
        %v6369 = vrot.slane %v6367, 5
        %v6370 = vsel %vm1834, %v6365, %v6369
        %v6372 = vshrl.u32 %v6235, 16
        %v6374 = vrot.slane %v6372, 4
        %v6375 = vshll.u32 %v6235, 16
        %v6377 = vrot.slane %v6375, 5
        %v6378 = vor.u32 %v6374, %v6377
        %v6379 = vrot.slane %v6378, 4
        %v6381 = vshll.u32 %v6236, 16
        %v6383 = vrot.slane %v6381, 5
        %v6384 = vsel %vm1834, %v6379, %v6383
        %v6385 = vshrl.u32 %v6236, 16
        %v6387 = vrot.slane %v6385, 4
        %v6388 = vor.u32 %v6387, %v6383
        %v6389 = vrot.slane %v6388, 4
        %v6391 = vshll.u32 %v6263, 16
        %v6393 = vrot.slane %v6391, 5
        %v6394 = vsel %vm1834, %v6389, %v6393
        %v6396 = vshrl.u32 %v6237, 16
        %v6398 = vrot.slane %v6396, 4
        %v6399 = vshll.u32 %v6237, 16
        %v6401 = vrot.slane %v6399, 5
        %v6402 = vor.u32 %v6398, %v6401
        %v6403 = vrot.slane %v6402, 4
        %v6405 = vshll.u32 %v6238, 16
        %v6407 = vrot.slane %v6405, 5
        %v6408 = vsel %vm1834, %v6403, %v6407
        %v6409 = vshrl.u32 %v6238, 16
        %v6411 = vrot.slane %v6409, 4
        %v6412 = vor.u32 %v6411, %v6407
        %v6413 = vrot.slane %v6412, 4
        %v6415 = vshll.u32 %v6264, 16
        %v6417 = vrot.slane %v6415, 5
        %v6418 = vsel %vm1834, %v6413, %v6417
        %v6420 = vshrl.u32 %v6239, 16
        %v6422 = vrot.slane %v6420, 4
        %v6423 = vshll.u32 %v6239, 16
        %v6425 = vrot.slane %v6423, 5
        %v6426 = vor.u32 %v6422, %v6425
        %v6427 = vrot.slane %v6426, 4
        %v6429 = vshll.u32 %v6240, 16
        %v6431 = vrot.slane %v6429, 5
        %v6432 = vsel %vm1834, %v6427, %v6431
        %v6433 = vshrl.u32 %v6240, 16
        %v6435 = vrot.slane %v6433, 4
        %v6436 = vor.u32 %v6435, %v6431
        %v6437 = vrot.slane %v6436, 4
        %v6439 = vshll.u32 %v6265, 16
        %v6441 = vrot.slane %v6439, 5
        %v6442 = vsel %vm1834, %v6437, %v6441
        %v6444 = vshrl.u32 %v6241, 16
        %v6446 = vrot.slane %v6444, 4
        %v6447 = vshll.u32 %v6241, 16
        %v6449 = vrot.slane %v6447, 5
        %v6450 = vor.u32 %v6446, %v6449
        %v6451 = vrot.slane %v6450, 4
        %v6453 = vshll.u32 %v6242, 16
        %v6455 = vrot.slane %v6453, 5
        %v6456 = vsel %vm1834, %v6451, %v6455
        %v6457 = vshrl.u32 %v6242, 16
        %v6459 = vrot.slane %v6457, 4
        %v6460 = vor.u32 %v6459, %v6455
        %v6461 = vrot.slane %v6460, 4
        %v6463 = vshll.u32 %v6266, 16
        %v6465 = vrot.slane %v6463, 5
        %v6466 = vsel %vm1834, %v6461, %v6465
        %v6468 = vshrl.u32 %v6243, 16
        %v6470 = vrot.slane %v6468, 4
        %v6471 = vshll.u32 %v6243, 16
        %v6473 = vrot.slane %v6471, 5
        %v6474 = vor.u32 %v6470, %v6473
        %v6475 = vrot.slane %v6474, 4
        %v6477 = vshll.u32 %v6244, 16
        %v6479 = vrot.slane %v6477, 5
        %v6480 = vsel %vm1834, %v6475, %v6479
        %v6481 = vshrl.u32 %v6244, 16
        %v6483 = vrot.slane %v6481, 4
        %v6484 = vor.u32 %v6483, %v6479
        %v6485 = vrot.slane %v6484, 4
        %v6487 = vshll.u32 %v6267, 16
        %v6489 = vrot.slane %v6487, 5
        %v6490 = vsel %vm1834, %v6485, %v6489
        %v6492 = vshrl.u32 %v6245, 16
        %v6494 = vrot.slane %v6492, 4
        %v6495 = vshll.u32 %v6245, 16
        %v6497 = vrot.slane %v6495, 5
        %v6498 = vor.u32 %v6494, %v6497
        %v6499 = vrot.slane %v6498, 4
        %v6501 = vshll.u32 %v6246, 16
        %v6503 = vrot.slane %v6501, 5
        %v6504 = vsel %vm1834, %v6499, %v6503
        %v6505 = vshrl.u32 %v6246, 16
        %v6507 = vrot.slane %v6505, 4
        %v6508 = vor.u32 %v6507, %v6503
        %v6509 = vrot.slane %v6508, 4
        %v6511 = vshll.u32 %v6268, 16
        %v6513 = vrot.slane %v6511, 5
        %v6514 = vsel %vm1834, %v6509, %v6513
        %v6516 = vshrl.u32 %v6247, 16
        %v6518 = vrot.slane %v6516, 4
        %v6519 = vshll.u32 %v6247, 16
        %v6521 = vrot.slane %v6519, 5
        %v6522 = vor.u32 %v6518, %v6521
        %v6523 = vrot.slane %v6522, 4
        %v6525 = vshll.u32 %v6248, 16
        %v6527 = vrot.slane %v6525, 5
        %v6528 = vsel %vm1834, %v6523, %v6527
        %v6529 = vshrl.u32 %v6248, 16
        %v6531 = vrot.slane %v6529, 4
        %v6532 = vor.u32 %v6531, %v6527
        %v6533 = vrot.slane %v6532, 4
        %v6535 = vshll.u32 %v6269, 16
        %v6537 = vrot.slane %v6535, 5
        %v6538 = vsel %vm1834, %v6533, %v6537
        %v6540 = vshrl.u32 %v6249, 16
        %v6542 = vrot.slane %v6540, 4
        %v6543 = vshll.u32 %v6249, 16
        %v6545 = vrot.slane %v6543, 5
        %v6546 = vor.u32 %v6542, %v6545
        %v6547 = vrot.slane %v6546, 4
        %v6549 = vshll.u32 %v6250, 16
        %v6551 = vrot.slane %v6549, 5
        %v6552 = vsel %vm1834, %v6547, %v6551
        %v6553 = vshrl.u32 %v6250, 16
        %v6555 = vrot.slane %v6553, 4
        %v6556 = vor.u32 %v6555, %v6551
        %v6557 = vrot.slane %v6556, 4
        %v6559 = vshll.u32 %v6270, 16
        %v6561 = vrot.slane %v6559, 5
        %v6562 = vsel %vm1834, %v6557, %v6561
        %v6564 = vshrl.u32 %v6251, 16
        %v6566 = vrot.slane %v6564, 4
        %v6567 = vshll.u32 %v6251, 16
        %v6569 = vrot.slane %v6567, 5
        %v6570 = vor.u32 %v6566, %v6569
        %v6571 = vrot.slane %v6570, 4
        %v6573 = vshll.u32 %v6252, 16
        %v6575 = vrot.slane %v6573, 5
        %v6576 = vsel %vm1834, %v6571, %v6575
        %v6577 = vshrl.u32 %v6252, 16
        %v6579 = vrot.slane %v6577, 4
        %v6580 = vor.u32 %v6579, %v6575
        %v6581 = vrot.slane %v6580, 4
        %v6583 = vshll.u32 %v6271, 16
        %v6585 = vrot.slane %v6583, 5
        %v6586 = vsel %vm1834, %v6581, %v6585
        %v6588 = vshrl.u32 %v6253, 16
        %v6590 = vrot.slane %v6588, 4
        %v6591 = vshll.u32 %v6253, 16
        %v6593 = vrot.slane %v6591, 5
        %v6594 = vor.u32 %v6590, %v6593
        %v6595 = vrot.slane %v6594, 4
        %v6597 = vshll.u32 %v6254, 16
        %v6599 = vrot.slane %v6597, 5
        %v6600 = vsel %vm1834, %v6595, %v6599
        %v6601 = vshrl.u32 %v6254, 16
        %v6603 = vrot.slane %v6601, 4
        %v6604 = vor.u32 %v6603, %v6599
        %v6605 = vrot.slane %v6604, 4
        %v6607 = vshll.u32 %v6272, 16
        %v6609 = vrot.slane %v6607, 5
        %v6610 = vsel %vm1834, %v6605, %v6609
        %v6612 = vshrl.u32 %v6255, 16
        %v6614 = vrot.slane %v6612, 4
        %v6615 = vshll.u32 %v6255, 16
        %v6617 = vrot.slane %v6615, 5
        %v6618 = vor.u32 %v6614, %v6617
        %v6619 = vrot.slane %v6618, 4
        %v6621 = vshll.u32 %v6256, 16
        %v6623 = vrot.slane %v6621, 5
        %v6624 = vsel %vm1834, %v6619, %v6623
        %v6625 = vshrl.u32 %v6256, 16
        %v6627 = vrot.slane %v6625, 4
        %v6628 = vor.u32 %v6627, %v6623
        %v6629 = vrot.slane %v6628, 4
        %v6631 = vshll.u32 %v6273, 16
        %v6633 = vrot.slane %v6631, 5
        %v6634 = vsel %vm1834, %v6629, %v6633
        %v6636 = vshrl.u32 %v6257, 16
        %v6638 = vrot.slane %v6636, 4
        %v6639 = vshll.u32 %v6257, 16
        %v6641 = vrot.slane %v6639, 5
        %v6642 = vor.u32 %v6638, %v6641
        %v6643 = vrot.slane %v6642, 4
        %v6645 = vshll.u32 %v6258, 16
        %v6647 = vrot.slane %v6645, 5
        %v6648 = vsel %vm1834, %v6643, %v6647
        %v6649 = vshrl.u32 %v6258, 16
        %v6651 = vrot.slane %v6649, 4
        %v6652 = vor.u32 %v6651, %v6647
        %v6653 = vrot.slane %v6652, 4
        %v6655 = vshll.u32 %v6274, 16
        %v6657 = vrot.slane %v6655, 5
        %v6658 = vsel %vm1834, %v6653, %v6657
        %v6659 = vld [vmem:[#allocation2] sm:$0xe]
        %v6660 = vld [vmem:[#allocation2 + $0xc] sm:$0xe]
        %v6661 = vld [vmem:[#allocation2 + $0x18] sm:$0xe]
        %v6662 = vld [vmem:[#allocation2 + $0x24] sm:$0xe]
        %v6663 = vld [vmem:[#allocation2 + $0x30] sm:$0xe]
        %v6664 = vld [vmem:[#allocation2 + $0x3c] sm:$0xe]
        %v6665 = vld [vmem:[#allocation2 + $0x48] sm:$0xe]
        %v6666 = vld [vmem:[#allocation2 + $0x54] sm:$0xe]
        %v6667 = vld [vmem:[#allocation2 + $0x60] sm:$0xe]
        %v6668 = vld [vmem:[#allocation2 + $0x6c] sm:$0xe]
        %v6669 = vld [vmem:[#allocation2 + $0x78] sm:$0xe]
        %v6670 = vld [vmem:[#allocation2 + $0x84] sm:$0xe]
        %v6671 = vld [vmem:[#allocation2 + $0x90] sm:$0xe]
        %v6672 = vld [vmem:[#allocation2 + $0x9c] sm:$0xe]
        %v6673 = vld [vmem:[#allocation2 + $0xa8] sm:$0xe]
        %v6674 = vld [vmem:[#allocation2 + $0xb4] sm:$0xe]
        %v6723 = vrot.slane %v6659, 5
        %v6724 = vrot.slane %v6723, 4
        %v6725 = vrot.slane %v6228, 5
        %v6726 = vsel %vm2285, %v6724, %v6725
        %v6727 = vrot.slane %v6725, 4
        %v6728 = vrot.slane %v6259, 5
        %v6729 = vsel %vm2285, %v6727, %v6728
        %v6730 = vrot.slane %v6660, 5
        %v6731 = vrot.slane %v6730, 4
        %v6732 = vrot.slane %v6230, 5
        %v6733 = vsel %vm2285, %v6731, %v6732
        %v6734 = vrot.slane %v6732, 4
        %v6735 = vrot.slane %v6260, 5
        %v6736 = vsel %vm2285, %v6734, %v6735
        %v6737 = vrot.slane %v6661, 5
        %v6738 = vrot.slane %v6737, 4
        %v6739 = vrot.slane %v6232, 5
        %v6740 = vsel %vm2285, %v6738, %v6739
        %v6741 = vrot.slane %v6739, 4
        %v6742 = vrot.slane %v6261, 5
        %v6743 = vsel %vm2285, %v6741, %v6742
        %v6744 = vrot.slane %v6662, 5
        %v6745 = vrot.slane %v6744, 4
        %v6746 = vrot.slane %v6234, 5
        %v6747 = vsel %vm2285, %v6745, %v6746
        %v6748 = vrot.slane %v6746, 4
        %v6749 = vrot.slane %v6262, 5
        %v6750 = vsel %vm2285, %v6748, %v6749
        %v6751 = vrot.slane %v6663, 5
        %v6752 = vrot.slane %v6751, 4
        %v6753 = vrot.slane %v6236, 5
        %v6754 = vsel %vm2285, %v6752, %v6753
        %v6755 = vrot.slane %v6753, 4
        %v6756 = vrot.slane %v6263, 5
        %v6757 = vsel %vm2285, %v6755, %v6756
        %v6758 = vrot.slane %v6664, 5
        %v6759 = vrot.slane %v6758, 4
        %v6760 = vrot.slane %v6238, 5
        %v6761 = vsel %vm2285, %v6759, %v6760
        %v6762 = vrot.slane %v6760, 4
        %v6763 = vrot.slane %v6264, 5
        %v6764 = vsel %vm2285, %v6762, %v6763
        %v6765 = vrot.slane %v6665, 5
        %v6766 = vrot.slane %v6765, 4
        %v6767 = vrot.slane %v6240, 5
        %v6768 = vsel %vm2285, %v6766, %v6767
        %v6769 = vrot.slane %v6767, 4
        %v6770 = vrot.slane %v6265, 5
        %v6771 = vsel %vm2285, %v6769, %v6770
        %v6772 = vrot.slane %v6666, 5
        %v6773 = vrot.slane %v6772, 4
        %v6774 = vrot.slane %v6242, 5
        %v6775 = vsel %vm2285, %v6773, %v6774
        %v6776 = vrot.slane %v6774, 4
        %v6777 = vrot.slane %v6266, 5
        %v6778 = vsel %vm2285, %v6776, %v6777
        %v6779 = vrot.slane %v6667, 5
        %v6780 = vrot.slane %v6779, 4
        %v6781 = vrot.slane %v6244, 5
        %v6782 = vsel %vm2285, %v6780, %v6781
        %v6783 = vrot.slane %v6781, 4
        %v6784 = vrot.slane %v6267, 5
        %v6785 = vsel %vm2285, %v6783, %v6784
        %v6786 = vrot.slane %v6668, 5
        %v6787 = vrot.slane %v6786, 4
        %v6788 = vrot.slane %v6246, 5
        %v6789 = vsel %vm2285, %v6787, %v6788
        %v6790 = vrot.slane %v6788, 4
        %v6791 = vrot.slane %v6268, 5
        %v6792 = vsel %vm2285, %v6790, %v6791
        %v6793 = vrot.slane %v6669, 5
        %v6794 = vrot.slane %v6793, 4
        %v6795 = vrot.slane %v6248, 5
        %v6796 = vsel %vm2285, %v6794, %v6795
        %v6797 = vrot.slane %v6795, 4
        %v6798 = vrot.slane %v6269, 5
        %v6799 = vsel %vm2285, %v6797, %v6798
        %v6800 = vrot.slane %v6670, 5
        %v6801 = vrot.slane %v6800, 4
        %v6802 = vrot.slane %v6250, 5
        %v6803 = vsel %vm2285, %v6801, %v6802
        %v6804 = vrot.slane %v6802, 4
        %v6805 = vrot.slane %v6270, 5
        %v6806 = vsel %vm2285, %v6804, %v6805
        %v6807 = vrot.slane %v6671, 5
        %v6808 = vrot.slane %v6807, 4
        %v6809 = vrot.slane %v6252, 5
        %v6810 = vsel %vm2285, %v6808, %v6809
        %v6811 = vrot.slane %v6809, 4
        %v6812 = vrot.slane %v6271, 5
        %v6813 = vsel %vm2285, %v6811, %v6812
        %v6814 = vrot.slane %v6672, 5
        %v6815 = vrot.slane %v6814, 4
        %v6816 = vrot.slane %v6254, 5
        %v6817 = vsel %vm2285, %v6815, %v6816
        %v6818 = vrot.slane %v6816, 4
        %v6819 = vrot.slane %v6272, 5
        %v6820 = vsel %vm2285, %v6818, %v6819
        %v6821 = vrot.slane %v6673, 5
        %v6822 = vrot.slane %v6821, 4
        %v6823 = vrot.slane %v6256, 5
        %v6824 = vsel %vm2285, %v6822, %v6823
        %v6825 = vrot.slane %v6823, 4
        %v6826 = vrot.slane %v6273, 5
        %v6827 = vsel %vm2285, %v6825, %v6826
        %v6828 = vrot.slane %v6674, 5
        %v6829 = vrot.slane %v6828, 4
        %v6830 = vrot.slane %v6258, 5
        %v6831 = vsel %vm2285, %v6829, %v6830
        %v6832 = vrot.slane %v6830, 4
        %v6833 = vrot.slane %v6274, 5
        %v6834 = vsel %vm2285, %v6832, %v6833
        %v6835 = vld [vmem:[%s1665] sm:$0xf]
        %v6836 = vld [vmem:[%s1665 + $0x4] sm:$0xf]
        %v6837 = vld [vmem:[%s1665 + $0xc] sm:$0xf]
        %v6838 = vld [vmem:[%s1665 + $0x10] sm:$0xf]
        %v6839 = vld [vmem:[%s1665 + $0x18] sm:$0xf]
        %v6840 = vld [vmem:[%s1665 + $0x1c] sm:$0xf]
        %v6841 = vld [vmem:[%s1665 + $0x24] sm:$0xf]
        %v6842 = vld [vmem:[%s1665 + $0x28] sm:$0xf]
        %v6843 = vld [vmem:[%s1665 + $0x30] sm:$0xf]
        %v6844 = vld [vmem:[%s1665 + $0x34] sm:$0xf]
        %v6845 = vld [vmem:[%s1665 + $0x3c] sm:$0xf]
        %v6846 = vld [vmem:[%s1665 + $0x40] sm:$0xf]
        %v6847 = vld [vmem:[%s1665 + $0x48] sm:$0xf]
        %v6848 = vld [vmem:[%s1665 + $0x4c] sm:$0xf]
        %v6849 = vld [vmem:[%s1665 + $0x54] sm:$0xf]
        %v6850 = vld [vmem:[%s1665 + $0x58] sm:$0xf]
        %v6851 = vld [vmem:[%s1665 + $0x60] sm:$0xf]
        %v6852 = vld [vmem:[%s1665 + $0x64] sm:$0xf]
        %v6853 = vld [vmem:[%s1665 + $0x6c] sm:$0xf]
        %v6854 = vld [vmem:[%s1665 + $0x70] sm:$0xf]
        %v6855 = vld [vmem:[%s1665 + $0x78] sm:$0xf]
        %v6856 = vld [vmem:[%s1665 + $0x7c] sm:$0xf]
        %v6857 = vld [vmem:[%s1665 + $0x84] sm:$0xf]
        %v6858 = vld [vmem:[%s1665 + $0x88] sm:$0xf]
        %v6859 = vld [vmem:[%s1665 + $0x90] sm:$0xf]
        %v6860 = vld [vmem:[%s1665 + $0x94] sm:$0xf]
        %v6861 = vld [vmem:[%s1665 + $0x9c] sm:$0xf]
        %v6862 = vld [vmem:[%s1665 + $0xa0] sm:$0xf]
        %v6863 = vld [vmem:[%s1665 + $0xa8] sm:$0xf]
        %v6864 = vld [vmem:[%s1665 + $0xac] sm:$0xf]
        %v6865 = vld [vmem:[%s1665 + $0xb4] sm:$0xf]
        %v6866 = vld [vmem:[%s1665 + $0xb8] sm:$0xf]
        %v6867 = vld [vmem:[%s1665 + $0x8] sm:$0x1]
        %v6868 = vld [vmem:[%s1665 + $0x14] sm:$0x1]
        %v6869 = vld [vmem:[%s1665 + $0x20] sm:$0x1]
        %v6870 = vld [vmem:[%s1665 + $0x2c] sm:$0x1]
        %v6871 = vld [vmem:[%s1665 + $0x38] sm:$0x1]
        %v6872 = vld [vmem:[%s1665 + $0x44] sm:$0x1]
        %v6873 = vld [vmem:[%s1665 + $0x50] sm:$0x1]
        %v6874 = vld [vmem:[%s1665 + $0x5c] sm:$0x1]
        %v6875 = vld [vmem:[%s1665 + $0x68] sm:$0x1]
        %v6876 = vld [vmem:[%s1665 + $0x74] sm:$0x1]
        %v6877 = vld [vmem:[%s1665 + $0x80] sm:$0x1]
        %v6878 = vld [vmem:[%s1665 + $0x8c] sm:$0x1]
        %v6879 = vld [vmem:[%s1665 + $0x98] sm:$0x1]
        %v6880 = vld [vmem:[%s1665 + $0xa4] sm:$0x1]
        %v6881 = vld [vmem:[%s1665 + $0xb0] sm:$0x1]
        %v6882 = vld [vmem:[%s1665 + $0xbc] sm:$0x1]
        %v6884 = vshrl.u32 %v6835, 16
        %v6886 = vrot.slane %v6884, 4
        %v6887 = vshll.u32 %v6835, 16
        %v6889 = vrot.slane %v6887, 5
        %v6890 = vor.u32 %v6886, %v6889
        %v6891 = vrot.slane %v6890, 4
        %v6893 = vshll.u32 %v6836, 16
        %v6895 = vrot.slane %v6893, 5
        %v6896 = vsel %vm1834, %v6891, %v6895
        %v6897 = vshrl.u32 %v6836, 16
        %v6899 = vrot.slane %v6897, 4
        %v6900 = vor.u32 %v6899, %v6895
        %v6901 = vrot.slane %v6900, 4
        %v6903 = vshll.u32 %v6867, 16
        %v6905 = vrot.slane %v6903, 5
        %v6906 = vsel %vm1834, %v6901, %v6905
        %v6908 = vshrl.u32 %v6837, 16
        %v6910 = vrot.slane %v6908, 4
        %v6911 = vshll.u32 %v6837, 16
        %v6913 = vrot.slane %v6911, 5
        %v6914 = vor.u32 %v6910, %v6913
        %v6915 = vrot.slane %v6914, 4
        %v6917 = vshll.u32 %v6838, 16
        %v6919 = vrot.slane %v6917, 5
        %v6920 = vsel %vm1834, %v6915, %v6919
        %v6921 = vshrl.u32 %v6838, 16
        %v6923 = vrot.slane %v6921, 4
        %v6924 = vor.u32 %v6923, %v6919
        %v6925 = vrot.slane %v6924, 4
        %v6927 = vshll.u32 %v6868, 16
        %v6929 = vrot.slane %v6927, 5
        %v6930 = vsel %vm1834, %v6925, %v6929
        %v6932 = vshrl.u32 %v6839, 16
        %v6934 = vrot.slane %v6932, 4
        %v6935 = vshll.u32 %v6839, 16
        %v6937 = vrot.slane %v6935, 5
        %v6938 = vor.u32 %v6934, %v6937
        %v6939 = vrot.slane %v6938, 4
        %v6941 = vshll.u32 %v6840, 16
        %v6943 = vrot.slane %v6941, 5
        %v6944 = vsel %vm1834, %v6939, %v6943
        %v6945 = vshrl.u32 %v6840, 16
        %v6947 = vrot.slane %v6945, 4
        %v6948 = vor.u32 %v6947, %v6943
        %v6949 = vrot.slane %v6948, 4
        %v6951 = vshll.u32 %v6869, 16
        %v6953 = vrot.slane %v6951, 5
        %v6954 = vsel %vm1834, %v6949, %v6953
        %v6956 = vshrl.u32 %v6841, 16
        %v6958 = vrot.slane %v6956, 4
        %v6959 = vshll.u32 %v6841, 16
        %v6961 = vrot.slane %v6959, 5
        %v6962 = vor.u32 %v6958, %v6961
        %v6963 = vrot.slane %v6962, 4
        %v6965 = vshll.u32 %v6842, 16
        %v6967 = vrot.slane %v6965, 5
        %v6968 = vsel %vm1834, %v6963, %v6967
        %v6969 = vshrl.u32 %v6842, 16
        %v6971 = vrot.slane %v6969, 4
        %v6972 = vor.u32 %v6971, %v6967
        %v6973 = vrot.slane %v6972, 4
        %v6975 = vshll.u32 %v6870, 16
        %v6977 = vrot.slane %v6975, 5
        %v6978 = vsel %vm1834, %v6973, %v6977
        %v6980 = vshrl.u32 %v6843, 16
        %v6982 = vrot.slane %v6980, 4
        %v6983 = vshll.u32 %v6843, 16
        %v6985 = vrot.slane %v6983, 5
        %v6986 = vor.u32 %v6982, %v6985
        %v6987 = vrot.slane %v6986, 4
        %v6989 = vshll.u32 %v6844, 16
        %v6991 = vrot.slane %v6989, 5
        %v6992 = vsel %vm1834, %v6987, %v6991
        %v6993 = vshrl.u32 %v6844, 16
        %v6995 = vrot.slane %v6993, 4
        %v6996 = vor.u32 %v6995, %v6991
        %v6997 = vrot.slane %v6996, 4
        %v6999 = vshll.u32 %v6871, 16
        %v7001 = vrot.slane %v6999, 5
        %v7002 = vsel %vm1834, %v6997, %v7001
        %v7004 = vshrl.u32 %v6845, 16
        %v7006 = vrot.slane %v7004, 4
        %v7007 = vshll.u32 %v6845, 16
        %v7009 = vrot.slane %v7007, 5
        %v7010 = vor.u32 %v7006, %v7009
        %v7011 = vrot.slane %v7010, 4
        %v7013 = vshll.u32 %v6846, 16
        %v7015 = vrot.slane %v7013, 5
        %v7016 = vsel %vm1834, %v7011, %v7015
        %v7017 = vshrl.u32 %v6846, 16
        %v7019 = vrot.slane %v7017, 4
        %v7020 = vor.u32 %v7019, %v7015
        %v7021 = vrot.slane %v7020, 4
        %v7023 = vshll.u32 %v6872, 16
        %v7025 = vrot.slane %v7023, 5
        %v7026 = vsel %vm1834, %v7021, %v7025
        %v7028 = vshrl.u32 %v6847, 16
        %v7030 = vrot.slane %v7028, 4
        %v7031 = vshll.u32 %v6847, 16
        %v7033 = vrot.slane %v7031, 5
        %v7034 = vor.u32 %v7030, %v7033
        %v7035 = vrot.slane %v7034, 4
        %v7037 = vshll.u32 %v6848, 16
        %v7039 = vrot.slane %v7037, 5
        %v7040 = vsel %vm1834, %v7035, %v7039
        %v7041 = vshrl.u32 %v6848, 16
        %v7043 = vrot.slane %v7041, 4
        %v7044 = vor.u32 %v7043, %v7039
        %v7045 = vrot.slane %v7044, 4
        %v7047 = vshll.u32 %v6873, 16
        %v7049 = vrot.slane %v7047, 5
        %v7050 = vsel %vm1834, %v7045, %v7049
        %v7052 = vshrl.u32 %v6849, 16
        %v7054 = vrot.slane %v7052, 4
        %v7055 = vshll.u32 %v6849, 16
        %v7057 = vrot.slane %v7055, 5
        %v7058 = vor.u32 %v7054, %v7057
        %v7059 = vrot.slane %v7058, 4
        %v7061 = vshll.u32 %v6850, 16
        %v7063 = vrot.slane %v7061, 5
        %v7064 = vsel %vm1834, %v7059, %v7063
        %v7065 = vshrl.u32 %v6850, 16
        %v7067 = vrot.slane %v7065, 4
        %v7068 = vor.u32 %v7067, %v7063
        %v7069 = vrot.slane %v7068, 4
        %v7071 = vshll.u32 %v6874, 16
        %v7073 = vrot.slane %v7071, 5
        %v7074 = vsel %vm1834, %v7069, %v7073
        %v7076 = vshrl.u32 %v6851, 16
        %v7078 = vrot.slane %v7076, 4
        %v7079 = vshll.u32 %v6851, 16
        %v7081 = vrot.slane %v7079, 5
        %v7082 = vor.u32 %v7078, %v7081
        %v7083 = vrot.slane %v7082, 4
        %v7085 = vshll.u32 %v6852, 16
        %v7087 = vrot.slane %v7085, 5
        %v7088 = vsel %vm1834, %v7083, %v7087
        %v7089 = vshrl.u32 %v6852, 16
        %v7091 = vrot.slane %v7089, 4
        %v7092 = vor.u32 %v7091, %v7087
        %v7093 = vrot.slane %v7092, 4
        %v7095 = vshll.u32 %v6875, 16
        %v7097 = vrot.slane %v7095, 5
        %v7098 = vsel %vm1834, %v7093, %v7097
        %v7100 = vshrl.u32 %v6853, 16
        %v7102 = vrot.slane %v7100, 4
        %v7103 = vshll.u32 %v6853, 16
        %v7105 = vrot.slane %v7103, 5
        %v7106 = vor.u32 %v7102, %v7105
        %v7107 = vrot.slane %v7106, 4
        %v7109 = vshll.u32 %v6854, 16
        %v7111 = vrot.slane %v7109, 5
        %v7112 = vsel %vm1834, %v7107, %v7111
        %v7113 = vshrl.u32 %v6854, 16
        %v7115 = vrot.slane %v7113, 4
        %v7116 = vor.u32 %v7115, %v7111
        %v7117 = vrot.slane %v7116, 4
        %v7119 = vshll.u32 %v6876, 16
        %v7121 = vrot.slane %v7119, 5
        %v7122 = vsel %vm1834, %v7117, %v7121
        %v7124 = vshrl.u32 %v6855, 16
        %v7126 = vrot.slane %v7124, 4
        %v7127 = vshll.u32 %v6855, 16
        %v7129 = vrot.slane %v7127, 5
        %v7130 = vor.u32 %v7126, %v7129
        %v7131 = vrot.slane %v7130, 4
        %v7133 = vshll.u32 %v6856, 16
        %v7135 = vrot.slane %v7133, 5
        %v7136 = vsel %vm1834, %v7131, %v7135
        %v7137 = vshrl.u32 %v6856, 16
        %v7139 = vrot.slane %v7137, 4
        %v7140 = vor.u32 %v7139, %v7135
        %v7141 = vrot.slane %v7140, 4
        %v7143 = vshll.u32 %v6877, 16
        %v7145 = vrot.slane %v7143, 5
        %v7146 = vsel %vm1834, %v7141, %v7145
        %v7148 = vshrl.u32 %v6857, 16
        %v7150 = vrot.slane %v7148, 4
        %v7151 = vshll.u32 %v6857, 16
        %v7153 = vrot.slane %v7151, 5
        %v7154 = vor.u32 %v7150, %v7153
        %v7155 = vrot.slane %v7154, 4
        %v7157 = vshll.u32 %v6858, 16
        %v7159 = vrot.slane %v7157, 5
        %v7160 = vsel %vm1834, %v7155, %v7159
        %v7161 = vshrl.u32 %v6858, 16
        %v7163 = vrot.slane %v7161, 4
        %v7164 = vor.u32 %v7163, %v7159
        %v7165 = vrot.slane %v7164, 4
        %v7167 = vshll.u32 %v6878, 16
        %v7169 = vrot.slane %v7167, 5
        %v7170 = vsel %vm1834, %v7165, %v7169
        %v7172 = vshrl.u32 %v6859, 16
        %v7174 = vrot.slane %v7172, 4
        %v7175 = vshll.u32 %v6859, 16
        %v7177 = vrot.slane %v7175, 5
        %v7178 = vor.u32 %v7174, %v7177
        %v7179 = vrot.slane %v7178, 4
        %v7181 = vshll.u32 %v6860, 16
        %v7183 = vrot.slane %v7181, 5
        %v7184 = vsel %vm1834, %v7179, %v7183
        %v7185 = vshrl.u32 %v6860, 16
        %v7187 = vrot.slane %v7185, 4
        %v7188 = vor.u32 %v7187, %v7183
        %v7189 = vrot.slane %v7188, 4
        %v7191 = vshll.u32 %v6879, 16
        %v7193 = vrot.slane %v7191, 5
        %v7194 = vsel %vm1834, %v7189, %v7193
        %v7196 = vshrl.u32 %v6861, 16
        %v7198 = vrot.slane %v7196, 4
        %v7199 = vshll.u32 %v6861, 16
        %v7201 = vrot.slane %v7199, 5
        %v7202 = vor.u32 %v7198, %v7201
        %v7203 = vrot.slane %v7202, 4
        %v7205 = vshll.u32 %v6862, 16
        %v7207 = vrot.slane %v7205, 5
        %v7208 = vsel %vm1834, %v7203, %v7207
        %v7209 = vshrl.u32 %v6862, 16
        %v7211 = vrot.slane %v7209, 4
        %v7212 = vor.u32 %v7211, %v7207
        %v7213 = vrot.slane %v7212, 4
        %v7215 = vshll.u32 %v6880, 16
        %v7217 = vrot.slane %v7215, 5
        %v7218 = vsel %vm1834, %v7213, %v7217
        %v7220 = vshrl.u32 %v6863, 16
        %v7222 = vrot.slane %v7220, 4
        %v7223 = vshll.u32 %v6863, 16
        %v7225 = vrot.slane %v7223, 5
        %v7226 = vor.u32 %v7222, %v7225
        %v7227 = vrot.slane %v7226, 4
        %v7229 = vshll.u32 %v6864, 16
        %v7231 = vrot.slane %v7229, 5
        %v7232 = vsel %vm1834, %v7227, %v7231
        %v7233 = vshrl.u32 %v6864, 16
        %v7235 = vrot.slane %v7233, 4
        %v7236 = vor.u32 %v7235, %v7231
        %v7237 = vrot.slane %v7236, 4
        %v7239 = vshll.u32 %v6881, 16
        %v7241 = vrot.slane %v7239, 5
        %v7242 = vsel %vm1834, %v7237, %v7241
        %v7244 = vshrl.u32 %v6865, 16
        %v7246 = vrot.slane %v7244, 4
        %v7247 = vshll.u32 %v6865, 16
        %v7249 = vrot.slane %v7247, 5
        %v7250 = vor.u32 %v7246, %v7249
        %v7251 = vrot.slane %v7250, 4
        %v7253 = vshll.u32 %v6866, 16
        %v7255 = vrot.slane %v7253, 5
        %v7256 = vsel %vm1834, %v7251, %v7255
        %v7257 = vshrl.u32 %v6866, 16
        %v7259 = vrot.slane %v7257, 4
        %v7260 = vor.u32 %v7259, %v7255
        %v7261 = vrot.slane %v7260, 4
        %v7263 = vshll.u32 %v6882, 16
        %v7265 = vrot.slane %v7263, 5
        %v7266 = vsel %vm1834, %v7261, %v7265
        %v7267 = vld [vmem:[%s1665] sm:$0xe]
        %v7268 = vld [vmem:[%s1665 + $0xc] sm:$0xe]
        %v7269 = vld [vmem:[%s1665 + $0x18] sm:$0xe]
        %v7270 = vld [vmem:[%s1665 + $0x24] sm:$0xe]
        %v7271 = vld [vmem:[%s1665 + $0x30] sm:$0xe]
        %v7272 = vld [vmem:[%s1665 + $0x3c] sm:$0xe]
        %v7273 = vld [vmem:[%s1665 + $0x48] sm:$0xe]
        %v7274 = vld [vmem:[%s1665 + $0x54] sm:$0xe]
        %v7275 = vld [vmem:[%s1665 + $0x60] sm:$0xe]
        %v7276 = vld [vmem:[%s1665 + $0x6c] sm:$0xe]
        %v7277 = vld [vmem:[%s1665 + $0x78] sm:$0xe]
        %v7278 = vld [vmem:[%s1665 + $0x84] sm:$0xe]
        %v7279 = vld [vmem:[%s1665 + $0x90] sm:$0xe]
        %v7280 = vld [vmem:[%s1665 + $0x9c] sm:$0xe]
        %v7281 = vld [vmem:[%s1665 + $0xa8] sm:$0xe]
        %v7282 = vld [vmem:[%s1665 + $0xb4] sm:$0xe]
        %v7331 = vrot.slane %v7267, 5
        %v7332 = vrot.slane %v7331, 4
        %v7333 = vrot.slane %v6836, 5
        %v7334 = vsel %vm2285, %v7332, %v7333
        %v7335 = vrot.slane %v7333, 4
        %v7336 = vrot.slane %v6867, 5
        %v7337 = vsel %vm2285, %v7335, %v7336
        %v7338 = vrot.slane %v7268, 5
        %v7339 = vrot.slane %v7338, 4
        %v7340 = vrot.slane %v6838, 5
        %v7341 = vsel %vm2285, %v7339, %v7340
        %v7342 = vrot.slane %v7340, 4
        %v7343 = vrot.slane %v6868, 5
        %v7344 = vsel %vm2285, %v7342, %v7343
        %v7345 = vrot.slane %v7269, 5
        %v7346 = vrot.slane %v7345, 4
        %v7347 = vrot.slane %v6840, 5
        %v7348 = vsel %vm2285, %v7346, %v7347
        %v7349 = vrot.slane %v7347, 4
        %v7350 = vrot.slane %v6869, 5
        %v7351 = vsel %vm2285, %v7349, %v7350
        %v7352 = vrot.slane %v7270, 5
        %v7353 = vrot.slane %v7352, 4
        %v7354 = vrot.slane %v6842, 5
        %v7355 = vsel %vm2285, %v7353, %v7354
        %v7356 = vrot.slane %v7354, 4
        %v7357 = vrot.slane %v6870, 5
        %v7358 = vsel %vm2285, %v7356, %v7357
        %v7359 = vrot.slane %v7271, 5
        %v7360 = vrot.slane %v7359, 4
        %v7361 = vrot.slane %v6844, 5
        %v7362 = vsel %vm2285, %v7360, %v7361
        %v7363 = vrot.slane %v7361, 4
        %v7364 = vrot.slane %v6871, 5
        %v7365 = vsel %vm2285, %v7363, %v7364
        %v7366 = vrot.slane %v7272, 5
        %v7367 = vrot.slane %v7366, 4
        %v7368 = vrot.slane %v6846, 5
        %v7369 = vsel %vm2285, %v7367, %v7368
        %v7370 = vrot.slane %v7368, 4
        %v7371 = vrot.slane %v6872, 5
        %v7372 = vsel %vm2285, %v7370, %v7371
        %v7373 = vrot.slane %v7273, 5
        %v7374 = vrot.slane %v7373, 4
        %v7375 = vrot.slane %v6848, 5
        %v7376 = vsel %vm2285, %v7374, %v7375
        %v7377 = vrot.slane %v7375, 4
        %v7378 = vrot.slane %v6873, 5
        %v7379 = vsel %vm2285, %v7377, %v7378
        %v7380 = vrot.slane %v7274, 5
        %v7381 = vrot.slane %v7380, 4
        %v7382 = vrot.slane %v6850, 5
        %v7383 = vsel %vm2285, %v7381, %v7382
        %v7384 = vrot.slane %v7382, 4
        %v7385 = vrot.slane %v6874, 5
        %v7386 = vsel %vm2285, %v7384, %v7385
        %v7387 = vrot.slane %v7275, 5
        %v7388 = vrot.slane %v7387, 4
        %v7389 = vrot.slane %v6852, 5
        %v7390 = vsel %vm2285, %v7388, %v7389
        %v7391 = vrot.slane %v7389, 4
        %v7392 = vrot.slane %v6875, 5
        %v7393 = vsel %vm2285, %v7391, %v7392
        %v7394 = vrot.slane %v7276, 5
        %v7395 = vrot.slane %v7394, 4
        %v7396 = vrot.slane %v6854, 5
        %v7397 = vsel %vm2285, %v7395, %v7396
        %v7398 = vrot.slane %v7396, 4
        %v7399 = vrot.slane %v6876, 5
        %v7400 = vsel %vm2285, %v7398, %v7399
        %v7401 = vrot.slane %v7277, 5
        %v7402 = vrot.slane %v7401, 4
        %v7403 = vrot.slane %v6856, 5
        %v7404 = vsel %vm2285, %v7402, %v7403
        %v7405 = vrot.slane %v7403, 4
        %v7406 = vrot.slane %v6877, 5
        %v7407 = vsel %vm2285, %v7405, %v7406
        %v7408 = vrot.slane %v7278, 5
        %v7409 = vrot.slane %v7408, 4
        %v7410 = vrot.slane %v6858, 5
        %v7411 = vsel %vm2285, %v7409, %v7410
        %v7412 = vrot.slane %v7410, 4
        %v7413 = vrot.slane %v6878, 5
        %v7414 = vsel %vm2285, %v7412, %v7413
        %v7415 = vrot.slane %v7279, 5
        %v7416 = vrot.slane %v7415, 4
        %v7417 = vrot.slane %v6860, 5
        %v7418 = vsel %vm2285, %v7416, %v7417
        %v7419 = vrot.slane %v7417, 4
        %v7420 = vrot.slane %v6879, 5
        %v7421 = vsel %vm2285, %v7419, %v7420
        %v7422 = vrot.slane %v7280, 5
        %v7423 = vrot.slane %v7422, 4
        %v7424 = vrot.slane %v6862, 5
        %v7425 = vsel %vm2285, %v7423, %v7424
        %v7426 = vrot.slane %v7424, 4
        %v7427 = vrot.slane %v6880, 5
        %v7428 = vsel %vm2285, %v7426, %v7427
        %v7429 = vrot.slane %v7281, 5
        %v7430 = vrot.slane %v7429, 4
        %v7431 = vrot.slane %v6864, 5
        %v7432 = vsel %vm2285, %v7430, %v7431
        %v7433 = vrot.slane %v7431, 4
        %v7434 = vrot.slane %v6881, 5
        %v7435 = vsel %vm2285, %v7433, %v7434
        %v7436 = vrot.slane %v7282, 5
        %v7437 = vrot.slane %v7436, 4
        %v7438 = vrot.slane %v6866, 5
        %v7439 = vsel %vm2285, %v7437, %v7438
        %v7440 = vrot.slane %v7438, 4
        %v7441 = vrot.slane %v6882, 5
        %v7442 = vsel %vm2285, %v7440, %v7441
        %v7443 = vld [vmem:[%s3006] sm:$0xf]
        %v7444 = vld [vmem:[%s3006 + $0x4] sm:$0xf]
        %v7445 = vld [vmem:[%s3006 + $0xc] sm:$0xf]
        %v7446 = vld [vmem:[%s3006 + $0x10] sm:$0xf]
        %v7447 = vld [vmem:[%s3006 + $0x18] sm:$0xf]
        %v7448 = vld [vmem:[%s3006 + $0x1c] sm:$0xf]
        %v7449 = vld [vmem:[%s3006 + $0x24] sm:$0xf]
        %v7450 = vld [vmem:[%s3006 + $0x28] sm:$0xf]
        %v7451 = vld [vmem:[%s3006 + $0x30] sm:$0xf]
        %v7452 = vld [vmem:[%s3006 + $0x34] sm:$0xf]
        %v7453 = vld [vmem:[%s3006 + $0x3c] sm:$0xf]
        %v7454 = vld [vmem:[%s3006 + $0x40] sm:$0xf]
        %v7455 = vld [vmem:[%s3006 + $0x48] sm:$0xf]
        %v7456 = vld [vmem:[%s3006 + $0x4c] sm:$0xf]
        %v7457 = vld [vmem:[%s3006 + $0x54] sm:$0xf]
        %v7458 = vld [vmem:[%s3006 + $0x58] sm:$0xf]
        %v7459 = vld [vmem:[%s3006 + $0x60] sm:$0xf]
        %v7460 = vld [vmem:[%s3006 + $0x64] sm:$0xf]
        %v7461 = vld [vmem:[%s3006 + $0x6c] sm:$0xf]
        %v7462 = vld [vmem:[%s3006 + $0x70] sm:$0xf]
        %v7463 = vld [vmem:[%s3006 + $0x78] sm:$0xf]
        %v7464 = vld [vmem:[%s3006 + $0x7c] sm:$0xf]
        %v7465 = vld [vmem:[%s3006 + $0x84] sm:$0xf]
        %v7466 = vld [vmem:[%s3006 + $0x88] sm:$0xf]
        %v7467 = vld [vmem:[%s3006 + $0x90] sm:$0xf]
        %v7468 = vld [vmem:[%s3006 + $0x94] sm:$0xf]
        %v7469 = vld [vmem:[%s3006 + $0x9c] sm:$0xf]
        %v7470 = vld [vmem:[%s3006 + $0xa0] sm:$0xf]
        %v7471 = vld [vmem:[%s3006 + $0xa8] sm:$0xf]
        %v7472 = vld [vmem:[%s3006 + $0xac] sm:$0xf]
        %v7473 = vld [vmem:[%s3006 + $0xb4] sm:$0xf]
        %v7474 = vld [vmem:[%s3006 + $0xb8] sm:$0xf]
        %v7475 = vld [vmem:[%s3006 + $0x8] sm:$0x1]
        %v7476 = vld [vmem:[%s3006 + $0x14] sm:$0x1]
        %v7477 = vld [vmem:[%s3006 + $0x20] sm:$0x1]
        %v7478 = vld [vmem:[%s3006 + $0x2c] sm:$0x1]
        %v7479 = vld [vmem:[%s3006 + $0x38] sm:$0x1]
        %v7480 = vld [vmem:[%s3006 + $0x44] sm:$0x1]
        %v7481 = vld [vmem:[%s3006 + $0x50] sm:$0x1]
        %v7482 = vld [vmem:[%s3006 + $0x5c] sm:$0x1]
        %v7483 = vld [vmem:[%s3006 + $0x68] sm:$0x1]
        %v7484 = vld [vmem:[%s3006 + $0x74] sm:$0x1]
        %v7485 = vld [vmem:[%s3006 + $0x80] sm:$0x1]
        %v7486 = vld [vmem:[%s3006 + $0x8c] sm:$0x1]
        %v7487 = vld [vmem:[%s3006 + $0x98] sm:$0x1]
        %v7488 = vld [vmem:[%s3006 + $0xa4] sm:$0x1]
        %v7489 = vld [vmem:[%s3006 + $0xb0] sm:$0x1]
        %v7490 = vld [vmem:[%s3006 + $0xbc] sm:$0x1]
        %v7492 = vshrl.u32 %v7443, 16
        %v7494 = vrot.slane %v7492, 4
        %v7495 = vshll.u32 %v7443, 16
        %v7497 = vrot.slane %v7495, 5
        %v7498 = vor.u32 %v7494, %v7497
        %v7499 = vrot.slane %v7498, 4
        %v7501 = vshll.u32 %v7444, 16
        %v7503 = vrot.slane %v7501, 5
        %v7504 = vsel %vm1834, %v7499, %v7503
        %v7505 = vshrl.u32 %v7444, 16
        %v7507 = vrot.slane %v7505, 4
        %v7508 = vor.u32 %v7507, %v7503
        %v7509 = vrot.slane %v7508, 4
        %v7511 = vshll.u32 %v7475, 16
        %v7513 = vrot.slane %v7511, 5
        %v7514 = vsel %vm1834, %v7509, %v7513
        %v7516 = vshrl.u32 %v7445, 16
        %v7518 = vrot.slane %v7516, 4
        %v7519 = vshll.u32 %v7445, 16
        %v7521 = vrot.slane %v7519, 5
        %v7522 = vor.u32 %v7518, %v7521
        %v7523 = vrot.slane %v7522, 4
        %v7525 = vshll.u32 %v7446, 16
        %v7527 = vrot.slane %v7525, 5
        %v7528 = vsel %vm1834, %v7523, %v7527
        %v7529 = vshrl.u32 %v7446, 16
        %v7531 = vrot.slane %v7529, 4
        %v7532 = vor.u32 %v7531, %v7527
        %v7533 = vrot.slane %v7532, 4
        %v7535 = vshll.u32 %v7476, 16
        %v7537 = vrot.slane %v7535, 5
        %v7538 = vsel %vm1834, %v7533, %v7537
        %v7540 = vshrl.u32 %v7447, 16
        %v7542 = vrot.slane %v7540, 4
        %v7543 = vshll.u32 %v7447, 16
        %v7545 = vrot.slane %v7543, 5
        %v7546 = vor.u32 %v7542, %v7545
        %v7547 = vrot.slane %v7546, 4
        %v7549 = vshll.u32 %v7448, 16
        %v7551 = vrot.slane %v7549, 5
        %v7552 = vsel %vm1834, %v7547, %v7551
        %v7553 = vshrl.u32 %v7448, 16
        %v7555 = vrot.slane %v7553, 4
        %v7556 = vor.u32 %v7555, %v7551
        %v7557 = vrot.slane %v7556, 4
        %v7559 = vshll.u32 %v7477, 16
        %v7561 = vrot.slane %v7559, 5
        %v7562 = vsel %vm1834, %v7557, %v7561
        %v7564 = vshrl.u32 %v7449, 16
        %v7566 = vrot.slane %v7564, 4
        %v7567 = vshll.u32 %v7449, 16
        %v7569 = vrot.slane %v7567, 5
        %v7570 = vor.u32 %v7566, %v7569
        %v7571 = vrot.slane %v7570, 4
        %v7573 = vshll.u32 %v7450, 16
        %v7575 = vrot.slane %v7573, 5
        %v7576 = vsel %vm1834, %v7571, %v7575
        %v7577 = vshrl.u32 %v7450, 16
        %v7579 = vrot.slane %v7577, 4
        %v7580 = vor.u32 %v7579, %v7575
        %v7581 = vrot.slane %v7580, 4
        %v7583 = vshll.u32 %v7478, 16
        %v7585 = vrot.slane %v7583, 5
        %v7586 = vsel %vm1834, %v7581, %v7585
        %v7588 = vshrl.u32 %v7451, 16
        %v7590 = vrot.slane %v7588, 4
        %v7591 = vshll.u32 %v7451, 16
        %v7593 = vrot.slane %v7591, 5
        %v7594 = vor.u32 %v7590, %v7593
        %v7595 = vrot.slane %v7594, 4
        %v7597 = vshll.u32 %v7452, 16
        %v7599 = vrot.slane %v7597, 5
        %v7600 = vsel %vm1834, %v7595, %v7599
        %v7601 = vshrl.u32 %v7452, 16
        %v7603 = vrot.slane %v7601, 4
        %v7604 = vor.u32 %v7603, %v7599
        %v7605 = vrot.slane %v7604, 4
        %v7607 = vshll.u32 %v7479, 16
        %v7609 = vrot.slane %v7607, 5
        %v7610 = vsel %vm1834, %v7605, %v7609
        %v7612 = vshrl.u32 %v7453, 16
        %v7614 = vrot.slane %v7612, 4
        %v7615 = vshll.u32 %v7453, 16
        %v7617 = vrot.slane %v7615, 5
        %v7618 = vor.u32 %v7614, %v7617
        %v7619 = vrot.slane %v7618, 4
        %v7621 = vshll.u32 %v7454, 16
        %v7623 = vrot.slane %v7621, 5
        %v7624 = vsel %vm1834, %v7619, %v7623
        %v7625 = vshrl.u32 %v7454, 16
        %v7627 = vrot.slane %v7625, 4
        %v7628 = vor.u32 %v7627, %v7623
        %v7629 = vrot.slane %v7628, 4
        %v7631 = vshll.u32 %v7480, 16
        %v7633 = vrot.slane %v7631, 5
        %v7634 = vsel %vm1834, %v7629, %v7633
        %v7636 = vshrl.u32 %v7455, 16
        %v7638 = vrot.slane %v7636, 4
        %v7639 = vshll.u32 %v7455, 16
        %v7641 = vrot.slane %v7639, 5
        %v7642 = vor.u32 %v7638, %v7641
        %v7643 = vrot.slane %v7642, 4
        %v7645 = vshll.u32 %v7456, 16
        %v7647 = vrot.slane %v7645, 5
        %v7648 = vsel %vm1834, %v7643, %v7647
        %v7649 = vshrl.u32 %v7456, 16
        %v7651 = vrot.slane %v7649, 4
        %v7652 = vor.u32 %v7651, %v7647
        %v7653 = vrot.slane %v7652, 4
        %v7655 = vshll.u32 %v7481, 16
        %v7657 = vrot.slane %v7655, 5
        %v7658 = vsel %vm1834, %v7653, %v7657
        %v7660 = vshrl.u32 %v7457, 16
        %v7662 = vrot.slane %v7660, 4
        %v7663 = vshll.u32 %v7457, 16
        %v7665 = vrot.slane %v7663, 5
        %v7666 = vor.u32 %v7662, %v7665
        %v7667 = vrot.slane %v7666, 4
        %v7669 = vshll.u32 %v7458, 16
        %v7671 = vrot.slane %v7669, 5
        %v7672 = vsel %vm1834, %v7667, %v7671
        %v7673 = vshrl.u32 %v7458, 16
        %v7675 = vrot.slane %v7673, 4
        %v7676 = vor.u32 %v7675, %v7671
        %v7677 = vrot.slane %v7676, 4
        %v7679 = vshll.u32 %v7482, 16
        %v7681 = vrot.slane %v7679, 5
        %v7682 = vsel %vm1834, %v7677, %v7681
        %v7684 = vshrl.u32 %v7459, 16
        %v7686 = vrot.slane %v7684, 4
        %v7687 = vshll.u32 %v7459, 16
        %v7689 = vrot.slane %v7687, 5
        %v7690 = vor.u32 %v7686, %v7689
        %v7691 = vrot.slane %v7690, 4
        %v7693 = vshll.u32 %v7460, 16
        %v7695 = vrot.slane %v7693, 5
        %v7696 = vsel %vm1834, %v7691, %v7695
        %v7697 = vshrl.u32 %v7460, 16
        %v7699 = vrot.slane %v7697, 4
        %v7700 = vor.u32 %v7699, %v7695
        %v7701 = vrot.slane %v7700, 4
        %v7703 = vshll.u32 %v7483, 16
        %v7705 = vrot.slane %v7703, 5
        %v7706 = vsel %vm1834, %v7701, %v7705
        %v7708 = vshrl.u32 %v7461, 16
        %v7710 = vrot.slane %v7708, 4
        %v7711 = vshll.u32 %v7461, 16
        %v7713 = vrot.slane %v7711, 5
        %v7714 = vor.u32 %v7710, %v7713
        %v7715 = vrot.slane %v7714, 4
        %v7717 = vshll.u32 %v7462, 16
        %v7719 = vrot.slane %v7717, 5
        %v7720 = vsel %vm1834, %v7715, %v7719
        %v7721 = vshrl.u32 %v7462, 16
        %v7723 = vrot.slane %v7721, 4
        %v7724 = vor.u32 %v7723, %v7719
        %v7725 = vrot.slane %v7724, 4
        %v7727 = vshll.u32 %v7484, 16
        %v7729 = vrot.slane %v7727, 5
        %v7730 = vsel %vm1834, %v7725, %v7729
        %v7732 = vshrl.u32 %v7463, 16
        %v7734 = vrot.slane %v7732, 4
        %v7735 = vshll.u32 %v7463, 16
        %v7737 = vrot.slane %v7735, 5
        %v7738 = vor.u32 %v7734, %v7737
        %v7739 = vrot.slane %v7738, 4
        %v7741 = vshll.u32 %v7464, 16
        %v7743 = vrot.slane %v7741, 5
        %v7744 = vsel %vm1834, %v7739, %v7743
        %v7745 = vshrl.u32 %v7464, 16
        %v7747 = vrot.slane %v7745, 4
        %v7748 = vor.u32 %v7747, %v7743
        %v7749 = vrot.slane %v7748, 4
        %v7751 = vshll.u32 %v7485, 16
        %v7753 = vrot.slane %v7751, 5
        %v7754 = vsel %vm1834, %v7749, %v7753
        %v7756 = vshrl.u32 %v7465, 16
        %v7758 = vrot.slane %v7756, 4
        %v7759 = vshll.u32 %v7465, 16
        %v7761 = vrot.slane %v7759, 5
        %v7762 = vor.u32 %v7758, %v7761
        %v7763 = vrot.slane %v7762, 4
        %v7765 = vshll.u32 %v7466, 16
        %v7767 = vrot.slane %v7765, 5
        %v7768 = vsel %vm1834, %v7763, %v7767
        %v7769 = vshrl.u32 %v7466, 16
        %v7771 = vrot.slane %v7769, 4
        %v7772 = vor.u32 %v7771, %v7767
        %v7773 = vrot.slane %v7772, 4
        %v7775 = vshll.u32 %v7486, 16
        %v7777 = vrot.slane %v7775, 5
        %v7778 = vsel %vm1834, %v7773, %v7777
        %v7780 = vshrl.u32 %v7467, 16
        %v7782 = vrot.slane %v7780, 4
        %v7783 = vshll.u32 %v7467, 16
        %v7785 = vrot.slane %v7783, 5
        %v7786 = vor.u32 %v7782, %v7785
        %v7787 = vrot.slane %v7786, 4
        %v7789 = vshll.u32 %v7468, 16
        %v7791 = vrot.slane %v7789, 5
        %v7792 = vsel %vm1834, %v7787, %v7791
        %v7793 = vshrl.u32 %v7468, 16
        %v7795 = vrot.slane %v7793, 4
        %v7796 = vor.u32 %v7795, %v7791
        %v7797 = vrot.slane %v7796, 4
        %v7799 = vshll.u32 %v7487, 16
        %v7801 = vrot.slane %v7799, 5
        %v7802 = vsel %vm1834, %v7797, %v7801
        %v7804 = vshrl.u32 %v7469, 16
        %v7806 = vrot.slane %v7804, 4
        %v7807 = vshll.u32 %v7469, 16
        %v7809 = vrot.slane %v7807, 5
        %v7810 = vor.u32 %v7806, %v7809
        %v7811 = vrot.slane %v7810, 4
        %v7813 = vshll.u32 %v7470, 16
        %v7815 = vrot.slane %v7813, 5
        %v7816 = vsel %vm1834, %v7811, %v7815
        %v7817 = vshrl.u32 %v7470, 16
        %v7819 = vrot.slane %v7817, 4
        %v7820 = vor.u32 %v7819, %v7815
        %v7821 = vrot.slane %v7820, 4
        %v7823 = vshll.u32 %v7488, 16
        %v7825 = vrot.slane %v7823, 5
        %v7826 = vsel %vm1834, %v7821, %v7825
        %v7828 = vshrl.u32 %v7471, 16
        %v7830 = vrot.slane %v7828, 4
        %v7831 = vshll.u32 %v7471, 16
        %v7833 = vrot.slane %v7831, 5
        %v7834 = vor.u32 %v7830, %v7833
        %v7835 = vrot.slane %v7834, 4
        %v7837 = vshll.u32 %v7472, 16
        %v7839 = vrot.slane %v7837, 5
        %v7840 = vsel %vm1834, %v7835, %v7839
        %v7841 = vshrl.u32 %v7472, 16
        %v7843 = vrot.slane %v7841, 4
        %v7844 = vor.u32 %v7843, %v7839
        %v7845 = vrot.slane %v7844, 4
        %v7847 = vshll.u32 %v7489, 16
        %v7849 = vrot.slane %v7847, 5
        %v7850 = vsel %vm1834, %v7845, %v7849
        %v7852 = vshrl.u32 %v7473, 16
        %v7854 = vrot.slane %v7852, 4
        %v7855 = vshll.u32 %v7473, 16
        %v7857 = vrot.slane %v7855, 5
        %v7858 = vor.u32 %v7854, %v7857
        %v7859 = vrot.slane %v7858, 4
        %v7861 = vshll.u32 %v7474, 16
        %v7863 = vrot.slane %v7861, 5
        %v7864 = vsel %vm1834, %v7859, %v7863
        %v7865 = vshrl.u32 %v7474, 16
        %v7867 = vrot.slane %v7865, 4
        %v7868 = vor.u32 %v7867, %v7863
        %v7869 = vrot.slane %v7868, 4
        %v7871 = vshll.u32 %v7490, 16
        %v7873 = vrot.slane %v7871, 5
        %v7874 = vsel %vm1834, %v7869, %v7873
        %v7875 = vld [vmem:[%s3006] sm:$0xe]
        %v7876 = vld [vmem:[%s3006 + $0xc] sm:$0xe]
        %v7877 = vld [vmem:[%s3006 + $0x18] sm:$0xe]
        %v7878 = vld [vmem:[%s3006 + $0x24] sm:$0xe]
        %v7879 = vld [vmem:[%s3006 + $0x30] sm:$0xe]
        %v7880 = vld [vmem:[%s3006 + $0x3c] sm:$0xe]
        %v7881 = vld [vmem:[%s3006 + $0x48] sm:$0xe]
        %v7882 = vld [vmem:[%s3006 + $0x54] sm:$0xe]
        %v7883 = vld [vmem:[%s3006 + $0x60] sm:$0xe]
        %v7884 = vld [vmem:[%s3006 + $0x6c] sm:$0xe]
        %v7885 = vld [vmem:[%s3006 + $0x78] sm:$0xe]
        %v7886 = vld [vmem:[%s3006 + $0x84] sm:$0xe]
        %v7887 = vld [vmem:[%s3006 + $0x90] sm:$0xe]
        %v7888 = vld [vmem:[%s3006 + $0x9c] sm:$0xe]
        %v7889 = vld [vmem:[%s3006 + $0xa8] sm:$0xe]
        %v7890 = vld [vmem:[%s3006 + $0xb4] sm:$0xe]
        %v7939 = vrot.slane %v7875, 5
        %v7940 = vrot.slane %v7939, 4
        %v7941 = vrot.slane %v7444, 5
        %v7942 = vsel %vm2285, %v7940, %v7941
        %v7943 = vrot.slane %v7941, 4
        %v7944 = vrot.slane %v7475, 5
        %v7945 = vsel %vm2285, %v7943, %v7944
        %v7946 = vrot.slane %v7876, 5
        %v7947 = vrot.slane %v7946, 4
        %v7948 = vrot.slane %v7446, 5
        %v7949 = vsel %vm2285, %v7947, %v7948
        %v7950 = vrot.slane %v7948, 4
        %v7951 = vrot.slane %v7476, 5
        %v7952 = vsel %vm2285, %v7950, %v7951
        %v7953 = vrot.slane %v7877, 5
        %v7954 = vrot.slane %v7953, 4
        %v7955 = vrot.slane %v7448, 5
        %v7956 = vsel %vm2285, %v7954, %v7955
        %v7957 = vrot.slane %v7955, 4
        %v7958 = vrot.slane %v7477, 5
        %v7959 = vsel %vm2285, %v7957, %v7958
        %v7960 = vrot.slane %v7878, 5
        %v7961 = vrot.slane %v7960, 4
        %v7962 = vrot.slane %v7450, 5
        %v7963 = vsel %vm2285, %v7961, %v7962
        %v7964 = vrot.slane %v7962, 4
        %v7965 = vrot.slane %v7478, 5
        %v7966 = vsel %vm2285, %v7964, %v7965
        %v7967 = vrot.slane %v7879, 5
        %v7968 = vrot.slane %v7967, 4
        %v7969 = vrot.slane %v7452, 5
        %v7970 = vsel %vm2285, %v7968, %v7969
        %v7971 = vrot.slane %v7969, 4
        %v7972 = vrot.slane %v7479, 5
        %v7973 = vsel %vm2285, %v7971, %v7972
        %v7974 = vrot.slane %v7880, 5
        %v7975 = vrot.slane %v7974, 4
        %v7976 = vrot.slane %v7454, 5
        %v7977 = vsel %vm2285, %v7975, %v7976
        %v7978 = vrot.slane %v7976, 4
        %v7979 = vrot.slane %v7480, 5
        %v7980 = vsel %vm2285, %v7978, %v7979
        %v7981 = vrot.slane %v7881, 5
        %v7982 = vrot.slane %v7981, 4
        %v7983 = vrot.slane %v7456, 5
        %v7984 = vsel %vm2285, %v7982, %v7983
        %v7985 = vrot.slane %v7983, 4
        %v7986 = vrot.slane %v7481, 5
        %v7987 = vsel %vm2285, %v7985, %v7986
        %v7988 = vrot.slane %v7882, 5
        %v7989 = vrot.slane %v7988, 4
        %v7990 = vrot.slane %v7458, 5
        %v7991 = vsel %vm2285, %v7989, %v7990
        %v7992 = vrot.slane %v7990, 4
        %v7993 = vrot.slane %v7482, 5
        %v7994 = vsel %vm2285, %v7992, %v7993
        %v7995 = vrot.slane %v7883, 5
        %v7996 = vrot.slane %v7995, 4
        %v7997 = vrot.slane %v7460, 5
        %v7998 = vsel %vm2285, %v7996, %v7997
        %v7999 = vrot.slane %v7997, 4
        %v8000 = vrot.slane %v7483, 5
        %v8001 = vsel %vm2285, %v7999, %v8000
        %v8002 = vrot.slane %v7884, 5
        %v8003 = vrot.slane %v8002, 4
        %v8004 = vrot.slane %v7462, 5
        %v8005 = vsel %vm2285, %v8003, %v8004
        %v8006 = vrot.slane %v8004, 4
        %v8007 = vrot.slane %v7484, 5
        %v8008 = vsel %vm2285, %v8006, %v8007
        %v8009 = vrot.slane %v7885, 5
        %v8010 = vrot.slane %v8009, 4
        %v8011 = vrot.slane %v7464, 5
        %v8012 = vsel %vm2285, %v8010, %v8011
        %v8013 = vrot.slane %v8011, 4
        %v8014 = vrot.slane %v7485, 5
        %v8015 = vsel %vm2285, %v8013, %v8014
        %v8016 = vrot.slane %v7886, 5
        %v8017 = vrot.slane %v8016, 4
        %v8018 = vrot.slane %v7466, 5
        %v8019 = vsel %vm2285, %v8017, %v8018
        %v8020 = vrot.slane %v8018, 4
        %v8021 = vrot.slane %v7486, 5
        %v8022 = vsel %vm2285, %v8020, %v8021
        %v8023 = vrot.slane %v7887, 5
        %v8024 = vrot.slane %v8023, 4
        %v8025 = vrot.slane %v7468, 5
        %v8026 = vsel %vm2285, %v8024, %v8025
        %v8027 = vrot.slane %v8025, 4
        %v8028 = vrot.slane %v7487, 5
        %v8029 = vsel %vm2285, %v8027, %v8028
        %v8030 = vrot.slane %v7888, 5
        %v8031 = vrot.slane %v8030, 4
        %v8032 = vrot.slane %v7470, 5
        %v8033 = vsel %vm2285, %v8031, %v8032
        %v8034 = vrot.slane %v8032, 4
        %v8035 = vrot.slane %v7488, 5
        %v8036 = vsel %vm2285, %v8034, %v8035
        %v8037 = vrot.slane %v7889, 5
        %v8038 = vrot.slane %v8037, 4
        %v8039 = vrot.slane %v7472, 5
        %v8040 = vsel %vm2285, %v8038, %v8039
        %v8041 = vrot.slane %v8039, 4
        %v8042 = vrot.slane %v7489, 5
        %v8043 = vsel %vm2285, %v8041, %v8042
        %v8044 = vrot.slane %v7890, 5
        %v8045 = vrot.slane %v8044, 4
        %v8046 = vrot.slane %v7474, 5
        %v8047 = vsel %vm2285, %v8045, %v8046
        %v8048 = vrot.slane %v8046, 4
        %v8049 = vrot.slane %v7490, 5
        %v8050 = vsel %vm2285, %v8048, %v8049
        %v8051 = vld [vmem:[%s12] sm:$0xf]
        %v8052 = vld [vmem:[%s12 + $0x4] sm:$0xf]
        %v8053 = vld [vmem:[%s12 + $0x8] sm:$0xf]
        %v8054 = vld [vmem:[%s12 + $0xc] sm:$0xf]
        %v8055 = vld [vmem:[%s12 + $0x10] sm:$0xf]
        %v8056 = vld [vmem:[%s12 + $0x14] sm:$0xf]
        %v8057 = vld [vmem:[%s12 + $0x18] sm:$0xf]
        %v8058 = vld [vmem:[%s12 + $0x1c] sm:$0xf]
        %v8059 = vld [vmem:[%s12 + $0x20] sm:$0xf]
        %v8060 = vld [vmem:[%s12 + $0x24] sm:$0xf]
        %v8061 = vld [vmem:[%s12 + $0x28] sm:$0xf]
        %v8062 = vld [vmem:[%s12 + $0x2c] sm:$0xf]
        %v8063 = vld [vmem:[%s12 + $0x30] sm:$0xf]
        %v8064 = vld [vmem:[%s12 + $0x34] sm:$0xf]
        %v8065 = vld [vmem:[%s12 + $0x38] sm:$0xf]
        %v8066 = vld [vmem:[%s12 + $0x3c] sm:$0xf]
        %v8067 = vld [vmem:[%s12 + $0x40] sm:$0xf]
        %v8068 = vld [vmem:[%s12 + $0x44] sm:$0xf]
        %v8069 = vld [vmem:[%s12 + $0x48] sm:$0xf]
        %v8070 = vld [vmem:[%s12 + $0x4c] sm:$0xf]
        %v8071 = vld [vmem:[%s12 + $0x50] sm:$0xf]
        %v8072 = vld [vmem:[%s12 + $0x54] sm:$0xf]
        %v8073 = vld [vmem:[%s12 + $0x58] sm:$0xf]
        %v8074 = vld [vmem:[%s12 + $0x5c] sm:$0xf]
        %v8075 = vld [vmem:[%s12 + $0x60] sm:$0xf]
        %v8076 = vld [vmem:[%s12 + $0x64] sm:$0xf]
        %v8077 = vld [vmem:[%s12 + $0x68] sm:$0xf]
        %v8078 = vld [vmem:[%s12 + $0x6c] sm:$0xf]
        %v8079 = vld [vmem:[%s12 + $0x70] sm:$0xf]
        %v8080 = vld [vmem:[%s12 + $0x74] sm:$0xf]
        %v8081 = vld [vmem:[%s12 + $0x78] sm:$0xf]
        %v8082 = vld [vmem:[%s12 + $0x7c] sm:$0xf]
        %v8083 = vunpack.c.l.b16 %v6288
        %v8084 = vunpack.c.l.b16 %v6298
        %v8085 = vunpack.c.l.b16 %v6312
        %v8086 = vunpack.c.l.b16 %v6322
        %v8087 = vunpack.c.l.b16 %v6336
        %v8088 = vunpack.c.l.b16 %v6346
        %v8089 = vunpack.c.l.b16 %v6360
        %v8090 = vunpack.c.l.b16 %v6370
        %v8091 = vunpack.c.l.b16 %v6384
        %v8092 = vunpack.c.l.b16 %v6394
        %v8093 = vunpack.c.l.b16 %v6408
        %v8094 = vunpack.c.l.b16 %v6418
        %v8095 = vunpack.c.l.b16 %v6432
        %v8096 = vunpack.c.l.b16 %v6442
        %v8097 = vunpack.c.l.b16 %v6456
        %v8098 = vunpack.c.l.b16 %v6466
        %v8099 = vunpack.c.l.b16 %v6480
        %v8100 = vunpack.c.l.b16 %v6490
        %v8101 = vunpack.c.l.b16 %v6504
        %v8102 = vunpack.c.l.b16 %v6514
        %v8103 = vunpack.c.l.b16 %v6528
        %v8104 = vunpack.c.l.b16 %v6538
        %v8105 = vunpack.c.l.b16 %v6552
        %v8106 = vunpack.c.l.b16 %v6562
        %v8107 = vunpack.c.l.b16 %v6576
        %v8108 = vunpack.c.l.b16 %v6586
        %v8109 = vunpack.c.l.b16 %v6600
        %v8110 = vunpack.c.l.b16 %v6610
        %v8111 = vunpack.c.l.b16 %v6624
        %v8112 = vunpack.c.l.b16 %v6634
        %v8113 = vunpack.c.l.b16 %v6648
        %v8114 = vunpack.c.l.b16 %v6658
        %v8115 = vpack.c.b16 %v8084, %v8083
        %v8116 = vpack.c.b16 %v8086, %v8085
        %v8117 = vpack.c.b16 %v8088, %v8087
        %v8118 = vpack.c.b16 %v8090, %v8089
        %v8119 = vpack.c.b16 %v8092, %v8091
        %v8120 = vpack.c.b16 %v8094, %v8093
        %v8121 = vpack.c.b16 %v8096, %v8095
        %v8122 = vpack.c.b16 %v8098, %v8097
        %v8123 = vpack.c.b16 %v8100, %v8099
        %v8124 = vpack.c.b16 %v8102, %v8101
        %v8125 = vpack.c.b16 %v8104, %v8103
        %v8126 = vpack.c.b16 %v8106, %v8105
        %v8127 = vpack.c.b16 %v8108, %v8107
        %v8128 = vpack.c.b16 %v8110, %v8109
        %v8129 = vpack.c.b16 %v8112, %v8111
        %v8130 = vpack.c.b16 %v8114, %v8113
        %v8163 = vunpack.c.l.b16 %v8067
        %v8164 = vunpack.c.l.b16 %v8068
        %v8165 = vunpack.c.l.b16 %v8069
        %v8166 = vunpack.c.l.b16 %v8070
        %v8167 = vunpack.c.l.b16 %v8071
        %v8168 = vunpack.c.l.b16 %v8072
        %v8169 = vunpack.c.l.b16 %v8073
        %v8170 = vunpack.c.l.b16 %v8074
        %v8171 = vunpack.c.l.b16 %v8075
        %v8172 = vunpack.c.l.b16 %v8076
        %v8173 = vunpack.c.l.b16 %v8077
        %v8174 = vunpack.c.l.b16 %v8078
        %v8175 = vunpack.c.l.b16 %v8079
        %v8176 = vunpack.c.l.b16 %v8080
        %v8177 = vunpack.c.l.b16 %v8081
        %v8178 = vunpack.c.l.b16 %v8082
        %v8179 = vpack.c.b16 %v8164, %v8163
        %v8180 = vpack.c.b16 %v8166, %v8165
        %v8181 = vpack.c.b16 %v8168, %v8167
        %v8182 = vpack.c.b16 %v8170, %v8169
        %v8183 = vpack.c.b16 %v8172, %v8171
        %v8184 = vpack.c.b16 %v8174, %v8173
        %v8185 = vpack.c.b16 %v8176, %v8175
        %v8186 = vpack.c.b16 %v8178, %v8177
        %8195 = vmatprep.subr.bf16.mxu0 0
        %8196 = vmatpush1.bf16.msra.mxu0 %v8179
        %8197 = vmatprep.subr.bf16.mxu0 0
        %8198 = vmatpush1.bf16.msra.mxu0 %v8180
        %8199 = vmatprep.subr.bf16.mxu0 0
        %8200 = vmatpush1.bf16.msra.mxu0 %v8181
        %8201 = vmatprep.subr.bf16.mxu0 0
        %8202 = vmatpush1.bf16.msra.mxu0 %v8182
        %8203 = vmatprep.subr.bf16.mxu0 0
        %8204 = vmatpush1.bf16.msra.mxu0 %v8183
        %8205 = vmatprep.subr.bf16.mxu0 0
        %8206 = vmatpush1.bf16.msra.mxu0 %v8184
        %8207 = vmatprep.subr.bf16.mxu0 0
        %8208 = vmatpush1.bf16.msra.mxu0 %v8185
        %8209 = vmatprep.subr.bf16.mxu0 0
        %8210 = vmatpush1.bf16.msra.mxu0 %v8186
        %8211 = vmatprep.subr.bf16.mxu0 0
        %8212 = vmatpush1.bf16.msra.mxu0 0
        %8213 = vmatprep.subr.bf16.mxu0 0
        %8214 = vmatpush1.bf16.msra.mxu0 0
        %8215 = vmatprep.subr.bf16.mxu0 0
        %8216 = vmatpush1.bf16.msra.mxu0 0
        %8217 = vmatprep.subr.bf16.mxu0 0
        %8218 = vmatpush1.bf16.msra.mxu0 0
        %8219 = vmatprep.subr.bf16.mxu0 0
        %8220 = vmatpush1.bf16.msra.mxu0 0
        %8221 = vmatprep.subr.bf16.mxu0 0
        %8222 = vmatpush1.bf16.msra.mxu0 0
        %8223 = vmatprep.subr.bf16.mxu0 0
        %8224 = vmatpush1.bf16.msra.mxu0 0
        %8225 = vmatprep.subr.bf16.mxu0 0
        %8226 = vmatpush1.bf16.msra.mxu0 0
        %8227 = vmatprep.mubr.bf16.mxu0 0
        %8228 = vmatmul.mubr.bf16.gmra.mrb[0].mxu0 %v8115
        %v8229 = vpop.f32.mrb[0].mxu0
        %v8230 = vadd.f32 0.0, %v8229
        %v8231 = vpop.f32.mrb[0].mxu0
        %v8232 = vpop.f32.mrb[0].mxu0
        %v8233 = vadd.f32 0.0, %v8232
        %v8234 = vpop.f32.mrb[0].mxu0
        %8235 = vmatprep.mubr.bf16.mxu0 0
        %8236 = vmatmul.mubr.bf16.gmra.mrb[0].mxu0 %v8116
        %v8237 = vpop.f32.mrb[0].mxu0
        %v8238 = vadd.f32 0.0, %v8237
        %v8239 = vpop.f32.mrb[0].mxu0
        %v8240 = vpop.f32.mrb[0].mxu0
        %v8241 = vadd.f32 0.0, %v8240
        %v8242 = vpop.f32.mrb[0].mxu0
        %8243 = vmatprep.mubr.bf16.mxu0 0
        %8244 = vmatmul.mubr.bf16.gmra.mrb[0].mxu0 %v8117
        %v8245 = vpop.f32.mrb[0].mxu0
        %v8246 = vadd.f32 0.0, %v8245
        %v8247 = vpop.f32.mrb[0].mxu0
        %v8248 = vpop.f32.mrb[0].mxu0
        %v8249 = vadd.f32 0.0, %v8248
        %v8250 = vpop.f32.mrb[0].mxu0
        %8251 = vmatprep.mubr.bf16.mxu0 0
        %8252 = vmatmul.mubr.bf16.gmra.mrb[0].mxu0 %v8118
        %v8253 = vpop.f32.mrb[0].mxu0
        %v8254 = vadd.f32 0.0, %v8253
        %v8255 = vpop.f32.mrb[0].mxu0
        %v8256 = vpop.f32.mrb[0].mxu0
        %v8257 = vadd.f32 0.0, %v8256
        %v8258 = vpop.f32.mrb[0].mxu0
        %8259 = vmatprep.mubr.bf16.mxu0 0
        %8260 = vmatmul.mubr.bf16.gmra.mrb[0].mxu0 %v8119
        %v8261 = vpop.f32.mrb[0].mxu0
        %v8262 = vadd.f32 0.0, %v8261
        %v8263 = vpop.f32.mrb[0].mxu0
        %v8264 = vpop.f32.mrb[0].mxu0
        %v8265 = vadd.f32 0.0, %v8264
        %v8266 = vpop.f32.mrb[0].mxu0
        %8267 = vmatprep.mubr.bf16.mxu0 0
        %8268 = vmatmul.mubr.bf16.gmra.mrb[0].mxu0 %v8120
        %v8269 = vpop.f32.mrb[0].mxu0
        %v8270 = vadd.f32 0.0, %v8269
        %v8271 = vpop.f32.mrb[0].mxu0
        %v8272 = vpop.f32.mrb[0].mxu0
        %v8273 = vadd.f32 0.0, %v8272
        %v8274 = vpop.f32.mrb[0].mxu0
        %8275 = vmatprep.mubr.bf16.mxu0 0
        %8276 = vmatmul.mubr.bf16.gmra.mrb[0].mxu0 %v8121
        %v8277 = vpop.f32.mrb[0].mxu0
        %v8278 = vadd.f32 0.0, %v8277
        %v8279 = vpop.f32.mrb[0].mxu0
        %v8280 = vpop.f32.mrb[0].mxu0
        %v8281 = vadd.f32 0.0, %v8280
        %v8282 = vpop.f32.mrb[0].mxu0
        %8283 = vmatprep.mubr.bf16.mxu0 0
        %8284 = vmatmul.mubr.bf16.gmra.mrb[0].mxu0 %v8122
        %v8285 = vpop.f32.mrb[0].mxu0
        %v8286 = vadd.f32 0.0, %v8285
        %v8287 = vpop.f32.mrb[0].mxu0
        %v8288 = vpop.f32.mrb[0].mxu0
        %v8289 = vadd.f32 0.0, %v8288
        %v8290 = vpop.f32.mrb[0].mxu0
        %8291 = vmatprep.mubr.bf16.mxu0 0
        %8292 = vmatmul.mubr.bf16.gmra.mrb[0].mxu0 %v8123
        %v8293 = vpop.f32.mrb[0].mxu0
        %v8294 = vadd.f32 0.0, %v8293
        %v8295 = vpop.f32.mrb[0].mxu0
        %v8296 = vpop.f32.mrb[0].mxu0
        %v8297 = vadd.f32 0.0, %v8296
        %v8298 = vpop.f32.mrb[0].mxu0
        %8299 = vmatprep.mubr.bf16.mxu0 0
        %8300 = vmatmul.mubr.bf16.gmra.mrb[0].mxu0 %v8124
        %v8301 = vpop.f32.mrb[0].mxu0
        %v8302 = vadd.f32 0.0, %v8301
        %v8303 = vpop.f32.mrb[0].mxu0
        %v8304 = vpop.f32.mrb[0].mxu0
        %v8305 = vadd.f32 0.0, %v8304
        %v8306 = vpop.f32.mrb[0].mxu0
        %8307 = vmatprep.mubr.bf16.mxu0 0
        %8308 = vmatmul.mubr.bf16.gmra.mrb[0].mxu0 %v8125
        %v8309 = vpop.f32.mrb[0].mxu0
        %v8310 = vadd.f32 0.0, %v8309
        %v8311 = vpop.f32.mrb[0].mxu0
        %v8312 = vpop.f32.mrb[0].mxu0
        %v8313 = vadd.f32 0.0, %v8312
        %v8314 = vpop.f32.mrb[0].mxu0
        %8315 = vmatprep.mubr.bf16.mxu0 0
        %8316 = vmatmul.mubr.bf16.gmra.mrb[0].mxu0 %v8126
        %v8317 = vpop.f32.mrb[0].mxu0
        %v8318 = vadd.f32 0.0, %v8317
        %v8319 = vpop.f32.mrb[0].mxu0
        %v8320 = vpop.f32.mrb[0].mxu0
        %v8321 = vadd.f32 0.0, %v8320
        %v8322 = vpop.f32.mrb[0].mxu0
        %8323 = vmatprep.mubr.bf16.mxu0 0
        %8324 = vmatmul.mubr.bf16.gmra.mrb[0].mxu0 %v8127
        %v8325 = vpop.f32.mrb[0].mxu0
        %v8326 = vadd.f32 0.0, %v8325
        %v8327 = vpop.f32.mrb[0].mxu0
        %v8328 = vpop.f32.mrb[0].mxu0
        %v8329 = vadd.f32 0.0, %v8328
        %v8330 = vpop.f32.mrb[0].mxu0
        %8331 = vmatprep.mubr.bf16.mxu0 0
        %8332 = vmatmul.mubr.bf16.gmra.mrb[0].mxu0 %v8128
        %v8333 = vpop.f32.mrb[0].mxu0
        %v8334 = vadd.f32 0.0, %v8333
        %v8335 = vpop.f32.mrb[0].mxu0
        %v8336 = vpop.f32.mrb[0].mxu0
        %v8337 = vadd.f32 0.0, %v8336
        %v8338 = vpop.f32.mrb[0].mxu0
        %8339 = vmatprep.mubr.bf16.mxu0 0
        %8340 = vmatmul.mubr.bf16.gmra.mrb[0].mxu0 %v8129
        %v8341 = vpop.f32.mrb[0].mxu0
        %v8342 = vadd.f32 0.0, %v8341
        %v8343 = vpop.f32.mrb[0].mxu0
        %v8344 = vpop.f32.mrb[0].mxu0
        %v8345 = vadd.f32 0.0, %v8344
        %v8346 = vpop.f32.mrb[0].mxu0
        %8347 = vmatprep.mubr.bf16.mxu0 0
        %8348 = vmatmul.mubr.bf16.gmra.mrb[0].mxu0 %v8130
        %v8349 = vpop.f32.mrb[0].mxu0
        %v8350 = vadd.f32 0.0, %v8349
        %v8351 = vpop.f32.mrb[0].mxu0
        %v8352 = vpop.f32.mrb[0].mxu0
        %v8353 = vadd.f32 0.0, %v8352
        %v8354 = vpop.f32.mrb[0].mxu0
        %8355 = vdwg.mxu0
        %v8372 = vunpack.c.l.b16 %v6227
        %v8373 = vunpack.c.l.b16 %v6228
        %v8374 = vunpack.c.l.b16 %v6229
        %v8375 = vunpack.c.l.b16 %v6230
        %v8376 = vunpack.c.l.b16 %v6231
        %v8377 = vunpack.c.l.b16 %v6232
        %v8378 = vunpack.c.l.b16 %v6233
        %v8379 = vunpack.c.l.b16 %v6234
        %v8380 = vunpack.c.l.b16 %v6235
        %v8381 = vunpack.c.l.b16 %v6236
        %v8382 = vunpack.c.l.b16 %v6237
        %v8383 = vunpack.c.l.b16 %v6238
        %v8384 = vunpack.c.l.b16 %v6239
        %v8385 = vunpack.c.l.b16 %v6240
        %v8386 = vunpack.c.l.b16 %v6241
        %v8387 = vunpack.c.l.b16 %v6242
        %v8388 = vunpack.c.l.b16 %v6243
        %v8389 = vunpack.c.l.b16 %v6244
        %v8390 = vunpack.c.l.b16 %v6245
        %v8391 = vunpack.c.l.b16 %v6246
        %v8392 = vunpack.c.l.b16 %v6247
        %v8393 = vunpack.c.l.b16 %v6248
        %v8394 = vunpack.c.l.b16 %v6249
        %v8395 = vunpack.c.l.b16 %v6250
        %v8396 = vunpack.c.l.b16 %v6251
        %v8397 = vunpack.c.l.b16 %v6252
        %v8398 = vunpack.c.l.b16 %v6253
        %v8399 = vunpack.c.l.b16 %v6254
        %v8400 = vunpack.c.l.b16 %v6255
        %v8401 = vunpack.c.l.b16 %v6256
        %v8402 = vunpack.c.l.b16 %v6257
        %v8403 = vunpack.c.l.b16 %v6258
        %v8404 = vpack.c.b16 %v8373, %v8372
        %v8405 = vpack.c.b16 %v8375, %v8374
        %v8406 = vpack.c.b16 %v8377, %v8376
        %v8407 = vpack.c.b16 %v8379, %v8378
        %v8408 = vpack.c.b16 %v8381, %v8380
        %v8409 = vpack.c.b16 %v8383, %v8382
        %v8410 = vpack.c.b16 %v8385, %v8384
        %v8411 = vpack.c.b16 %v8387, %v8386
        %v8412 = vpack.c.b16 %v8389, %v8388
        %v8413 = vpack.c.b16 %v8391, %v8390
        %v8414 = vpack.c.b16 %v8393, %v8392
        %v8415 = vpack.c.b16 %v8395, %v8394
        %v8416 = vpack.c.b16 %v8397, %v8396
        %v8417 = vpack.c.b16 %v8399, %v8398
        %v8418 = vpack.c.b16 %v8401, %v8400
        %v8419 = vpack.c.b16 %v8403, %v8402
        %v8452 = vunpack.c.l.b16 %v8051
        %v8453 = vunpack.c.l.b16 %v8052
        %v8454 = vunpack.c.l.b16 %v8053
        %v8455 = vunpack.c.l.b16 %v8054
        %v8456 = vunpack.c.l.b16 %v8055
        %v8457 = vunpack.c.l.b16 %v8056
        %v8458 = vunpack.c.l.b16 %v8057
        %v8459 = vunpack.c.l.b16 %v8058
        %v8460 = vunpack.c.l.b16 %v8059
        %v8461 = vunpack.c.l.b16 %v8060
        %v8462 = vunpack.c.l.b16 %v8061
        %v8463 = vunpack.c.l.b16 %v8062
        %v8464 = vunpack.c.l.b16 %v8063
        %v8465 = vunpack.c.l.b16 %v8064
        %v8466 = vunpack.c.l.b16 %v8065
        %v8467 = vunpack.c.l.b16 %v8066
        %v8468 = vpack.c.b16 %v8453, %v8452
        %v8469 = vpack.c.b16 %v8455, %v8454
        %v8470 = vpack.c.b16 %v8457, %v8456
        %v8471 = vpack.c.b16 %v8459, %v8458
        %v8472 = vpack.c.b16 %v8461, %v8460
        %v8473 = vpack.c.b16 %v8463, %v8462
        %v8474 = vpack.c.b16 %v8465, %v8464
        %v8475 = vpack.c.b16 %v8467, %v8466
        %8484 = vmatprep.subr.bf16.mxu0 0
        %8485 = vmatpush1.bf16.msra.mxu0 %v8468
        %8486 = vmatprep.subr.bf16.mxu0 0
        %8487 = vmatpush1.bf16.msra.mxu0 %v8469
        %8488 = vmatprep.subr.bf16.mxu0 0
        %8489 = vmatpush1.bf16.msra.mxu0 %v8470
        %8490 = vmatprep.subr.bf16.mxu0 0
        %8491 = vmatpush1.bf16.msra.mxu0 %v8471
        %8492 = vmatprep.subr.bf16.mxu0 0
        %8493 = vmatpush1.bf16.msra.mxu0 %v8472
        %8494 = vmatprep.subr.bf16.mxu0 0
        %8495 = vmatpush1.bf16.msra.mxu0 %v8473
        %8496 = vmatprep.subr.bf16.mxu0 0
        %8497 = vmatpush1.bf16.msra.mxu0 %v8474
        %8498 = vmatprep.subr.bf16.mxu0 0
        %8499 = vmatpush1.bf16.msra.mxu0 %v8475
        %8500 = vmatprep.subr.bf16.mxu0 0
        %8501 = vmatpush1.bf16.msra.mxu0 0
        %8502 = vmatprep.subr.bf16.mxu0 0
        %8503 = vmatpush1.bf16.msra.mxu0 0
        %8504 = vmatprep.subr.bf16.mxu0 0
        %8505 = vmatpush1.bf16.msra.mxu0 0
        %8506 = vmatprep.subr.bf16.mxu0 0
        %8507 = vmatpush1.bf16.msra.mxu0 0
        %8508 = vmatprep.subr.bf16.mxu0 0
        %8509 = vmatpush1.bf16.msra.mxu0 0
        %8510 = vmatprep.subr.bf16.mxu0 0
        %8511 = vmatpush1.bf16.msra.mxu0 0
        %8512 = vmatprep.subr.bf16.mxu0 0
        %8513 = vmatpush1.bf16.msra.mxu0 0
        %8514 = vmatprep.subr.bf16.mxu0 0
        %8515 = vmatpush1.bf16.msra.mxu0 0
        %8516 = vmatprep.mubr.bf16.mxu0 0
        %8517 = vmatmul.mubr.bf16.gmra.mrb[0].mxu0 %v8404
        %v8518 = vpop.f32.mrb[0].mxu0
        %v8519 = vadd.f32 %v8230, %v8518
        %v8520 = vpop.f32.mrb[0].mxu0
        %v8521 = vpop.f32.mrb[0].mxu0
        %v8522 = vadd.f32 %v8233, %v8521
        %v8523 = vpop.f32.mrb[0].mxu0
        %8524 = vmatprep.mubr.bf16.mxu0 0
        %8525 = vmatmul.mubr.bf16.gmra.mrb[0].mxu0 %v8405
        %v8526 = vpop.f32.mrb[0].mxu0
        %v8527 = vadd.f32 %v8238, %v8526
        %v8528 = vpop.f32.mrb[0].mxu0
        %v8529 = vpop.f32.mrb[0].mxu0
        %v8530 = vadd.f32 %v8241, %v8529
        %v8531 = vpop.f32.mrb[0].mxu0
        %8532 = vmatprep.mubr.bf16.mxu0 0
        %8533 = vmatmul.mubr.bf16.gmra.mrb[0].mxu0 %v8406
        %v8534 = vpop.f32.mrb[0].mxu0
        %v8535 = vadd.f32 %v8246, %v8534
        %v8536 = vpop.f32.mrb[0].mxu0
        %v8537 = vpop.f32.mrb[0].mxu0
        %v8538 = vadd.f32 %v8249, %v8537
        %v8539 = vpop.f32.mrb[0].mxu0
        %8540 = vmatprep.mubr.bf16.mxu0 0
        %8541 = vmatmul.mubr.bf16.gmra.mrb[0].mxu0 %v8407
        %v8542 = vpop.f32.mrb[0].mxu0
        %v8543 = vadd.f32 %v8254, %v8542
        %v8544 = vpop.f32.mrb[0].mxu0
        %v8545 = vpop.f32.mrb[0].mxu0
        %v8546 = vadd.f32 %v8257, %v8545
        %v8547 = vpop.f32.mrb[0].mxu0
        %8548 = vmatprep.mubr.bf16.mxu0 0
        %8549 = vmatmul.mubr.bf16.gmra.mrb[0].mxu0 %v8408
        %v8550 = vpop.f32.mrb[0].mxu0
        %v8551 = vadd.f32 %v8262, %v8550
        %v8552 = vpop.f32.mrb[0].mxu0
        %v8553 = vpop.f32.mrb[0].mxu0
        %v8554 = vadd.f32 %v8265, %v8553
        %v8555 = vpop.f32.mrb[0].mxu0
        %8556 = vmatprep.mubr.bf16.mxu0 0
        %8557 = vmatmul.mubr.bf16.gmra.mrb[0].mxu0 %v8409
        %v8558 = vpop.f32.mrb[0].mxu0
        %v8559 = vadd.f32 %v8270, %v8558
        %v8560 = vpop.f32.mrb[0].mxu0
        %v8561 = vpop.f32.mrb[0].mxu0
        %v8562 = vadd.f32 %v8273, %v8561
        %v8563 = vpop.f32.mrb[0].mxu0
        %8564 = vmatprep.mubr.bf16.mxu0 0
        %8565 = vmatmul.mubr.bf16.gmra.mrb[0].mxu0 %v8410
        %v8566 = vpop.f32.mrb[0].mxu0
        %v8567 = vadd.f32 %v8278, %v8566
        %v8568 = vpop.f32.mrb[0].mxu0
        %v8569 = vpop.f32.mrb[0].mxu0
        %v8570 = vadd.f32 %v8281, %v8569
        %v8571 = vpop.f32.mrb[0].mxu0
        %8572 = vmatprep.mubr.bf16.mxu0 0
        %8573 = vmatmul.mubr.bf16.gmra.mrb[0].mxu0 %v8411
        %v8574 = vpop.f32.mrb[0].mxu0
        %v8575 = vadd.f32 %v8286, %v8574
        %v8576 = vpop.f32.mrb[0].mxu0
        %v8577 = vpop.f32.mrb[0].mxu0
        %v8578 = vadd.f32 %v8289, %v8577
        %v8579 = vpop.f32.mrb[0].mxu0
        %8580 = vmatprep.mubr.bf16.mxu0 0
        %8581 = vmatmul.mubr.bf16.gmra.mrb[0].mxu0 %v8412
        %v8582 = vpop.f32.mrb[0].mxu0
        %v8583 = vadd.f32 %v8294, %v8582
        %v8584 = vpop.f32.mrb[0].mxu0
        %v8585 = vpop.f32.mrb[0].mxu0
        %v8586 = vadd.f32 %v8297, %v8585
        %v8587 = vpop.f32.mrb[0].mxu0
        %8588 = vmatprep.mubr.bf16.mxu0 0
        %8589 = vmatmul.mubr.bf16.gmra.mrb[0].mxu0 %v8413
        %v8590 = vpop.f32.mrb[0].mxu0
        %v8591 = vadd.f32 %v8302, %v8590
        %v8592 = vpop.f32.mrb[0].mxu0
        %v8593 = vpop.f32.mrb[0].mxu0
        %v8594 = vadd.f32 %v8305, %v8593
        %v8595 = vpop.f32.mrb[0].mxu0
        %8596 = vmatprep.mubr.bf16.mxu0 0
        %8597 = vmatmul.mubr.bf16.gmra.mrb[0].mxu0 %v8414
        %v8598 = vpop.f32.mrb[0].mxu0
        %v8599 = vadd.f32 %v8310, %v8598
        %v8600 = vpop.f32.mrb[0].mxu0
        %v8601 = vpop.f32.mrb[0].mxu0
        %v8602 = vadd.f32 %v8313, %v8601
        %v8603 = vpop.f32.mrb[0].mxu0
        %8604 = vmatprep.mubr.bf16.mxu0 0
        %8605 = vmatmul.mubr.bf16.gmra.mrb[0].mxu0 %v8415
        %v8606 = vpop.f32.mrb[0].mxu0
        %v8607 = vadd.f32 %v8318, %v8606
        %v8608 = vpop.f32.mrb[0].mxu0
        %v8609 = vpop.f32.mrb[0].mxu0
        %v8610 = vadd.f32 %v8321, %v8609
        %v8611 = vpop.f32.mrb[0].mxu0
        %8612 = vmatprep.mubr.bf16.mxu0 0
        %8613 = vmatmul.mubr.bf16.gmra.mrb[0].mxu0 %v8416
        %v8614 = vpop.f32.mrb[0].mxu0
        %v8615 = vadd.f32 %v8326, %v8614
        %v8616 = vpop.f32.mrb[0].mxu0
        %v8617 = vpop.f32.mrb[0].mxu0
        %v8618 = vadd.f32 %v8329, %v8617
        %v8619 = vpop.f32.mrb[0].mxu0
        %8620 = vmatprep.mubr.bf16.mxu0 0
        %8621 = vmatmul.mubr.bf16.gmra.mrb[0].mxu0 %v8417
        %v8622 = vpop.f32.mrb[0].mxu0
        %v8623 = vadd.f32 %v8334, %v8622
        %v8624 = vpop.f32.mrb[0].mxu0
        %v8625 = vpop.f32.mrb[0].mxu0
        %v8626 = vadd.f32 %v8337, %v8625
        %v8627 = vpop.f32.mrb[0].mxu0
        %8628 = vmatprep.mubr.bf16.mxu0 0
        %8629 = vmatmul.mubr.bf16.gmra.mrb[0].mxu0 %v8418
        %v8630 = vpop.f32.mrb[0].mxu0
        %v8631 = vadd.f32 %v8342, %v8630
        %v8632 = vpop.f32.mrb[0].mxu0
        %v8633 = vpop.f32.mrb[0].mxu0
        %v8634 = vadd.f32 %v8345, %v8633
        %v8635 = vpop.f32.mrb[0].mxu0
        %8636 = vmatprep.mubr.bf16.mxu0 0
        %8637 = vmatmul.mubr.bf16.gmra.mrb[0].mxu0 %v8419
        %v8638 = vpop.f32.mrb[0].mxu0
        %v8639 = vadd.f32 %v8350, %v8638
        %v8640 = vpop.f32.mrb[0].mxu0
        %v8641 = vpop.f32.mrb[0].mxu0
        %v8642 = vadd.f32 %v8353, %v8641
        %v8643 = vpop.f32.mrb[0].mxu0
        %8644 = vdwg.mxu0
        %v8645 = vld [vmem:[%s12 + $0x80] sm:$0xf]
        %v8646 = vld [vmem:[%s12 + $0x84] sm:$0xf]
        %v8647 = vld [vmem:[%s12 + $0x88] sm:$0xf]
        %v8648 = vld [vmem:[%s12 + $0x8c] sm:$0xf]
        %v8649 = vld [vmem:[%s12 + $0x90] sm:$0xf]
        %v8650 = vld [vmem:[%s12 + $0x94] sm:$0xf]
        %v8651 = vld [vmem:[%s12 + $0x98] sm:$0xf]
        %v8652 = vld [vmem:[%s12 + $0x9c] sm:$0xf]
        %v8653 = vld [vmem:[%s12 + $0xa0] sm:$0xf]
        %v8654 = vld [vmem:[%s12 + $0xa4] sm:$0xf]
        %v8655 = vld [vmem:[%s12 + $0xa8] sm:$0xf]
        %v8656 = vld [vmem:[%s12 + $0xac] sm:$0xf]
        %v8657 = vld [vmem:[%s12 + $0xb0] sm:$0xf]
        %v8658 = vld [vmem:[%s12 + $0xb4] sm:$0xf]
        %v8659 = vld [vmem:[%s12 + $0xb8] sm:$0xf]
        %v8660 = vld [vmem:[%s12 + $0xbc] sm:$0xf]
        %v8661 = vunpack.c.l.b16 %v6726
        %v8662 = vunpack.c.l.b16 %v6729
        %v8663 = vunpack.c.l.b16 %v6733
        %v8664 = vunpack.c.l.b16 %v6736
        %v8665 = vunpack.c.l.b16 %v6740
        %v8666 = vunpack.c.l.b16 %v6743
        %v8667 = vunpack.c.l.b16 %v6747
        %v8668 = vunpack.c.l.b16 %v6750
        %v8669 = vunpack.c.l.b16 %v6754
        %v8670 = vunpack.c.l.b16 %v6757
        %v8671 = vunpack.c.l.b16 %v6761
        %v8672 = vunpack.c.l.b16 %v6764
        %v8673 = vunpack.c.l.b16 %v6768
        %v8674 = vunpack.c.l.b16 %v6771
        %v8675 = vunpack.c.l.b16 %v6775
        %v8676 = vunpack.c.l.b16 %v6778
        %v8677 = vunpack.c.l.b16 %v6782
        %v8678 = vunpack.c.l.b16 %v6785
        %v8679 = vunpack.c.l.b16 %v6789
        %v8680 = vunpack.c.l.b16 %v6792
        %v8681 = vunpack.c.l.b16 %v6796
        %v8682 = vunpack.c.l.b16 %v6799
        %v8683 = vunpack.c.l.b16 %v6803
        %v8684 = vunpack.c.l.b16 %v6806
        %v8685 = vunpack.c.l.b16 %v6810
        %v8686 = vunpack.c.l.b16 %v6813
        %v8687 = vunpack.c.l.b16 %v6817
        %v8688 = vunpack.c.l.b16 %v6820
        %v8689 = vunpack.c.l.b16 %v6824
        %v8690 = vunpack.c.l.b16 %v6827
        %v8691 = vunpack.c.l.b16 %v6831
        %v8692 = vunpack.c.l.b16 %v6834
        %v8693 = vpack.c.b16 %v8662, %v8661
        %v8694 = vpack.c.b16 %v8664, %v8663
        %v8695 = vpack.c.b16 %v8666, %v8665
        %v8696 = vpack.c.b16 %v8668, %v8667
        %v8697 = vpack.c.b16 %v8670, %v8669
        %v8698 = vpack.c.b16 %v8672, %v8671
        %v8699 = vpack.c.b16 %v8674, %v8673
        %v8700 = vpack.c.b16 %v8676, %v8675
        %v8701 = vpack.c.b16 %v8678, %v8677
        %v8702 = vpack.c.b16 %v8680, %v8679
        %v8703 = vpack.c.b16 %v8682, %v8681
        %v8704 = vpack.c.b16 %v8684, %v8683
        %v8705 = vpack.c.b16 %v8686, %v8685
        %v8706 = vpack.c.b16 %v8688, %v8687
        %v8707 = vpack.c.b16 %v8690, %v8689
        %v8708 = vpack.c.b16 %v8692, %v8691
        %v8741 = vunpack.c.l.b16 %v8645
        %v8742 = vunpack.c.l.b16 %v8646
        %v8743 = vunpack.c.l.b16 %v8647
        %v8744 = vunpack.c.l.b16 %v8648
        %v8745 = vunpack.c.l.b16 %v8649
        %v8746 = vunpack.c.l.b16 %v8650
        %v8747 = vunpack.c.l.b16 %v8651
        %v8748 = vunpack.c.l.b16 %v8652
        %v8749 = vunpack.c.l.b16 %v8653
        %v8750 = vunpack.c.l.b16 %v8654
        %v8751 = vunpack.c.l.b16 %v8655
        %v8752 = vunpack.c.l.b16 %v8656
        %v8753 = vunpack.c.l.b16 %v8657
        %v8754 = vunpack.c.l.b16 %v8658
        %v8755 = vunpack.c.l.b16 %v8659
        %v8756 = vunpack.c.l.b16 %v8660
        %v8757 = vpack.c.b16 %v8742, %v8741
        %v8758 = vpack.c.b16 %v8744, %v8743
        %v8759 = vpack.c.b16 %v8746, %v8745
        %v8760 = vpack.c.b16 %v8748, %v8747
        %v8761 = vpack.c.b16 %v8750, %v8749
        %v8762 = vpack.c.b16 %v8752, %v8751
        %v8763 = vpack.c.b16 %v8754, %v8753
        %v8764 = vpack.c.b16 %v8756, %v8755
        %8773 = vmatprep.subr.bf16.mxu0 0
        %8774 = vmatpush1.bf16.msra.mxu0 %v8757
        %8775 = vmatprep.subr.bf16.mxu0 0
        %8776 = vmatpush1.bf16.msra.mxu0 %v8758
        %8777 = vmatprep.subr.bf16.mxu0 0
        %8778 = vmatpush1.bf16.msra.mxu0 %v8759
        %8779 = vmatprep.subr.bf16.mxu0 0
        %8780 = vmatpush1.bf16.msra.mxu0 %v8760
        %8781 = vmatprep.subr.bf16.mxu0 0
        %8782 = vmatpush1.bf16.msra.mxu0 %v8761
        %8783 = vmatprep.subr.bf16.mxu0 0
        %8784 = vmatpush1.bf16.msra.mxu0 %v8762
        %8785 = vmatprep.subr.bf16.mxu0 0
        %8786 = vmatpush1.bf16.msra.mxu0 %v8763
        %8787 = vmatprep.subr.bf16.mxu0 0
        %8788 = vmatpush1.bf16.msra.mxu0 %v8764
        %8789 = vmatprep.subr.bf16.mxu0 0
        %8790 = vmatpush1.bf16.msra.mxu0 0
        %8791 = vmatprep.subr.bf16.mxu0 0
        %8792 = vmatpush1.bf16.msra.mxu0 0
        %8793 = vmatprep.subr.bf16.mxu0 0
        %8794 = vmatpush1.bf16.msra.mxu0 0
        %8795 = vmatprep.subr.bf16.mxu0 0
        %8796 = vmatpush1.bf16.msra.mxu0 0
        %8797 = vmatprep.subr.bf16.mxu0 0
        %8798 = vmatpush1.bf16.msra.mxu0 0
        %8799 = vmatprep.subr.bf16.mxu0 0
        %8800 = vmatpush1.bf16.msra.mxu0 0
        %8801 = vmatprep.subr.bf16.mxu0 0
        %8802 = vmatpush1.bf16.msra.mxu0 0
        %8803 = vmatprep.subr.bf16.mxu0 0
        %8804 = vmatpush1.bf16.msra.mxu0 0
        %8805 = vmatprep.mubr.bf16.mxu0 0
        %8806 = vmatmul.mubr.bf16.gmra.mrb[0].mxu0 %v8693
        %v8807 = vpop.f32.mrb[0].mxu0
        %v8808 = vadd.f32 0.0, %v8807
        %v8809 = vpop.f32.mrb[0].mxu0
        %v8810 = vpop.f32.mrb[0].mxu0
        %v8811 = vadd.f32 0.0, %v8810
        %v8812 = vpop.f32.mrb[0].mxu0
        %8813 = vmatprep.mubr.bf16.mxu0 0
        %8814 = vmatmul.mubr.bf16.gmra.mrb[0].mxu0 %v8694
        %v8815 = vpop.f32.mrb[0].mxu0
        %v8816 = vadd.f32 0.0, %v8815
        %v8817 = vpop.f32.mrb[0].mxu0
        %v8818 = vpop.f32.mrb[0].mxu0
        %v8819 = vadd.f32 0.0, %v8818
        %v8820 = vpop.f32.mrb[0].mxu0
        %8821 = vmatprep.mubr.bf16.mxu0 0
        %8822 = vmatmul.mubr.bf16.gmra.mrb[0].mxu0 %v8695
        %v8823 = vpop.f32.mrb[0].mxu0
        %v8824 = vadd.f32 0.0, %v8823
        %v8825 = vpop.f32.mrb[0].mxu0
        %v8826 = vpop.f32.mrb[0].mxu0
        %v8827 = vadd.f32 0.0, %v8826
        %v8828 = vpop.f32.mrb[0].mxu0
        %8829 = vmatprep.mubr.bf16.mxu0 0
        %8830 = vmatmul.mubr.bf16.gmra.mrb[0].mxu0 %v8696
        %v8831 = vpop.f32.mrb[0].mxu0
        %v8832 = vadd.f32 0.0, %v8831
        %v8833 = vpop.f32.mrb[0].mxu0
        %v8834 = vpop.f32.mrb[0].mxu0
        %v8835 = vadd.f32 0.0, %v8834
        %v8836 = vpop.f32.mrb[0].mxu0
        %8837 = vmatprep.mubr.bf16.mxu0 0
        %8838 = vmatmul.mubr.bf16.gmra.mrb[0].mxu0 %v8697
        %v8839 = vpop.f32.mrb[0].mxu0
        %v8840 = vadd.f32 0.0, %v8839
        %v8841 = vpop.f32.mrb[0].mxu0
        %v8842 = vpop.f32.mrb[0].mxu0
        %v8843 = vadd.f32 0.0, %v8842
        %v8844 = vpop.f32.mrb[0].mxu0
        %8845 = vmatprep.mubr.bf16.mxu0 0
        %8846 = vmatmul.mubr.bf16.gmra.mrb[0].mxu0 %v8698
        %v8847 = vpop.f32.mrb[0].mxu0
        %v8848 = vadd.f32 0.0, %v8847
        %v8849 = vpop.f32.mrb[0].mxu0
        %v8850 = vpop.f32.mrb[0].mxu0
        %v8851 = vadd.f32 0.0, %v8850
        %v8852 = vpop.f32.mrb[0].mxu0
        %8853 = vmatprep.mubr.bf16.mxu0 0
        %8854 = vmatmul.mubr.bf16.gmra.mrb[0].mxu0 %v8699
        %v8855 = vpop.f32.mrb[0].mxu0
        %v8856 = vadd.f32 0.0, %v8855
        %v8857 = vpop.f32.mrb[0].mxu0
        %v8858 = vpop.f32.mrb[0].mxu0
        %v8859 = vadd.f32 0.0, %v8858
        %v8860 = vpop.f32.mrb[0].mxu0
        %8861 = vmatprep.mubr.bf16.mxu0 0
        %8862 = vmatmul.mubr.bf16.gmra.mrb[0].mxu0 %v8700
        %v8863 = vpop.f32.mrb[0].mxu0
        %v8864 = vadd.f32 0.0, %v8863
        %v8865 = vpop.f32.mrb[0].mxu0
        %v8866 = vpop.f32.mrb[0].mxu0
        %v8867 = vadd.f32 0.0, %v8866
        %v8868 = vpop.f32.mrb[0].mxu0
        %8869 = vmatprep.mubr.bf16.mxu0 0
        %8870 = vmatmul.mubr.bf16.gmra.mrb[0].mxu0 %v8701
        %v8871 = vpop.f32.mrb[0].mxu0
        %v8872 = vadd.f32 0.0, %v8871
        %v8873 = vpop.f32.mrb[0].mxu0
        %v8874 = vpop.f32.mrb[0].mxu0
        %v8875 = vadd.f32 0.0, %v8874
        %v8876 = vpop.f32.mrb[0].mxu0
        %8877 = vmatprep.mubr.bf16.mxu0 0
        %8878 = vmatmul.mubr.bf16.gmra.mrb[0].mxu0 %v8702
        %v8879 = vpop.f32.mrb[0].mxu0
        %v8880 = vadd.f32 0.0, %v8879
        %v8881 = vpop.f32.mrb[0].mxu0
        %v8882 = vpop.f32.mrb[0].mxu0
        %v8883 = vadd.f32 0.0, %v8882
        %v8884 = vpop.f32.mrb[0].mxu0
        %8885 = vmatprep.mubr.bf16.mxu0 0
        %8886 = vmatmul.mubr.bf16.gmra.mrb[0].mxu0 %v8703
        %v8887 = vpop.f32.mrb[0].mxu0
        %v8888 = vadd.f32 0.0, %v8887
        %v8889 = vpop.f32.mrb[0].mxu0
        %v8890 = vpop.f32.mrb[0].mxu0
        %v8891 = vadd.f32 0.0, %v8890
        %v8892 = vpop.f32.mrb[0].mxu0
        %8893 = vmatprep.mubr.bf16.mxu0 0
        %8894 = vmatmul.mubr.bf16.gmra.mrb[0].mxu0 %v8704
        %v8895 = vpop.f32.mrb[0].mxu0
        %v8896 = vadd.f32 0.0, %v8895
        %v8897 = vpop.f32.mrb[0].mxu0
        %v8898 = vpop.f32.mrb[0].mxu0
        %v8899 = vadd.f32 0.0, %v8898
        %v8900 = vpop.f32.mrb[0].mxu0
        %8901 = vmatprep.mubr.bf16.mxu0 0
        %8902 = vmatmul.mubr.bf16.gmra.mrb[0].mxu0 %v8705
        %v8903 = vpop.f32.mrb[0].mxu0
        %v8904 = vadd.f32 0.0, %v8903
        %v8905 = vpop.f32.mrb[0].mxu0
        %v8906 = vpop.f32.mrb[0].mxu0
        %v8907 = vadd.f32 0.0, %v8906
        %v8908 = vpop.f32.mrb[0].mxu0
        %8909 = vmatprep.mubr.bf16.mxu0 0
        %8910 = vmatmul.mubr.bf16.gmra.mrb[0].mxu0 %v8706
        %v8911 = vpop.f32.mrb[0].mxu0
        %v8912 = vadd.f32 0.0, %v8911
        %v8913 = vpop.f32.mrb[0].mxu0
        %v8914 = vpop.f32.mrb[0].mxu0
        %v8915 = vadd.f32 0.0, %v8914
        %v8916 = vpop.f32.mrb[0].mxu0
        %8917 = vmatprep.mubr.bf16.mxu0 0
        %8918 = vmatmul.mubr.bf16.gmra.mrb[0].mxu0 %v8707
        %v8919 = vpop.f32.mrb[0].mxu0
        %v8920 = vadd.f32 0.0, %v8919
        %v8921 = vpop.f32.mrb[0].mxu0
        %v8922 = vpop.f32.mrb[0].mxu0
        %v8923 = vadd.f32 0.0, %v8922
        %v8924 = vpop.f32.mrb[0].mxu0
        %8925 = vmatprep.mubr.bf16.mxu0 0
        %8926 = vmatmul.mubr.bf16.gmra.mrb[0].mxu0 %v8708
        %v8927 = vpop.f32.mrb[0].mxu0
        %v8928 = vadd.f32 0.0, %v8927
        %v8929 = vpop.f32.mrb[0].mxu0
        %v8930 = vpop.f32.mrb[0].mxu0
        %v8931 = vadd.f32 0.0, %v8930
        %v8932 = vpop.f32.mrb[0].mxu0
        %8933 = vdwg.mxu0
        %v8934 = vadd.f32 %v8519, %v8808
        %v8935 = vadd.f32 %v8522, %v8811
        %v8936 = vadd.f32 %v8527, %v8816
        %v8937 = vadd.f32 %v8530, %v8819
        %v8938 = vadd.f32 %v8535, %v8824
        %v8939 = vadd.f32 %v8538, %v8827
        %v8940 = vadd.f32 %v8543, %v8832
        %v8941 = vadd.f32 %v8546, %v8835
        %v8942 = vadd.f32 %v8551, %v8840
        %v8943 = vadd.f32 %v8554, %v8843
        %v8944 = vadd.f32 %v8559, %v8848
        %v8945 = vadd.f32 %v8562, %v8851
        %v8946 = vadd.f32 %v8567, %v8856
        %v8947 = vadd.f32 %v8570, %v8859
        %v8948 = vadd.f32 %v8575, %v8864
        %v8949 = vadd.f32 %v8578, %v8867
        %v8950 = vadd.f32 %v8583, %v8872
        %v8951 = vadd.f32 %v8586, %v8875
        %v8952 = vadd.f32 %v8591, %v8880
        %v8953 = vadd.f32 %v8594, %v8883
        %v8954 = vadd.f32 %v8599, %v8888
        %v8955 = vadd.f32 %v8602, %v8891
        %v8956 = vadd.f32 %v8607, %v8896
        %v8957 = vadd.f32 %v8610, %v8899
        %v8958 = vadd.f32 %v8615, %v8904
        %v8959 = vadd.f32 %v8618, %v8907
        %v8960 = vadd.f32 %v8623, %v8912
        %v8961 = vadd.f32 %v8626, %v8915
        %v8962 = vadd.f32 %v8631, %v8920
        %v8963 = vadd.f32 %v8634, %v8923
        %v8964 = vadd.f32 %v8639, %v8928
        %v8965 = vadd.f32 %v8642, %v8931
        %v8966 = vld [vmem:[%s12 + $0xc0] sm:$0xf]
        %v8967 = vld [vmem:[%s12 + $0xc4] sm:$0xf]
        %v8968 = vld [vmem:[%s12 + $0xc8] sm:$0xf]
        %v8969 = vld [vmem:[%s12 + $0xcc] sm:$0xf]
        %v8970 = vld [vmem:[%s12 + $0xd0] sm:$0xf]
        %v8971 = vld [vmem:[%s12 + $0xd4] sm:$0xf]
        %v8972 = vld [vmem:[%s12 + $0xd8] sm:$0xf]
        %v8973 = vld [vmem:[%s12 + $0xdc] sm:$0xf]
        %v8974 = vld [vmem:[%s12 + $0xe0] sm:$0xf]
        %v8975 = vld [vmem:[%s12 + $0xe4] sm:$0xf]
        %v8976 = vld [vmem:[%s12 + $0xe8] sm:$0xf]
        %v8977 = vld [vmem:[%s12 + $0xec] sm:$0xf]
        %v8978 = vld [vmem:[%s12 + $0xf0] sm:$0xf]
        %v8979 = vld [vmem:[%s12 + $0xf4] sm:$0xf]
        %v8980 = vld [vmem:[%s12 + $0xf8] sm:$0xf]
        %v8981 = vld [vmem:[%s12 + $0xfc] sm:$0xf]
        %v8998 = vunpack.c.l.b16 %v6835
        %v8999 = vunpack.c.l.b16 %v6836
        %v9000 = vunpack.c.l.b16 %v6837
        %v9001 = vunpack.c.l.b16 %v6838
        %v9002 = vunpack.c.l.b16 %v6839
        %v9003 = vunpack.c.l.b16 %v6840
        %v9004 = vunpack.c.l.b16 %v6841
        %v9005 = vunpack.c.l.b16 %v6842
        %v9006 = vunpack.c.l.b16 %v6843
        %v9007 = vunpack.c.l.b16 %v6844
        %v9008 = vunpack.c.l.b16 %v6845
        %v9009 = vunpack.c.l.b16 %v6846
        %v9010 = vunpack.c.l.b16 %v6847
        %v9011 = vunpack.c.l.b16 %v6848
        %v9012 = vunpack.c.l.b16 %v6849
        %v9013 = vunpack.c.l.b16 %v6850
        %v9014 = vunpack.c.l.b16 %v6851
        %v9015 = vunpack.c.l.b16 %v6852
        %v9016 = vunpack.c.l.b16 %v6853
        %v9017 = vunpack.c.l.b16 %v6854
        %v9018 = vunpack.c.l.b16 %v6855
        %v9019 = vunpack.c.l.b16 %v6856
        %v9020 = vunpack.c.l.b16 %v6857
        %v9021 = vunpack.c.l.b16 %v6858
        %v9022 = vunpack.c.l.b16 %v6859
        %v9023 = vunpack.c.l.b16 %v6860
        %v9024 = vunpack.c.l.b16 %v6861
        %v9025 = vunpack.c.l.b16 %v6862
        %v9026 = vunpack.c.l.b16 %v6863
        %v9027 = vunpack.c.l.b16 %v6864
        %v9028 = vunpack.c.l.b16 %v6865
        %v9029 = vunpack.c.l.b16 %v6866
        %v9030 = vpack.c.b16 %v8999, %v8998
        %v9031 = vpack.c.b16 %v9001, %v9000
        %v9032 = vpack.c.b16 %v9003, %v9002
        %v9033 = vpack.c.b16 %v9005, %v9004
        %v9034 = vpack.c.b16 %v9007, %v9006
        %v9035 = vpack.c.b16 %v9009, %v9008
        %v9036 = vpack.c.b16 %v9011, %v9010
        %v9037 = vpack.c.b16 %v9013, %v9012
        %v9038 = vpack.c.b16 %v9015, %v9014
        %v9039 = vpack.c.b16 %v9017, %v9016
        %v9040 = vpack.c.b16 %v9019, %v9018
        %v9041 = vpack.c.b16 %v9021, %v9020
        %v9042 = vpack.c.b16 %v9023, %v9022
        %v9043 = vpack.c.b16 %v9025, %v9024
        %v9044 = vpack.c.b16 %v9027, %v9026
        %v9045 = vpack.c.b16 %v9029, %v9028
        %v9078 = vunpack.c.l.b16 %v8966
        %v9079 = vunpack.c.l.b16 %v8967
        %v9080 = vunpack.c.l.b16 %v8968
        %v9081 = vunpack.c.l.b16 %v8969
        %v9082 = vunpack.c.l.b16 %v8970
        %v9083 = vunpack.c.l.b16 %v8971
        %v9084 = vunpack.c.l.b16 %v8972
        %v9085 = vunpack.c.l.b16 %v8973
        %v9086 = vunpack.c.l.b16 %v8974
        %v9087 = vunpack.c.l.b16 %v8975
        %v9088 = vunpack.c.l.b16 %v8976
        %v9089 = vunpack.c.l.b16 %v8977
        %v9090 = vunpack.c.l.b16 %v8978
        %v9091 = vunpack.c.l.b16 %v8979
        %v9092 = vunpack.c.l.b16 %v8980
        %v9093 = vunpack.c.l.b16 %v8981
        %v9094 = vpack.c.b16 %v9079, %v9078
        %v9095 = vpack.c.b16 %v9081, %v9080
        %v9096 = vpack.c.b16 %v9083, %v9082
        %v9097 = vpack.c.b16 %v9085, %v9084
        %v9098 = vpack.c.b16 %v9087, %v9086
        %v9099 = vpack.c.b16 %v9089, %v9088
        %v9100 = vpack.c.b16 %v9091, %v9090
        %v9101 = vpack.c.b16 %v9093, %v9092
        %9110 = vmatprep.subr.bf16.mxu0 0
        %9111 = vmatpush1.bf16.msra.mxu0 %v9094
        %9112 = vmatprep.subr.bf16.mxu0 0
        %9113 = vmatpush1.bf16.msra.mxu0 %v9095
        %9114 = vmatprep.subr.bf16.mxu0 0
        %9115 = vmatpush1.bf16.msra.mxu0 %v9096
        %9116 = vmatprep.subr.bf16.mxu0 0
        %9117 = vmatpush1.bf16.msra.mxu0 %v9097
        %9118 = vmatprep.subr.bf16.mxu0 0
        %9119 = vmatpush1.bf16.msra.mxu0 %v9098
        %9120 = vmatprep.subr.bf16.mxu0 0
        %9121 = vmatpush1.bf16.msra.mxu0 %v9099
        %9122 = vmatprep.subr.bf16.mxu0 0
        %9123 = vmatpush1.bf16.msra.mxu0 %v9100
        %9124 = vmatprep.subr.bf16.mxu0 0
        %9125 = vmatpush1.bf16.msra.mxu0 %v9101
        %9126 = vmatprep.subr.bf16.mxu0 0
        %9127 = vmatpush1.bf16.msra.mxu0 0
        %9128 = vmatprep.subr.bf16.mxu0 0
        %9129 = vmatpush1.bf16.msra.mxu0 0
        %9130 = vmatprep.subr.bf16.mxu0 0
        %9131 = vmatpush1.bf16.msra.mxu0 0
        %9132 = vmatprep.subr.bf16.mxu0 0
        %9133 = vmatpush1.bf16.msra.mxu0 0
        %9134 = vmatprep.subr.bf16.mxu0 0
        %9135 = vmatpush1.bf16.msra.mxu0 0
        %9136 = vmatprep.subr.bf16.mxu0 0
        %9137 = vmatpush1.bf16.msra.mxu0 0
        %9138 = vmatprep.subr.bf16.mxu0 0
        %9139 = vmatpush1.bf16.msra.mxu0 0
        %9140 = vmatprep.subr.bf16.mxu0 0
        %9141 = vmatpush1.bf16.msra.mxu0 0
        %9142 = vmatprep.mubr.bf16.mxu0 0
        %9143 = vmatmul.mubr.bf16.gmra.mrb[0].mxu0 %v9030
        %v9144 = vpop.f32.mrb[0].mxu0
        %v9145 = vadd.f32 0.0, %v9144
        %v9146 = vpop.f32.mrb[0].mxu0
        %v9147 = vpop.f32.mrb[0].mxu0
        %v9148 = vadd.f32 0.0, %v9147
        %v9149 = vpop.f32.mrb[0].mxu0
        %9150 = vmatprep.mubr.bf16.mxu0 0
        %9151 = vmatmul.mubr.bf16.gmra.mrb[0].mxu0 %v9031
        %v9152 = vpop.f32.mrb[0].mxu0
        %v9153 = vadd.f32 0.0, %v9152
        %v9154 = vpop.f32.mrb[0].mxu0
        %v9155 = vpop.f32.mrb[0].mxu0
        %v9156 = vadd.f32 0.0, %v9155
        %v9157 = vpop.f32.mrb[0].mxu0
        %9158 = vmatprep.mubr.bf16.mxu0 0
        %9159 = vmatmul.mubr.bf16.gmra.mrb[0].mxu0 %v9032
        %v9160 = vpop.f32.mrb[0].mxu0
        %v9161 = vadd.f32 0.0, %v9160
        %v9162 = vpop.f32.mrb[0].mxu0
        %v9163 = vpop.f32.mrb[0].mxu0
        %v9164 = vadd.f32 0.0, %v9163
        %v9165 = vpop.f32.mrb[0].mxu0
        %9166 = vmatprep.mubr.bf16.mxu0 0
        %9167 = vmatmul.mubr.bf16.gmra.mrb[0].mxu0 %v9033
        %v9168 = vpop.f32.mrb[0].mxu0
        %v9169 = vadd.f32 0.0, %v9168
        %v9170 = vpop.f32.mrb[0].mxu0
        %v9171 = vpop.f32.mrb[0].mxu0
        %v9172 = vadd.f32 0.0, %v9171
        %v9173 = vpop.f32.mrb[0].mxu0
        %9174 = vmatprep.mubr.bf16.mxu0 0
        %9175 = vmatmul.mubr.bf16.gmra.mrb[0].mxu0 %v9034
        %v9176 = vpop.f32.mrb[0].mxu0
        %v9177 = vadd.f32 0.0, %v9176
        %v9178 = vpop.f32.mrb[0].mxu0
        %v9179 = vpop.f32.mrb[0].mxu0
        %v9180 = vadd.f32 0.0, %v9179
        %v9181 = vpop.f32.mrb[0].mxu0
        %9182 = vmatprep.mubr.bf16.mxu0 0
        %9183 = vmatmul.mubr.bf16.gmra.mrb[0].mxu0 %v9035
        %v9184 = vpop.f32.mrb[0].mxu0
        %v9185 = vadd.f32 0.0, %v9184
        %v9186 = vpop.f32.mrb[0].mxu0
        %v9187 = vpop.f32.mrb[0].mxu0
        %v9188 = vadd.f32 0.0, %v9187
        %v9189 = vpop.f32.mrb[0].mxu0
        %9190 = vmatprep.mubr.bf16.mxu0 0
        %9191 = vmatmul.mubr.bf16.gmra.mrb[0].mxu0 %v9036
        %v9192 = vpop.f32.mrb[0].mxu0
        %v9193 = vadd.f32 0.0, %v9192
        %v9194 = vpop.f32.mrb[0].mxu0
        %v9195 = vpop.f32.mrb[0].mxu0
        %v9196 = vadd.f32 0.0, %v9195
        %v9197 = vpop.f32.mrb[0].mxu0
        %9198 = vmatprep.mubr.bf16.mxu0 0
        %9199 = vmatmul.mubr.bf16.gmra.mrb[0].mxu0 %v9037
        %v9200 = vpop.f32.mrb[0].mxu0
        %v9201 = vadd.f32 0.0, %v9200
        %v9202 = vpop.f32.mrb[0].mxu0
        %v9203 = vpop.f32.mrb[0].mxu0
        %v9204 = vadd.f32 0.0, %v9203
        %v9205 = vpop.f32.mrb[0].mxu0
        %9206 = vmatprep.mubr.bf16.mxu0 0
        %9207 = vmatmul.mubr.bf16.gmra.mrb[0].mxu0 %v9038
        %v9208 = vpop.f32.mrb[0].mxu0
        %v9209 = vadd.f32 0.0, %v9208
        %v9210 = vpop.f32.mrb[0].mxu0
        %v9211 = vpop.f32.mrb[0].mxu0
        %v9212 = vadd.f32 0.0, %v9211
        %v9213 = vpop.f32.mrb[0].mxu0
        %9214 = vmatprep.mubr.bf16.mxu0 0
        %9215 = vmatmul.mubr.bf16.gmra.mrb[0].mxu0 %v9039
        %v9216 = vpop.f32.mrb[0].mxu0
        %v9217 = vadd.f32 0.0, %v9216
        %v9218 = vpop.f32.mrb[0].mxu0
        %v9219 = vpop.f32.mrb[0].mxu0
        %v9220 = vadd.f32 0.0, %v9219
        %v9221 = vpop.f32.mrb[0].mxu0
        %9222 = vmatprep.mubr.bf16.mxu0 0
        %9223 = vmatmul.mubr.bf16.gmra.mrb[0].mxu0 %v9040
        %v9224 = vpop.f32.mrb[0].mxu0
        %v9225 = vadd.f32 0.0, %v9224
        %v9226 = vpop.f32.mrb[0].mxu0
        %v9227 = vpop.f32.mrb[0].mxu0
        %v9228 = vadd.f32 0.0, %v9227
        %v9229 = vpop.f32.mrb[0].mxu0
        %9230 = vmatprep.mubr.bf16.mxu0 0
        %9231 = vmatmul.mubr.bf16.gmra.mrb[0].mxu0 %v9041
        %v9232 = vpop.f32.mrb[0].mxu0
        %v9233 = vadd.f32 0.0, %v9232
        %v9234 = vpop.f32.mrb[0].mxu0
        %v9235 = vpop.f32.mrb[0].mxu0
        %v9236 = vadd.f32 0.0, %v9235
        %v9237 = vpop.f32.mrb[0].mxu0
        %9238 = vmatprep.mubr.bf16.mxu0 0
        %9239 = vmatmul.mubr.bf16.gmra.mrb[0].mxu0 %v9042
        %v9240 = vpop.f32.mrb[0].mxu0
        %v9241 = vadd.f32 0.0, %v9240
        %v9242 = vpop.f32.mrb[0].mxu0
        %v9243 = vpop.f32.mrb[0].mxu0
        %v9244 = vadd.f32 0.0, %v9243
        %v9245 = vpop.f32.mrb[0].mxu0
        %9246 = vmatprep.mubr.bf16.mxu0 0
        %9247 = vmatmul.mubr.bf16.gmra.mrb[0].mxu0 %v9043
        %v9248 = vpop.f32.mrb[0].mxu0
        %v9249 = vadd.f32 0.0, %v9248
        %v9250 = vpop.f32.mrb[0].mxu0
        %v9251 = vpop.f32.mrb[0].mxu0
        %v9252 = vadd.f32 0.0, %v9251
        %v9253 = vpop.f32.mrb[0].mxu0
        %9254 = vmatprep.mubr.bf16.mxu0 0
        %9255 = vmatmul.mubr.bf16.gmra.mrb[0].mxu0 %v9044
        %v9256 = vpop.f32.mrb[0].mxu0
        %v9257 = vadd.f32 0.0, %v9256
        %v9258 = vpop.f32.mrb[0].mxu0
        %v9259 = vpop.f32.mrb[0].mxu0
        %v9260 = vadd.f32 0.0, %v9259
        %v9261 = vpop.f32.mrb[0].mxu0
        %9262 = vmatprep.mubr.bf16.mxu0 0
        %9263 = vmatmul.mubr.bf16.gmra.mrb[0].mxu0 %v9045
        %v9264 = vpop.f32.mrb[0].mxu0
        %v9265 = vadd.f32 0.0, %v9264
        %v9266 = vpop.f32.mrb[0].mxu0
        %v9267 = vpop.f32.mrb[0].mxu0
        %v9268 = vadd.f32 0.0, %v9267
        %v9269 = vpop.f32.mrb[0].mxu0
        %9270 = vdwg.mxu0
        %v9271 = vadd.f32 %v8934, %v9145
        %v9272 = vadd.f32 %v8935, %v9148
        %v9273 = vadd.f32 %v8936, %v9153
        %v9274 = vadd.f32 %v8937, %v9156
        %v9275 = vadd.f32 %v8938, %v9161
        %v9276 = vadd.f32 %v8939, %v9164
        %v9277 = vadd.f32 %v8940, %v9169
        %v9278 = vadd.f32 %v8941, %v9172
        %v9279 = vadd.f32 %v8942, %v9177
        %v9280 = vadd.f32 %v8943, %v9180
        %v9281 = vadd.f32 %v8944, %v9185
        %v9282 = vadd.f32 %v8945, %v9188
        %v9283 = vadd.f32 %v8946, %v9193
        %v9284 = vadd.f32 %v8947, %v9196
        %v9285 = vadd.f32 %v8948, %v9201
        %v9286 = vadd.f32 %v8949, %v9204
        %v9287 = vadd.f32 %v8950, %v9209
        %v9288 = vadd.f32 %v8951, %v9212
        %v9289 = vadd.f32 %v8952, %v9217
        %v9290 = vadd.f32 %v8953, %v9220
        %v9291 = vadd.f32 %v8954, %v9225
        %v9292 = vadd.f32 %v8955, %v9228
        %v9293 = vadd.f32 %v8956, %v9233
        %v9294 = vadd.f32 %v8957, %v9236
        %v9295 = vadd.f32 %v8958, %v9241
        %v9296 = vadd.f32 %v8959, %v9244
        %v9297 = vadd.f32 %v8960, %v9249
        %v9298 = vadd.f32 %v8961, %v9252
        %v9299 = vadd.f32 %v8962, %v9257
        %v9300 = vadd.f32 %v8963, %v9260
        %v9301 = vadd.f32 %v8964, %v9265
        %v9302 = vadd.f32 %v8965, %v9268
        %v9303 = vld [vmem:[%s12 + $0x100] sm:$0xf]
        %v9304 = vld [vmem:[%s12 + $0x104] sm:$0xf]
        %v9305 = vld [vmem:[%s12 + $0x108] sm:$0xf]
        %v9306 = vld [vmem:[%s12 + $0x10c] sm:$0xf]
        %v9307 = vld [vmem:[%s12 + $0x110] sm:$0xf]
        %v9308 = vld [vmem:[%s12 + $0x114] sm:$0xf]
        %v9309 = vld [vmem:[%s12 + $0x118] sm:$0xf]
        %v9310 = vld [vmem:[%s12 + $0x11c] sm:$0xf]
        %v9311 = vld [vmem:[%s12 + $0x120] sm:$0xf]
        %v9312 = vld [vmem:[%s12 + $0x124] sm:$0xf]
        %v9313 = vld [vmem:[%s12 + $0x128] sm:$0xf]
        %v9314 = vld [vmem:[%s12 + $0x12c] sm:$0xf]
        %v9315 = vld [vmem:[%s12 + $0x130] sm:$0xf]
        %v9316 = vld [vmem:[%s12 + $0x134] sm:$0xf]
        %v9317 = vld [vmem:[%s12 + $0x138] sm:$0xf]
        %v9318 = vld [vmem:[%s12 + $0x13c] sm:$0xf]
        %v9319 = vunpack.c.l.b16 %v6896
        %v9320 = vunpack.c.l.b16 %v6906
        %v9321 = vunpack.c.l.b16 %v6920
        %v9322 = vunpack.c.l.b16 %v6930
        %v9323 = vunpack.c.l.b16 %v6944
        %v9324 = vunpack.c.l.b16 %v6954
        %v9325 = vunpack.c.l.b16 %v6968
        %v9326 = vunpack.c.l.b16 %v6978
        %v9327 = vunpack.c.l.b16 %v6992
        %v9328 = vunpack.c.l.b16 %v7002
        %v9329 = vunpack.c.l.b16 %v7016
        %v9330 = vunpack.c.l.b16 %v7026
        %v9331 = vunpack.c.l.b16 %v7040
        %v9332 = vunpack.c.l.b16 %v7050
        %v9333 = vunpack.c.l.b16 %v7064
        %v9334 = vunpack.c.l.b16 %v7074
        %v9335 = vunpack.c.l.b16 %v7088
        %v9336 = vunpack.c.l.b16 %v7098
        %v9337 = vunpack.c.l.b16 %v7112
        %v9338 = vunpack.c.l.b16 %v7122
        %v9339 = vunpack.c.l.b16 %v7136
        %v9340 = vunpack.c.l.b16 %v7146
        %v9341 = vunpack.c.l.b16 %v7160
        %v9342 = vunpack.c.l.b16 %v7170
        %v9343 = vunpack.c.l.b16 %v7184
        %v9344 = vunpack.c.l.b16 %v7194
        %v9345 = vunpack.c.l.b16 %v7208
        %v9346 = vunpack.c.l.b16 %v7218
        %v9347 = vunpack.c.l.b16 %v7232
        %v9348 = vunpack.c.l.b16 %v7242
        %v9349 = vunpack.c.l.b16 %v7256
        %v9350 = vunpack.c.l.b16 %v7266
        %v9351 = vpack.c.b16 %v9320, %v9319
        %v9352 = vpack.c.b16 %v9322, %v9321
        %v9353 = vpack.c.b16 %v9324, %v9323
        %v9354 = vpack.c.b16 %v9326, %v9325
        %v9355 = vpack.c.b16 %v9328, %v9327
        %v9356 = vpack.c.b16 %v9330, %v9329
        %v9357 = vpack.c.b16 %v9332, %v9331
        %v9358 = vpack.c.b16 %v9334, %v9333
        %v9359 = vpack.c.b16 %v9336, %v9335
        %v9360 = vpack.c.b16 %v9338, %v9337
        %v9361 = vpack.c.b16 %v9340, %v9339
        %v9362 = vpack.c.b16 %v9342, %v9341
        %v9363 = vpack.c.b16 %v9344, %v9343
        %v9364 = vpack.c.b16 %v9346, %v9345
        %v9365 = vpack.c.b16 %v9348, %v9347
        %v9366 = vpack.c.b16 %v9350, %v9349
        %v9399 = vunpack.c.l.b16 %v9303
        %v9400 = vunpack.c.l.b16 %v9304
        %v9401 = vunpack.c.l.b16 %v9305
        %v9402 = vunpack.c.l.b16 %v9306
        %v9403 = vunpack.c.l.b16 %v9307
        %v9404 = vunpack.c.l.b16 %v9308
        %v9405 = vunpack.c.l.b16 %v9309
        %v9406 = vunpack.c.l.b16 %v9310
        %v9407 = vunpack.c.l.b16 %v9311
        %v9408 = vunpack.c.l.b16 %v9312
        %v9409 = vunpack.c.l.b16 %v9313
        %v9410 = vunpack.c.l.b16 %v9314
        %v9411 = vunpack.c.l.b16 %v9315
        %v9412 = vunpack.c.l.b16 %v9316
        %v9413 = vunpack.c.l.b16 %v9317
        %v9414 = vunpack.c.l.b16 %v9318
        %v9415 = vpack.c.b16 %v9400, %v9399
        %v9416 = vpack.c.b16 %v9402, %v9401
        %v9417 = vpack.c.b16 %v9404, %v9403
        %v9418 = vpack.c.b16 %v9406, %v9405
        %v9419 = vpack.c.b16 %v9408, %v9407
        %v9420 = vpack.c.b16 %v9410, %v9409
        %v9421 = vpack.c.b16 %v9412, %v9411
        %v9422 = vpack.c.b16 %v9414, %v9413
        %9431 = vmatprep.subr.bf16.mxu0 0
        %9432 = vmatpush1.bf16.msra.mxu0 %v9415
        %9433 = vmatprep.subr.bf16.mxu0 0
        %9434 = vmatpush1.bf16.msra.mxu0 %v9416
        %9435 = vmatprep.subr.bf16.mxu0 0
        %9436 = vmatpush1.bf16.msra.mxu0 %v9417
        %9437 = vmatprep.subr.bf16.mxu0 0
        %9438 = vmatpush1.bf16.msra.mxu0 %v9418
        %9439 = vmatprep.subr.bf16.mxu0 0
        %9440 = vmatpush1.bf16.msra.mxu0 %v9419
        %9441 = vmatprep.subr.bf16.mxu0 0
        %9442 = vmatpush1.bf16.msra.mxu0 %v9420
        %9443 = vmatprep.subr.bf16.mxu0 0
        %9444 = vmatpush1.bf16.msra.mxu0 %v9421
        %9445 = vmatprep.subr.bf16.mxu0 0
        %9446 = vmatpush1.bf16.msra.mxu0 %v9422
        %9447 = vmatprep.subr.bf16.mxu0 0
        %9448 = vmatpush1.bf16.msra.mxu0 0
        %9449 = vmatprep.subr.bf16.mxu0 0
        %9450 = vmatpush1.bf16.msra.mxu0 0
        %9451 = vmatprep.subr.bf16.mxu0 0
        %9452 = vmatpush1.bf16.msra.mxu0 0
        %9453 = vmatprep.subr.bf16.mxu0 0
        %9454 = vmatpush1.bf16.msra.mxu0 0
        %9455 = vmatprep.subr.bf16.mxu0 0
        %9456 = vmatpush1.bf16.msra.mxu0 0
        %9457 = vmatprep.subr.bf16.mxu0 0
        %9458 = vmatpush1.bf16.msra.mxu0 0
        %9459 = vmatprep.subr.bf16.mxu0 0
        %9460 = vmatpush1.bf16.msra.mxu0 0
        %9461 = vmatprep.subr.bf16.mxu0 0
        %9462 = vmatpush1.bf16.msra.mxu0 0
        %9463 = vmatprep.mubr.bf16.mxu0 0
        %9464 = vmatmul.mubr.bf16.gmra.mrb[0].mxu0 %v9351
        %v9465 = vpop.f32.mrb[0].mxu0
        %v9466 = vadd.f32 0.0, %v9465
        %v9467 = vpop.f32.mrb[0].mxu0
        %v9468 = vpop.f32.mrb[0].mxu0
        %v9469 = vadd.f32 0.0, %v9468
        %v9470 = vpop.f32.mrb[0].mxu0
        %9471 = vmatprep.mubr.bf16.mxu0 0
        %9472 = vmatmul.mubr.bf16.gmra.mrb[0].mxu0 %v9352
        %v9473 = vpop.f32.mrb[0].mxu0
        %v9474 = vadd.f32 0.0, %v9473
        %v9475 = vpop.f32.mrb[0].mxu0
        %v9476 = vpop.f32.mrb[0].mxu0
        %v9477 = vadd.f32 0.0, %v9476
        %v9478 = vpop.f32.mrb[0].mxu0
        %9479 = vmatprep.mubr.bf16.mxu0 0
        %9480 = vmatmul.mubr.bf16.gmra.mrb[0].mxu0 %v9353
        %v9481 = vpop.f32.mrb[0].mxu0
        %v9482 = vadd.f32 0.0, %v9481
        %v9483 = vpop.f32.mrb[0].mxu0
        %v9484 = vpop.f32.mrb[0].mxu0
        %v9485 = vadd.f32 0.0, %v9484
        %v9486 = vpop.f32.mrb[0].mxu0
        %9487 = vmatprep.mubr.bf16.mxu0 0
        %9488 = vmatmul.mubr.bf16.gmra.mrb[0].mxu0 %v9354
        %v9489 = vpop.f32.mrb[0].mxu0
        %v9490 = vadd.f32 0.0, %v9489
        %v9491 = vpop.f32.mrb[0].mxu0
        %v9492 = vpop.f32.mrb[0].mxu0
        %v9493 = vadd.f32 0.0, %v9492
        %v9494 = vpop.f32.mrb[0].mxu0
        %9495 = vmatprep.mubr.bf16.mxu0 0
        %9496 = vmatmul.mubr.bf16.gmra.mrb[0].mxu0 %v9355
        %v9497 = vpop.f32.mrb[0].mxu0
        %v9498 = vadd.f32 0.0, %v9497
        %v9499 = vpop.f32.mrb[0].mxu0
        %v9500 = vpop.f32.mrb[0].mxu0
        %v9501 = vadd.f32 0.0, %v9500
        %v9502 = vpop.f32.mrb[0].mxu0
        %9503 = vmatprep.mubr.bf16.mxu0 0
        %9504 = vmatmul.mubr.bf16.gmra.mrb[0].mxu0 %v9356
        %v9505 = vpop.f32.mrb[0].mxu0
        %v9506 = vadd.f32 0.0, %v9505
        %v9507 = vpop.f32.mrb[0].mxu0
        %v9508 = vpop.f32.mrb[0].mxu0
        %v9509 = vadd.f32 0.0, %v9508
        %v9510 = vpop.f32.mrb[0].mxu0
        %9511 = vmatprep.mubr.bf16.mxu0 0
        %9512 = vmatmul.mubr.bf16.gmra.mrb[0].mxu0 %v9357
        %v9513 = vpop.f32.mrb[0].mxu0
        %v9514 = vadd.f32 0.0, %v9513
        %v9515 = vpop.f32.mrb[0].mxu0
        %v9516 = vpop.f32.mrb[0].mxu0
        %v9517 = vadd.f32 0.0, %v9516
        %v9518 = vpop.f32.mrb[0].mxu0
        %9519 = vmatprep.mubr.bf16.mxu0 0
        %9520 = vmatmul.mubr.bf16.gmra.mrb[0].mxu0 %v9358
        %v9521 = vpop.f32.mrb[0].mxu0
        %v9522 = vadd.f32 0.0, %v9521
        %v9523 = vpop.f32.mrb[0].mxu0
        %v9524 = vpop.f32.mrb[0].mxu0
        %v9525 = vadd.f32 0.0, %v9524
        %v9526 = vpop.f32.mrb[0].mxu0
        %9527 = vmatprep.mubr.bf16.mxu0 0
        %9528 = vmatmul.mubr.bf16.gmra.mrb[0].mxu0 %v9359
        %v9529 = vpop.f32.mrb[0].mxu0
        %v9530 = vadd.f32 0.0, %v9529
        %v9531 = vpop.f32.mrb[0].mxu0
        %v9532 = vpop.f32.mrb[0].mxu0
        %v9533 = vadd.f32 0.0, %v9532
        %v9534 = vpop.f32.mrb[0].mxu0
        %9535 = vmatprep.mubr.bf16.mxu0 0
        %9536 = vmatmul.mubr.bf16.gmra.mrb[0].mxu0 %v9360
        %v9537 = vpop.f32.mrb[0].mxu0
        %v9538 = vadd.f32 0.0, %v9537
        %v9539 = vpop.f32.mrb[0].mxu0
        %v9540 = vpop.f32.mrb[0].mxu0
        %v9541 = vadd.f32 0.0, %v9540
        %v9542 = vpop.f32.mrb[0].mxu0
        %9543 = vmatprep.mubr.bf16.mxu0 0
        %9544 = vmatmul.mubr.bf16.gmra.mrb[0].mxu0 %v9361
        %v9545 = vpop.f32.mrb[0].mxu0
        %v9546 = vadd.f32 0.0, %v9545
        %v9547 = vpop.f32.mrb[0].mxu0
        %v9548 = vpop.f32.mrb[0].mxu0
        %v9549 = vadd.f32 0.0, %v9548
        %v9550 = vpop.f32.mrb[0].mxu0
        %9551 = vmatprep.mubr.bf16.mxu0 0
        %9552 = vmatmul.mubr.bf16.gmra.mrb[0].mxu0 %v9362
        %v9553 = vpop.f32.mrb[0].mxu0
        %v9554 = vadd.f32 0.0, %v9553
        %v9555 = vpop.f32.mrb[0].mxu0
        %v9556 = vpop.f32.mrb[0].mxu0
        %v9557 = vadd.f32 0.0, %v9556
        %v9558 = vpop.f32.mrb[0].mxu0
        %9559 = vmatprep.mubr.bf16.mxu0 0
        %9560 = vmatmul.mubr.bf16.gmra.mrb[0].mxu0 %v9363
        %v9561 = vpop.f32.mrb[0].mxu0
        %v9562 = vadd.f32 0.0, %v9561
        %v9563 = vpop.f32.mrb[0].mxu0
        %v9564 = vpop.f32.mrb[0].mxu0
        %v9565 = vadd.f32 0.0, %v9564
        %v9566 = vpop.f32.mrb[0].mxu0
        %9567 = vmatprep.mubr.bf16.mxu0 0
        %9568 = vmatmul.mubr.bf16.gmra.mrb[0].mxu0 %v9364
        %v9569 = vpop.f32.mrb[0].mxu0
        %v9570 = vadd.f32 0.0, %v9569
        %v9571 = vpop.f32.mrb[0].mxu0
        %v9572 = vpop.f32.mrb[0].mxu0
        %v9573 = vadd.f32 0.0, %v9572
        %v9574 = vpop.f32.mrb[0].mxu0
        %9575 = vmatprep.mubr.bf16.mxu0 0
        %9576 = vmatmul.mubr.bf16.gmra.mrb[0].mxu0 %v9365
        %v9577 = vpop.f32.mrb[0].mxu0
        %v9578 = vadd.f32 0.0, %v9577
        %v9579 = vpop.f32.mrb[0].mxu0
        %v9580 = vpop.f32.mrb[0].mxu0
        %v9581 = vadd.f32 0.0, %v9580
        %v9582 = vpop.f32.mrb[0].mxu0
        %9583 = vmatprep.mubr.bf16.mxu0 0
        %9584 = vmatmul.mubr.bf16.gmra.mrb[0].mxu0 %v9366
        %v9585 = vpop.f32.mrb[0].mxu0
        %v9586 = vadd.f32 0.0, %v9585
        %v9587 = vpop.f32.mrb[0].mxu0
        %v9588 = vpop.f32.mrb[0].mxu0
        %v9589 = vadd.f32 0.0, %v9588
        %v9590 = vpop.f32.mrb[0].mxu0
        %9591 = vdwg.mxu0
        %v9592 = vadd.f32 %v9271, %v9466
        %v9593 = vadd.f32 %v9272, %v9469
        %v9594 = vadd.f32 %v9273, %v9474
        %v9595 = vadd.f32 %v9274, %v9477
        %v9596 = vadd.f32 %v9275, %v9482
        %v9597 = vadd.f32 %v9276, %v9485
        %v9598 = vadd.f32 %v9277, %v9490
        %v9599 = vadd.f32 %v9278, %v9493
        %v9600 = vadd.f32 %v9279, %v9498
        %v9601 = vadd.f32 %v9280, %v9501
        %v9602 = vadd.f32 %v9281, %v9506
        %v9603 = vadd.f32 %v9282, %v9509
        %v9604 = vadd.f32 %v9283, %v9514
        %v9605 = vadd.f32 %v9284, %v9517
        %v9606 = vadd.f32 %v9285, %v9522
        %v9607 = vadd.f32 %v9286, %v9525
        %v9608 = vadd.f32 %v9287, %v9530
        %v9609 = vadd.f32 %v9288, %v9533
        %v9610 = vadd.f32 %v9289, %v9538
        %v9611 = vadd.f32 %v9290, %v9541
        %v9612 = vadd.f32 %v9291, %v9546
        %v9613 = vadd.f32 %v9292, %v9549
        %v9614 = vadd.f32 %v9293, %v9554
        %v9615 = vadd.f32 %v9294, %v9557
        %v9616 = vadd.f32 %v9295, %v9562
        %v9617 = vadd.f32 %v9296, %v9565
        %v9618 = vadd.f32 %v9297, %v9570
        %v9619 = vadd.f32 %v9298, %v9573
        %v9620 = vadd.f32 %v9299, %v9578
        %v9621 = vadd.f32 %v9300, %v9581
        %v9622 = vadd.f32 %v9301, %v9586
        %v9623 = vadd.f32 %v9302, %v9589
        %v9624 = vld [vmem:[%s12 + $0x140] sm:$0xf]
        %v9625 = vld [vmem:[%s12 + $0x144] sm:$0xf]
        %v9626 = vld [vmem:[%s12 + $0x148] sm:$0xf]
        %v9627 = vld [vmem:[%s12 + $0x14c] sm:$0xf]
        %v9628 = vld [vmem:[%s12 + $0x150] sm:$0xf]
        %v9629 = vld [vmem:[%s12 + $0x154] sm:$0xf]
        %v9630 = vld [vmem:[%s12 + $0x158] sm:$0xf]
        %v9631 = vld [vmem:[%s12 + $0x15c] sm:$0xf]
        %v9632 = vld [vmem:[%s12 + $0x160] sm:$0xf]
        %v9633 = vld [vmem:[%s12 + $0x164] sm:$0xf]
        %v9634 = vld [vmem:[%s12 + $0x168] sm:$0xf]
        %v9635 = vld [vmem:[%s12 + $0x16c] sm:$0xf]
        %v9636 = vld [vmem:[%s12 + $0x170] sm:$0xf]
        %v9637 = vld [vmem:[%s12 + $0x174] sm:$0xf]
        %v9638 = vld [vmem:[%s12 + $0x178] sm:$0xf]
        %v9639 = vld [vmem:[%s12 + $0x17c] sm:$0xf]
        %v9640 = vunpack.c.l.b16 %v7334
        %v9641 = vunpack.c.l.b16 %v7337
        %v9642 = vunpack.c.l.b16 %v7341
        %v9643 = vunpack.c.l.b16 %v7344
        %v9644 = vunpack.c.l.b16 %v7348
        %v9645 = vunpack.c.l.b16 %v7351
        %v9646 = vunpack.c.l.b16 %v7355
        %v9647 = vunpack.c.l.b16 %v7358
        %v9648 = vunpack.c.l.b16 %v7362
        %v9649 = vunpack.c.l.b16 %v7365
        %v9650 = vunpack.c.l.b16 %v7369
        %v9651 = vunpack.c.l.b16 %v7372
        %v9652 = vunpack.c.l.b16 %v7376
        %v9653 = vunpack.c.l.b16 %v7379
        %v9654 = vunpack.c.l.b16 %v7383
        %v9655 = vunpack.c.l.b16 %v7386
        %v9656 = vunpack.c.l.b16 %v7390
        %v9657 = vunpack.c.l.b16 %v7393
        %v9658 = vunpack.c.l.b16 %v7397
        %v9659 = vunpack.c.l.b16 %v7400
        %v9660 = vunpack.c.l.b16 %v7404
        %v9661 = vunpack.c.l.b16 %v7407
        %v9662 = vunpack.c.l.b16 %v7411
        %v9663 = vunpack.c.l.b16 %v7414
        %v9664 = vunpack.c.l.b16 %v7418
        %v9665 = vunpack.c.l.b16 %v7421
        %v9666 = vunpack.c.l.b16 %v7425
        %v9667 = vunpack.c.l.b16 %v7428
        %v9668 = vunpack.c.l.b16 %v7432
        %v9669 = vunpack.c.l.b16 %v7435
        %v9670 = vunpack.c.l.b16 %v7439
        %v9671 = vunpack.c.l.b16 %v7442
        %v9672 = vpack.c.b16 %v9641, %v9640
        %v9673 = vpack.c.b16 %v9643, %v9642
        %v9674 = vpack.c.b16 %v9645, %v9644
        %v9675 = vpack.c.b16 %v9647, %v9646
        %v9676 = vpack.c.b16 %v9649, %v9648
        %v9677 = vpack.c.b16 %v9651, %v9650
        %v9678 = vpack.c.b16 %v9653, %v9652
        %v9679 = vpack.c.b16 %v9655, %v9654
        %v9680 = vpack.c.b16 %v9657, %v9656
        %v9681 = vpack.c.b16 %v9659, %v9658
        %v9682 = vpack.c.b16 %v9661, %v9660
        %v9683 = vpack.c.b16 %v9663, %v9662
        %v9684 = vpack.c.b16 %v9665, %v9664
        %v9685 = vpack.c.b16 %v9667, %v9666
        %v9686 = vpack.c.b16 %v9669, %v9668
        %v9687 = vpack.c.b16 %v9671, %v9670
        %v9720 = vunpack.c.l.b16 %v9624
        %v9721 = vunpack.c.l.b16 %v9625
        %v9722 = vunpack.c.l.b16 %v9626
        %v9723 = vunpack.c.l.b16 %v9627
        %v9724 = vunpack.c.l.b16 %v9628
        %v9725 = vunpack.c.l.b16 %v9629
        %v9726 = vunpack.c.l.b16 %v9630
        %v9727 = vunpack.c.l.b16 %v9631
        %v9728 = vunpack.c.l.b16 %v9632
        %v9729 = vunpack.c.l.b16 %v9633
        %v9730 = vunpack.c.l.b16 %v9634
        %v9731 = vunpack.c.l.b16 %v9635
        %v9732 = vunpack.c.l.b16 %v9636
        %v9733 = vunpack.c.l.b16 %v9637
        %v9734 = vunpack.c.l.b16 %v9638
        %v9735 = vunpack.c.l.b16 %v9639
        %v9736 = vpack.c.b16 %v9721, %v9720
        %v9737 = vpack.c.b16 %v9723, %v9722
        %v9738 = vpack.c.b16 %v9725, %v9724
        %v9739 = vpack.c.b16 %v9727, %v9726
        %v9740 = vpack.c.b16 %v9729, %v9728
        %v9741 = vpack.c.b16 %v9731, %v9730
        %v9742 = vpack.c.b16 %v9733, %v9732
        %v9743 = vpack.c.b16 %v9735, %v9734
        %9752 = vmatprep.subr.bf16.mxu0 0
        %9753 = vmatpush1.bf16.msra.mxu0 %v9736
        %9754 = vmatprep.subr.bf16.mxu0 0
        %9755 = vmatpush1.bf16.msra.mxu0 %v9737
        %9756 = vmatprep.subr.bf16.mxu0 0
        %9757 = vmatpush1.bf16.msra.mxu0 %v9738
        %9758 = vmatprep.subr.bf16.mxu0 0
        %9759 = vmatpush1.bf16.msra.mxu0 %v9739
        %9760 = vmatprep.subr.bf16.mxu0 0
        %9761 = vmatpush1.bf16.msra.mxu0 %v9740
        %9762 = vmatprep.subr.bf16.mxu0 0
        %9763 = vmatpush1.bf16.msra.mxu0 %v9741
        %9764 = vmatprep.subr.bf16.mxu0 0
        %9765 = vmatpush1.bf16.msra.mxu0 %v9742
        %9766 = vmatprep.subr.bf16.mxu0 0
        %9767 = vmatpush1.bf16.msra.mxu0 %v9743
        %9768 = vmatprep.subr.bf16.mxu0 0
        %9769 = vmatpush1.bf16.msra.mxu0 0
        %9770 = vmatprep.subr.bf16.mxu0 0
        %9771 = vmatpush1.bf16.msra.mxu0 0
        %9772 = vmatprep.subr.bf16.mxu0 0
        %9773 = vmatpush1.bf16.msra.mxu0 0
        %9774 = vmatprep.subr.bf16.mxu0 0
        %9775 = vmatpush1.bf16.msra.mxu0 0
        %9776 = vmatprep.subr.bf16.mxu0 0
        %9777 = vmatpush1.bf16.msra.mxu0 0
        %9778 = vmatprep.subr.bf16.mxu0 0
        %9779 = vmatpush1.bf16.msra.mxu0 0
        %9780 = vmatprep.subr.bf16.mxu0 0
        %9781 = vmatpush1.bf16.msra.mxu0 0
        %9782 = vmatprep.subr.bf16.mxu0 0
        %9783 = vmatpush1.bf16.msra.mxu0 0
        %9784 = vmatprep.mubr.bf16.mxu0 0
        %9785 = vmatmul.mubr.bf16.gmra.mrb[0].mxu0 %v9672
        %v9786 = vpop.f32.mrb[0].mxu0
        %v9787 = vadd.f32 0.0, %v9786
        %v9788 = vpop.f32.mrb[0].mxu0
        %v9789 = vpop.f32.mrb[0].mxu0
        %v9790 = vadd.f32 0.0, %v9789
        %v9791 = vpop.f32.mrb[0].mxu0
        %9792 = vmatprep.mubr.bf16.mxu0 0
        %9793 = vmatmul.mubr.bf16.gmra.mrb[0].mxu0 %v9673
        %v9794 = vpop.f32.mrb[0].mxu0
        %v9795 = vadd.f32 0.0, %v9794
        %v9796 = vpop.f32.mrb[0].mxu0
        %v9797 = vpop.f32.mrb[0].mxu0
        %v9798 = vadd.f32 0.0, %v9797
        %v9799 = vpop.f32.mrb[0].mxu0
        %9800 = vmatprep.mubr.bf16.mxu0 0
        %9801 = vmatmul.mubr.bf16.gmra.mrb[0].mxu0 %v9674
        %v9802 = vpop.f32.mrb[0].mxu0
        %v9803 = vadd.f32 0.0, %v9802
        %v9804 = vpop.f32.mrb[0].mxu0
        %v9805 = vpop.f32.mrb[0].mxu0
        %v9806 = vadd.f32 0.0, %v9805
        %v9807 = vpop.f32.mrb[0].mxu0
        %9808 = vmatprep.mubr.bf16.mxu0 0
        %9809 = vmatmul.mubr.bf16.gmra.mrb[0].mxu0 %v9675
        %v9810 = vpop.f32.mrb[0].mxu0
        %v9811 = vadd.f32 0.0, %v9810
        %v9812 = vpop.f32.mrb[0].mxu0
        %v9813 = vpop.f32.mrb[0].mxu0
        %v9814 = vadd.f32 0.0, %v9813
        %v9815 = vpop.f32.mrb[0].mxu0
        %9816 = vmatprep.mubr.bf16.mxu0 0
        %9817 = vmatmul.mubr.bf16.gmra.mrb[0].mxu0 %v9676
        %v9818 = vpop.f32.mrb[0].mxu0
        %v9819 = vadd.f32 0.0, %v9818
        %v9820 = vpop.f32.mrb[0].mxu0
        %v9821 = vpop.f32.mrb[0].mxu0
        %v9822 = vadd.f32 0.0, %v9821
        %v9823 = vpop.f32.mrb[0].mxu0
        %9824 = vmatprep.mubr.bf16.mxu0 0
        %9825 = vmatmul.mubr.bf16.gmra.mrb[0].mxu0 %v9677
        %v9826 = vpop.f32.mrb[0].mxu0
        %v9827 = vadd.f32 0.0, %v9826
        %v9828 = vpop.f32.mrb[0].mxu0
        %v9829 = vpop.f32.mrb[0].mxu0
        %v9830 = vadd.f32 0.0, %v9829
        %v9831 = vpop.f32.mrb[0].mxu0
        %9832 = vmatprep.mubr.bf16.mxu0 0
        %9833 = vmatmul.mubr.bf16.gmra.mrb[0].mxu0 %v9678
        %v9834 = vpop.f32.mrb[0].mxu0
        %v9835 = vadd.f32 0.0, %v9834
        %v9836 = vpop.f32.mrb[0].mxu0
        %v9837 = vpop.f32.mrb[0].mxu0
        %v9838 = vadd.f32 0.0, %v9837
        %v9839 = vpop.f32.mrb[0].mxu0
        %9840 = vmatprep.mubr.bf16.mxu0 0
        %9841 = vmatmul.mubr.bf16.gmra.mrb[0].mxu0 %v9679
        %v9842 = vpop.f32.mrb[0].mxu0
        %v9843 = vadd.f32 0.0, %v9842
        %v9844 = vpop.f32.mrb[0].mxu0
        %v9845 = vpop.f32.mrb[0].mxu0
        %v9846 = vadd.f32 0.0, %v9845
        %v9847 = vpop.f32.mrb[0].mxu0
        %9848 = vmatprep.mubr.bf16.mxu0 0
        %9849 = vmatmul.mubr.bf16.gmra.mrb[0].mxu0 %v9680
        %v9850 = vpop.f32.mrb[0].mxu0
        %v9851 = vadd.f32 0.0, %v9850
        %v9852 = vpop.f32.mrb[0].mxu0
        %v9853 = vpop.f32.mrb[0].mxu0
        %v9854 = vadd.f32 0.0, %v9853
        %v9855 = vpop.f32.mrb[0].mxu0
        %9856 = vmatprep.mubr.bf16.mxu0 0
        %9857 = vmatmul.mubr.bf16.gmra.mrb[0].mxu0 %v9681
        %v9858 = vpop.f32.mrb[0].mxu0
        %v9859 = vadd.f32 0.0, %v9858
        %v9860 = vpop.f32.mrb[0].mxu0
        %v9861 = vpop.f32.mrb[0].mxu0
        %v9862 = vadd.f32 0.0, %v9861
        %v9863 = vpop.f32.mrb[0].mxu0
        %9864 = vmatprep.mubr.bf16.mxu0 0
        %9865 = vmatmul.mubr.bf16.gmra.mrb[0].mxu0 %v9682
        %v9866 = vpop.f32.mrb[0].mxu0
        %v9867 = vadd.f32 0.0, %v9866
        %v9868 = vpop.f32.mrb[0].mxu0
        %v9869 = vpop.f32.mrb[0].mxu0
        %v9870 = vadd.f32 0.0, %v9869
        %v9871 = vpop.f32.mrb[0].mxu0
        %9872 = vmatprep.mubr.bf16.mxu0 0
        %9873 = vmatmul.mubr.bf16.gmra.mrb[0].mxu0 %v9683
        %v9874 = vpop.f32.mrb[0].mxu0
        %v9875 = vadd.f32 0.0, %v9874
        %v9876 = vpop.f32.mrb[0].mxu0
        %v9877 = vpop.f32.mrb[0].mxu0
        %v9878 = vadd.f32 0.0, %v9877
        %v9879 = vpop.f32.mrb[0].mxu0
        %9880 = vmatprep.mubr.bf16.mxu0 0
        %9881 = vmatmul.mubr.bf16.gmra.mrb[0].mxu0 %v9684
        %v9882 = vpop.f32.mrb[0].mxu0
        %v9883 = vadd.f32 0.0, %v9882
        %v9884 = vpop.f32.mrb[0].mxu0
        %v9885 = vpop.f32.mrb[0].mxu0
        %v9886 = vadd.f32 0.0, %v9885
        %v9887 = vpop.f32.mrb[0].mxu0
        %9888 = vmatprep.mubr.bf16.mxu0 0
        %9889 = vmatmul.mubr.bf16.gmra.mrb[0].mxu0 %v9685
        %v9890 = vpop.f32.mrb[0].mxu0
        %v9891 = vadd.f32 0.0, %v9890
        %v9892 = vpop.f32.mrb[0].mxu0
        %v9893 = vpop.f32.mrb[0].mxu0
        %v9894 = vadd.f32 0.0, %v9893
        %v9895 = vpop.f32.mrb[0].mxu0
        %9896 = vmatprep.mubr.bf16.mxu0 0
        %9897 = vmatmul.mubr.bf16.gmra.mrb[0].mxu0 %v9686
        %v9898 = vpop.f32.mrb[0].mxu0
        %v9899 = vadd.f32 0.0, %v9898
        %v9900 = vpop.f32.mrb[0].mxu0
        %v9901 = vpop.f32.mrb[0].mxu0
        %v9902 = vadd.f32 0.0, %v9901
        %v9903 = vpop.f32.mrb[0].mxu0
        %9904 = vmatprep.mubr.bf16.mxu0 0
        %9905 = vmatmul.mubr.bf16.gmra.mrb[0].mxu0 %v9687
        %v9906 = vpop.f32.mrb[0].mxu0
        %v9907 = vadd.f32 0.0, %v9906
        %v9908 = vpop.f32.mrb[0].mxu0
        %v9909 = vpop.f32.mrb[0].mxu0
        %v9910 = vadd.f32 0.0, %v9909
        %v9911 = vpop.f32.mrb[0].mxu0
        %9912 = vdwg.mxu0
        %v9913 = vadd.f32 %v9592, %v9787
        %v9914 = vadd.f32 %v9593, %v9790
        %v9915 = vadd.f32 %v9594, %v9795
        %v9916 = vadd.f32 %v9595, %v9798
        %v9917 = vadd.f32 %v9596, %v9803
        %v9918 = vadd.f32 %v9597, %v9806
        %v9919 = vadd.f32 %v9598, %v9811
        %v9920 = vadd.f32 %v9599, %v9814
        %v9921 = vadd.f32 %v9600, %v9819
        %v9922 = vadd.f32 %v9601, %v9822
        %v9923 = vadd.f32 %v9602, %v9827
        %v9924 = vadd.f32 %v9603, %v9830
        %v9925 = vadd.f32 %v9604, %v9835
        %v9926 = vadd.f32 %v9605, %v9838
        %v9927 = vadd.f32 %v9606, %v9843
        %v9928 = vadd.f32 %v9607, %v9846
        %v9929 = vadd.f32 %v9608, %v9851
        %v9930 = vadd.f32 %v9609, %v9854
        %v9931 = vadd.f32 %v9610, %v9859
        %v9932 = vadd.f32 %v9611, %v9862
        %v9933 = vadd.f32 %v9612, %v9867
        %v9934 = vadd.f32 %v9613, %v9870
        %v9935 = vadd.f32 %v9614, %v9875
        %v9936 = vadd.f32 %v9615, %v9878
        %v9937 = vadd.f32 %v9616, %v9883
        %v9938 = vadd.f32 %v9617, %v9886
        %v9939 = vadd.f32 %v9618, %v9891
        %v9940 = vadd.f32 %v9619, %v9894
        %v9941 = vadd.f32 %v9620, %v9899
        %v9942 = vadd.f32 %v9621, %v9902
        %v9943 = vadd.f32 %v9622, %v9907
        %v9944 = vadd.f32 %v9623, %v9910
        %v9945 = vld [vmem:[%s12 + $0x180] sm:$0xf]
        %v9946 = vld [vmem:[%s12 + $0x184] sm:$0xf]
        %v9947 = vld [vmem:[%s12 + $0x188] sm:$0xf]
        %v9948 = vld [vmem:[%s12 + $0x18c] sm:$0xf]
        %v9949 = vld [vmem:[%s12 + $0x190] sm:$0xf]
        %v9950 = vld [vmem:[%s12 + $0x194] sm:$0xf]
        %v9951 = vld [vmem:[%s12 + $0x198] sm:$0xf]
        %v9952 = vld [vmem:[%s12 + $0x19c] sm:$0xf]
        %v9953 = vld [vmem:[%s12 + $0x1a0] sm:$0xf]
        %v9954 = vld [vmem:[%s12 + $0x1a4] sm:$0xf]
        %v9955 = vld [vmem:[%s12 + $0x1a8] sm:$0xf]
        %v9956 = vld [vmem:[%s12 + $0x1ac] sm:$0xf]
        %v9957 = vld [vmem:[%s12 + $0x1b0] sm:$0xf]
        %v9958 = vld [vmem:[%s12 + $0x1b4] sm:$0xf]
        %v9959 = vld [vmem:[%s12 + $0x1b8] sm:$0xf]
        %v9960 = vld [vmem:[%s12 + $0x1bc] sm:$0xf]
        %v9977 = vunpack.c.l.b16 %v7443
        %v9978 = vunpack.c.l.b16 %v7444
        %v9979 = vunpack.c.l.b16 %v7445
        %v9980 = vunpack.c.l.b16 %v7446
        %v9981 = vunpack.c.l.b16 %v7447
        %v9982 = vunpack.c.l.b16 %v7448
        %v9983 = vunpack.c.l.b16 %v7449
        %v9984 = vunpack.c.l.b16 %v7450
        %v9985 = vunpack.c.l.b16 %v7451
        %v9986 = vunpack.c.l.b16 %v7452
        %v9987 = vunpack.c.l.b16 %v7453
        %v9988 = vunpack.c.l.b16 %v7454
        %v9989 = vunpack.c.l.b16 %v7455
        %v9990 = vunpack.c.l.b16 %v7456
        %v9991 = vunpack.c.l.b16 %v7457
        %v9992 = vunpack.c.l.b16 %v7458
        %v9993 = vunpack.c.l.b16 %v7459
        %v9994 = vunpack.c.l.b16 %v7460
        %v9995 = vunpack.c.l.b16 %v7461
        %v9996 = vunpack.c.l.b16 %v7462
        %v9997 = vunpack.c.l.b16 %v7463
        %v9998 = vunpack.c.l.b16 %v7464
        %v9999 = vunpack.c.l.b16 %v7465
        %v10000 = vunpack.c.l.b16 %v7466
        %v10001 = vunpack.c.l.b16 %v7467
        %v10002 = vunpack.c.l.b16 %v7468
        %v10003 = vunpack.c.l.b16 %v7469
        %v10004 = vunpack.c.l.b16 %v7470
        %v10005 = vunpack.c.l.b16 %v7471
        %v10006 = vunpack.c.l.b16 %v7472
        %v10007 = vunpack.c.l.b16 %v7473
        %v10008 = vunpack.c.l.b16 %v7474
        %v10009 = vpack.c.b16 %v9978, %v9977
        %v10010 = vpack.c.b16 %v9980, %v9979
        %v10011 = vpack.c.b16 %v9982, %v9981
        %v10012 = vpack.c.b16 %v9984, %v9983
        %v10013 = vpack.c.b16 %v9986, %v9985
        %v10014 = vpack.c.b16 %v9988, %v9987
        %v10015 = vpack.c.b16 %v9990, %v9989
        %v10016 = vpack.c.b16 %v9992, %v9991
        %v10017 = vpack.c.b16 %v9994, %v9993
        %v10018 = vpack.c.b16 %v9996, %v9995
        %v10019 = vpack.c.b16 %v9998, %v9997
        %v10020 = vpack.c.b16 %v10000, %v9999
        %v10021 = vpack.c.b16 %v10002, %v10001
        %v10022 = vpack.c.b16 %v10004, %v10003
        %v10023 = vpack.c.b16 %v10006, %v10005
        %v10024 = vpack.c.b16 %v10008, %v10007
        %v10057 = vunpack.c.l.b16 %v9945
        %v10058 = vunpack.c.l.b16 %v9946
        %v10059 = vunpack.c.l.b16 %v9947
        %v10060 = vunpack.c.l.b16 %v9948
        %v10061 = vunpack.c.l.b16 %v9949
        %v10062 = vunpack.c.l.b16 %v9950
        %v10063 = vunpack.c.l.b16 %v9951
        %v10064 = vunpack.c.l.b16 %v9952
        %v10065 = vunpack.c.l.b16 %v9953
        %v10066 = vunpack.c.l.b16 %v9954
        %v10067 = vunpack.c.l.b16 %v9955
        %v10068 = vunpack.c.l.b16 %v9956
        %v10069 = vunpack.c.l.b16 %v9957
        %v10070 = vunpack.c.l.b16 %v9958
        %v10071 = vunpack.c.l.b16 %v9959
        %v10072 = vunpack.c.l.b16 %v9960
        %v10073 = vpack.c.b16 %v10058, %v10057
        %v10074 = vpack.c.b16 %v10060, %v10059
        %v10075 = vpack.c.b16 %v10062, %v10061
        %v10076 = vpack.c.b16 %v10064, %v10063
        %v10077 = vpack.c.b16 %v10066, %v10065
        %v10078 = vpack.c.b16 %v10068, %v10067
        %v10079 = vpack.c.b16 %v10070, %v10069
        %v10080 = vpack.c.b16 %v10072, %v10071
        %10089 = vmatprep.subr.bf16.mxu0 0
        %10090 = vmatpush1.bf16.msra.mxu0 %v10073
        %10091 = vmatprep.subr.bf16.mxu0 0
        %10092 = vmatpush1.bf16.msra.mxu0 %v10074
        %10093 = vmatprep.subr.bf16.mxu0 0
        %10094 = vmatpush1.bf16.msra.mxu0 %v10075
        %10095 = vmatprep.subr.bf16.mxu0 0
        %10096 = vmatpush1.bf16.msra.mxu0 %v10076
        %10097 = vmatprep.subr.bf16.mxu0 0
        %10098 = vmatpush1.bf16.msra.mxu0 %v10077
        %10099 = vmatprep.subr.bf16.mxu0 0
        %10100 = vmatpush1.bf16.msra.mxu0 %v10078
        %10101 = vmatprep.subr.bf16.mxu0 0
        %10102 = vmatpush1.bf16.msra.mxu0 %v10079
        %10103 = vmatprep.subr.bf16.mxu0 0
        %10104 = vmatpush1.bf16.msra.mxu0 %v10080
        %10105 = vmatprep.subr.bf16.mxu0 0
        %10106 = vmatpush1.bf16.msra.mxu0 0
        %10107 = vmatprep.subr.bf16.mxu0 0
        %10108 = vmatpush1.bf16.msra.mxu0 0
        %10109 = vmatprep.subr.bf16.mxu0 0
        %10110 = vmatpush1.bf16.msra.mxu0 0
        %10111 = vmatprep.subr.bf16.mxu0 0
        %10112 = vmatpush1.bf16.msra.mxu0 0
        %10113 = vmatprep.subr.bf16.mxu0 0
        %10114 = vmatpush1.bf16.msra.mxu0 0
        %10115 = vmatprep.subr.bf16.mxu0 0
        %10116 = vmatpush1.bf16.msra.mxu0 0
        %10117 = vmatprep.subr.bf16.mxu0 0
        %10118 = vmatpush1.bf16.msra.mxu0 0
        %10119 = vmatprep.subr.bf16.mxu0 0
        %10120 = vmatpush1.bf16.msra.mxu0 0
        %10121 = vmatprep.mubr.bf16.mxu0 0
        %10122 = vmatmul.mubr.bf16.gmra.mrb[0].mxu0 %v10009
        %v10123 = vpop.f32.mrb[0].mxu0
        %v10124 = vadd.f32 0.0, %v10123
        %v10125 = vpop.f32.mrb[0].mxu0
        %v10126 = vpop.f32.mrb[0].mxu0
        %v10127 = vadd.f32 0.0, %v10126
        %v10128 = vpop.f32.mrb[0].mxu0
        %10129 = vmatprep.mubr.bf16.mxu0 0
        %10130 = vmatmul.mubr.bf16.gmra.mrb[0].mxu0 %v10010
        %v10131 = vpop.f32.mrb[0].mxu0
        %v10132 = vadd.f32 0.0, %v10131
        %v10133 = vpop.f32.mrb[0].mxu0
        %v10134 = vpop.f32.mrb[0].mxu0
        %v10135 = vadd.f32 0.0, %v10134
        %v10136 = vpop.f32.mrb[0].mxu0
        %10137 = vmatprep.mubr.bf16.mxu0 0
        %10138 = vmatmul.mubr.bf16.gmra.mrb[0].mxu0 %v10011
        %v10139 = vpop.f32.mrb[0].mxu0
        %v10140 = vadd.f32 0.0, %v10139
        %v10141 = vpop.f32.mrb[0].mxu0
        %v10142 = vpop.f32.mrb[0].mxu0
        %v10143 = vadd.f32 0.0, %v10142
        %v10144 = vpop.f32.mrb[0].mxu0
        %10145 = vmatprep.mubr.bf16.mxu0 0
        %10146 = vmatmul.mubr.bf16.gmra.mrb[0].mxu0 %v10012
        %v10147 = vpop.f32.mrb[0].mxu0
        %v10148 = vadd.f32 0.0, %v10147
        %v10149 = vpop.f32.mrb[0].mxu0
        %v10150 = vpop.f32.mrb[0].mxu0
        %v10151 = vadd.f32 0.0, %v10150
        %v10152 = vpop.f32.mrb[0].mxu0
        %10153 = vmatprep.mubr.bf16.mxu0 0
        %10154 = vmatmul.mubr.bf16.gmra.mrb[0].mxu0 %v10013
        %v10155 = vpop.f32.mrb[0].mxu0
        %v10156 = vadd.f32 0.0, %v10155
        %v10157 = vpop.f32.mrb[0].mxu0
        %v10158 = vpop.f32.mrb[0].mxu0
        %v10159 = vadd.f32 0.0, %v10158
        %v10160 = vpop.f32.mrb[0].mxu0
        %10161 = vmatprep.mubr.bf16.mxu0 0
        %10162 = vmatmul.mubr.bf16.gmra.mrb[0].mxu0 %v10014
        %v10163 = vpop.f32.mrb[0].mxu0
        %v10164 = vadd.f32 0.0, %v10163
        %v10165 = vpop.f32.mrb[0].mxu0
        %v10166 = vpop.f32.mrb[0].mxu0
        %v10167 = vadd.f32 0.0, %v10166
        %v10168 = vpop.f32.mrb[0].mxu0
        %10169 = vmatprep.mubr.bf16.mxu0 0
        %10170 = vmatmul.mubr.bf16.gmra.mrb[0].mxu0 %v10015
        %v10171 = vpop.f32.mrb[0].mxu0
        %v10172 = vadd.f32 0.0, %v10171
        %v10173 = vpop.f32.mrb[0].mxu0
        %v10174 = vpop.f32.mrb[0].mxu0
        %v10175 = vadd.f32 0.0, %v10174
        %v10176 = vpop.f32.mrb[0].mxu0
        %10177 = vmatprep.mubr.bf16.mxu0 0
        %10178 = vmatmul.mubr.bf16.gmra.mrb[0].mxu0 %v10016
        %v10179 = vpop.f32.mrb[0].mxu0
        %v10180 = vadd.f32 0.0, %v10179
        %v10181 = vpop.f32.mrb[0].mxu0
        %v10182 = vpop.f32.mrb[0].mxu0
        %v10183 = vadd.f32 0.0, %v10182
        %v10184 = vpop.f32.mrb[0].mxu0
        %10185 = vmatprep.mubr.bf16.mxu0 0
        %10186 = vmatmul.mubr.bf16.gmra.mrb[0].mxu0 %v10017
        %v10187 = vpop.f32.mrb[0].mxu0
        %v10188 = vadd.f32 0.0, %v10187
        %v10189 = vpop.f32.mrb[0].mxu0
        %v10190 = vpop.f32.mrb[0].mxu0
        %v10191 = vadd.f32 0.0, %v10190
        %v10192 = vpop.f32.mrb[0].mxu0
        %10193 = vmatprep.mubr.bf16.mxu0 0
        %10194 = vmatmul.mubr.bf16.gmra.mrb[0].mxu0 %v10018
        %v10195 = vpop.f32.mrb[0].mxu0
        %v10196 = vadd.f32 0.0, %v10195
        %v10197 = vpop.f32.mrb[0].mxu0
        %v10198 = vpop.f32.mrb[0].mxu0
        %v10199 = vadd.f32 0.0, %v10198
        %v10200 = vpop.f32.mrb[0].mxu0
        %10201 = vmatprep.mubr.bf16.mxu0 0
        %10202 = vmatmul.mubr.bf16.gmra.mrb[0].mxu0 %v10019
        %v10203 = vpop.f32.mrb[0].mxu0
        %v10204 = vadd.f32 0.0, %v10203
        %v10205 = vpop.f32.mrb[0].mxu0
        %v10206 = vpop.f32.mrb[0].mxu0
        %v10207 = vadd.f32 0.0, %v10206
        %v10208 = vpop.f32.mrb[0].mxu0
        %10209 = vmatprep.mubr.bf16.mxu0 0
        %10210 = vmatmul.mubr.bf16.gmra.mrb[0].mxu0 %v10020
        %v10211 = vpop.f32.mrb[0].mxu0
        %v10212 = vadd.f32 0.0, %v10211
        %v10213 = vpop.f32.mrb[0].mxu0
        %v10214 = vpop.f32.mrb[0].mxu0
        %v10215 = vadd.f32 0.0, %v10214
        %v10216 = vpop.f32.mrb[0].mxu0
        %10217 = vmatprep.mubr.bf16.mxu0 0
        %10218 = vmatmul.mubr.bf16.gmra.mrb[0].mxu0 %v10021
        %v10219 = vpop.f32.mrb[0].mxu0
        %v10220 = vadd.f32 0.0, %v10219
        %v10221 = vpop.f32.mrb[0].mxu0
        %v10222 = vpop.f32.mrb[0].mxu0
        %v10223 = vadd.f32 0.0, %v10222
        %v10224 = vpop.f32.mrb[0].mxu0
        %10225 = vmatprep.mubr.bf16.mxu0 0
        %10226 = vmatmul.mubr.bf16.gmra.mrb[0].mxu0 %v10022
        %v10227 = vpop.f32.mrb[0].mxu0
        %v10228 = vadd.f32 0.0, %v10227
        %v10229 = vpop.f32.mrb[0].mxu0
        %v10230 = vpop.f32.mrb[0].mxu0
        %v10231 = vadd.f32 0.0, %v10230
        %v10232 = vpop.f32.mrb[0].mxu0
        %10233 = vmatprep.mubr.bf16.mxu0 0
        %10234 = vmatmul.mubr.bf16.gmra.mrb[0].mxu0 %v10023
        %v10235 = vpop.f32.mrb[0].mxu0
        %v10236 = vadd.f32 0.0, %v10235
        %v10237 = vpop.f32.mrb[0].mxu0
        %v10238 = vpop.f32.mrb[0].mxu0
        %v10239 = vadd.f32 0.0, %v10238
        %v10240 = vpop.f32.mrb[0].mxu0
        %10241 = vmatprep.mubr.bf16.mxu0 0
        %10242 = vmatmul.mubr.bf16.gmra.mrb[0].mxu0 %v10024
        %v10243 = vpop.f32.mrb[0].mxu0
        %v10244 = vadd.f32 0.0, %v10243
        %v10245 = vpop.f32.mrb[0].mxu0
        %v10246 = vpop.f32.mrb[0].mxu0
        %v10247 = vadd.f32 0.0, %v10246
        %v10248 = vpop.f32.mrb[0].mxu0
        %10249 = vdwg.mxu0
        %v10250 = vadd.f32 %v9913, %v10124
        %v10251 = vadd.f32 %v9914, %v10127
        %v10252 = vadd.f32 %v9915, %v10132
        %v10253 = vadd.f32 %v9916, %v10135
        %v10254 = vadd.f32 %v9917, %v10140
        %v10255 = vadd.f32 %v9918, %v10143
        %v10256 = vadd.f32 %v9919, %v10148
        %v10257 = vadd.f32 %v9920, %v10151
        %v10258 = vadd.f32 %v9921, %v10156
        %v10259 = vadd.f32 %v9922, %v10159
        %v10260 = vadd.f32 %v9923, %v10164
        %v10261 = vadd.f32 %v9924, %v10167
        %v10262 = vadd.f32 %v9925, %v10172
        %v10263 = vadd.f32 %v9926, %v10175
        %v10264 = vadd.f32 %v9927, %v10180
        %v10265 = vadd.f32 %v9928, %v10183
        %v10266 = vadd.f32 %v9929, %v10188
        %v10267 = vadd.f32 %v9930, %v10191
        %v10268 = vadd.f32 %v9931, %v10196
        %v10269 = vadd.f32 %v9932, %v10199
        %v10270 = vadd.f32 %v9933, %v10204
        %v10271 = vadd.f32 %v9934, %v10207
        %v10272 = vadd.f32 %v9935, %v10212
        %v10273 = vadd.f32 %v9936, %v10215
        %v10274 = vadd.f32 %v9937, %v10220
        %v10275 = vadd.f32 %v9938, %v10223
        %v10276 = vadd.f32 %v9939, %v10228
        %v10277 = vadd.f32 %v9940, %v10231
        %v10278 = vadd.f32 %v9941, %v10236
        %v10279 = vadd.f32 %v9942, %v10239
        %v10280 = vadd.f32 %v9943, %v10244
        %v10281 = vadd.f32 %v9944, %v10247
        %v10282 = vld [vmem:[%s12 + $0x1c0] sm:$0xf]
        %v10283 = vld [vmem:[%s12 + $0x1c4] sm:$0xf]
        %v10284 = vld [vmem:[%s12 + $0x1c8] sm:$0xf]
        %v10285 = vld [vmem:[%s12 + $0x1cc] sm:$0xf]
        %v10286 = vld [vmem:[%s12 + $0x1d0] sm:$0xf]
        %v10287 = vld [vmem:[%s12 + $0x1d4] sm:$0xf]
        %v10288 = vld [vmem:[%s12 + $0x1d8] sm:$0xf]
        %v10289 = vld [vmem:[%s12 + $0x1dc] sm:$0xf]
        %v10290 = vld [vmem:[%s12 + $0x1e0] sm:$0xf]
        %v10291 = vld [vmem:[%s12 + $0x1e4] sm:$0xf]
        %v10292 = vld [vmem:[%s12 + $0x1e8] sm:$0xf]
        %v10293 = vld [vmem:[%s12 + $0x1ec] sm:$0xf]
        %v10294 = vld [vmem:[%s12 + $0x1f0] sm:$0xf]
        %v10295 = vld [vmem:[%s12 + $0x1f4] sm:$0xf]
        %v10296 = vld [vmem:[%s12 + $0x1f8] sm:$0xf]
        %v10297 = vld [vmem:[%s12 + $0x1fc] sm:$0xf]
        %v10298 = vunpack.c.l.b16 %v7504
        %v10299 = vunpack.c.l.b16 %v7514
        %v10300 = vunpack.c.l.b16 %v7528
        %v10301 = vunpack.c.l.b16 %v7538
        %v10302 = vunpack.c.l.b16 %v7552
        %v10303 = vunpack.c.l.b16 %v7562
        %v10304 = vunpack.c.l.b16 %v7576
        %v10305 = vunpack.c.l.b16 %v7586
        %v10306 = vunpack.c.l.b16 %v7600
        %v10307 = vunpack.c.l.b16 %v7610
        %v10308 = vunpack.c.l.b16 %v7624
        %v10309 = vunpack.c.l.b16 %v7634
        %v10310 = vunpack.c.l.b16 %v7648
        %v10311 = vunpack.c.l.b16 %v7658
        %v10312 = vunpack.c.l.b16 %v7672
        %v10313 = vunpack.c.l.b16 %v7682
        %v10314 = vunpack.c.l.b16 %v7696
        %v10315 = vunpack.c.l.b16 %v7706
        %v10316 = vunpack.c.l.b16 %v7720
        %v10317 = vunpack.c.l.b16 %v7730
        %v10318 = vunpack.c.l.b16 %v7744
        %v10319 = vunpack.c.l.b16 %v7754
        %v10320 = vunpack.c.l.b16 %v7768
        %v10321 = vunpack.c.l.b16 %v7778
        %v10322 = vunpack.c.l.b16 %v7792
        %v10323 = vunpack.c.l.b16 %v7802
        %v10324 = vunpack.c.l.b16 %v7816
        %v10325 = vunpack.c.l.b16 %v7826
        %v10326 = vunpack.c.l.b16 %v7840
        %v10327 = vunpack.c.l.b16 %v7850
        %v10328 = vunpack.c.l.b16 %v7864
        %v10329 = vunpack.c.l.b16 %v7874
        %v10330 = vpack.c.b16 %v10299, %v10298
        %v10331 = vpack.c.b16 %v10301, %v10300
        %v10332 = vpack.c.b16 %v10303, %v10302
        %v10333 = vpack.c.b16 %v10305, %v10304
        %v10334 = vpack.c.b16 %v10307, %v10306
        %v10335 = vpack.c.b16 %v10309, %v10308
        %v10336 = vpack.c.b16 %v10311, %v10310
        %v10337 = vpack.c.b16 %v10313, %v10312
        %v10338 = vpack.c.b16 %v10315, %v10314
        %v10339 = vpack.c.b16 %v10317, %v10316
        %v10340 = vpack.c.b16 %v10319, %v10318
        %v10341 = vpack.c.b16 %v10321, %v10320
        %v10342 = vpack.c.b16 %v10323, %v10322
        %v10343 = vpack.c.b16 %v10325, %v10324
        %v10344 = vpack.c.b16 %v10327, %v10326
        %v10345 = vpack.c.b16 %v10329, %v10328
        %v10378 = vunpack.c.l.b16 %v10282
        %v10379 = vunpack.c.l.b16 %v10283
        %v10380 = vunpack.c.l.b16 %v10284
        %v10381 = vunpack.c.l.b16 %v10285
        %v10382 = vunpack.c.l.b16 %v10286
        %v10383 = vunpack.c.l.b16 %v10287
        %v10384 = vunpack.c.l.b16 %v10288
        %v10385 = vunpack.c.l.b16 %v10289
        %v10386 = vunpack.c.l.b16 %v10290
        %v10387 = vunpack.c.l.b16 %v10291
        %v10388 = vunpack.c.l.b16 %v10292
        %v10389 = vunpack.c.l.b16 %v10293
        %v10390 = vunpack.c.l.b16 %v10294
        %v10391 = vunpack.c.l.b16 %v10295
        %v10392 = vunpack.c.l.b16 %v10296
        %v10393 = vunpack.c.l.b16 %v10297
        %v10394 = vpack.c.b16 %v10379, %v10378
        %v10395 = vpack.c.b16 %v10381, %v10380
        %v10396 = vpack.c.b16 %v10383, %v10382
        %v10397 = vpack.c.b16 %v10385, %v10384
        %v10398 = vpack.c.b16 %v10387, %v10386
        %v10399 = vpack.c.b16 %v10389, %v10388
        %v10400 = vpack.c.b16 %v10391, %v10390
        %v10401 = vpack.c.b16 %v10393, %v10392
        %10410 = vmatprep.subr.bf16.mxu0 0
        %10411 = vmatpush1.bf16.msra.mxu0 %v10394
        %10412 = vmatprep.subr.bf16.mxu0 0
        %10413 = vmatpush1.bf16.msra.mxu0 %v10395
        %10414 = vmatprep.subr.bf16.mxu0 0
        %10415 = vmatpush1.bf16.msra.mxu0 %v10396
        %10416 = vmatprep.subr.bf16.mxu0 0
        %10417 = vmatpush1.bf16.msra.mxu0 %v10397
        %10418 = vmatprep.subr.bf16.mxu0 0
        %10419 = vmatpush1.bf16.msra.mxu0 %v10398
        %10420 = vmatprep.subr.bf16.mxu0 0
        %10421 = vmatpush1.bf16.msra.mxu0 %v10399
        %10422 = vmatprep.subr.bf16.mxu0 0
        %10423 = vmatpush1.bf16.msra.mxu0 %v10400
        %10424 = vmatprep.subr.bf16.mxu0 0
        %10425 = vmatpush1.bf16.msra.mxu0 %v10401
        %10426 = vmatprep.subr.bf16.mxu0 0
        %10427 = vmatpush1.bf16.msra.mxu0 0
        %10428 = vmatprep.subr.bf16.mxu0 0
        %10429 = vmatpush1.bf16.msra.mxu0 0
        %10430 = vmatprep.subr.bf16.mxu0 0
        %10431 = vmatpush1.bf16.msra.mxu0 0
        %10432 = vmatprep.subr.bf16.mxu0 0
        %10433 = vmatpush1.bf16.msra.mxu0 0
        %10434 = vmatprep.subr.bf16.mxu0 0
        %10435 = vmatpush1.bf16.msra.mxu0 0
        %10436 = vmatprep.subr.bf16.mxu0 0
        %10437 = vmatpush1.bf16.msra.mxu0 0
        %10438 = vmatprep.subr.bf16.mxu0 0
        %10439 = vmatpush1.bf16.msra.mxu0 0
        %10440 = vmatprep.subr.bf16.mxu0 0
        %10441 = vmatpush1.bf16.msra.mxu0 0
        %10442 = vmatprep.mubr.bf16.mxu0 0
        %10443 = vmatmul.mubr.bf16.gmra.mrb[0].mxu0 %v10330
        %v10444 = vpop.f32.mrb[0].mxu0
        %v10445 = vadd.f32 0.0, %v10444
        %v10446 = vpop.f32.mrb[0].mxu0
        %v10447 = vpop.f32.mrb[0].mxu0
        %v10448 = vadd.f32 0.0, %v10447
        %v10449 = vpop.f32.mrb[0].mxu0
        %10450 = vmatprep.mubr.bf16.mxu0 0
        %10451 = vmatmul.mubr.bf16.gmra.mrb[0].mxu0 %v10331
        %v10452 = vpop.f32.mrb[0].mxu0
        %v10453 = vadd.f32 0.0, %v10452
        %v10454 = vpop.f32.mrb[0].mxu0
        %v10455 = vpop.f32.mrb[0].mxu0
        %v10456 = vadd.f32 0.0, %v10455
        %v10457 = vpop.f32.mrb[0].mxu0
        %10458 = vmatprep.mubr.bf16.mxu0 0
        %10459 = vmatmul.mubr.bf16.gmra.mrb[0].mxu0 %v10332
        %v10460 = vpop.f32.mrb[0].mxu0
        %v10461 = vadd.f32 0.0, %v10460
        %v10462 = vpop.f32.mrb[0].mxu0
        %v10463 = vpop.f32.mrb[0].mxu0
        %v10464 = vadd.f32 0.0, %v10463
        %v10465 = vpop.f32.mrb[0].mxu0
        %10466 = vmatprep.mubr.bf16.mxu0 0
        %10467 = vmatmul.mubr.bf16.gmra.mrb[0].mxu0 %v10333
        %v10468 = vpop.f32.mrb[0].mxu0
        %v10469 = vadd.f32 0.0, %v10468
        %v10470 = vpop.f32.mrb[0].mxu0
        %v10471 = vpop.f32.mrb[0].mxu0
        %v10472 = vadd.f32 0.0, %v10471
        %v10473 = vpop.f32.mrb[0].mxu0
        %10474 = vmatprep.mubr.bf16.mxu0 0
        %10475 = vmatmul.mubr.bf16.gmra.mrb[0].mxu0 %v10334
        %v10476 = vpop.f32.mrb[0].mxu0
        %v10477 = vadd.f32 0.0, %v10476
        %v10478 = vpop.f32.mrb[0].mxu0
        %v10479 = vpop.f32.mrb[0].mxu0
        %v10480 = vadd.f32 0.0, %v10479
        %v10481 = vpop.f32.mrb[0].mxu0
        %10482 = vmatprep.mubr.bf16.mxu0 0
        %10483 = vmatmul.mubr.bf16.gmra.mrb[0].mxu0 %v10335
        %v10484 = vpop.f32.mrb[0].mxu0
        %v10485 = vadd.f32 0.0, %v10484
        %v10486 = vpop.f32.mrb[0].mxu0
        %v10487 = vpop.f32.mrb[0].mxu0
        %v10488 = vadd.f32 0.0, %v10487
        %v10489 = vpop.f32.mrb[0].mxu0
        %10490 = vmatprep.mubr.bf16.mxu0 0
        %10491 = vmatmul.mubr.bf16.gmra.mrb[0].mxu0 %v10336
        %v10492 = vpop.f32.mrb[0].mxu0
        %v10493 = vadd.f32 0.0, %v10492
        %v10494 = vpop.f32.mrb[0].mxu0
        %v10495 = vpop.f32.mrb[0].mxu0
        %v10496 = vadd.f32 0.0, %v10495
        %v10497 = vpop.f32.mrb[0].mxu0
        %10498 = vmatprep.mubr.bf16.mxu0 0
        %10499 = vmatmul.mubr.bf16.gmra.mrb[0].mxu0 %v10337
        %v10500 = vpop.f32.mrb[0].mxu0
        %v10501 = vadd.f32 0.0, %v10500
        %v10502 = vpop.f32.mrb[0].mxu0
        %v10503 = vpop.f32.mrb[0].mxu0
        %v10504 = vadd.f32 0.0, %v10503
        %v10505 = vpop.f32.mrb[0].mxu0
        %10506 = vmatprep.mubr.bf16.mxu0 0
        %10507 = vmatmul.mubr.bf16.gmra.mrb[0].mxu0 %v10338
        %v10508 = vpop.f32.mrb[0].mxu0
        %v10509 = vadd.f32 0.0, %v10508
        %v10510 = vpop.f32.mrb[0].mxu0
        %v10511 = vpop.f32.mrb[0].mxu0
        %v10512 = vadd.f32 0.0, %v10511
        %v10513 = vpop.f32.mrb[0].mxu0
        %10514 = vmatprep.mubr.bf16.mxu0 0
        %10515 = vmatmul.mubr.bf16.gmra.mrb[0].mxu0 %v10339
        %v10516 = vpop.f32.mrb[0].mxu0
        %v10517 = vadd.f32 0.0, %v10516
        %v10518 = vpop.f32.mrb[0].mxu0
        %v10519 = vpop.f32.mrb[0].mxu0
        %v10520 = vadd.f32 0.0, %v10519
        %v10521 = vpop.f32.mrb[0].mxu0
        %10522 = vmatprep.mubr.bf16.mxu0 0
        %10523 = vmatmul.mubr.bf16.gmra.mrb[0].mxu0 %v10340
        %v10524 = vpop.f32.mrb[0].mxu0
        %v10525 = vadd.f32 0.0, %v10524
        %v10526 = vpop.f32.mrb[0].mxu0
        %v10527 = vpop.f32.mrb[0].mxu0
        %v10528 = vadd.f32 0.0, %v10527
        %v10529 = vpop.f32.mrb[0].mxu0
        %10530 = vmatprep.mubr.bf16.mxu0 0
        %10531 = vmatmul.mubr.bf16.gmra.mrb[0].mxu0 %v10341
        %v10532 = vpop.f32.mrb[0].mxu0
        %v10533 = vadd.f32 0.0, %v10532
        %v10534 = vpop.f32.mrb[0].mxu0
        %v10535 = vpop.f32.mrb[0].mxu0
        %v10536 = vadd.f32 0.0, %v10535
        %v10537 = vpop.f32.mrb[0].mxu0
        %10538 = vmatprep.mubr.bf16.mxu0 0
        %10539 = vmatmul.mubr.bf16.gmra.mrb[0].mxu0 %v10342
        %v10540 = vpop.f32.mrb[0].mxu0
        %v10541 = vadd.f32 0.0, %v10540
        %v10542 = vpop.f32.mrb[0].mxu0
        %v10543 = vpop.f32.mrb[0].mxu0
        %v10544 = vadd.f32 0.0, %v10543
        %v10545 = vpop.f32.mrb[0].mxu0
        %10546 = vmatprep.mubr.bf16.mxu0 0
        %10547 = vmatmul.mubr.bf16.gmra.mrb[0].mxu0 %v10343
        %v10548 = vpop.f32.mrb[0].mxu0
        %v10549 = vadd.f32 0.0, %v10548
        %v10550 = vpop.f32.mrb[0].mxu0
        %v10551 = vpop.f32.mrb[0].mxu0
        %v10552 = vadd.f32 0.0, %v10551
        %v10553 = vpop.f32.mrb[0].mxu0
        %10554 = vmatprep.mubr.bf16.mxu0 0
        %10555 = vmatmul.mubr.bf16.gmra.mrb[0].mxu0 %v10344
        %v10556 = vpop.f32.mrb[0].mxu0
        %v10557 = vadd.f32 0.0, %v10556
        %v10558 = vpop.f32.mrb[0].mxu0
        %v10559 = vpop.f32.mrb[0].mxu0
        %v10560 = vadd.f32 0.0, %v10559
        %v10561 = vpop.f32.mrb[0].mxu0
        %10562 = vmatprep.mubr.bf16.mxu0 0
        %10563 = vmatmul.mubr.bf16.gmra.mrb[0].mxu0 %v10345
        %v10564 = vpop.f32.mrb[0].mxu0
        %v10565 = vadd.f32 0.0, %v10564
        %v10566 = vpop.f32.mrb[0].mxu0
        %v10567 = vpop.f32.mrb[0].mxu0
        %v10568 = vadd.f32 0.0, %v10567
        %v10569 = vpop.f32.mrb[0].mxu0
        %10570 = vdwg.mxu0
        %v10571 = vadd.f32 %v10250, %v10445
        %v10572 = vadd.f32 %v10251, %v10448
        %v10573 = vadd.f32 %v10252, %v10453
        %v10574 = vadd.f32 %v10253, %v10456
        %v10575 = vadd.f32 %v10254, %v10461
        %v10576 = vadd.f32 %v10255, %v10464
        %v10577 = vadd.f32 %v10256, %v10469
        %v10578 = vadd.f32 %v10257, %v10472
        %v10579 = vadd.f32 %v10258, %v10477
        %v10580 = vadd.f32 %v10259, %v10480
        %v10581 = vadd.f32 %v10260, %v10485
        %v10582 = vadd.f32 %v10261, %v10488
        %v10583 = vadd.f32 %v10262, %v10493
        %v10584 = vadd.f32 %v10263, %v10496
        %v10585 = vadd.f32 %v10264, %v10501
        %v10586 = vadd.f32 %v10265, %v10504
        %v10587 = vadd.f32 %v10266, %v10509
        %v10588 = vadd.f32 %v10267, %v10512
        %v10589 = vadd.f32 %v10268, %v10517
        %v10590 = vadd.f32 %v10269, %v10520
        %v10591 = vadd.f32 %v10270, %v10525
        %v10592 = vadd.f32 %v10271, %v10528
        %v10593 = vadd.f32 %v10272, %v10533
        %v10594 = vadd.f32 %v10273, %v10536
        %v10595 = vadd.f32 %v10274, %v10541
        %v10596 = vadd.f32 %v10275, %v10544
        %v10597 = vadd.f32 %v10276, %v10549
        %v10598 = vadd.f32 %v10277, %v10552
        %v10599 = vadd.f32 %v10278, %v10557
        %v10600 = vadd.f32 %v10279, %v10560
        %v10601 = vadd.f32 %v10280, %v10565
        %v10602 = vadd.f32 %v10281, %v10568
        %v10603 = vld [vmem:[%s12 + $0x200] sm:$0xf]
        %v10604 = vld [vmem:[%s12 + $0x204] sm:$0xf]
        %v10605 = vld [vmem:[%s12 + $0x208] sm:$0xf]
        %v10606 = vld [vmem:[%s12 + $0x20c] sm:$0xf]
        %v10607 = vld [vmem:[%s12 + $0x210] sm:$0xf]
        %v10608 = vld [vmem:[%s12 + $0x214] sm:$0xf]
        %v10609 = vld [vmem:[%s12 + $0x218] sm:$0xf]
        %v10610 = vld [vmem:[%s12 + $0x21c] sm:$0xf]
        %v10611 = vld [vmem:[%s12 + $0x220] sm:$0xf]
        %v10612 = vld [vmem:[%s12 + $0x224] sm:$0xf]
        %v10613 = vld [vmem:[%s12 + $0x228] sm:$0xf]
        %v10614 = vld [vmem:[%s12 + $0x22c] sm:$0xf]
        %v10615 = vld [vmem:[%s12 + $0x230] sm:$0xf]
        %v10616 = vld [vmem:[%s12 + $0x234] sm:$0xf]
        %v10617 = vld [vmem:[%s12 + $0x238] sm:$0xf]
        %v10618 = vld [vmem:[%s12 + $0x23c] sm:$0xf]
        %v10619 = vunpack.c.l.b16 %v7942
        %v10620 = vunpack.c.l.b16 %v7945
        %v10621 = vunpack.c.l.b16 %v7949
        %v10622 = vunpack.c.l.b16 %v7952
        %v10623 = vunpack.c.l.b16 %v7956
        %v10624 = vunpack.c.l.b16 %v7959
        %v10625 = vunpack.c.l.b16 %v7963
        %v10626 = vunpack.c.l.b16 %v7966
        %v10627 = vunpack.c.l.b16 %v7970
        %v10628 = vunpack.c.l.b16 %v7973
        %v10629 = vunpack.c.l.b16 %v7977
        %v10630 = vunpack.c.l.b16 %v7980
        %v10631 = vunpack.c.l.b16 %v7984
        %v10632 = vunpack.c.l.b16 %v7987
        %v10633 = vunpack.c.l.b16 %v7991
        %v10634 = vunpack.c.l.b16 %v7994
        %v10635 = vunpack.c.l.b16 %v7998
        %v10636 = vunpack.c.l.b16 %v8001
        %v10637 = vunpack.c.l.b16 %v8005
        %v10638 = vunpack.c.l.b16 %v8008
        %v10639 = vunpack.c.l.b16 %v8012
        %v10640 = vunpack.c.l.b16 %v8015
        %v10641 = vunpack.c.l.b16 %v8019
        %v10642 = vunpack.c.l.b16 %v8022
        %v10643 = vunpack.c.l.b16 %v8026
        %v10644 = vunpack.c.l.b16 %v8029
        %v10645 = vunpack.c.l.b16 %v8033
        %v10646 = vunpack.c.l.b16 %v8036
        %v10647 = vunpack.c.l.b16 %v8040
        %v10648 = vunpack.c.l.b16 %v8043
        %v10649 = vunpack.c.l.b16 %v8047
        %v10650 = vunpack.c.l.b16 %v8050
        %v10651 = vpack.c.b16 %v10620, %v10619
        %v10652 = vpack.c.b16 %v10622, %v10621
        %v10653 = vpack.c.b16 %v10624, %v10623
        %v10654 = vpack.c.b16 %v10626, %v10625
        %v10655 = vpack.c.b16 %v10628, %v10627
        %v10656 = vpack.c.b16 %v10630, %v10629
        %v10657 = vpack.c.b16 %v10632, %v10631
        %v10658 = vpack.c.b16 %v10634, %v10633
        %v10659 = vpack.c.b16 %v10636, %v10635
        %v10660 = vpack.c.b16 %v10638, %v10637
        %v10661 = vpack.c.b16 %v10640, %v10639
        %v10662 = vpack.c.b16 %v10642, %v10641
        %v10663 = vpack.c.b16 %v10644, %v10643
        %v10664 = vpack.c.b16 %v10646, %v10645
        %v10665 = vpack.c.b16 %v10648, %v10647
        %v10666 = vpack.c.b16 %v10650, %v10649
        %v10699 = vunpack.c.l.b16 %v10603
        %v10700 = vunpack.c.l.b16 %v10604
        %v10701 = vunpack.c.l.b16 %v10605
        %v10702 = vunpack.c.l.b16 %v10606
        %v10703 = vunpack.c.l.b16 %v10607
        %v10704 = vunpack.c.l.b16 %v10608
        %v10705 = vunpack.c.l.b16 %v10609
        %v10706 = vunpack.c.l.b16 %v10610
        %v10707 = vunpack.c.l.b16 %v10611
        %v10708 = vunpack.c.l.b16 %v10612
        %v10709 = vunpack.c.l.b16 %v10613
        %v10710 = vunpack.c.l.b16 %v10614
        %v10711 = vunpack.c.l.b16 %v10615
        %v10712 = vunpack.c.l.b16 %v10616
        %v10713 = vunpack.c.l.b16 %v10617
        %v10714 = vunpack.c.l.b16 %v10618
        %v10715 = vpack.c.b16 %v10700, %v10699
        %v10716 = vpack.c.b16 %v10702, %v10701
        %v10717 = vpack.c.b16 %v10704, %v10703
        %v10718 = vpack.c.b16 %v10706, %v10705
        %v10719 = vpack.c.b16 %v10708, %v10707
        %v10720 = vpack.c.b16 %v10710, %v10709
        %v10721 = vpack.c.b16 %v10712, %v10711
        %v10722 = vpack.c.b16 %v10714, %v10713
        %10731 = vmatprep.subr.bf16.mxu0 0
        %10732 = vmatpush1.bf16.msra.mxu0 %v10715
        %10733 = vmatprep.subr.bf16.mxu0 0
        %10734 = vmatpush1.bf16.msra.mxu0 %v10716
        %10735 = vmatprep.subr.bf16.mxu0 0
        %10736 = vmatpush1.bf16.msra.mxu0 %v10717
        %10737 = vmatprep.subr.bf16.mxu0 0
        %10738 = vmatpush1.bf16.msra.mxu0 %v10718
        %10739 = vmatprep.subr.bf16.mxu0 0
        %10740 = vmatpush1.bf16.msra.mxu0 %v10719
        %10741 = vmatprep.subr.bf16.mxu0 0
        %10742 = vmatpush1.bf16.msra.mxu0 %v10720
        %10743 = vmatprep.subr.bf16.mxu0 0
        %10744 = vmatpush1.bf16.msra.mxu0 %v10721
        %10745 = vmatprep.subr.bf16.mxu0 0
        %10746 = vmatpush1.bf16.msra.mxu0 %v10722
        %10747 = vmatprep.subr.bf16.mxu0 0
        %10748 = vmatpush1.bf16.msra.mxu0 0
        %10749 = vmatprep.subr.bf16.mxu0 0
        %10750 = vmatpush1.bf16.msra.mxu0 0
        %10751 = vmatprep.subr.bf16.mxu0 0
        %10752 = vmatpush1.bf16.msra.mxu0 0
        %10753 = vmatprep.subr.bf16.mxu0 0
        %10754 = vmatpush1.bf16.msra.mxu0 0
        %10755 = vmatprep.subr.bf16.mxu0 0
        %10756 = vmatpush1.bf16.msra.mxu0 0
        %10757 = vmatprep.subr.bf16.mxu0 0
        %10758 = vmatpush1.bf16.msra.mxu0 0
        %10759 = vmatprep.subr.bf16.mxu0 0
        %10760 = vmatpush1.bf16.msra.mxu0 0
        %10761 = vmatprep.subr.bf16.mxu0 0
        %10762 = vmatpush1.bf16.msra.mxu0 0
        %10763 = vmatprep.mubr.bf16.mxu0 0
        %10764 = vmatmul.mubr.bf16.gmra.mrb[0].mxu0 %v10651
        %v10765 = vpop.f32.mrb[0].mxu0
        %v10766 = vadd.f32 0.0, %v10765
        %v10767 = vpop.f32.mrb[0].mxu0
        %v10768 = vpop.f32.mrb[0].mxu0
        %v10769 = vadd.f32 0.0, %v10768
        %v10770 = vpop.f32.mrb[0].mxu0
        %10771 = vmatprep.mubr.bf16.mxu0 0
        %10772 = vmatmul.mubr.bf16.gmra.mrb[0].mxu0 %v10652
        %v10773 = vpop.f32.mrb[0].mxu0
        %v10774 = vadd.f32 0.0, %v10773
        %v10775 = vpop.f32.mrb[0].mxu0
        %v10776 = vpop.f32.mrb[0].mxu0
        %v10777 = vadd.f32 0.0, %v10776
        %v10778 = vpop.f32.mrb[0].mxu0
        %10779 = vmatprep.mubr.bf16.mxu0 0
        %10780 = vmatmul.mubr.bf16.gmra.mrb[0].mxu0 %v10653
        %v10781 = vpop.f32.mrb[0].mxu0
        %v10782 = vadd.f32 0.0, %v10781
        %v10783 = vpop.f32.mrb[0].mxu0
        %v10784 = vpop.f32.mrb[0].mxu0
        %v10785 = vadd.f32 0.0, %v10784
        %v10786 = vpop.f32.mrb[0].mxu0
        %10787 = vmatprep.mubr.bf16.mxu0 0
        %10788 = vmatmul.mubr.bf16.gmra.mrb[0].mxu0 %v10654
        %v10789 = vpop.f32.mrb[0].mxu0
        %v10790 = vadd.f32 0.0, %v10789
        %v10791 = vpop.f32.mrb[0].mxu0
        %v10792 = vpop.f32.mrb[0].mxu0
        %v10793 = vadd.f32 0.0, %v10792
        %v10794 = vpop.f32.mrb[0].mxu0
        %10795 = vmatprep.mubr.bf16.mxu0 0
        %10796 = vmatmul.mubr.bf16.gmra.mrb[0].mxu0 %v10655
        %v10797 = vpop.f32.mrb[0].mxu0
        %v10798 = vadd.f32 0.0, %v10797
        %v10799 = vpop.f32.mrb[0].mxu0
        %v10800 = vpop.f32.mrb[0].mxu0
        %v10801 = vadd.f32 0.0, %v10800
        %v10802 = vpop.f32.mrb[0].mxu0
        %10803 = vmatprep.mubr.bf16.mxu0 0
        %10804 = vmatmul.mubr.bf16.gmra.mrb[0].mxu0 %v10656
        %v10805 = vpop.f32.mrb[0].mxu0
        %v10806 = vadd.f32 0.0, %v10805
        %v10807 = vpop.f32.mrb[0].mxu0
        %v10808 = vpop.f32.mrb[0].mxu0
        %v10809 = vadd.f32 0.0, %v10808
        %v10810 = vpop.f32.mrb[0].mxu0
        %10811 = vmatprep.mubr.bf16.mxu0 0
        %10812 = vmatmul.mubr.bf16.gmra.mrb[0].mxu0 %v10657
        %v10813 = vpop.f32.mrb[0].mxu0
        %v10814 = vadd.f32 0.0, %v10813
        %v10815 = vpop.f32.mrb[0].mxu0
        %v10816 = vpop.f32.mrb[0].mxu0
        %v10817 = vadd.f32 0.0, %v10816
        %v10818 = vpop.f32.mrb[0].mxu0
        %10819 = vmatprep.mubr.bf16.mxu0 0
        %10820 = vmatmul.mubr.bf16.gmra.mrb[0].mxu0 %v10658
        %v10821 = vpop.f32.mrb[0].mxu0
        %v10822 = vadd.f32 0.0, %v10821
        %v10823 = vpop.f32.mrb[0].mxu0
        %v10824 = vpop.f32.mrb[0].mxu0
        %v10825 = vadd.f32 0.0, %v10824
        %v10826 = vpop.f32.mrb[0].mxu0
        %10827 = vmatprep.mubr.bf16.mxu0 0
        %10828 = vmatmul.mubr.bf16.gmra.mrb[0].mxu0 %v10659
        %v10829 = vpop.f32.mrb[0].mxu0
        %v10830 = vadd.f32 0.0, %v10829
        %v10831 = vpop.f32.mrb[0].mxu0
        %v10832 = vpop.f32.mrb[0].mxu0
        %v10833 = vadd.f32 0.0, %v10832
        %v10834 = vpop.f32.mrb[0].mxu0
        %10835 = vmatprep.mubr.bf16.mxu0 0
        %10836 = vmatmul.mubr.bf16.gmra.mrb[0].mxu0 %v10660
        %v10837 = vpop.f32.mrb[0].mxu0
        %v10838 = vadd.f32 0.0, %v10837
        %v10839 = vpop.f32.mrb[0].mxu0
        %v10840 = vpop.f32.mrb[0].mxu0
        %v10841 = vadd.f32 0.0, %v10840
        %v10842 = vpop.f32.mrb[0].mxu0
        %10843 = vmatprep.mubr.bf16.mxu0 0
        %10844 = vmatmul.mubr.bf16.gmra.mrb[0].mxu0 %v10661
        %v10845 = vpop.f32.mrb[0].mxu0
        %v10846 = vadd.f32 0.0, %v10845
        %v10847 = vpop.f32.mrb[0].mxu0
        %v10848 = vpop.f32.mrb[0].mxu0
        %v10849 = vadd.f32 0.0, %v10848
        %v10850 = vpop.f32.mrb[0].mxu0
        %10851 = vmatprep.mubr.bf16.mxu0 0
        %10852 = vmatmul.mubr.bf16.gmra.mrb[0].mxu0 %v10662
        %v10853 = vpop.f32.mrb[0].mxu0
        %v10854 = vadd.f32 0.0, %v10853
        %v10855 = vpop.f32.mrb[0].mxu0
        %v10856 = vpop.f32.mrb[0].mxu0
        %v10857 = vadd.f32 0.0, %v10856
        %v10858 = vpop.f32.mrb[0].mxu0
        %10859 = vmatprep.mubr.bf16.mxu0 0
        %10860 = vmatmul.mubr.bf16.gmra.mrb[0].mxu0 %v10663
        %v10861 = vpop.f32.mrb[0].mxu0
        %v10862 = vadd.f32 0.0, %v10861
        %v10863 = vpop.f32.mrb[0].mxu0
        %v10864 = vpop.f32.mrb[0].mxu0
        %v10865 = vadd.f32 0.0, %v10864
        %v10866 = vpop.f32.mrb[0].mxu0
        %10867 = vmatprep.mubr.bf16.mxu0 0
        %10868 = vmatmul.mubr.bf16.gmra.mrb[0].mxu0 %v10664
        %v10869 = vpop.f32.mrb[0].mxu0
        %v10870 = vadd.f32 0.0, %v10869
        %v10871 = vpop.f32.mrb[0].mxu0
        %v10872 = vpop.f32.mrb[0].mxu0
        %v10873 = vadd.f32 0.0, %v10872
        %v10874 = vpop.f32.mrb[0].mxu0
        %10875 = vmatprep.mubr.bf16.mxu0 0
        %10876 = vmatmul.mubr.bf16.gmra.mrb[0].mxu0 %v10665
        %v10877 = vpop.f32.mrb[0].mxu0
        %v10878 = vadd.f32 0.0, %v10877
        %v10879 = vpop.f32.mrb[0].mxu0
        %v10880 = vpop.f32.mrb[0].mxu0
        %v10881 = vadd.f32 0.0, %v10880
        %v10882 = vpop.f32.mrb[0].mxu0
        %10883 = vmatprep.mubr.bf16.mxu0 0
        %10884 = vmatmul.mubr.bf16.gmra.mrb[0].mxu0 %v10666
        %v10885 = vpop.f32.mrb[0].mxu0
        %v10886 = vadd.f32 0.0, %v10885
        %v10887 = vpop.f32.mrb[0].mxu0
        %v10888 = vpop.f32.mrb[0].mxu0
        %v10889 = vadd.f32 0.0, %v10888
        %v10890 = vpop.f32.mrb[0].mxu0
        %10891 = vdwg.mxu0
        %v10892 = vadd.f32 %v10571, %v10766
        %v10893 = vadd.f32 %v10572, %v10769
        %v10894 = vadd.f32 %v10573, %v10774
        %v10895 = vadd.f32 %v10574, %v10777
        %v10896 = vadd.f32 %v10575, %v10782
        %v10897 = vadd.f32 %v10576, %v10785
        %v10898 = vadd.f32 %v10577, %v10790
        %v10899 = vadd.f32 %v10578, %v10793
        %v10900 = vadd.f32 %v10579, %v10798
        %v10901 = vadd.f32 %v10580, %v10801
        %v10902 = vadd.f32 %v10581, %v10806
        %v10903 = vadd.f32 %v10582, %v10809
        %v10904 = vadd.f32 %v10583, %v10814
        %v10905 = vadd.f32 %v10584, %v10817
        %v10906 = vadd.f32 %v10585, %v10822
        %v10907 = vadd.f32 %v10586, %v10825
        %v10908 = vadd.f32 %v10587, %v10830
        %v10909 = vadd.f32 %v10588, %v10833
        %v10910 = vadd.f32 %v10589, %v10838
        %v10911 = vadd.f32 %v10590, %v10841
        %v10912 = vadd.f32 %v10591, %v10846
        %v10913 = vadd.f32 %v10592, %v10849
        %v10914 = vadd.f32 %v10593, %v10854
        %v10915 = vadd.f32 %v10594, %v10857
        %v10916 = vadd.f32 %v10595, %v10862
        %v10917 = vadd.f32 %v10596, %v10865
        %v10918 = vadd.f32 %v10597, %v10870
        %v10919 = vadd.f32 %v10598, %v10873
        %v10920 = vadd.f32 %v10599, %v10878
        %v10921 = vadd.f32 %v10600, %v10881
        %v10922 = vadd.f32 %v10601, %v10886
        %v10923 = vadd.f32 %v10602, %v10889
        %v10925 = vlaneseq
        %v10926 = vshrl.u32 %v10925, 7
        %v10927 = vsub.s32 0, %v10926
        %v10928 = vrot.slane %v5694, %v10927
        %v10930 = vadd.f32 %v10892, %v10928
        %v10931 = vadd.f32 %v10893, %v10928
        %v10932 = vadd.f32 %v10894, %v10928
        %v10933 = vadd.f32 %v10895, %v10928
        %v10934 = vadd.f32 %v10896, %v10928
        %v10935 = vadd.f32 %v10897, %v10928
        %v10936 = vadd.f32 %v10898, %v10928
        %v10937 = vadd.f32 %v10899, %v10928
        %v10938 = vadd.f32 %v10900, %v10928
        %v10939 = vadd.f32 %v10901, %v10928
        %v10940 = vadd.f32 %v10902, %v10928
        %v10941 = vadd.f32 %v10903, %v10928
        %v10942 = vadd.f32 %v10904, %v10928
        %v10943 = vadd.f32 %v10905, %v10928
        %v10944 = vadd.f32 %v10906, %v10928
        %v10945 = vadd.f32 %v10907, %v10928
        %v10946 = vadd.f32 %v10908, %v10928
        %v10947 = vadd.f32 %v10909, %v10928
        %v10948 = vadd.f32 %v10910, %v10928
        %v10949 = vadd.f32 %v10911, %v10928
        %v10950 = vadd.f32 %v10912, %v10928
        %v10951 = vadd.f32 %v10913, %v10928
        %v10952 = vadd.f32 %v10914, %v10928
        %v10953 = vadd.f32 %v10915, %v10928
        %v10954 = vadd.f32 %v10916, %v10928
        %v10955 = vadd.f32 %v10917, %v10928
        %v10956 = vadd.f32 %v10918, %v10928
        %v10957 = vadd.f32 %v10919, %v10928
        %v10958 = vadd.f32 %v10920, %v10928
        %v10959 = vadd.f32 %v10921, %v10928
        %v10960 = vadd.f32 %v10922, %v10928
        %v10961 = vadd.f32 %v10923, %v10928
        %v10962 = vld [vmem:[%s14] sm:$0xf]
        %v10963 = vld [vmem:[%s14 + $0x4] sm:$0xf]
        %v10964 = vld [vmem:[%s14 + $0x8] sm:$0xf]
        %v10965 = vld [vmem:[%s14 + $0xc] sm:$0xf]
        %v10966 = vld [vmem:[%s15] sm:$0x1]
        %v10968 = vlaneseq
        %v10969 = vshrl.u32 %v10968, 7
        %v10970 = vsub.s32 0, %v10969
        %v10971 = vrot.slane %v10966, %v10970
        %v11005 = vunpack.c.l.b16 %v599
        %v11006 = vunpack.c.l.b16 %v600
        %v11007 = vunpack.c.l.b16 %v601
        %v11008 = vunpack.c.l.b16 %v602
        %v11009 = vunpack.c.l.b16 %v603
        %v11010 = vunpack.c.l.b16 %v604
        %v11011 = vunpack.c.l.b16 %v605
        %v11012 = vunpack.c.l.b16 %v606
        %v11013 = vunpack.c.l.b16 %v607
        %v11014 = vunpack.c.l.b16 %v608
        %v11015 = vunpack.c.l.b16 %v609
        %v11016 = vunpack.c.l.b16 %v610
        %v11017 = vunpack.c.l.b16 %v611
        %v11018 = vunpack.c.l.b16 %v612
        %v11019 = vunpack.c.l.b16 %v613
        %v11020 = vunpack.c.l.b16 %v614
        %v11021 = vunpack.c.l.b16 %v615
        %v11022 = vunpack.c.l.b16 %v616
        %v11023 = vunpack.c.l.b16 %v617
        %v11024 = vunpack.c.l.b16 %v618
        %v11025 = vunpack.c.l.b16 %v619
        %v11026 = vunpack.c.l.b16 %v620
        %v11027 = vunpack.c.l.b16 %v621
        %v11028 = vunpack.c.l.b16 %v622
        %v11029 = vunpack.c.l.b16 %v623
        %v11030 = vunpack.c.l.b16 %v624
        %v11031 = vunpack.c.l.b16 %v625
        %v11032 = vunpack.c.l.b16 %v626
        %v11033 = vunpack.c.l.b16 %v627
        %v11034 = vunpack.c.l.b16 %v628
        %v11035 = vunpack.c.l.b16 %v629
        %v11036 = vunpack.c.l.b16 %v630
        %v11037 = vpack.c.b16 %v11006, %v11005
        %v11038 = vpack.c.b16 %v11008, %v11007
        %v11039 = vpack.c.b16 %v11010, %v11009
        %v11040 = vpack.c.b16 %v11012, %v11011
        %v11041 = vpack.c.b16 %v11014, %v11013
        %v11042 = vpack.c.b16 %v11016, %v11015
        %v11043 = vpack.c.b16 %v11018, %v11017
        %v11044 = vpack.c.b16 %v11020, %v11019
        %v11045 = vpack.c.b16 %v11022, %v11021
        %v11046 = vpack.c.b16 %v11024, %v11023
        %v11047 = vpack.c.b16 %v11026, %v11025
        %v11048 = vpack.c.b16 %v11028, %v11027
        %v11049 = vpack.c.b16 %v11030, %v11029
        %v11050 = vpack.c.b16 %v11032, %v11031
        %v11051 = vpack.c.b16 %v11034, %v11033
        %v11052 = vpack.c.b16 %v11036, %v11035
        %v11057 = vunpack.c.l.b16 %v10962
        %v11058 = vunpack.c.l.b16 %v10963
        %v11059 = vunpack.c.l.b16 %v10964
        %v11060 = vunpack.c.l.b16 %v10965
        %v11061 = vpack.c.b16 %v11058, %v11057
        %v11062 = vpack.c.b16 %v11060, %v11059
        %v11066 = vsel %vm669, %v11037, 0
        %v11069 = vsel %vm669, %v11038, 0
        %v11072 = vsel %vm669, %v11039, 0
        %v11075 = vsel %vm669, %v11040, 0
        %v11078 = vsel %vm669, %v11041, 0
        %v11081 = vsel %vm669, %v11042, 0
        %v11084 = vsel %vm669, %v11043, 0
        %v11087 = vsel %vm669, %v11044, 0
        %v11090 = vsel %vm669, %v11045, 0
        %v11093 = vsel %vm669, %v11046, 0
        %v11096 = vsel %vm669, %v11047, 0
        %v11099 = vsel %vm669, %v11048, 0
        %v11102 = vsel %vm669, %v11049, 0
        %v11105 = vsel %vm669, %v11050, 0
        %v11108 = vsel %vm669, %v11051, 0
        %v11111 = vsel %vm669, %v11052, 0
        %11113 = vmatprep.subr.bf16.mxu0 0
        %11114 = vmatpush1.bf16.msra.mxu0 %v11061
        %11115 = vmatprep.subr.bf16.mxu0 0
        %11116 = vmatpush1.bf16.msra.mxu0 %v11062
        %11117 = vmatprep.subr.bf16.mxu0 0
        %11118 = vmatpush1.bf16.msra.mxu0 0
        %11119 = vmatprep.subr.bf16.mxu0 0
        %11120 = vmatpush1.bf16.msra.mxu0 0
        %11121 = vmatprep.subr.bf16.mxu0 0
        %11122 = vmatpush1.bf16.msra.mxu0 0
        %11123 = vmatprep.subr.bf16.mxu0 0
        %11124 = vmatpush1.bf16.msra.mxu0 0
        %11125 = vmatprep.subr.bf16.mxu0 0
        %11126 = vmatpush1.bf16.msra.mxu0 0
        %11127 = vmatprep.subr.bf16.mxu0 0
        %11128 = vmatpush1.bf16.msra.mxu0 0
        %11129 = vmatprep.subr.bf16.mxu0 0
        %11130 = vmatpush1.bf16.msra.mxu0 0
        %11131 = vmatprep.subr.bf16.mxu0 0
        %11132 = vmatpush1.bf16.msra.mxu0 0
        %11133 = vmatprep.subr.bf16.mxu0 0
        %11134 = vmatpush1.bf16.msra.mxu0 0
        %11135 = vmatprep.subr.bf16.mxu0 0
        %11136 = vmatpush1.bf16.msra.mxu0 0
        %11137 = vmatprep.subr.bf16.mxu0 0
        %11138 = vmatpush1.bf16.msra.mxu0 0
        %11139 = vmatprep.subr.bf16.mxu0 0
        %11140 = vmatpush1.bf16.msra.mxu0 0
        %11141 = vmatprep.subr.bf16.mxu0 0
        %11142 = vmatpush1.bf16.msra.mxu0 0
        %11143 = vmatprep.subr.bf16.mxu0 0
        %11144 = vmatpush1.bf16.msra.mxu0 0
        %11145 = vmatprep.mubr.bf16.mxu0 0
        %11146 = vmatmul.mubr.bf16.gmra.mrb[0].mxu0 %v11066
        %v11147 = vpop.f32.mrb[0].mxu0
        %v11148 = vadd.f32 %v10971, %v11147
        %v11149 = vpop.f32.mrb[0].mxu0
        %v11150 = vpop.f32.mrb[0].mxu0
        %v11151 = vadd.f32 %v10971, %v11150
        %v11152 = vpop.f32.mrb[0].mxu0
        %11153 = vmatprep.mubr.bf16.mxu0 0
        %11154 = vmatmul.mubr.bf16.gmra.mrb[0].mxu0 %v11069
        %v11155 = vpop.f32.mrb[0].mxu0
        %v11156 = vadd.f32 %v10971, %v11155
        %v11157 = vpop.f32.mrb[0].mxu0
        %v11158 = vpop.f32.mrb[0].mxu0
        %v11159 = vadd.f32 %v10971, %v11158
        %v11160 = vpop.f32.mrb[0].mxu0
        %11161 = vmatprep.mubr.bf16.mxu0 0
        %11162 = vmatmul.mubr.bf16.gmra.mrb[0].mxu0 %v11072
        %v11163 = vpop.f32.mrb[0].mxu0
        %v11164 = vadd.f32 %v10971, %v11163
        %v11165 = vpop.f32.mrb[0].mxu0
        %v11166 = vpop.f32.mrb[0].mxu0
        %v11167 = vadd.f32 %v10971, %v11166
        %v11168 = vpop.f32.mrb[0].mxu0
        %11169 = vmatprep.mubr.bf16.mxu0 0
        %11170 = vmatmul.mubr.bf16.gmra.mrb[0].mxu0 %v11075
        %v11171 = vpop.f32.mrb[0].mxu0
        %v11172 = vadd.f32 %v10971, %v11171
        %v11173 = vpop.f32.mrb[0].mxu0
        %v11174 = vpop.f32.mrb[0].mxu0
        %v11175 = vadd.f32 %v10971, %v11174
        %v11176 = vpop.f32.mrb[0].mxu0
        %11177 = vmatprep.mubr.bf16.mxu0 0
        %11178 = vmatmul.mubr.bf16.gmra.mrb[0].mxu0 %v11078
        %v11179 = vpop.f32.mrb[0].mxu0
        %v11180 = vadd.f32 %v10971, %v11179
        %v11181 = vpop.f32.mrb[0].mxu0
        %v11182 = vpop.f32.mrb[0].mxu0
        %v11183 = vadd.f32 %v10971, %v11182
        %v11184 = vpop.f32.mrb[0].mxu0
        %11185 = vmatprep.mubr.bf16.mxu0 0
        %11186 = vmatmul.mubr.bf16.gmra.mrb[0].mxu0 %v11081
        %v11187 = vpop.f32.mrb[0].mxu0
        %v11188 = vadd.f32 %v10971, %v11187
        %v11189 = vpop.f32.mrb[0].mxu0
        %v11190 = vpop.f32.mrb[0].mxu0
        %v11191 = vadd.f32 %v10971, %v11190
        %v11192 = vpop.f32.mrb[0].mxu0
        %11193 = vmatprep.mubr.bf16.mxu0 0
        %11194 = vmatmul.mubr.bf16.gmra.mrb[0].mxu0 %v11084
        %v11195 = vpop.f32.mrb[0].mxu0
        %v11196 = vadd.f32 %v10971, %v11195
        %v11197 = vpop.f32.mrb[0].mxu0
        %v11198 = vpop.f32.mrb[0].mxu0
        %v11199 = vadd.f32 %v10971, %v11198
        %v11200 = vpop.f32.mrb[0].mxu0
        %11201 = vmatprep.mubr.bf16.mxu0 0
        %11202 = vmatmul.mubr.bf16.gmra.mrb[0].mxu0 %v11087
        %v11203 = vpop.f32.mrb[0].mxu0
        %v11204 = vadd.f32 %v10971, %v11203
        %v11205 = vpop.f32.mrb[0].mxu0
        %v11206 = vpop.f32.mrb[0].mxu0
        %v11207 = vadd.f32 %v10971, %v11206
        %v11208 = vpop.f32.mrb[0].mxu0
        %11209 = vmatprep.mubr.bf16.mxu0 0
        %11210 = vmatmul.mubr.bf16.gmra.mrb[0].mxu0 %v11090
        %v11211 = vpop.f32.mrb[0].mxu0
        %v11212 = vadd.f32 %v10971, %v11211
        %v11213 = vpop.f32.mrb[0].mxu0
        %v11214 = vpop.f32.mrb[0].mxu0
        %v11215 = vadd.f32 %v10971, %v11214
        %v11216 = vpop.f32.mrb[0].mxu0
        %11217 = vmatprep.mubr.bf16.mxu0 0
        %11218 = vmatmul.mubr.bf16.gmra.mrb[0].mxu0 %v11093
        %v11219 = vpop.f32.mrb[0].mxu0
        %v11220 = vadd.f32 %v10971, %v11219
        %v11221 = vpop.f32.mrb[0].mxu0
        %v11222 = vpop.f32.mrb[0].mxu0
        %v11223 = vadd.f32 %v10971, %v11222
        %v11224 = vpop.f32.mrb[0].mxu0
        %11225 = vmatprep.mubr.bf16.mxu0 0
        %11226 = vmatmul.mubr.bf16.gmra.mrb[0].mxu0 %v11096
        %v11227 = vpop.f32.mrb[0].mxu0
        %v11228 = vadd.f32 %v10971, %v11227
        %v11229 = vpop.f32.mrb[0].mxu0
        %v11230 = vpop.f32.mrb[0].mxu0
        %v11231 = vadd.f32 %v10971, %v11230
        %v11232 = vpop.f32.mrb[0].mxu0
        %11233 = vmatprep.mubr.bf16.mxu0 0
        %11234 = vmatmul.mubr.bf16.gmra.mrb[0].mxu0 %v11099
        %v11235 = vpop.f32.mrb[0].mxu0
        %v11236 = vadd.f32 %v10971, %v11235
        %v11237 = vpop.f32.mrb[0].mxu0
        %v11238 = vpop.f32.mrb[0].mxu0
        %v11239 = vadd.f32 %v10971, %v11238
        %v11240 = vpop.f32.mrb[0].mxu0
        %11241 = vmatprep.mubr.bf16.mxu0 0
        %11242 = vmatmul.mubr.bf16.gmra.mrb[0].mxu0 %v11102
        %v11243 = vpop.f32.mrb[0].mxu0
        %v11244 = vadd.f32 %v10971, %v11243
        %v11245 = vpop.f32.mrb[0].mxu0
        %v11246 = vpop.f32.mrb[0].mxu0
        %v11247 = vadd.f32 %v10971, %v11246
        %v11248 = vpop.f32.mrb[0].mxu0
        %11249 = vmatprep.mubr.bf16.mxu0 0
        %11250 = vmatmul.mubr.bf16.gmra.mrb[0].mxu0 %v11105
        %v11251 = vpop.f32.mrb[0].mxu0
        %v11252 = vadd.f32 %v10971, %v11251
        %v11253 = vpop.f32.mrb[0].mxu0
        %v11254 = vpop.f32.mrb[0].mxu0
        %v11255 = vadd.f32 %v10971, %v11254
        %v11256 = vpop.f32.mrb[0].mxu0
        %11257 = vmatprep.mubr.bf16.mxu0 0
        %11258 = vmatmul.mubr.bf16.gmra.mrb[0].mxu0 %v11108
        %v11259 = vpop.f32.mrb[0].mxu0
        %v11260 = vadd.f32 %v10971, %v11259
        %v11261 = vpop.f32.mrb[0].mxu0
        %v11262 = vpop.f32.mrb[0].mxu0
        %v11263 = vadd.f32 %v10971, %v11262
        %v11264 = vpop.f32.mrb[0].mxu0
        %11265 = vmatprep.mubr.bf16.mxu0 0
        %11266 = vmatmul.mubr.bf16.gmra.mrb[0].mxu0 %v11111
        %v11267 = vpop.f32.mrb[0].mxu0
        %v11268 = vadd.f32 %v10971, %v11267
        %v11269 = vpop.f32.mrb[0].mxu0
        %v11270 = vpop.f32.mrb[0].mxu0
        %v11271 = vadd.f32 %v10971, %v11270
        %v11272 = vpop.f32.mrb[0].mxu0
        %11273 = vdwg.mxu0
        %v11274 = vadd.f32 %v11148, %v10930
        %v11275 = vadd.f32 %v11151, %v10931
        %v11276 = vadd.f32 %v11156, %v10932
        %v11277 = vadd.f32 %v11159, %v10933
        %v11278 = vadd.f32 %v11164, %v10934
        %v11279 = vadd.f32 %v11167, %v10935
        %v11280 = vadd.f32 %v11172, %v10936
        %v11281 = vadd.f32 %v11175, %v10937
        %v11282 = vadd.f32 %v11180, %v10938
        %v11283 = vadd.f32 %v11183, %v10939
        %v11284 = vadd.f32 %v11188, %v10940
        %v11285 = vadd.f32 %v11191, %v10941
        %v11286 = vadd.f32 %v11196, %v10942
        %v11287 = vadd.f32 %v11199, %v10943
        %v11288 = vadd.f32 %v11204, %v10944
        %v11289 = vadd.f32 %v11207, %v10945
        %v11290 = vadd.f32 %v11212, %v10946
        %v11291 = vadd.f32 %v11215, %v10947
        %v11292 = vadd.f32 %v11220, %v10948
        %v11293 = vadd.f32 %v11223, %v10949
        %v11294 = vadd.f32 %v11228, %v10950
        %v11295 = vadd.f32 %v11231, %v10951
        %v11296 = vadd.f32 %v11236, %v10952
        %v11297 = vadd.f32 %v11239, %v10953
        %v11298 = vadd.f32 %v11244, %v10954
        %v11299 = vadd.f32 %v11247, %v10955
        %v11300 = vadd.f32 %v11252, %v10956
        %v11301 = vadd.f32 %v11255, %v10957
        %v11302 = vadd.f32 %v11260, %v10958
        %v11303 = vadd.f32 %v11263, %v10959
        %v11304 = vadd.f32 %v11268, %v10960
        %v11305 = vadd.f32 %v11271, %v10961
        %11306 = vst [vmem:[%s540] sm:$0xff] %v11274
        %11307 = vst [vmem:[%s540 + $0x8] sm:$0xff] %v11275
        %11308 = vst [vmem:[%s540 + $0x10] sm:$0xff] %v11276
        %11309 = vst [vmem:[%s540 + $0x18] sm:$0xff] %v11277
        %11310 = vst [vmem:[%s540 + $0x20] sm:$0xff] %v11278
        %11311 = vst [vmem:[%s540 + $0x28] sm:$0xff] %v11279
        %11312 = vst [vmem:[%s540 + $0x30] sm:$0xff] %v11280
        %11313 = vst [vmem:[%s540 + $0x38] sm:$0xff] %v11281
        %11314 = vst [vmem:[%s540 + $0x40] sm:$0xff] %v11282
        %11315 = vst [vmem:[%s540 + $0x48] sm:$0xff] %v11283
        %11316 = vst [vmem:[%s540 + $0x50] sm:$0xff] %v11284
        %11317 = vst [vmem:[%s540 + $0x58] sm:$0xff] %v11285
        %11318 = vst [vmem:[%s540 + $0x60] sm:$0xff] %v11286
        %11319 = vst [vmem:[%s540 + $0x68] sm:$0xff] %v11287
        %11320 = vst [vmem:[%s540 + $0x70] sm:$0xff] %v11288
        %11321 = vst [vmem:[%s540 + $0x78] sm:$0xff] %v11289
        %11322 = vst [vmem:[%s540 + $0x80] sm:$0xff] %v11290
        %11323 = vst [vmem:[%s540 + $0x88] sm:$0xff] %v11291
        %11324 = vst [vmem:[%s540 + $0x90] sm:$0xff] %v11292
        %11325 = vst [vmem:[%s540 + $0x98] sm:$0xff] %v11293
        %11326 = vst [vmem:[%s540 + $0xa0] sm:$0xff] %v11294
        %11327 = vst [vmem:[%s540 + $0xa8] sm:$0xff] %v11295
        %11328 = vst [vmem:[%s540 + $0xb0] sm:$0xff] %v11296
        %11329 = vst [vmem:[%s540 + $0xb8] sm:$0xff] %v11297
        %11330 = vst [vmem:[%s540 + $0xc0] sm:$0xff] %v11298
        %11331 = vst [vmem:[%s540 + $0xc8] sm:$0xff] %v11299
        %11332 = vst [vmem:[%s540 + $0xd0] sm:$0xff] %v11300
        %11333 = vst [vmem:[%s540 + $0xd8] sm:$0xff] %v11301
        %11334 = vst [vmem:[%s540 + $0xe0] sm:$0xff] %v11302
        %11335 = vst [vmem:[%s540 + $0xe8] sm:$0xff] %v11303
        %11336 = vst [vmem:[%s540 + $0xf0] sm:$0xff] %v11304
        %11337 = vst [vmem:[%s540 + $0xf8] sm:$0xff] %v11305
        %s11338 = sand.u32 %s385, 1
        %s11339 = scalar_lea.sflag [#allocation5], %s11338
        %s11340 = sand.u32 %s385, 1
        %s11341 = smul.addr %s11340, 256
        %s11342 = scalar_lea.vmem [#allocation6], %s11341
        // Predicated region
        $region89: #{resnet_block_2d.1} parent=83 // pred_check
          %p11343 = pneg %p395
        $region90: #{resnet_block_2d.1} parent=83 // pred_check_branch
          %11345 = sbr.rel (%p11343) target = $region92
        $region91: #{resnet_block_2d.1} parent=83 // pred_region
          %s11347 = ssub.s32 4096, 4096
          %11348 = vsyncadd %s11339, %s11347
          %s11349 = smul.addr %s31, 32
          %s11350 = smul.addr %s11349, 128
          %s11351 = scalar_lea.hbm %s16, %s11350
          %s11352 = sshll.u32 %s11342, 4
          %s11353 = int_to_ptr.vmem [resolvable:$true] %s11352
          %11358 = dma.vmem_to_hbm [thread:$0]  %s11353, 4096, %s11351, %s11339, 128, 128, 8
        $region92: #{resnet_block_2d.1} parent=83 // pred_fallthru
          _
      $region84: #{resnet_block_2d.1} parent=5 // pred_fallthru
        _
      %p11359 = scmp.le.s32.totalorder 2, %s26
      // Predicated region
      $region93: #{resnet_block_2d.1} parent=5 // pred_check
        %p11360 = pneg %p11359
      $region94: #{resnet_block_2d.1} parent=5 // pred_check_branch
        %11362 = sbr.rel (%p11360) target = $region96
      $region95: #{resnet_block_2d.1} parent=5 // pred_region
        %s11363 = ssub.s32 %s26, 2
        // Predicated region
        $region97: #{resnet_block_2d.1} parent=95 // pred_check
          %p11364 = pneg %p401
        $region98: #{resnet_block_2d.1} parent=95 // pred_check_branch
          %11366 = sbr.rel (%p11364) target = $region100
        $region99: #{resnet_block_2d.1} parent=95 // pred_region
          %s11367 = sand.u32 %s386, 1
          %s11368 = scalar_lea.sflag [#allocation5], %s11367
          %s11369 = sand.u32 %s386, 1
          %s11370 = smul.addr %s11369, 256
          %s11371 = scalar_lea.vmem [#allocation6], %s11370
          %11372 = dma.done %s11368, 4096
        $region100: #{resnet_block_2d.1} parent=95 // pred_fallthru
          _
      $region96: #{resnet_block_2d.1} parent=5 // pred_fallthru
        _
    $region6: #{resnet_block_2d.1} parent=1 // loop_footer
      %s30 = sadd.s32 1, %s26
    $region7: #{resnet_block_2d.1} parent=1 // loop_footer_branch
      %25 = sbr.rel target = $region3
    $region8: #{resnet_block_2d.1} parent=1 // loop_exit
      _
    %11373 = vsyncpa [#allocation4], 1
    %s11374 = scalar_lea.sflag [#allocation4], 1
    %11375 = vsyncpa %s11374, 1
    %11376 = vsyncpa [#allocation5], 1
    %s11377 = scalar_lea.sflag [#allocation5], 1
    %11378 = vsyncpa %s11377, 1

</llo_original>
